<compile_context>
chip_gen: v7x
topology: tpu7x:2x2x1
jax: 0.10.0
libtpu: 0.0.40
codegen_flags: <defaults>
</compile_context>

<pallas_src>
import functools
import numpy as np

import jax
import jax.numpy as jnp
from jax.experimental import pallas as pl
from jax.experimental.pallas import tpu as pltpu


# ----------------------------------------------------------------------------
# in-kernel helpers
# ----------------------------------------------------------------------------
def _ln(x, g, b, eps=1e-5):
    """LayerNorm over last dim, f32 statistics. g/b are [1, D]."""
    mu = jnp.mean(x, axis=-1, keepdims=True)
    var = jnp.mean((x - mu) ** 2, axis=-1, keepdims=True)
    return (x - mu) * jax.lax.rsqrt(var + eps) * g + b


def _mm(a, w_bf16):
    """a @ w ; activation cast to bf16 once, weight already bf16, f32 accum."""
    return jax.lax.dot_general(
        a.astype(jnp.bfloat16), w_bf16,
        (((1,), (0,)), ((), ())),
        preferred_element_type=jnp.float32)


def _bmm(a, b, ca, cb):
    """Leading-dim batched matmul (bf16 operands), f32 accumulation."""
    return jax.lax.dot_general(
        a, b, (((ca,), (cb,)), ((0,), (0,))),
        preferred_element_type=jnp.float32)


# ----------------------------------------------------------------------------
# transformer tower: ONE pallas_call, grid = (batch, layer)
# ----------------------------------------------------------------------------
def _tower_block_kernel(x_ref,
                        ln1_g_ref, ln1_b_ref, wqkv_ref, bqkv_ref,
                        wo_ref, bo_ref,
                        ln2_g_ref, ln2_b_ref, wfc_ref, bfc_ref,
                        wpj_ref, bpj_ref,
                        o_ref, acc_ref, *, causal):
    l = pl.program_id(1)
    n_layers = pl.num_programs(1)

    # Layer 0: pull this batch row's (bf16) activations into the f32 residual
    # stream accumulator that stays resident in VMEM across the layer axis.
    @pl.when(l == 0)
    def _():
        acc_ref[...] = x_ref[0].astype(jnp.float32)

    x = acc_ref[...]                                   # [S, W] f32
    S, W = x.shape
    H3 = wqkv_ref.shape[1]                             # 3 * n_heads
    H = H3 // 3

    # ---- multi-head self-attention (pre-norm), head-batched matmuls ----
    h = _ln(x, ln1_g_ref[0], ln1_b_ref[0]).astype(jnp.bfloat16)
    hb = jnp.broadcast_to(h[None], (H3, S, W))         # batched lhs (q/k/v heads)
    qkv = _bmm(hb, wqkv_ref[0], 2, 1) + bqkv_ref[0]    # [3H, S, Dh] f32, Q pre-scaled
    qkv = qkv.astype(jnp.bfloat16)                     # one wide cast
    q, k, v = qkv[:H], qkv[H:2 * H], qkv[2 * H:]

    s = _bmm(q, k, 2, 2)                               # [H, S, S] f32
    if causal:
        rows = jax.lax.broadcasted_iota(jnp.int32, (S, S), 0)
        cols = jax.lax.broadcasted_iota(jnp.int32, (S, S), 1)
        s = s + jnp.where(cols > rows, jnp.float32(-1e9), jnp.float32(0.0))
    s = s - jnp.max(s, axis=-1, keepdims=True)
    p = jnp.exp(s)
    p = p * pl.reciprocal(jnp.sum(p, axis=-1, keepdims=True), approx=True)

    pv = _bmm(p.astype(jnp.bfloat16), v, 2, 1)                 # [H, S, Dh] f32
    attn = _bmm(pv.astype(jnp.bfloat16), wo_ref[0], 2, 1)      # [H, S, W]  f32
    x = x + jnp.sum(attn, axis=0) + bo_ref[0]                  # head-sum + residual

    # ---- MLP (pre-norm, QuickGELU) ----
    m = _ln(x, ln2_g_ref[0], ln2_b_ref[0])
    m = _mm(m, wfc_ref[0]) + bfc_ref[0]
    m = m * jax.nn.sigmoid(1.702 * m)
    x = x + _mm(m, wpj_ref[0]) + bpj_ref[0]

    acc_ref[...] = x

    # only the last layer's activations leave VMEM (bf16 HBM stream)
    @pl.when(l == n_layers - 1)
    def _():
        o_ref[0] = x.astype(o_ref.dtype)


def transformer_tower(x, tw, *, causal):
    """x: [B, S, W] bf16 -> [B, S, W] bf16; all layers in one pallas_call."""
    B, S, W = x.shape
    L, H3, _, Dh = tw["wqkv"].shape
    F = tw["wfc"].shape[2]

    def xmap(b, l):
        return (b, 0, 0)

    def wspec(*shape):
        n = len(shape)
        return pl.BlockSpec((1,) + shape, lambda b, l, n=n: (l,) + (0,) * n)

    kernel = functools.partial(_tower_block_kernel, causal=causal)
    return pl.pallas_call(
        kernel,
        out_shape=jax.ShapeDtypeStruct((B, S, W), jnp.bfloat16),
        grid=(B, L),
        in_specs=[
            pl.BlockSpec((1, S, W), xmap),
            wspec(1, W), wspec(1, W),
            wspec(H3, W, Dh), wspec(H3, 1, Dh),
            wspec(H3 // 3, Dh, W), wspec(1, W),
            wspec(1, W), wspec(1, W),
            wspec(W, F), wspec(1, F),
            wspec(F, W), wspec(1, W),
        ],
        out_specs=pl.BlockSpec((1, S, W), xmap),
        scratch_shapes=[pltpu.VMEM((S, W), jnp.float32)],
        compiler_params=pltpu.CompilerParams(
            dimension_semantics=("parallel", "arbitrary"),
            vmem_limit_bytes=48 * 1024 * 1024),
    )(x, tw["ln1_g"], tw["ln1_b"], tw["wqkv"], tw["bqkv"], tw["wo"], tw["bo"],
      tw["ln2_g"], tw["ln2_b"], tw["wfc"], tw["bfc"], tw["wpj"], tw["bpj"])


# ----------------------------------------------------------------------------
# fused vision stem: patch-embed matmul + cls/pos + ln_pre (single dense store)
# ----------------------------------------------------------------------------
def _vision_stem_kernel(p_ref, w_ref, cls_ref, pos_ref, g_ref, b_ref, o_ref):
    tok = _mm(p_ref[0], w_ref[...])                            # [P, W] f32 (no conv bias)
    full = jnp.concatenate([cls_ref[...], tok], axis=0) + pos_ref[...]
    o_ref[0] = _ln(full, g_ref[...], b_ref[...]).astype(o_ref.dtype)


def vision_stem(patches, vp):
    B, P, Cpp = patches.shape
    W = vp["conv_w"].shape[1]
    S = P + 1
    return pl.pallas_call(
        _vision_stem_kernel,
        out_shape=jax.ShapeDtypeStruct((B, S, W), jnp.bfloat16),
        grid=(B,),
        in_specs=[
            pl.BlockSpec((1, P, Cpp), lambda b: (b, 0, 0)),
            pl.BlockSpec((Cpp, W), lambda b: (0, 0)),
            pl.BlockSpec((1, W), lambda b: (0, 0)),
            pl.BlockSpec((S, W), lambda b: (0, 0)),
            pl.BlockSpec((1, W), lambda b: (0, 0)),
            pl.BlockSpec((1, W), lambda b: (0, 0)),
        ],
        out_specs=pl.BlockSpec((1, S, W), lambda b: (b, 0, 0)),
        compiler_params=pltpu.CompilerParams(
            dimension_semantics=("parallel",),
            vmem_limit_bytes=48 * 1024 * 1024),
    )(patches, vp["conv_w"], vp["class_emb"], vp["pos_emb"],
      vp["ln_pre_g"], vp["ln_pre_b"])


# ----------------------------------------------------------------------------
# fused CLIP head: ln_post + ln_final + projections + L2-norm + scaled logits
# ----------------------------------------------------------------------------
def _clip_head_kernel(img_ref, txt_ref, ig_ref, ib_ref, iw_ref,
                      tg_ref, tb_ref, tw_ref, s_ref, o_ref):
    img = _mm(_ln(img_ref[...].astype(jnp.float32), ig_ref[...], ib_ref[...]), iw_ref[...])
    txt = _mm(_ln(txt_ref[...].astype(jnp.float32), tg_ref[...], tb_ref[...]), tw_ref[...])
    img = img * jax.lax.rsqrt(jnp.sum(img * img, axis=-1, keepdims=True) + 1e-12)
    txt = txt * jax.lax.rsqrt(jnp.sum(txt * txt, axis=-1, keepdims=True) + 1e-12)
    sim = jax.lax.dot_general(img, txt, (((1,), (1,)), ((), ())),
                              preferred_element_type=jnp.float32)
    o_ref[...] = jnp.exp(s_ref[...]) * sim


def clip_head(img_feats, txt_feats, head):
    B, Bt = img_feats.shape[0], txt_feats.shape[0]
    return pl.pallas_call(
        _clip_head_kernel,
        out_shape=jax.ShapeDtypeStruct((B, Bt), jnp.float32),
        compiler_params=pltpu.CompilerParams(vmem_limit_bytes=48 * 1024 * 1024),
    )(img_feats, txt_feats,
      head["img_g"], head["img_b"], head["img_w"],
      head["txt_g"], head["txt_b"], head["txt_w"], head["logit_scale"])


# ----------------------------------------------------------------------------
# towers + forward (glue in plain JAX, compute in the fused kernels above)
# ----------------------------------------------------------------------------
def encode_image_feats(prep, cfg, images):
    """images: NCHW [B, C, H, W] -> pooled CLS features [B, v_width] (bf16)."""
    B, C, Hs, Ws = images.shape
    ps = cfg["patch"]
    gh, gw = Hs // ps, Ws // ps
    # TODO(synk): the NCHW -> [B, P, C*ps*ps] patch relayout stays in XLA; at real
    # image sizes this should become an in-kernel gather instead of an HBM pass.
    patches = images.reshape(B, C, gh, ps, gw, ps).transpose(0, 2, 4, 1, 3, 5)
    patches = patches.reshape(B, gh * gw, C * ps * ps).astype(jnp.bfloat16)
    x = vision_stem(patches, prep["visual"])
    x = transformer_tower(x, prep["visual"]["tower"], causal=False)
    return x[:, 0, :]


def encode_text_feats(prep, text):
    """text: int32 ids [Bt, ctx] -> pooled EOT features [Bt, t_width] (bf16)."""
    tp = prep["text"]
    # TODO(synk): token-embedding / EOT gathers are data-dependent and stay in XLA.
    x = (tp["tok_emb"][text] + tp["pos_emb"][None]).astype(jnp.bfloat16)
    x = transformer_tower(x, tp["tower"], causal=True)
    eot = text.argmax(axis=-1)                           # EOT = highest token id
    return x[jnp.arange(text.shape[0]), eot]


def clip_forward(prep, cfg, images, text):
    """Equivalent of CLIPEncoder.forward -> (logits_per_image, logits_per_text)."""
    img = encode_image_feats(prep, cfg, images)
    txt = encode_text_feats(prep, text)
    logits_per_image = clip_head(img, txt, prep["head"])
    return logits_per_image, logits_per_image.T


# ----------------------------------------------------------------------------
# parameter prep: one-time stacking / bf16 cast / Q-scale folding (outside jit)
# ----------------------------------------------------------------------------
def prepare_params(params, cfg):
    bf = jnp.bfloat16

    def prep_tower(blocks, n_heads):
        W = blocks[0]["ln1_g"].shape[0]
        H, Dh, F = n_heads, W // n_heads, 4 * W
        scale = jnp.float32(Dh ** -0.5)

        def qkv_w(b):
            w = b["attn_in_w"].reshape(W, 3, H, Dh).transpose(1, 2, 0, 3)
            w = w.at[0].multiply(scale)                  # fold attention scale into Q
            return w.reshape(3 * H, W, Dh)

        def qkv_b(b):
            v = b["attn_in_b"].reshape(3, H, Dh)
            v = v.at[0].multiply(scale)
            return v.reshape(3 * H, 1, Dh)

        def stk(fn, dtype):
            return jnp.stack([fn(b) for b in blocks], 0).astype(dtype)

        return dict(
            ln1_g=stk(lambda b: b["ln1_g"].reshape(1, W), jnp.float32),
            ln1_b=stk(lambda b: b["ln1_b"].reshape(1, W), jnp.float32),
            wqkv=stk(qkv_w, bf),
            bqkv=stk(qkv_b, jnp.float32),
            wo=stk(lambda b: b["attn_out_w"].reshape(H, Dh, W), bf),
            bo=stk(lambda b: b["attn_out_b"].reshape(1, W), jnp.float32),
            ln2_g=stk(lambda b: b["ln2_g"].reshape(1, W), jnp.float32),
            ln2_b=stk(lambda b: b["ln2_b"].reshape(1, W), jnp.float32),
            wfc=stk(lambda b: b["fc_w"], bf),
            bfc=stk(lambda b: b["fc_b"].reshape(1, F), jnp.float32),
            wpj=stk(lambda b: b["proj_w"], bf),
            bpj=stk(lambda b: b["proj_b"].reshape(1, W), jnp.float32),
        )

    vw, tw = cfg["v_width"], cfg["t_width"]
    vp, tp = params["visual"], params["text"]
    visual = dict(
        conv_w=vp["conv_w"].reshape(vw, -1).T.astype(bf),
        class_emb=vp["class_emb"].reshape(1, vw),
        pos_emb=vp["pos_emb"],
        ln_pre_g=vp["ln_pre_g"].reshape(1, vw),
        ln_pre_b=vp["ln_pre_b"].reshape(1, vw),
        tower=prep_tower(vp["blocks"], cfg["v_heads"]),
    )
    text = dict(
        tok_emb=tp["tok_emb"],
        pos_emb=tp["pos_emb"],
        tower=prep_tower(tp["blocks"], cfg["t_heads"]),
    )
    head = dict(
        img_g=vp["ln_post_g"].reshape(1, vw), img_b=vp["ln_post_b"].reshape(1, vw),
        img_w=vp["proj"].astype(bf),
        txt_g=tp["ln_final_g"].reshape(1, tw), txt_b=tp["ln_final_b"].reshape(1, tw),
        txt_w=tp["text_proj"].astype(bf),
        logit_scale=params["logit_scale"].reshape(1, 1),
    )
    return dict(visual=visual, text=text, head=head)


# ----------------------------------------------------------------------------
# deterministic parameter init (shapes follow a scaled-down CLIP ViT)
# ----------------------------------------------------------------------------
def init_params(key):
    cfg = dict(image_size=16, patch=8, in_ch=3,
               v_width=32, v_layers=2, v_heads=4,
               vocab=64, ctx=8, t_width=32, t_layers=2, t_heads=4,
               embed_dim=16)
    n_patches = (cfg["image_size"] // cfg["patch"]) ** 2
    keys = iter(jax.random.split(key, 256))

    def nrm(shape, std=0.02):
        return jax.random.normal(next(keys), shape, jnp.float32) * std

    def block(width):
        return dict(
            ln1_g=jnp.ones((width,), jnp.float32), ln1_b=jnp.zeros((width,), jnp.float32),
            attn_in_w=nrm((width, 3 * width)), attn_in_b=jnp.zeros((3 * width,), jnp.float32),
            attn_out_w=nrm((width, width)), attn_out_b=jnp.zeros((width,), jnp.float32),
            ln2_g=jnp.ones((width,), jnp.float32), ln2_b=jnp.zeros((width,), jnp.float32),
            fc_w=nrm((width, 4 * width)), fc_b=jnp.zeros((4 * width,), jnp.float32),
            proj_w=nrm((4 * width, width)), proj_b=jnp.zeros((width,), jnp.float32),
        )

    visual = dict(
        conv_w=nrm((cfg["v_width"], cfg["in_ch"], cfg["patch"], cfg["patch"])),
        class_emb=nrm((cfg["v_width"],)),
        pos_emb=nrm((n_patches + 1, cfg["v_width"])),
        ln_pre_g=jnp.ones((cfg["v_width"],), jnp.float32),
        ln_pre_b=jnp.zeros((cfg["v_width"],), jnp.float32),
        blocks=[block(cfg["v_width"]) for _ in range(cfg["v_layers"])],
        ln_post_g=jnp.ones((cfg["v_width"],), jnp.float32),
        ln_post_b=jnp.zeros((cfg["v_width"],), jnp.float32),
        proj=nrm((cfg["v_width"], cfg["embed_dim"])),
    )
    text = dict(
        tok_emb=nrm((cfg["vocab"], cfg["t_width"])),
        pos_emb=nrm((cfg["ctx"], cfg["t_width"])),
        blocks=[block(cfg["t_width"]) for _ in range(cfg["t_layers"])],
        ln_final_g=jnp.ones((cfg["t_width"],), jnp.float32),
        ln_final_b=jnp.zeros((cfg["t_width"],), jnp.float32),
        text_proj=nrm((cfg["t_width"], cfg["embed_dim"])),
    )
    return dict(visual=visual, text=text,
                logit_scale=jnp.asarray(np.log(1.0 / 0.07), jnp.float32)), cfg


# ----------------------------------------------------------------------------
# pure-JAX f32 reference (same math, unfused) for tolerance-asserted checking
# ----------------------------------------------------------------------------
def _reference_forward(params, cfg, images, text):
    def ln(x, g, b, eps=1e-5):
        mu = x.mean(-1, keepdims=True)
        var = ((x - mu) ** 2).mean(-1, keepdims=True)
        return (x - mu) / jnp.sqrt(var + eps) * g + b

    def block(x, blk, n_heads, causal):
        B, S, W = x.shape
        Dh = W // n_heads
        h = ln(x, blk["ln1_g"], blk["ln1_b"])
        qkv = h @ blk["attn_in_w"] + blk["attn_in_b"]
        q, k, v = jnp.split(qkv, 3, axis=-1)
        q = q.reshape(B, S, n_heads, Dh).transpose(0, 2, 1, 3)
        k = k.reshape(B, S, n_heads, Dh).transpose(0, 2, 1, 3)
        v = v.reshape(B, S, n_heads, Dh).transpose(0, 2, 1, 3)
        s = jnp.einsum("bhqd,bhkd->bhqk", q, k) * (Dh ** -0.5)
        if causal:
            s = s + jnp.triu(jnp.full((S, S), -1e9, jnp.float32), k=1)
        p = jax.nn.softmax(s, axis=-1)
        o = jnp.einsum("bhqk,bhkd->bhqd", p, v).transpose(0, 2, 1, 3).reshape(B, S, W)
        x = x + o @ blk["attn_out_w"] + blk["attn_out_b"]
        h = ln(x, blk["ln2_g"], blk["ln2_b"])
        h = h @ blk["fc_w"] + blk["fc_b"]
        h = h * jax.nn.sigmoid(1.702 * h)
        return x + h @ blk["proj_w"] + blk["proj_b"]

    vp, tp = params["visual"], params["text"]
    B, C, H, W = images.shape
    ps = cfg["patch"]
    gh, gw = H // ps, W // ps
    patches = images.reshape(B, C, gh, ps, gw, ps).transpose(0, 2, 4, 1, 3, 5)
    patches = patches.reshape(B, gh * gw, C * ps * ps)
    x = patches @ vp["conv_w"].reshape(cfg["v_width"], -1).T
    cls = jnp.broadcast_to(vp["class_emb"][None, None, :], (B, 1, cfg["v_width"]))
    x = jnp.concatenate([cls, x], axis=1) + vp["pos_emb"][None]
    x = ln(x, vp["ln_pre_g"], vp["ln_pre_b"])
    for blk in vp["blocks"]:
        x = block(x, blk, cfg["v_heads"], False)
    img = ln(x[:, 0], vp["ln_post_g"], vp["ln_post_b"]) @ vp["proj"]

    y = tp["tok_emb"][text] + tp["pos_emb"][None]
    for blk in tp["blocks"]:
        y = block(y, blk, cfg["t_heads"], True)
    eot = text.argmax(-1)
    txt = ln(y[jnp.arange(text.shape[0]), eot], tp["ln_final_g"], tp["ln_final_b"]) @ tp["text_proj"]

    img = img / jnp.linalg.norm(img, axis=-1, keepdims=True)
    txt = txt / jnp.linalg.norm(txt, axis=-1, keepdims=True)
    logits = jnp.exp(params["logit_scale"]) * img @ txt.T
    return logits, logits.T


if __name__ == "__main__":
    key = jax.random.PRNGKey(0)
    kp, ki, kt = jax.random.split(key, 3)
    params, cfg = init_params(kp)
    prep = prepare_params(params, cfg)

    # NCHW images, exactly like the PyTorch module's input convention.
    images = jax.random.normal(
        ki, (2, cfg["in_ch"], cfg["image_size"], cfg["image_size"]), jnp.float32)
    # Synthetic "tokenized" text: ids in [1, vocab-2], EOT (= highest id) at the end.
    text = jax.random.randint(kt, (2, cfg["ctx"]), 1, cfg["vocab"] - 1, dtype=jnp.int32)
    text = text.at[:, -1].set(cfg["vocab"] - 1)

    forward = jax.jit(lambda p, imgs, toks: clip_forward(p, cfg, imgs, toks))
    logits_per_image, logits_per_text = forward(prep, images, text)
    jax.block_until_ready((logits_per_image, logits_per_text))

    # tolerance-asserted pure-JAX f32 reference (covers bf16 MXU / approx-recip drift)
    ref_lpi, _ = _reference_forward(params, cfg, images, text)

    assert logits_per_image.shape == (2, 2) and logits_per_text.shape == (2, 2)
    assert bool(jnp.all(jnp.isfinite(logits_per_image)))
    assert bool(jnp.allclose(logits_per_text, logits_per_image.T))
    assert bool(jnp.allclose(logits_per_image, ref_lpi, atol=1.0, rtol=0.1)), (
        logits_per_image, ref_lpi)
    print("KERNEL_OK")
</pallas_src>

<mosaic_0001>
module attributes {stable_mosaic.version = 11 : i64} {
  func.func @_vision_stem_kernel(%arg0: i32, %arg1: memref<1x4x192xbf16, #tpu.memory_space<vmem>>, %arg2: memref<192x32xbf16, #tpu.memory_space<vmem>>, %arg3: memref<1x32xf32, #tpu.memory_space<vmem>>, %arg4: memref<5x32xf32, #tpu.memory_space<vmem>>, %arg5: memref<1x32xf32, #tpu.memory_space<vmem>>, %arg6: memref<1x32xf32, #tpu.memory_space<vmem>>, %arg7: memref<1x5x32xbf16, #tpu.memory_space<vmem>>) attributes {dimension_semantics = [#tpu.dimension_semantics<parallel>], iteration_bounds = array<i64: 2>, scalar_prefetch = 0 : i64, scratch_operands = 0 : i64, tpu.core_type = #tpu.core_type<tc>, window_params = [{transform_indices = @transform_0, window_bounds = array<i64: 1, 4, 192>}, {pipeline_mode = #tpu.pipeline_mode<synchronous>, transform_indices = @transform_1, window_bounds = array<i64: 192, 32>}, {pipeline_mode = #tpu.pipeline_mode<synchronous>, transform_indices = @transform_2, window_bounds = array<i64: 1, 32>}, {pipeline_mode = #tpu.pipeline_mode<synchronous>, transform_indices = @transform_3, window_bounds = array<i64: 5, 32>}, {pipeline_mode = #tpu.pipeline_mode<synchronous>, transform_indices = @transform_4, window_bounds = array<i64: 1, 32>}, {pipeline_mode = #tpu.pipeline_mode<synchronous>, transform_indices = @transform_5, window_bounds = array<i64: 1, 32>}, {transform_indices = @transform_6, window_bounds = array<i64: 1, 5, 32>}]} {
    %c0 = arith.constant 0 : index
    %c0_0 = arith.constant 0 : index
    %c0_1 = arith.constant 0 : index
    %0 = vector.load %arg1[%c0, %c0_0, %c0_1] : memref<1x4x192xbf16, #tpu.memory_space<vmem>>, vector<1x4x192xbf16>
    %1 = vector.shape_cast %0 : vector<1x4x192xbf16> to vector<4x192xbf16>
    %c0_2 = arith.constant 0 : index
    %c0_3 = arith.constant 0 : index
    %2 = vector.load %arg2[%c0_2, %c0_3] : memref<192x32xbf16, #tpu.memory_space<vmem>>, vector<192x32xbf16>
    %cst = arith.constant dense<0.000000e+00> : vector<4x32xf32>
    %3 = tpu.matmul %1, %2, %cst {dimension_numbers = #tpu.dot_dimension_numbers<[1], [0], [0], [1], [0, 0, 1, 1], [], []>} : vector<4x192xbf16>, vector<192x32xbf16>, vector<4x32xf32> -> vector<4x32xf32>
    %c0_4 = arith.constant 0 : index
    %c0_5 = arith.constant 0 : index
    %4 = vector.load %arg3[%c0_4, %c0_5] : memref<1x32xf32, #tpu.memory_space<vmem>>, vector<1x32xf32>
    %5 = tpu.concatenate %4, %3 in 0 : vector<1x32xf32>, vector<4x32xf32> -> vector<5x32xf32>
    %c0_6 = arith.constant 0 : index
    %c0_7 = arith.constant 0 : index
    %6 = vector.load %arg4[%c0_6, %c0_7] : memref<5x32xf32, #tpu.memory_space<vmem>>, vector<5x32xf32>
    %7 = arith.addf %5, %6 : vector<5x32xf32>
    %c0_8 = arith.constant 0 : index
    %c0_9 = arith.constant 0 : index
    %8 = vector.load %arg5[%c0_8, %c0_9] : memref<1x32xf32, #tpu.memory_space<vmem>>, vector<1x32xf32>
    %c0_10 = arith.constant 0 : index
    %c0_11 = arith.constant 0 : index
    %9 = vector.load %arg6[%c0_10, %c0_11] : memref<1x32xf32, #tpu.memory_space<vmem>>, vector<1x32xf32>
    %cst_12 = arith.constant dense<0.000000e+00> : vector<5xf32>
    %10 = vector.multi_reduction <add>, %7, %cst_12 [1] : vector<5x32xf32> to vector<5xf32>
    %11 = vector.shape_cast %10 : vector<5xf32> to vector<5x1xf32>
    %cst_13 = arith.constant 3.200000e+01 : f32
    %12 = vector.broadcast %cst_13 : f32 to vector<5x1xf32>
    %13 = arith.divf %11, %12 : vector<5x1xf32>
    %14 = vector.broadcast %13 : vector<5x1xf32> to vector<5x32xf32>
    %15 = arith.subf %7, %14 : vector<5x32xf32>
    %16 = arith.mulf %15, %15 : vector<5x32xf32>
    %cst_14 = arith.constant dense<0.000000e+00> : vector<5xf32>
    %17 = vector.multi_reduction <add>, %16, %cst_14 [1] : vector<5x32xf32> to vector<5xf32>
    %18 = vector.shape_cast %17 : vector<5xf32> to vector<5x1xf32>
    %cst_15 = arith.constant 3.200000e+01 : f32
    %19 = vector.broadcast %cst_15 : f32 to vector<5x1xf32>
    %20 = arith.divf %18, %19 : vector<5x1xf32>
    %21 = vector.broadcast %13 : vector<5x1xf32> to vector<5x32xf32>
    %22 = arith.subf %7, %21 : vector<5x32xf32>
    %cst_16 = arith.constant 9.99999974E-6 : f32
    %23 = vector.broadcast %cst_16 : f32 to vector<5x1xf32>
    %24 = arith.addf %20, %23 : vector<5x1xf32>
    %25 = math.rsqrt %24 : vector<5x1xf32>
    %26 = vector.broadcast %25 : vector<5x1xf32> to vector<5x32xf32>
    %27 = arith.mulf %22, %26 : vector<5x32xf32>
    %28 = vector.broadcast %8 : vector<1x32xf32> to vector<5x32xf32>
    %29 = arith.mulf %27, %28 : vector<5x32xf32>
    %30 = vector.broadcast %9 : vector<1x32xf32> to vector<5x32xf32>
    %31 = arith.addf %29, %30 : vector<5x32xf32>
    %32 = arith.truncf %31 : vector<5x32xf32> to vector<5x32xbf16>
    %c0_17 = arith.constant 0 : index
    %c0_18 = arith.constant 0 : index
    %c0_19 = arith.constant 0 : index
    %33 = vector.load %arg7[%c0_17, %c0_18, %c0_19] : memref<1x5x32xbf16, #tpu.memory_space<vmem>>, vector<1x5x32xbf16>
    %34 = vector.shape_cast %33 : vector<1x5x32xbf16> to vector<5x32xbf16>
    %35 = vector.shape_cast %32 : vector<5x32xbf16> to vector<1x5x32xbf16>
    tpu.vector_store %arg7[%c0_17, %c0_18, %c0_19], %35 {strides = array<i32>} : memref<1x5x32xbf16, #tpu.memory_space<vmem>>, vector<1x5x32xbf16>,
    return
  }
  func.func @transform_0(%arg0: i32) -> (i32, i32, i32) {
    %c0_i32 = arith.constant 0 : i32
    %c0_i32_0 = arith.constant 0 : i32
    %c0_i32_1 = arith.constant 0 : i32
    return %arg0, %c0_i32, %c0_i32_0 : i32, i32, i32
  }
  func.func @transform_1(%arg0: i32) -> (i32, i32) {
    %c0_i32 = arith.constant 0 : i32
    %c0_i32_0 = arith.constant 0 : i32
    %c0_i32_1 = arith.constant 0 : i32
    return %c0_i32, %c0_i32_0 : i32, i32
  }
  func.func @transform_2(%arg0: i32) -> (i32, i32) {
    %c0_i32 = arith.constant 0 : i32
    %c0_i32_0 = arith.constant 0 : i32
    %c0_i32_1 = arith.constant 0 : i32
    return %c0_i32, %c0_i32_0 : i32, i32
  }
  func.func @transform_3(%arg0: i32) -> (i32, i32) {
    %c0_i32 = arith.constant 0 : i32
    %c0_i32_0 = arith.constant 0 : i32
    %c0_i32_1 = arith.constant 0 : i32
    return %c0_i32, %c0_i32_0 : i32, i32
  }
  func.func @transform_4(%arg0: i32) -> (i32, i32) {
    %c0_i32 = arith.constant 0 : i32
    %c0_i32_0 = arith.constant 0 : i32
    %c0_i32_1 = arith.constant 0 : i32
    return %c0_i32, %c0_i32_0 : i32, i32
  }
  func.func @transform_5(%arg0: i32) -> (i32, i32) {
    %c0_i32 = arith.constant 0 : i32
    %c0_i32_0 = arith.constant 0 : i32
    %c0_i32_1 = arith.constant 0 : i32
    return %c0_i32, %c0_i32_0 : i32, i32
  }
  func.func @transform_6(%arg0: i32) -> (i32, i32, i32) {
    %c0_i32 = arith.constant 0 : i32
    %c0_i32_0 = arith.constant 0 : i32
    %c0_i32_1 = arith.constant 0 : i32
    return %arg0, %c0_i32, %c0_i32_0 : i32, i32, i32
  }
}

module attributes {stable_mosaic.version = 11 : i64} {
  func.func @_tower_block_kernel(%arg0: i32, %arg1: i32, %arg2: memref<1x5x32xbf16, #tpu.memory_space<vmem>>, %arg3: memref<1x1x32xf32, #tpu.memory_space<vmem>>, %arg4: memref<1x1x32xf32, #tpu.memory_space<vmem>>, %arg5: memref<1x12x32x8xbf16, #tpu.memory_space<vmem>>, %arg6: memref<1x12x1x8xf32, #tpu.memory_space<vmem>>, %arg7: memref<1x4x8x32xbf16, #tpu.memory_space<vmem>>, %arg8: memref<1x1x32xf32, #tpu.memory_space<vmem>>, %arg9: memref<1x1x32xf32, #tpu.memory_space<vmem>>, %arg10: memref<1x1x32xf32, #tpu.memory_space<vmem>>, %arg11: memref<1x32x128xbf16, #tpu.memory_space<vmem>>, %arg12: memref<1x1x128xf32, #tpu.memory_space<vmem>>, %arg13: memref<1x128x32xbf16, #tpu.memory_space<vmem>>, %arg14: memref<1x1x32xf32, #tpu.memory_space<vmem>>, %arg15: memref<1x5x32xbf16, #tpu.memory_space<vmem>>, %arg16: memref<5x32xf32, #tpu.memory_space<vmem>>) attributes {dimension_semantics = [#tpu.dimension_semantics<parallel>, #tpu.dimension_semantics<arbitrary>], iteration_bounds = array<i64: 2, 2>, scalar_prefetch = 0 : i64, scratch_operands = 1 : i64, tpu.core_type = #tpu.core_type<tc>, window_params = [{transform_indices = @transform_0, window_bounds = array<i64: 1, 5, 32>}, {transform_indices = @transform_1, window_bounds = array<i64: 1, 1, 32>}, {transform_indices = @transform_2, window_bounds = array<i64: 1, 1, 32>}, {transform_indices = @transform_3, window_bounds = array<i64: 1, 12, 32, 8>}, {transform_indices = @transform_4, window_bounds = array<i64: 1, 12, 1, 8>}, {transform_indices = @transform_5, window_bounds = array<i64: 1, 4, 8, 32>}, {transform_indices = @transform_6, window_bounds = array<i64: 1, 1, 32>}, {transform_indices = @transform_7, window_bounds = array<i64: 1, 1, 32>}, {transform_indices = @transform_8, window_bounds = array<i64: 1, 1, 32>}, {transform_indices = @transform_9, window_bounds = array<i64: 1, 32, 128>}, {transform_indices = @transform_10, window_bounds = array<i64: 1, 1, 128>}, {transform_indices = @transform_11, window_bounds = array<i64: 1, 128, 32>}, {transform_indices = @transform_12, window_bounds = array<i64: 1, 1, 32>}, {transform_indices = @transform_13, window_bounds = array<i64: 1, 5, 32>}]} {
    %c0_i32 = arith.constant 0 : i32
    %0 = arith.cmpi eq, %arg1, %c0_i32 : i32
    %1 = arith.extui %0 : i1 to i32
    %c0_i32_0 = arith.constant 0 : i32
    %2 = arith.cmpi ne, %1, %c0_i32_0 : i32
    scf.if %2 {
      %c0_64 = arith.constant 0 : index
      %c0_65 = arith.constant 0 : index
      %c0_66 = arith.constant 0 : index
      %123 = vector.load %arg2[%c0_64, %c0_65, %c0_66] : memref<1x5x32xbf16, #tpu.memory_space<vmem>>, vector<1x5x32xbf16>
      %124 = vector.shape_cast %123 : vector<1x5x32xbf16> to vector<5x32xbf16>
      %125 = arith.extf %124 : vector<5x32xbf16> to vector<5x32xf32>
      %c0_67 = arith.constant 0 : index
      %c0_68 = arith.constant 0 : index
      %126 = vector.load %arg16[%c0_67, %c0_68] : memref<5x32xf32, #tpu.memory_space<vmem>>, vector<5x32xf32>
      tpu.vector_store %arg16[%c0_67, %c0_68], %125 {strides = array<i32>} : memref<5x32xf32, #tpu.memory_space<vmem>>, vector<5x32xf32>,
    } else {
    }
    %c0 = arith.constant 0 : index
    %c0_1 = arith.constant 0 : index
    %3 = vector.load %arg16[%c0, %c0_1] : memref<5x32xf32, #tpu.memory_space<vmem>>, vector<5x32xf32>
    %c0_2 = arith.constant 0 : index
    %c0_3 = arith.constant 0 : index
    %c0_4 = arith.constant 0 : index
    %4 = vector.load %arg3[%c0_2, %c0_3, %c0_4] : memref<1x1x32xf32, #tpu.memory_space<vmem>>, vector<1x1x32xf32>
    %5 = vector.shape_cast %4 : vector<1x1x32xf32> to vector<1x32xf32>
    %c0_5 = arith.constant 0 : index
    %c0_6 = arith.constant 0 : index
    %c0_7 = arith.constant 0 : index
    %6 = vector.load %arg4[%c0_5, %c0_6, %c0_7] : memref<1x1x32xf32, #tpu.memory_space<vmem>>, vector<1x1x32xf32>
    %7 = vector.shape_cast %6 : vector<1x1x32xf32> to vector<1x32xf32>
    %cst = arith.constant dense<0.000000e+00> : vector<5xf32>
    %8 = vector.multi_reduction <add>, %3, %cst [1] : vector<5x32xf32> to vector<5xf32>
    %9 = vector.shape_cast %8 : vector<5xf32> to vector<5x1xf32>
    %cst_8 = arith.constant 3.200000e+01 : f32
    %10 = vector.broadcast %cst_8 : f32 to vector<5x1xf32>
    %11 = arith.divf %9, %10 : vector<5x1xf32>
    %12 = vector.broadcast %11 : vector<5x1xf32> to vector<5x32xf32>
    %13 = arith.subf %3, %12 : vector<5x32xf32>
    %14 = arith.mulf %13, %13 : vector<5x32xf32>
    %cst_9 = arith.constant dense<0.000000e+00> : vector<5xf32>
    %15 = vector.multi_reduction <add>, %14, %cst_9 [1] : vector<5x32xf32> to vector<5xf32>
    %16 = vector.shape_cast %15 : vector<5xf32> to vector<5x1xf32>
    %cst_10 = arith.constant 3.200000e+01 : f32
    %17 = vector.broadcast %cst_10 : f32 to vector<5x1xf32>
    %18 = arith.divf %16, %17 : vector<5x1xf32>
    %19 = vector.broadcast %11 : vector<5x1xf32> to vector<5x32xf32>
    %20 = arith.subf %3, %19 : vector<5x32xf32>
    %cst_11 = arith.constant 9.99999974E-6 : f32
    %21 = vector.broadcast %cst_11 : f32 to vector<5x1xf32>
    %22 = arith.addf %18, %21 : vector<5x1xf32>
    %23 = math.rsqrt %22 : vector<5x1xf32>
    %24 = vector.broadcast %23 : vector<5x1xf32> to vector<5x32xf32>
    %25 = arith.mulf %20, %24 : vector<5x32xf32>
    %26 = vector.broadcast %5 : vector<1x32xf32> to vector<5x32xf32>
    %27 = arith.mulf %25, %26 : vector<5x32xf32>
    %28 = vector.broadcast %7 : vector<1x32xf32> to vector<5x32xf32>
    %29 = arith.addf %27, %28 : vector<5x32xf32>
    %30 = arith.truncf %29 : vector<5x32xf32> to vector<5x32xbf16>
    %31 = vector.shape_cast %30 : vector<5x32xbf16> to vector<1x5x32xbf16>
    %32 = vector.shape_cast %31 : vector<1x5x32xbf16> to vector<1x5x32xbf16>
    %33 = vector.broadcast %32 : vector<1x5x32xbf16> to vector<12x5x32xbf16>
    %c0_12 = arith.constant 0 : index
    %c0_13 = arith.constant 0 : index
    %c0_14 = arith.constant 0 : index
    %c0_15 = arith.constant 0 : index
    %34 = vector.load %arg5[%c0_12, %c0_13, %c0_14, %c0_15] : memref<1x12x32x8xbf16, #tpu.memory_space<vmem>>, vector<1x12x32x8xbf16>
    %35 = vector.shape_cast %34 : vector<1x12x32x8xbf16> to vector<12x32x8xbf16>
    %cst_16 = arith.constant dense<0.000000e+00> : vector<12x5x8xf32>
    %36 = tpu.matmul %33, %35, %cst_16 {dimension_numbers = #tpu.dot_dimension_numbers<[2], [1], [1], [2], [0, 0, 0, 1, 1, 2], [0], [0]>} : vector<12x5x32xbf16>, vector<12x32x8xbf16>, vector<12x5x8xf32> -> vector<12x5x8xf32>
    %c0_17 = arith.constant 0 : index
    %c0_18 = arith.constant 0 : index
    %c0_19 = arith.constant 0 : index
    %c0_20 = arith.constant 0 : index
    %37 = vector.load %arg6[%c0_17, %c0_18, %c0_19, %c0_20] : memref<1x12x1x8xf32, #tpu.memory_space<vmem>>, vector<1x12x1x8xf32>
    %38 = vector.shape_cast %37 : vector<1x12x1x8xf32> to vector<12x1x8xf32>
    %39 = vector.broadcast %38 : vector<12x1x8xf32> to vector<12x5x8xf32>
    %40 = arith.addf %36, %39 : vector<12x5x8xf32>
    %41 = arith.truncf %40 : vector<12x5x8xf32> to vector<12x5x8xbf16>
    %42 = vector.extract_strided_slice %41 {offsets = [0, 0, 0], sizes = [4, 5, 8], strides = [1, 1, 1]} : vector<12x5x8xbf16> to vector<4x5x8xbf16>
    %43 = vector.extract_strided_slice %41 {offsets = [4, 0, 0], sizes = [4, 5, 8], strides = [1, 1, 1]} : vector<12x5x8xbf16> to vector<4x5x8xbf16>
    %44 = vector.extract_strided_slice %41 {offsets = [8, 0, 0], sizes = [4, 5, 8], strides = [1, 1, 1]} : vector<12x5x8xbf16> to vector<4x5x8xbf16>
    %cst_21 = arith.constant dense<0.000000e+00> : vector<4x5x5xf32>
    %45 = tpu.matmul %42, %43, %cst_21 {dimension_numbers = #tpu.dot_dimension_numbers<[2], [2], [1], [1], [0, 0, 0, 1, 1, 1], [0], [0]>} : vector<4x5x8xbf16>, vector<4x5x8xbf16>, vector<4x5x5xf32> -> vector<4x5x5xf32>
    %cst_22 = arith.constant dense<0xFF800000> : vector<4x5xf32>
    %46 = vector.multi_reduction <maximumf>, %45, %cst_22 [2] : vector<4x5x5xf32> to vector<4x5xf32>
    %47 = vector.shape_cast %46 : vector<4x5xf32> to vector<4x5x1xf32>
    %48 = vector.broadcast %47 : vector<4x5x1xf32> to vector<4x5x5xf32>
    %49 = arith.subf %45, %48 : vector<4x5x5xf32>
    %50 = math.exp %49 : vector<4x5x5xf32>
    %cst_23 = arith.constant dense<0.000000e+00> : vector<4x5xf32>
    %51 = vector.multi_reduction <add>, %50, %cst_23 [2] : vector<4x5x5xf32> to vector<4x5xf32>
    %52 = vector.shape_cast %51 : vector<4x5xf32> to vector<4x5x1xf32>
    %53 = tpu.reciprocal %52 {approx = true} : vector<4x5x1xf32> -> vector<4x5x1xf32>
    %54 = vector.broadcast %53 : vector<4x5x1xf32> to vector<4x5x5xf32>
    %55 = arith.mulf %50, %54 : vector<4x5x5xf32>
    %56 = arith.truncf %55 : vector<4x5x5xf32> to vector<4x5x5xbf16>
    %cst_24 = arith.constant dense<0.000000e+00> : vector<4x5x8xf32>
    %57 = tpu.matmul %56, %44, %cst_24 {dimension_numbers = #tpu.dot_dimension_numbers<[2], [1], [1], [2], [0, 0, 0, 1, 1, 2], [0], [0]>} : vector<4x5x5xbf16>, vector<4x5x8xbf16>, vector<4x5x8xf32> -> vector<4x5x8xf32>
    %58 = arith.truncf %57 : vector<4x5x8xf32> to vector<4x5x8xbf16>
    %c0_25 = arith.constant 0 : index
    %c0_26 = arith.constant 0 : index
    %c0_27 = arith.constant 0 : index
    %c0_28 = arith.constant 0 : index
    %59 = vector.load %arg7[%c0_25, %c0_26, %c0_27, %c0_28] : memref<1x4x8x32xbf16, #tpu.memory_space<vmem>>, vector<1x4x8x32xbf16>
    %60 = vector.shape_cast %59 : vector<1x4x8x32xbf16> to vector<4x8x32xbf16>
    %cst_29 = arith.constant dense<0.000000e+00> : vector<4x5x32xf32>
    %61 = tpu.matmul %58, %60, %cst_29 {dimension_numbers = #tpu.dot_dimension_numbers<[2], [1], [1], [2], [0, 0, 0, 1, 1, 2], [0], [0]>} : vector<4x5x8xbf16>, vector<4x8x32xbf16>, vector<4x5x32xf32> -> vector<4x5x32xf32>
    %cst_30 = arith.constant dense<0.000000e+00> : vector<5x32xf32>
    %62 = vector.multi_reduction <add>, %61, %cst_30 [0] : vector<4x5x32xf32> to vector<5x32xf32>
    %63 = arith.addf %3, %62 : vector<5x32xf32>
    %c0_31 = arith.constant 0 : index
    %c0_32 = arith.constant 0 : index
    %c0_33 = arith.constant 0 : index
    %64 = vector.load %arg8[%c0_31, %c0_32, %c0_33] : memref<1x1x32xf32, #tpu.memory_space<vmem>>, vector<1x1x32xf32>
    %65 = vector.shape_cast %64 : vector<1x1x32xf32> to vector<1x32xf32>
    %66 = vector.broadcast %65 : vector<1x32xf32> to vector<5x32xf32>
    %67 = arith.addf %63, %66 : vector<5x32xf32>
    %c0_34 = arith.constant 0 : index
    %c0_35 = arith.constant 0 : index
    %c0_36 = arith.constant 0 : index
    %68 = vector.load %arg9[%c0_34, %c0_35, %c0_36] : memref<1x1x32xf32, #tpu.memory_space<vmem>>, vector<1x1x32xf32>
    %69 = vector.shape_cast %68 : vector<1x1x32xf32> to vector<1x32xf32>
    %c0_37 = arith.constant 0 : index
    %c0_38 = arith.constant 0 : index
    %c0_39 = arith.constant 0 : index
    %70 = vector.load %arg10[%c0_37, %c0_38, %c0_39] : memref<1x1x32xf32, #tpu.memory_space<vmem>>, vector<1x1x32xf32>
    %71 = vector.shape_cast %70 : vector<1x1x32xf32> to vector<1x32xf32>
    %cst_40 = arith.constant dense<0.000000e+00> : vector<5xf32>
    %72 = vector.multi_reduction <add>, %67, %cst_40 [1] : vector<5x32xf32> to vector<5xf32>
    %73 = vector.shape_cast %72 : vector<5xf32> to vector<5x1xf32>
    %cst_41 = arith.constant 3.200000e+01 : f32
    %74 = vector.broadcast %cst_41 : f32 to vector<5x1xf32>
    %75 = arith.divf %73, %74 : vector<5x1xf32>
    %76 = vector.broadcast %75 : vector<5x1xf32> to vector<5x32xf32>
    %77 = arith.subf %67, %76 : vector<5x32xf32>
    %78 = arith.mulf %77, %77 : vector<5x32xf32>
    %cst_42 = arith.constant dense<0.000000e+00> : vector<5xf32>
    %79 = vector.multi_reduction <add>, %78, %cst_42 [1] : vector<5x32xf32> to vector<5xf32>
    %80 = vector.shape_cast %79 : vector<5xf32> to vector<5x1xf32>
    %cst_43 = arith.constant 3.200000e+01 : f32
    %81 = vector.broadcast %cst_43 : f32 to vector<5x1xf32>
    %82 = arith.divf %80, %81 : vector<5x1xf32>
    %83 = vector.broadcast %75 : vector<5x1xf32> to vector<5x32xf32>
    %84 = arith.subf %67, %83 : vector<5x32xf32>
    %cst_44 = arith.constant 9.99999974E-6 : f32
    %85 = vector.broadcast %cst_44 : f32 to vector<5x1xf32>
    %86 = arith.addf %82, %85 : vector<5x1xf32>
    %87 = math.rsqrt %86 : vector<5x1xf32>
    %88 = vector.broadcast %87 : vector<5x1xf32> to vector<5x32xf32>
    %89 = arith.mulf %84, %88 : vector<5x32xf32>
    %90 = vector.broadcast %69 : vector<1x32xf32> to vector<5x32xf32>
    %91 = arith.mulf %89, %90 : vector<5x32xf32>
    %92 = vector.broadcast %71 : vector<1x32xf32> to vector<5x32xf32>
    %93 = arith.addf %91, %92 : vector<5x32xf32>
    %c0_45 = arith.constant 0 : index
    %c0_46 = arith.constant 0 : index
    %c0_47 = arith.constant 0 : index
    %94 = vector.load %arg11[%c0_45, %c0_46, %c0_47] : memref<1x32x128xbf16, #tpu.memory_space<vmem>>, vector<1x32x128xbf16>
    %95 = vector.shape_cast %94 : vector<1x32x128xbf16> to vector<32x128xbf16>
    %96 = arith.truncf %93 : vector<5x32xf32> to vector<5x32xbf16>
    %cst_48 = arith.constant dense<0.000000e+00> : vector<5x128xf32>
    %97 = tpu.matmul %96, %95, %cst_48 {dimension_numbers = #tpu.dot_dimension_numbers<[1], [0], [0], [1], [0, 0, 1, 1], [], []>} : vector<5x32xbf16>, vector<32x128xbf16>, vector<5x128xf32> -> vector<5x128xf32>
    %c0_49 = arith.constant 0 : index
    %c0_50 = arith.constant 0 : index
    %c0_51 = arith.constant 0 : index
    %98 = vector.load %arg12[%c0_49, %c0_50, %c0_51] : memref<1x1x128xf32, #tpu.memory_space<vmem>>, vector<1x1x128xf32>
    %99 = vector.shape_cast %98 : vector<1x1x128xf32> to vector<1x128xf32>
    %100 = vector.broadcast %99 : vector<1x128xf32> to vector<5x128xf32>
    %101 = arith.addf %97, %100 : vector<5x128xf32>
    %cst_52 = arith.constant 1.702000e+00 : f32
    %102 = vector.broadcast %cst_52 : f32 to vector<5x128xf32>
    %103 = arith.mulf %102, %101 : vector<5x128xf32>
    %104 = arith.negf %103 : vector<5x128xf32>
    %105 = math.exp %104 : vector<5x128xf32>
    %cst_53 = arith.constant 1.000000e+00 : f32
    %106 = vector.broadcast %cst_53 : f32 to vector<5x128xf32>
    %107 = arith.addf %106, %105 : vector<5x128xf32>
    %108 = arith.divf %106, %107 : vector<5x128xf32>
    %109 = arith.mulf %101, %108 : vector<5x128xf32>
    %c0_54 = arith.constant 0 : index
    %c0_55 = arith.constant 0 : index
    %c0_56 = arith.constant 0 : index
    %110 = vector.load %arg13[%c0_54, %c0_55, %c0_56] : memref<1x128x32xbf16, #tpu.memory_space<vmem>>, vector<1x128x32xbf16>
    %111 = vector.shape_cast %110 : vector<1x128x32xbf16> to vector<128x32xbf16>
    %112 = arith.truncf %109 : vector<5x128xf32> to vector<5x128xbf16>
    %cst_57 = arith.constant dense<0.000000e+00> : vector<5x32xf32>
    %113 = tpu.matmul %112, %111, %cst_57 {dimension_numbers = #tpu.dot_dimension_numbers<[1], [0], [0], [1], [0, 0, 1, 1], [], []>} : vector<5x128xbf16>, vector<128x32xbf16>, vector<5x32xf32> -> vector<5x32xf32>
    %114 = arith.addf %67, %113 : vector<5x32xf32>
    %c0_58 = arith.constant 0 : index
    %c0_59 = arith.constant 0 : index
    %c0_60 = arith.constant 0 : index
    %115 = vector.load %arg14[%c0_58, %c0_59, %c0_60] : memref<1x1x32xf32, #tpu.memory_space<vmem>>, vector<1x1x32xf32>
    %116 = vector.shape_cast %115 : vector<1x1x32xf32> to vector<1x32xf32>
    %117 = vector.broadcast %116 : vector<1x32xf32> to vector<5x32xf32>
    %118 = arith.addf %114, %117 : vector<5x32xf32>
    %c0_61 = arith.constant 0 : index
    %c0_62 = arith.constant 0 : index
    %119 = vector.load %arg16[%c0_61, %c0_62] : memref<5x32xf32, #tpu.memory_space<vmem>>, vector<5x32xf32>
    tpu.vector_store %arg16[%c0_61, %c0_62], %118 {strides = array<i32>} : memref<5x32xf32, #tpu.memory_space<vmem>>, vector<5x32xf32>,
    %c1_i32 = arith.constant 1 : i32
    %120 = arith.cmpi eq, %arg1, %c1_i32 : i32
    %121 = arith.extui %120 : i1 to i32
    %c0_i32_63 = arith.constant 0 : i32
    %122 = arith.cmpi ne, %121, %c0_i32_63 : i32
    scf.if %122 {
      %123 = arith.truncf %118 : vector<5x32xf32> to vector<5x32xbf16>
      %c0_64 = arith.constant 0 : index
      %c0_65 = arith.constant 0 : index
      %c0_66 = arith.constant 0 : index
      %124 = vector.load %arg15[%c0_64, %c0_65, %c0_66] : memref<1x5x32xbf16, #tpu.memory_space<vmem>>, vector<1x5x32xbf16>
      %125 = vector.shape_cast %124 : vector<1x5x32xbf16> to vector<5x32xbf16>
      %126 = vector.shape_cast %123 : vector<5x32xbf16> to vector<1x5x32xbf16>
      tpu.vector_store %arg15[%c0_64, %c0_65, %c0_66], %126 {strides = array<i32>} : memref<1x5x32xbf16, #tpu.memory_space<vmem>>, vector<1x5x32xbf16>,
    } else {
    }
    return
  }
  func.func @transform_0(%arg0: i32, %arg1: i32) -> (i32, i32, i32) {
    %c0_i32 = arith.constant 0 : i32
    %c0_i32_0 = arith.constant 0 : i32
    %c0_i32_1 = arith.constant 0 : i32
    return %arg0, %c0_i32, %c0_i32_0 : i32, i32, i32
  }
  func.func @transform_1(%arg0: i32, %arg1: i32) -> (i32, i32, i32) {
    %c0_i32 = arith.constant 0 : i32
    %c0_i32_0 = arith.constant 0 : i32
    %c0_i32_1 = arith.constant 0 : i32
    return %arg1, %c0_i32, %c0_i32_0 : i32, i32, i32
  }
  func.func @transform_2(%arg0: i32, %arg1: i32) -> (i32, i32, i32) {
    %c0_i32 = arith.constant 0 : i32
    %c0_i32_0 = arith.constant 0 : i32
    %c0_i32_1 = arith.constant 0 : i32
    return %arg1, %c0_i32, %c0_i32_0 : i32, i32, i32
  }
  func.func @transform_3(%arg0: i32, %arg1: i32) -> (i32, i32, i32, i32) {
    %c0_i32 = arith.constant 0 : i32
    %c0_i32_0 = arith.constant 0 : i32
    %c0_i32_1 = arith.constant 0 : i32
    %c0_i32_2 = arith.constant 0 : i32
    return %arg1, %c0_i32, %c0_i32_0, %c0_i32_1 : i32, i32, i32, i32
  }
  func.func @transform_4(%arg0: i32, %arg1: i32) -> (i32, i32, i32, i32) {
    %c0_i32 = arith.constant 0 : i32
    %c0_i32_0 = arith.constant 0 : i32
    %c0_i32_1 = arith.constant 0 : i32
    %c0_i32_2 = arith.constant 0 : i32
    return %arg1, %c0_i32, %c0_i32_0, %c0_i32_1 : i32, i32, i32, i32
  }
  func.func @transform_5(%arg0: i32, %arg1: i32) -> (i32, i32, i32, i32) {
    %c0_i32 = arith.constant 0 : i32
    %c0_i32_0 = arith.constant 0 : i32
    %c0_i32_1 = arith.constant 0 : i32
    %c0_i32_2 = arith.constant 0 : i32
    return %arg1, %c0_i32, %c0_i32_0, %c0_i32_1 : i32, i32, i32, i32
  }
  func.func @transform_6(%arg0: i32, %arg1: i32) -> (i32, i32, i32) {
    %c0_i32 = arith.constant 0 : i32
    %c0_i32_0 = arith.constant 0 : i32
    %c0_i32_1 = arith.constant 0 : i32
    return %arg1, %c0_i32, %c0_i32_0 : i32, i32, i32
  }
  func.func @transform_7(%arg0: i32, %arg1: i32) -> (i32, i32, i32) {
    %c0_i32 = arith.constant 0 : i32
    %c0_i32_0 = arith.constant 0 : i32
    %c0_i32_1 = arith.constant 0 : i32
    return %arg1, %c0_i32, %c0_i32_0 : i32, i32, i32
  }
  func.func @transform_8(%arg0: i32, %arg1: i32) -> (i32, i32, i32) {
    %c0_i32 = arith.constant 0 : i32
    %c0_i32_0 = arith.constant 0 : i32
    %c0_i32_1 = arith.constant 0 : i32
    return %arg1, %c0_i32, %c0_i32_0 : i32, i32, i32
  }
  func.func @transform_9(%arg0: i32, %arg1: i32) -> (i32, i32, i32) {
    %c0_i32 = arith.constant 0 : i32
    %c0_i32_0 = arith.constant 0 : i32
    %c0_i32_1 = arith.constant 0 : i32
    return %arg1, %c0_i32, %c0_i32_0 : i32, i32, i32
  }
  func.func @transform_10(%arg0: i32, %arg1: i32) -> (i32, i32, i32) {
    %c0_i32 = arith.constant 0 : i32
    %c0_i32_0 = arith.constant 0 : i32
    %c0_i32_1 = arith.constant 0 : i32
    return %arg1, %c0_i32, %c0_i32_0 : i32, i32, i32
  }
  func.func @transform_11(%arg0: i32, %arg1: i32) -> (i32, i32, i32) {
    %c0_i32 = arith.constant 0 : i32
    %c0_i32_0 = arith.constant 0 : i32
    %c0_i32_1 = arith.constant 0 : i32
    return %arg1, %c0_i32, %c0_i32_0 : i32, i32, i32
  }
  func.func @transform_12(%arg0: i32, %arg1: i32) -> (i32, i32, i32) {
    %c0_i32 = arith.constant 0 : i32
    %c0_i32_0 = arith.constant 0 : i32
    %c0_i32_1 = arith.constant 0 : i32
    return %arg1, %c0_i32, %c0_i32_0 : i32, i32, i32
  }
  func.func @transform_13(%arg0: i32, %arg1: i32) -> (i32, i32, i32) {
    %c0_i32 = arith.constant 0 : i32
    %c0_i32_0 = arith.constant 0 : i32
    %c0_i32_1 = arith.constant 0 : i32
    return %arg0, %c0_i32, %c0_i32_0 : i32, i32, i32
  }
}

module attributes {stable_mosaic.version = 11 : i64} {
  func.func @_tower_block_kernel(%arg0: i32, %arg1: i32, %arg2: memref<1x8x32xbf16, #tpu.memory_space<vmem>>, %arg3: memref<1x1x32xf32, #tpu.memory_space<vmem>>, %arg4: memref<1x1x32xf32, #tpu.memory_space<vmem>>, %arg5: memref<1x12x32x8xbf16, #tpu.memory_space<vmem>>, %arg6: memref<1x12x1x8xf32, #tpu.memory_space<vmem>>, %arg7: memref<1x4x8x32xbf16, #tpu.memory_space<vmem>>, %arg8: memref<1x1x32xf32, #tpu.memory_space<vmem>>, %arg9: memref<1x1x32xf32, #tpu.memory_space<vmem>>, %arg10: memref<1x1x32xf32, #tpu.memory_space<vmem>>, %arg11: memref<1x32x128xbf16, #tpu.memory_space<vmem>>, %arg12: memref<1x1x128xf32, #tpu.memory_space<vmem>>, %arg13: memref<1x128x32xbf16, #tpu.memory_space<vmem>>, %arg14: memref<1x1x32xf32, #tpu.memory_space<vmem>>, %arg15: memref<1x8x32xbf16, #tpu.memory_space<vmem>>, %arg16: memref<8x32xf32, #tpu.memory_space<vmem>>) attributes {dimension_semantics = [#tpu.dimension_semantics<parallel>, #tpu.dimension_semantics<arbitrary>], iteration_bounds = array<i64: 2, 2>, scalar_prefetch = 0 : i64, scratch_operands = 1 : i64, tpu.core_type = #tpu.core_type<tc>, window_params = [{transform_indices = @transform_0, window_bounds = array<i64: 1, 8, 32>}, {transform_indices = @transform_1, window_bounds = array<i64: 1, 1, 32>}, {transform_indices = @transform_2, window_bounds = array<i64: 1, 1, 32>}, {transform_indices = @transform_3, window_bounds = array<i64: 1, 12, 32, 8>}, {transform_indices = @transform_4, window_bounds = array<i64: 1, 12, 1, 8>}, {transform_indices = @transform_5, window_bounds = array<i64: 1, 4, 8, 32>}, {transform_indices = @transform_6, window_bounds = array<i64: 1, 1, 32>}, {transform_indices = @transform_7, window_bounds = array<i64: 1, 1, 32>}, {transform_indices = @transform_8, window_bounds = array<i64: 1, 1, 32>}, {transform_indices = @transform_9, window_bounds = array<i64: 1, 32, 128>}, {transform_indices = @transform_10, window_bounds = array<i64: 1, 1, 128>}, {transform_indices = @transform_11, window_bounds = array<i64: 1, 128, 32>}, {transform_indices = @transform_12, window_bounds = array<i64: 1, 1, 32>}, {transform_indices = @transform_13, window_bounds = array<i64: 1, 8, 32>}]} {
    %c0_i32 = arith.constant 0 : i32
    %0 = arith.cmpi eq, %arg1, %c0_i32 : i32
    %1 = arith.extui %0 : i1 to i32
    %c0_i32_0 = arith.constant 0 : i32
    %2 = arith.cmpi ne, %1, %c0_i32_0 : i32
    scf.if %2 {
      %c0_66 = arith.constant 0 : index
      %c0_67 = arith.constant 0 : index
      %c0_68 = arith.constant 0 : index
      %132 = vector.load %arg2[%c0_66, %c0_67, %c0_68] : memref<1x8x32xbf16, #tpu.memory_space<vmem>>, vector<1x8x32xbf16>
      %133 = vector.shape_cast %132 : vector<1x8x32xbf16> to vector<8x32xbf16>
      %134 = arith.extf %133 : vector<8x32xbf16> to vector<8x32xf32>
      %c0_69 = arith.constant 0 : index
      %c0_70 = arith.constant 0 : index
      %135 = vector.load %arg16[%c0_69, %c0_70] : memref<8x32xf32, #tpu.memory_space<vmem>>, vector<8x32xf32>
      tpu.vector_store %arg16[%c0_69, %c0_70], %134 {strides = array<i32>} : memref<8x32xf32, #tpu.memory_space<vmem>>, vector<8x32xf32>,
    } else {
    }
    %c0 = arith.constant 0 : index
    %c0_1 = arith.constant 0 : index
    %3 = vector.load %arg16[%c0, %c0_1] : memref<8x32xf32, #tpu.memory_space<vmem>>, vector<8x32xf32>
    %c0_2 = arith.constant 0 : index
    %c0_3 = arith.constant 0 : index
    %c0_4 = arith.constant 0 : index
    %4 = vector.load %arg3[%c0_2, %c0_3, %c0_4] : memref<1x1x32xf32, #tpu.memory_space<vmem>>, vector<1x1x32xf32>
    %5 = vector.shape_cast %4 : vector<1x1x32xf32> to vector<1x32xf32>
    %c0_5 = arith.constant 0 : index
    %c0_6 = arith.constant 0 : index
    %c0_7 = arith.constant 0 : index
    %6 = vector.load %arg4[%c0_5, %c0_6, %c0_7] : memref<1x1x32xf32, #tpu.memory_space<vmem>>, vector<1x1x32xf32>
    %7 = vector.shape_cast %6 : vector<1x1x32xf32> to vector<1x32xf32>
    %cst = arith.constant dense<0.000000e+00> : vector<8xf32>
    %8 = vector.multi_reduction <add>, %3, %cst [1] : vector<8x32xf32> to vector<8xf32>
    %9 = vector.shape_cast %8 : vector<8xf32> to vector<8x1xf32>
    %cst_8 = arith.constant 3.200000e+01 : f32
    %10 = vector.broadcast %cst_8 : f32 to vector<8x1xf32>
    %11 = arith.divf %9, %10 : vector<8x1xf32>
    %12 = vector.broadcast %11 : vector<8x1xf32> to vector<8x32xf32>
    %13 = arith.subf %3, %12 : vector<8x32xf32>
    %14 = arith.mulf %13, %13 : vector<8x32xf32>
    %cst_9 = arith.constant dense<0.000000e+00> : vector<8xf32>
    %15 = vector.multi_reduction <add>, %14, %cst_9 [1] : vector<8x32xf32> to vector<8xf32>
    %16 = vector.shape_cast %15 : vector<8xf32> to vector<8x1xf32>
    %cst_10 = arith.constant 3.200000e+01 : f32
    %17 = vector.broadcast %cst_10 : f32 to vector<8x1xf32>
    %18 = arith.divf %16, %17 : vector<8x1xf32>
    %19 = vector.broadcast %11 : vector<8x1xf32> to vector<8x32xf32>
    %20 = arith.subf %3, %19 : vector<8x32xf32>
    %cst_11 = arith.constant 9.99999974E-6 : f32
    %21 = vector.broadcast %cst_11 : f32 to vector<8x1xf32>
    %22 = arith.addf %18, %21 : vector<8x1xf32>
    %23 = math.rsqrt %22 : vector<8x1xf32>
    %24 = vector.broadcast %23 : vector<8x1xf32> to vector<8x32xf32>
    %25 = arith.mulf %20, %24 : vector<8x32xf32>
    %26 = vector.broadcast %5 : vector<1x32xf32> to vector<8x32xf32>
    %27 = arith.mulf %25, %26 : vector<8x32xf32>
    %28 = vector.broadcast %7 : vector<1x32xf32> to vector<8x32xf32>
    %29 = arith.addf %27, %28 : vector<8x32xf32>
    %30 = arith.truncf %29 : vector<8x32xf32> to vector<8x32xbf16>
    %31 = vector.shape_cast %30 : vector<8x32xbf16> to vector<1x8x32xbf16>
    %32 = vector.shape_cast %31 : vector<1x8x32xbf16> to vector<1x8x32xbf16>
    %33 = vector.broadcast %32 : vector<1x8x32xbf16> to vector<12x8x32xbf16>
    %c0_12 = arith.constant 0 : index
    %c0_13 = arith.constant 0 : index
    %c0_14 = arith.constant 0 : index
    %c0_15 = arith.constant 0 : index
    %34 = vector.load %arg5[%c0_12, %c0_13, %c0_14, %c0_15] : memref<1x12x32x8xbf16, #tpu.memory_space<vmem>>, vector<1x12x32x8xbf16>
    %35 = vector.shape_cast %34 : vector<1x12x32x8xbf16> to vector<12x32x8xbf16>
    %cst_16 = arith.constant dense<0.000000e+00> : vector<12x8x8xf32>
    %36 = tpu.matmul %33, %35, %cst_16 {dimension_numbers = #tpu.dot_dimension_numbers<[2], [1], [1], [2], [0, 0, 0, 1, 1, 2], [0], [0]>} : vector<12x8x32xbf16>, vector<12x32x8xbf16>, vector<12x8x8xf32> -> vector<12x8x8xf32>
    %c0_17 = arith.constant 0 : index
    %c0_18 = arith.constant 0 : index
    %c0_19 = arith.constant 0 : index
    %c0_20 = arith.constant 0 : index
    %37 = vector.load %arg6[%c0_17, %c0_18, %c0_19, %c0_20] : memref<1x12x1x8xf32, #tpu.memory_space<vmem>>, vector<1x12x1x8xf32>
    %38 = vector.shape_cast %37 : vector<1x12x1x8xf32> to vector<12x1x8xf32>
    %39 = vector.broadcast %38 : vector<12x1x8xf32> to vector<12x8x8xf32>
    %40 = arith.addf %36, %39 : vector<12x8x8xf32>
    %41 = arith.truncf %40 : vector<12x8x8xf32> to vector<12x8x8xbf16>
    %42 = vector.extract_strided_slice %41 {offsets = [0, 0, 0], sizes = [4, 8, 8], strides = [1, 1, 1]} : vector<12x8x8xbf16> to vector<4x8x8xbf16>
    %43 = vector.extract_strided_slice %41 {offsets = [4, 0, 0], sizes = [4, 8, 8], strides = [1, 1, 1]} : vector<12x8x8xbf16> to vector<4x8x8xbf16>
    %44 = vector.extract_strided_slice %41 {offsets = [8, 0, 0], sizes = [4, 8, 8], strides = [1, 1, 1]} : vector<12x8x8xbf16> to vector<4x8x8xbf16>
    %cst_21 = arith.constant dense<0.000000e+00> : vector<4x8x8xf32>
    %45 = tpu.matmul %42, %43, %cst_21 {dimension_numbers = #tpu.dot_dimension_numbers<[2], [2], [1], [1], [0, 0, 0, 1, 1, 1], [0], [0]>} : vector<4x8x8xbf16>, vector<4x8x8xbf16>, vector<4x8x8xf32> -> vector<4x8x8xf32>
    %46 = tpu.iota {dimensions = array<i32: 0>} : vector<8x8xi32>
    %47 = tpu.iota {dimensions = array<i32: 1>} : vector<8x8xi32>
    %48 = arith.cmpi sgt, %47, %46 : vector<8x8xi32>
    %cst_22 = arith.constant -1.000000e+09 : f32
    %cst_23 = arith.constant 0.000000e+00 : f32
    %49 = vector.broadcast %cst_22 : f32 to vector<8x8xf32>
    %50 = vector.broadcast %cst_23 : f32 to vector<8x8xf32>
    %51 = arith.select %48, %49, %50 : vector<8x8xi1>, vector<8x8xf32>
    %52 = vector.shape_cast %51 : vector<8x8xf32> to vector<1x8x8xf32>
    %53 = vector.broadcast %52 : vector<1x8x8xf32> to vector<4x8x8xf32>
    %54 = arith.addf %45, %53 : vector<4x8x8xf32>
    %cst_24 = arith.constant dense<0xFF800000> : vector<4x8xf32>
    %55 = vector.multi_reduction <maximumf>, %54, %cst_24 [2] : vector<4x8x8xf32> to vector<4x8xf32>
    %56 = vector.shape_cast %55 : vector<4x8xf32> to vector<4x8x1xf32>
    %57 = vector.broadcast %56 : vector<4x8x1xf32> to vector<4x8x8xf32>
    %58 = arith.subf %54, %57 : vector<4x8x8xf32>
    %59 = math.exp %58 : vector<4x8x8xf32>
    %cst_25 = arith.constant dense<0.000000e+00> : vector<4x8xf32>
    %60 = vector.multi_reduction <add>, %59, %cst_25 [2] : vector<4x8x8xf32> to vector<4x8xf32>
    %61 = vector.shape_cast %60 : vector<4x8xf32> to vector<4x8x1xf32>
    %62 = tpu.reciprocal %61 {approx = true} : vector<4x8x1xf32> -> vector<4x8x1xf32>
    %63 = vector.broadcast %62 : vector<4x8x1xf32> to vector<4x8x8xf32>
    %64 = arith.mulf %59, %63 : vector<4x8x8xf32>
    %65 = arith.truncf %64 : vector<4x8x8xf32> to vector<4x8x8xbf16>
    %cst_26 = arith.constant dense<0.000000e+00> : vector<4x8x8xf32>
    %66 = tpu.matmul %65, %44, %cst_26 {dimension_numbers = #tpu.dot_dimension_numbers<[2], [1], [1], [2], [0, 0, 0, 1, 1, 2], [0], [0]>} : vector<4x8x8xbf16>, vector<4x8x8xbf16>, vector<4x8x8xf32> -> vector<4x8x8xf32>
    %67 = arith.truncf %66 : vector<4x8x8xf32> to vector<4x8x8xbf16>
    %c0_27 = arith.constant 0 : index
    %c0_28 = arith.constant 0 : index
    %c0_29 = arith.constant 0 : index
    %c0_30 = arith.constant 0 : index
    %68 = vector.load %arg7[%c0_27, %c0_28, %c0_29, %c0_30] : memref<1x4x8x32xbf16, #tpu.memory_space<vmem>>, vector<1x4x8x32xbf16>
    %69 = vector.shape_cast %68 : vector<1x4x8x32xbf16> to vector<4x8x32xbf16>
    %cst_31 = arith.constant dense<0.000000e+00> : vector<4x8x32xf32>
    %70 = tpu.matmul %67, %69, %cst_31 {dimension_numbers = #tpu.dot_dimension_numbers<[2], [1], [1], [2], [0, 0, 0, 1, 1, 2], [0], [0]>} : vector<4x8x8xbf16>, vector<4x8x32xbf16>, vector<4x8x32xf32> -> vector<4x8x32xf32>
    %cst_32 = arith.constant dense<0.000000e+00> : vector<8x32xf32>
    %71 = vector.multi_reduction <add>, %70, %cst_32 [0] : vector<4x8x32xf32> to vector<8x32xf32>
    %72 = arith.addf %3, %71 : vector<8x32xf32>
    %c0_33 = arith.constant 0 : index
    %c0_34 = arith.constant 0 : index
    %c0_35 = arith.constant 0 : index
    %73 = vector.load %arg8[%c0_33, %c0_34, %c0_35] : memref<1x1x32xf32, #tpu.memory_space<vmem>>, vector<1x1x32xf32>
    %74 = vector.shape_cast %73 : vector<1x1x32xf32> to vector<1x32xf32>
    %75 = vector.broadcast %74 : vector<1x32xf32> to vector<8x32xf32>
    %76 = arith.addf %72, %75 : vector<8x32xf32>
    %c0_36 = arith.constant 0 : index
    %c0_37 = arith.constant 0 : index
    %c0_38 = arith.constant 0 : index
    %77 = vector.load %arg9[%c0_36, %c0_37, %c0_38] : memref<1x1x32xf32, #tpu.memory_space<vmem>>, vector<1x1x32xf32>
    %78 = vector.shape_cast %77 : vector<1x1x32xf32> to vector<1x32xf32>
    %c0_39 = arith.constant 0 : index
    %c0_40 = arith.constant 0 : index
    %c0_41 = arith.constant 0 : index
    %79 = vector.load %arg10[%c0_39, %c0_40, %c0_41] : memref<1x1x32xf32, #tpu.memory_space<vmem>>, vector<1x1x32xf32>
    %80 = vector.shape_cast %79 : vector<1x1x32xf32> to vector<1x32xf32>
    %cst_42 = arith.constant dense<0.000000e+00> : vector<8xf32>
    %81 = vector.multi_reduction <add>, %76, %cst_42 [1] : vector<8x32xf32> to vector<8xf32>
    %82 = vector.shape_cast %81 : vector<8xf32> to vector<8x1xf32>
    %cst_43 = arith.constant 3.200000e+01 : f32
    %83 = vector.broadcast %cst_43 : f32 to vector<8x1xf32>
    %84 = arith.divf %82, %83 : vector<8x1xf32>
    %85 = vector.broadcast %84 : vector<8x1xf32> to vector<8x32xf32>
    %86 = arith.subf %76, %85 : vector<8x32xf32>
    %87 = arith.mulf %86, %86 : vector<8x32xf32>
    %cst_44 = arith.constant dense<0.000000e+00> : vector<8xf32>
    %88 = vector.multi_reduction <add>, %87, %cst_44 [1] : vector<8x32xf32> to vector<8xf32>
    %89 = vector.shape_cast %88 : vector<8xf32> to vector<8x1xf32>
    %cst_45 = arith.constant 3.200000e+01 : f32
    %90 = vector.broadcast %cst_45 : f32 to vector<8x1xf32>
    %91 = arith.divf %89, %90 : vector<8x1xf32>
    %92 = vector.broadcast %84 : vector<8x1xf32> to vector<8x32xf32>
    %93 = arith.subf %76, %92 : vector<8x32xf32>
    %cst_46 = arith.constant 9.99999974E-6 : f32
    %94 = vector.broadcast %cst_46 : f32 to vector<8x1xf32>
    %95 = arith.addf %91, %94 : vector<8x1xf32>
    %96 = math.rsqrt %95 : vector<8x1xf32>
    %97 = vector.broadcast %96 : vector<8x1xf32> to vector<8x32xf32>
    %98 = arith.mulf %93, %97 : vector<8x32xf32>
    %99 = vector.broadcast %78 : vector<1x32xf32> to vector<8x32xf32>
    %100 = arith.mulf %98, %99 : vector<8x32xf32>
    %101 = vector.broadcast %80 : vector<1x32xf32> to vector<8x32xf32>
    %102 = arith.addf %100, %101 : vector<8x32xf32>
    %c0_47 = arith.constant 0 : index
    %c0_48 = arith.constant 0 : index
    %c0_49 = arith.constant 0 : index
    %103 = vector.load %arg11[%c0_47, %c0_48, %c0_49] : memref<1x32x128xbf16, #tpu.memory_space<vmem>>, vector<1x32x128xbf16>
    %104 = vector.shape_cast %103 : vector<1x32x128xbf16> to vector<32x128xbf16>
    %105 = arith.truncf %102 : vector<8x32xf32> to vector<8x32xbf16>
    %cst_50 = arith.constant dense<0.000000e+00> : vector<8x128xf32>
    %106 = tpu.matmul %105, %104, %cst_50 {dimension_numbers = #tpu.dot_dimension_numbers<[1], [0], [0], [1], [0, 0, 1, 1], [], []>} : vector<8x32xbf16>, vector<32x128xbf16>, vector<8x128xf32> -> vector<8x128xf32>
    %c0_51 = arith.constant 0 : index
    %c0_52 = arith.constant 0 : index
    %c0_53 = arith.constant 0 : index
    %107 = vector.load %arg12[%c0_51, %c0_52, %c0_53] : memref<1x1x128xf32, #tpu.memory_space<vmem>>, vector<1x1x128xf32>
    %108 = vector.shape_cast %107 : vector<1x1x128xf32> to vector<1x128xf32>
    %109 = vector.broadcast %108 : vector<1x128xf32> to vector<8x128xf32>
    %110 = arith.addf %106, %109 : vector<8x128xf32>
    %cst_54 = arith.constant 1.702000e+00 : f32
    %111 = vector.broadcast %cst_54 : f32 to vector<8x128xf32>
    %112 = arith.mulf %111, %110 : vector<8x128xf32>
    %113 = arith.negf %112 : vector<8x128xf32>
    %114 = math.exp %113 : vector<8x128xf32>
    %cst_55 = arith.constant 1.000000e+00 : f32
    %115 = vector.broadcast %cst_55 : f32 to vector<8x128xf32>
    %116 = arith.addf %115, %114 : vector<8x128xf32>
    %117 = arith.divf %115, %116 : vector<8x128xf32>
    %118 = arith.mulf %110, %117 : vector<8x128xf32>
    %c0_56 = arith.constant 0 : index
    %c0_57 = arith.constant 0 : index
    %c0_58 = arith.constant 0 : index
    %119 = vector.load %arg13[%c0_56, %c0_57, %c0_58] : memref<1x128x32xbf16, #tpu.memory_space<vmem>>, vector<1x128x32xbf16>
    %120 = vector.shape_cast %119 : vector<1x128x32xbf16> to vector<128x32xbf16>
    %121 = arith.truncf %118 : vector<8x128xf32> to vector<8x128xbf16>
    %cst_59 = arith.constant dense<0.000000e+00> : vector<8x32xf32>
    %122 = tpu.matmul %121, %120, %cst_59 {dimension_numbers = #tpu.dot_dimension_numbers<[1], [0], [0], [1], [0, 0, 1, 1], [], []>} : vector<8x128xbf16>, vector<128x32xbf16>, vector<8x32xf32> -> vector<8x32xf32>
    %123 = arith.addf %76, %122 : vector<8x32xf32>
    %c0_60 = arith.constant 0 : index
    %c0_61 = arith.constant 0 : index
    %c0_62 = arith.constant 0 : index
    %124 = vector.load %arg14[%c0_60, %c0_61, %c0_62] : memref<1x1x32xf32, #tpu.memory_space<vmem>>, vector<1x1x32xf32>
    %125 = vector.shape_cast %124 : vector<1x1x32xf32> to vector<1x32xf32>
    %126 = vector.broadcast %125 : vector<1x32xf32> to vector<8x32xf32>
    %127 = arith.addf %123, %126 : vector<8x32xf32>
    %c0_63 = arith.constant 0 : index
    %c0_64 = arith.constant 0 : index
    %128 = vector.load %arg16[%c0_63, %c0_64] : memref<8x32xf32, #tpu.memory_space<vmem>>, vector<8x32xf32>
    tpu.vector_store %arg16[%c0_63, %c0_64], %127 {strides = array<i32>} : memref<8x32xf32, #tpu.memory_space<vmem>>, vector<8x32xf32>,
    %c1_i32 = arith.constant 1 : i32
    %129 = arith.cmpi eq, %arg1, %c1_i32 : i32
    %130 = arith.extui %129 : i1 to i32
    %c0_i32_65 = arith.constant 0 : i32
    %131 = arith.cmpi ne, %130, %c0_i32_65 : i32
    scf.if %131 {
      %132 = arith.truncf %127 : vector<8x32xf32> to vector<8x32xbf16>
      %c0_66 = arith.constant 0 : index
      %c0_67 = arith.constant 0 : index
      %c0_68 = arith.constant 0 : index
      %133 = vector.load %arg15[%c0_66, %c0_67, %c0_68] : memref<1x8x32xbf16, #tpu.memory_space<vmem>>, vector<1x8x32xbf16>
      %134 = vector.shape_cast %133 : vector<1x8x32xbf16> to vector<8x32xbf16>
      %135 = vector.shape_cast %132 : vector<8x32xbf16> to vector<1x8x32xbf16>
      tpu.vector_store %arg15[%c0_66, %c0_67, %c0_68], %135 {strides = array<i32>} : memref<1x8x32xbf16, #tpu.memory_space<vmem>>, vector<1x8x32xbf16>,
    } else {
    }
    return
  }
  func.func @transform_0(%arg0: i32, %arg1: i32) -> (i32, i32, i32) {
    %c0_i32 = arith.constant 0 : i32
    %c0_i32_0 = arith.constant 0 : i32
    %c0_i32_1 = arith.constant 0 : i32
    return %arg0, %c0_i32, %c0_i32_0 : i32, i32, i32
  }
  func.func @transform_1(%arg0: i32, %arg1: i32) -> (i32, i32, i32) {
    %c0_i32 = arith.constant 0 : i32
    %c0_i32_0 = arith.constant 0 : i32
    %c0_i32_1 = arith.constant 0 : i32
    return %arg1, %c0_i32, %c0_i32_0 : i32, i32, i32
  }
  func.func @transform_2(%arg0: i32, %arg1: i32) -> (i32, i32, i32) {
    %c0_i32 = arith.constant 0 : i32
    %c0_i32_0 = arith.constant 0 : i32
    %c0_i32_1 = arith.constant 0 : i32
    return %arg1, %c0_i32, %c0_i32_0 : i32, i32, i32
  }
  func.func @transform_3(%arg0: i32, %arg1: i32) -> (i32, i32, i32, i32) {
    %c0_i32 = arith.constant 0 : i32
    %c0_i32_0 = arith.constant 0 : i32
    %c0_i32_1 = arith.constant 0 : i32
    %c0_i32_2 = arith.constant 0 : i32
    return %arg1, %c0_i32, %c0_i32_0, %c0_i32_1 : i32, i32, i32, i32
  }
  func.func @transform_4(%arg0: i32, %arg1: i32) -> (i32, i32, i32, i32) {
    %c0_i32 = arith.constant 0 : i32
    %c0_i32_0 = arith.constant 0 : i32
    %c0_i32_1 = arith.constant 0 : i32
    %c0_i32_2 = arith.constant 0 : i32
    return %arg1, %c0_i32, %c0_i32_0, %c0_i32_1 : i32, i32, i32, i32
  }
  func.func @transform_5(%arg0: i32, %arg1: i32) -> (i32, i32, i32, i32) {
    %c0_i32 = arith.constant 0 : i32
    %c0_i32_0 = arith.constant 0 : i32
    %c0_i32_1 = arith.constant 0 : i32
    %c0_i32_2 = arith.constant 0 : i32
    return %arg1, %c0_i32, %c0_i32_0, %c0_i32_1 : i32, i32, i32, i32
  }
  func.func @transform_6(%arg0: i32, %arg1: i32) -> (i32, i32, i32) {
    %c0_i32 = arith.constant 0 : i32
    %c0_i32_0 = arith.constant 0 : i32
    %c0_i32_1 = arith.constant 0 : i32
    return %arg1, %c0_i32, %c0_i32_0 : i32, i32, i32
  }
  func.func @transform_7(%arg0: i32, %arg1: i32) -> (i32, i32, i32) {
    %c0_i32 = arith.constant 0 : i32
    %c0_i32_0 = arith.constant 0 : i32
    %c0_i32_1 = arith.constant 0 : i32
    return %arg1, %c0_i32, %c0_i32_0 : i32, i32, i32
  }
  func.func @transform_8(%arg0: i32, %arg1: i32) -> (i32, i32, i32) {
    %c0_i32 = arith.constant 0 : i32
    %c0_i32_0 = arith.constant 0 : i32
    %c0_i32_1 = arith.constant 0 : i32
    return %arg1, %c0_i32, %c0_i32_0 : i32, i32, i32
  }
  func.func @transform_9(%arg0: i32, %arg1: i32) -> (i32, i32, i32) {
    %c0_i32 = arith.constant 0 : i32
    %c0_i32_0 = arith.constant 0 : i32
    %c0_i32_1 = arith.constant 0 : i32
    return %arg1, %c0_i32, %c0_i32_0 : i32, i32, i32
  }
  func.func @transform_10(%arg0: i32, %arg1: i32) -> (i32, i32, i32) {
    %c0_i32 = arith.constant 0 : i32
    %c0_i32_0 = arith.constant 0 : i32
    %c0_i32_1 = arith.constant 0 : i32
    return %arg1, %c0_i32, %c0_i32_0 : i32, i32, i32
  }
  func.func @transform_11(%arg0: i32, %arg1: i32) -> (i32, i32, i32) {
    %c0_i32 = arith.constant 0 : i32
    %c0_i32_0 = arith.constant 0 : i32
    %c0_i32_1 = arith.constant 0 : i32
    return %arg1, %c0_i32, %c0_i32_0 : i32, i32, i32
  }
  func.func @transform_12(%arg0: i32, %arg1: i32) -> (i32, i32, i32) {
    %c0_i32 = arith.constant 0 : i32
    %c0_i32_0 = arith.constant 0 : i32
    %c0_i32_1 = arith.constant 0 : i32
    return %arg1, %c0_i32, %c0_i32_0 : i32, i32, i32
  }
  func.func @transform_13(%arg0: i32, %arg1: i32) -> (i32, i32, i32) {
    %c0_i32 = arith.constant 0 : i32
    %c0_i32_0 = arith.constant 0 : i32
    %c0_i32_1 = arith.constant 0 : i32
    return %arg0, %c0_i32, %c0_i32_0 : i32, i32, i32
  }
}

module attributes {stable_mosaic.version = 11 : i64} {
  func.func @_clip_head_kernel(%arg0: memref<2x32xbf16, #tpu.memory_space<vmem>>, %arg1: memref<2x32xbf16, #tpu.memory_space<vmem>>, %arg2: memref<1x32xf32, #tpu.memory_space<vmem>>, %arg3: memref<1x32xf32, #tpu.memory_space<vmem>>, %arg4: memref<32x16xbf16, #tpu.memory_space<vmem>>, %arg5: memref<1x32xf32, #tpu.memory_space<vmem>>, %arg6: memref<1x32xf32, #tpu.memory_space<vmem>>, %arg7: memref<32x16xbf16, #tpu.memory_space<vmem>>, %arg8: memref<1x1xf32, #tpu.memory_space<vmem>>, %arg9: memref<2x2xf32, #tpu.memory_space<vmem>>) attributes {dimension_semantics = [], scalar_prefetch = 0 : i64, scratch_operands = 0 : i64, tpu.core_type = #tpu.core_type<tc>} {
    %c0 = arith.constant 0 : index
    %c0_0 = arith.constant 0 : index
    %0 = vector.load %arg0[%c0, %c0_0] : memref<2x32xbf16, #tpu.memory_space<vmem>>, vector<2x32xbf16>
    %1 = arith.extf %0 : vector<2x32xbf16> to vector<2x32xf32>
    %c0_1 = arith.constant 0 : index
    %c0_2 = arith.constant 0 : index
    %2 = vector.load %arg2[%c0_1, %c0_2] : memref<1x32xf32, #tpu.memory_space<vmem>>, vector<1x32xf32>
    %c0_3 = arith.constant 0 : index
    %c0_4 = arith.constant 0 : index
    %3 = vector.load %arg3[%c0_3, %c0_4] : memref<1x32xf32, #tpu.memory_space<vmem>>, vector<1x32xf32>
    %cst = arith.constant dense<0.000000e+00> : vector<2xf32>
    %4 = vector.multi_reduction <add>, %1, %cst [1] : vector<2x32xf32> to vector<2xf32>
    %5 = vector.shape_cast %4 : vector<2xf32> to vector<2x1xf32>
    %cst_5 = arith.constant 3.200000e+01 : f32
    %6 = vector.broadcast %cst_5 : f32 to vector<2x1xf32>
    %7 = arith.divf %5, %6 : vector<2x1xf32>
    %8 = vector.broadcast %7 : vector<2x1xf32> to vector<2x32xf32>
    %9 = arith.subf %1, %8 : vector<2x32xf32>
    %10 = arith.mulf %9, %9 : vector<2x32xf32>
    %cst_6 = arith.constant dense<0.000000e+00> : vector<2xf32>
    %11 = vector.multi_reduction <add>, %10, %cst_6 [1] : vector<2x32xf32> to vector<2xf32>
    %12 = vector.shape_cast %11 : vector<2xf32> to vector<2x1xf32>
    %cst_7 = arith.constant 3.200000e+01 : f32
    %13 = vector.broadcast %cst_7 : f32 to vector<2x1xf32>
    %14 = arith.divf %12, %13 : vector<2x1xf32>
    %15 = vector.broadcast %7 : vector<2x1xf32> to vector<2x32xf32>
    %16 = arith.subf %1, %15 : vector<2x32xf32>
    %cst_8 = arith.constant 9.99999974E-6 : f32
    %17 = vector.broadcast %cst_8 : f32 to vector<2x1xf32>
    %18 = arith.addf %14, %17 : vector<2x1xf32>
    %19 = math.rsqrt %18 : vector<2x1xf32>
    %20 = vector.broadcast %19 : vector<2x1xf32> to vector<2x32xf32>
    %21 = arith.mulf %16, %20 : vector<2x32xf32>
    %22 = vector.broadcast %2 : vector<1x32xf32> to vector<2x32xf32>
    %23 = arith.mulf %21, %22 : vector<2x32xf32>
    %24 = vector.broadcast %3 : vector<1x32xf32> to vector<2x32xf32>
    %25 = arith.addf %23, %24 : vector<2x32xf32>
    %c0_9 = arith.constant 0 : index
    %c0_10 = arith.constant 0 : index
    %26 = vector.load %arg4[%c0_9, %c0_10] : memref<32x16xbf16, #tpu.memory_space<vmem>>, vector<32x16xbf16>
    %27 = arith.truncf %25 : vector<2x32xf32> to vector<2x32xbf16>
    %cst_11 = arith.constant dense<0.000000e+00> : vector<2x16xf32>
    %28 = tpu.matmul %27, %26, %cst_11 {dimension_numbers = #tpu.dot_dimension_numbers<[1], [0], [0], [1], [0, 0, 1, 1], [], []>} : vector<2x32xbf16>, vector<32x16xbf16>, vector<2x16xf32> -> vector<2x16xf32>
    %c0_12 = arith.constant 0 : index
    %c0_13 = arith.constant 0 : index
    %29 = vector.load %arg1[%c0_12, %c0_13] : memref<2x32xbf16, #tpu.memory_space<vmem>>, vector<2x32xbf16>
    %30 = arith.extf %29 : vector<2x32xbf16> to vector<2x32xf32>
    %c0_14 = arith.constant 0 : index
    %c0_15 = arith.constant 0 : index
    %31 = vector.load %arg5[%c0_14, %c0_15] : memref<1x32xf32, #tpu.memory_space<vmem>>, vector<1x32xf32>
    %c0_16 = arith.constant 0 : index
    %c0_17 = arith.constant 0 : index
    %32 = vector.load %arg6[%c0_16, %c0_17] : memref<1x32xf32, #tpu.memory_space<vmem>>, vector<1x32xf32>
    %cst_18 = arith.constant dense<0.000000e+00> : vector<2xf32>
    %33 = vector.multi_reduction <add>, %30, %cst_18 [1] : vector<2x32xf32> to vector<2xf32>
    %34 = vector.shape_cast %33 : vector<2xf32> to vector<2x1xf32>
    %cst_19 = arith.constant 3.200000e+01 : f32
    %35 = vector.broadcast %cst_19 : f32 to vector<2x1xf32>
    %36 = arith.divf %34, %35 : vector<2x1xf32>
    %37 = vector.broadcast %36 : vector<2x1xf32> to vector<2x32xf32>
    %38 = arith.subf %30, %37 : vector<2x32xf32>
    %39 = arith.mulf %38, %38 : vector<2x32xf32>
    %cst_20 = arith.constant dense<0.000000e+00> : vector<2xf32>
    %40 = vector.multi_reduction <add>, %39, %cst_20 [1] : vector<2x32xf32> to vector<2xf32>
    %41 = vector.shape_cast %40 : vector<2xf32> to vector<2x1xf32>
    %cst_21 = arith.constant 3.200000e+01 : f32
    %42 = vector.broadcast %cst_21 : f32 to vector<2x1xf32>
    %43 = arith.divf %41, %42 : vector<2x1xf32>
    %44 = vector.broadcast %36 : vector<2x1xf32> to vector<2x32xf32>
    %45 = arith.subf %30, %44 : vector<2x32xf32>
    %cst_22 = arith.constant 9.99999974E-6 : f32
    %46 = vector.broadcast %cst_22 : f32 to vector<2x1xf32>
    %47 = arith.addf %43, %46 : vector<2x1xf32>
    %48 = math.rsqrt %47 : vector<2x1xf32>
    %49 = vector.broadcast %48 : vector<2x1xf32> to vector<2x32xf32>
    %50 = arith.mulf %45, %49 : vector<2x32xf32>
    %51 = vector.broadcast %31 : vector<1x32xf32> to vector<2x32xf32>
    %52 = arith.mulf %50, %51 : vector<2x32xf32>
    %53 = vector.broadcast %32 : vector<1x32xf32> to vector<2x32xf32>
    %54 = arith.addf %52, %53 : vector<2x32xf32>
    %c0_23 = arith.constant 0 : index
    %c0_24 = arith.constant 0 : index
    %55 = vector.load %arg7[%c0_23, %c0_24] : memref<32x16xbf16, #tpu.memory_space<vmem>>, vector<32x16xbf16>
    %56 = arith.truncf %54 : vector<2x32xf32> to vector<2x32xbf16>
    %cst_25 = arith.constant dense<0.000000e+00> : vector<2x16xf32>
    %57 = tpu.matmul %56, %55, %cst_25 {dimension_numbers = #tpu.dot_dimension_numbers<[1], [0], [0], [1], [0, 0, 1, 1], [], []>} : vector<2x32xbf16>, vector<32x16xbf16>, vector<2x16xf32> -> vector<2x16xf32>
    %58 = arith.mulf %28, %28 : vector<2x16xf32>
    %cst_26 = arith.constant dense<0.000000e+00> : vector<2xf32>
    %59 = vector.multi_reduction <add>, %58, %cst_26 [1] : vector<2x16xf32> to vector<2xf32>
    %60 = vector.shape_cast %59 : vector<2xf32> to vector<2x1xf32>
    %cst_27 = arith.constant 9.99999996E-13 : f32
    %61 = vector.broadcast %cst_27 : f32 to vector<2x1xf32>
    %62 = arith.addf %60, %61 : vector<2x1xf32>
    %63 = math.rsqrt %62 : vector<2x1xf32>
    %64 = vector.broadcast %63 : vector<2x1xf32> to vector<2x16xf32>
    %65 = arith.mulf %28, %64 : vector<2x16xf32>
    %66 = arith.mulf %57, %57 : vector<2x16xf32>
    %cst_28 = arith.constant dense<0.000000e+00> : vector<2xf32>
    %67 = vector.multi_reduction <add>, %66, %cst_28 [1] : vector<2x16xf32> to vector<2xf32>
    %68 = vector.shape_cast %67 : vector<2xf32> to vector<2x1xf32>
    %cst_29 = arith.constant 9.99999996E-13 : f32
    %69 = vector.broadcast %cst_29 : f32 to vector<2x1xf32>
    %70 = arith.addf %68, %69 : vector<2x1xf32>
    %71 = math.rsqrt %70 : vector<2x1xf32>
    %72 = vector.broadcast %71 : vector<2x1xf32> to vector<2x16xf32>
    %73 = arith.mulf %57, %72 : vector<2x16xf32>
    %cst_30 = arith.constant dense<0.000000e+00> : vector<2x2xf32>
    %74 = tpu.matmul %65, %73, %cst_30 {dimension_numbers = #tpu.dot_dimension_numbers<[1], [1], [0], [0], [0, 0, 1, 0], [], []>} : vector<2x16xf32>, vector<2x16xf32>, vector<2x2xf32> -> vector<2x2xf32>
    %c0_31 = arith.constant 0 : index
    %c0_32 = arith.constant 0 : index
    %75 = vector.load %arg8[%c0_31, %c0_32] : memref<1x1xf32, #tpu.memory_space<vmem>>, vector<1x1xf32>
    %76 = math.exp %75 : vector<1x1xf32>
    %77 = vector.broadcast %76 : vector<1x1xf32> to vector<2x2xf32>
    %78 = arith.mulf %77, %74 : vector<2x2xf32>
    %c0_33 = arith.constant 0 : index
    %c0_34 = arith.constant 0 : index
    %79 = vector.load %arg9[%c0_33, %c0_34] : memref<2x2xf32, #tpu.memory_space<vmem>>, vector<2x2xf32>
    tpu.vector_store %arg9[%c0_33, %c0_34], %78 {strides = array<i32>} : memref<2x2xf32, #tpu.memory_space<vmem>>, vector<2x2xf32>,
    return
  }
}

</mosaic_0001>

<llo_original>
// kernel: _lambda_.4
$region0: #{_lambda_.4}
  #allocation0 [shape = 'u32[]', space=smem, size = 0x4, offset = 0x4, fixed_abs, tag = 'smem constant byte address 0x4 - core index']
  #allocation1 [shape = 'u32[144,128]{1,0:T(1,128)}', space=vmem, size = 0x12000, scoped, tag = 'internal scratch']
  %s0 = inlined_call_operand.vmem [shape: bf16[2,4,192], index: 0, kind: input, shape index: {}]
  %s1 = inlined_call_operand.vmem [shape: bf16[192,32], index: 1, kind: input, shape index: {}]
  %s2 = inlined_call_operand.vmem [shape: f32[1,32], index: 2, kind: input, shape index: {}]
  %s3 = inlined_call_operand.vmem [shape: f32[5,32], index: 3, kind: input, shape index: {}]
  %s4 = inlined_call_operand.vmem [shape: f32[1,32], index: 4, kind: input, shape index: {}]
  %s5 = inlined_call_operand.vmem [shape: f32[1,32], index: 5, kind: input, shape index: {}]
  %s6 = inlined_call_operand.vmem [shape: bf16[2,5,32], index: 6, kind: output, shape index: {}]
  %s7 = sld [smem:[#allocation0]]
  $region57: #{_lambda_.4} parent=0
    _
  %s9 = ssub.s32 1, %s7
  %s10 = scalar_select 0, %s9, %s7
  loop: start=0, step=1, limit=4
  $region2: #{_lambda_.4} parent=0 // loop_pre_header
    _
  $region3: #{_lambda_.4} parent=0 // loop_header
    %s12 = sphi 0, %s16
    %p13 = scmp.ge.s32.totalorder %s12, 4
    %s22 = sphi 0, %s24
    %s25 = sphi 0, %s22
    %s26 = sphi 0, %s25
    %s42 = sphi 0, %s26
    %s46 = sphi 0, %s46
    %s48 = sphi 0, %s46
    %s49 = sphi 0, %s48
    %s63 = sphi 0, %s49
    %s67 = sphi 0, %s67
    %s69 = sphi 0, %s67
    %s70 = sphi 0, %s69
    %s84 = sphi 0, %s70
    %s88 = sphi 0, %s88
    %s90 = sphi 0, %s88
    %s91 = sphi 0, %s90
    %s105 = sphi 0, %s91
    %s109 = sphi 0, %s109
    %s111 = sphi 0, %s109
    %s112 = sphi 0, %s111
    %s126 = sphi 0, %s112
    %s130 = sphi 0, %s130
    %s132 = sphi 0, %s130
    %s133 = sphi 0, %s132
    %s147 = sphi 0, %s133
    %s153 = sphi 0, %s155
    %s156 = sphi 0, %s153
    %s157 = sphi 0, %s156
    %s173 = sphi 0, %s157
  $region4: #{_lambda_.4} parent=0 // loop_header_branch
    %15 = sbr.rel (%p13) target = $region8
  $region5: #{_lambda_.4} parent=0 // loop_body
    %s17 = ssub.s32 %s12, 1
    %s18 = ssub.s32 %s12, 2
    %s19 = sadd.s32 %s12, 1
    %s20 = ssub.s32 %s12, %s19
    %p21 = scmp.eq.s32.totalorder %s20, 0
    %s23 = sadd.s32 %s22, 1
    %s24 = scalar_select %p21, %s22, %s23
    %p27 = pneg %p21
    %p28 = scmp.eq.s32.totalorder %s12, 1
    %p29 = por %p27, %p28
    %p30 = scmp.ne.s32.totalorder %s22, %s25
    %p31 = scmp.eq.s32.totalorder %s12, 0
    %p32 = por %p30, %p31
    %p33 = scmp.ne.s32.totalorder %s22, %s25
    %p34 = scmp.eq.s32.totalorder %s17, 1
    %p35 = por %p33, %p34
    %p36 = scmp.ne.s32.totalorder %s25, %s26
    %p37 = scmp.eq.s32.totalorder %s17, 0
    %p38 = por %p36, %p37
    %p39 = scmp.ne.s32.totalorder %s25, %s26
    %p40 = scmp.eq.s32.totalorder %s18, 1
    %p41 = por %p39, %p40
    %p43 = scmp.ne.s32.totalorder %s26, %s42
    %p44 = scmp.eq.s32.totalorder %s18, 0
    %p45 = por %p43, %p44
    %s47 = sadd.s32 %s46, 1
    %p50 = scmp.eq.s32.totalorder %s12, 1
    %p51 = scmp.ne.s32.totalorder %s46, %s48
    %p52 = scmp.eq.s32.totalorder %s12, 0
    %p53 = por %p51, %p52
    %p54 = scmp.ne.s32.totalorder %s46, %s48
    %p55 = scmp.eq.s32.totalorder %s17, 1
    %p56 = por %p54, %p55
    %p57 = scmp.ne.s32.totalorder %s48, %s49
    %p58 = scmp.eq.s32.totalorder %s17, 0
    %p59 = por %p57, %p58
    %p60 = scmp.ne.s32.totalorder %s48, %s49
    %p61 = scmp.eq.s32.totalorder %s18, 1
    %p62 = por %p60, %p61
    %p64 = scmp.ne.s32.totalorder %s49, %s63
    %p65 = scmp.eq.s32.totalorder %s18, 0
    %p66 = por %p64, %p65
    %s68 = sadd.s32 %s67, 1
    %p71 = scmp.eq.s32.totalorder %s12, 1
    %p72 = scmp.ne.s32.totalorder %s67, %s69
    %p73 = scmp.eq.s32.totalorder %s12, 0
    %p74 = por %p72, %p73
    %p75 = scmp.ne.s32.totalorder %s67, %s69
    %p76 = scmp.eq.s32.totalorder %s17, 1
    %p77 = por %p75, %p76
    %p78 = scmp.ne.s32.totalorder %s69, %s70
    %p79 = scmp.eq.s32.totalorder %s17, 0
    %p80 = por %p78, %p79
    %p81 = scmp.ne.s32.totalorder %s69, %s70
    %p82 = scmp.eq.s32.totalorder %s18, 1
    %p83 = por %p81, %p82
    %p85 = scmp.ne.s32.totalorder %s70, %s84
    %p86 = scmp.eq.s32.totalorder %s18, 0
    %p87 = por %p85, %p86
    %s89 = sadd.s32 %s88, 1
    %p92 = scmp.eq.s32.totalorder %s12, 1
    %p93 = scmp.ne.s32.totalorder %s88, %s90
    %p94 = scmp.eq.s32.totalorder %s12, 0
    %p95 = por %p93, %p94
    %p96 = scmp.ne.s32.totalorder %s88, %s90
    %p97 = scmp.eq.s32.totalorder %s17, 1
    %p98 = por %p96, %p97
    %p99 = scmp.ne.s32.totalorder %s90, %s91
    %p100 = scmp.eq.s32.totalorder %s17, 0
    %p101 = por %p99, %p100
    %p102 = scmp.ne.s32.totalorder %s90, %s91
    %p103 = scmp.eq.s32.totalorder %s18, 1
    %p104 = por %p102, %p103
    %p106 = scmp.ne.s32.totalorder %s91, %s105
    %p107 = scmp.eq.s32.totalorder %s18, 0
    %p108 = por %p106, %p107
    %s110 = sadd.s32 %s109, 1
    %p113 = scmp.eq.s32.totalorder %s12, 1
    %p114 = scmp.ne.s32.totalorder %s109, %s111
    %p115 = scmp.eq.s32.totalorder %s12, 0
    %p116 = por %p114, %p115
    %p117 = scmp.ne.s32.totalorder %s109, %s111
    %p118 = scmp.eq.s32.totalorder %s17, 1
    %p119 = por %p117, %p118
    %p120 = scmp.ne.s32.totalorder %s111, %s112
    %p121 = scmp.eq.s32.totalorder %s17, 0
    %p122 = por %p120, %p121
    %p123 = scmp.ne.s32.totalorder %s111, %s112
    %p124 = scmp.eq.s32.totalorder %s18, 1
    %p125 = por %p123, %p124
    %p127 = scmp.ne.s32.totalorder %s112, %s126
    %p128 = scmp.eq.s32.totalorder %s18, 0
    %p129 = por %p127, %p128
    %s131 = sadd.s32 %s130, 1
    %p134 = scmp.eq.s32.totalorder %s12, 1
    %p135 = scmp.ne.s32.totalorder %s130, %s132
    %p136 = scmp.eq.s32.totalorder %s12, 0
    %p137 = por %p135, %p136
    %p138 = scmp.ne.s32.totalorder %s130, %s132
    %p139 = scmp.eq.s32.totalorder %s17, 1
    %p140 = por %p138, %p139
    %p141 = scmp.ne.s32.totalorder %s132, %s133
    %p142 = scmp.eq.s32.totalorder %s17, 0
    %p143 = por %p141, %p142
    %p144 = scmp.ne.s32.totalorder %s132, %s133
    %p145 = scmp.eq.s32.totalorder %s18, 1
    %p146 = por %p144, %p145
    %p148 = scmp.ne.s32.totalorder %s133, %s147
    %p149 = scmp.eq.s32.totalorder %s18, 0
    %p150 = por %p148, %p149
    %s151 = ssub.s32 %s12, %s19
    %p152 = scmp.eq.s32.totalorder %s151, 0
    %s154 = sadd.s32 %s153, 1
    %s155 = scalar_select %p152, %s153, %s154
    %p158 = pneg %p152
    %p159 = scmp.eq.s32.totalorder %s12, 1
    %p160 = por %p158, %p159
    %p161 = scmp.ne.s32.totalorder %s153, %s156
    %p162 = scmp.eq.s32.totalorder %s12, 0
    %p163 = por %p161, %p162
    %p164 = scmp.ne.s32.totalorder %s153, %s156
    %p165 = scmp.eq.s32.totalorder %s17, 1
    %p166 = por %p164, %p165
    %p167 = scmp.ne.s32.totalorder %s156, %s157
    %p168 = scmp.eq.s32.totalorder %s17, 0
    %p169 = por %p167, %p168
    %p170 = scmp.ne.s32.totalorder %s156, %s157
    %p171 = scmp.eq.s32.totalorder %s18, 1
    %p172 = por %p170, %p171
    %p174 = scmp.ne.s32.totalorder %s157, %s173
    %p175 = scmp.eq.s32.totalorder %s18, 0
    %p176 = por %p174, %p175
    %p177 = scmp.le.s32.totalorder 1, %s12
    %p178 = scmp.lt.s32.totalorder %s12, 3
    %p179 = pnand %p177, %p178
    %p180 = pneg %p179
    // Predicated region
    $region9: #{_lambda_.4} parent=5 // pred_check
      _
    $region10: #{_lambda_.4} parent=5 // pred_check_branch
      %182 = sbr.rel (%p179) target = $region12
    $region11: #{_lambda_.4} parent=5 // pred_region
      %s183 = ssub.s32 %s12, 1
      // Predicated region
      $region13: #{_lambda_.4} parent=11 // pred_check
        %p184 = pneg %p59
      $region14: #{_lambda_.4} parent=11 // pred_check_branch
        %186 = sbr.rel (%p184) target = $region16
      $region15: #{_lambda_.4} parent=11 // pred_region
        _
      $region16: #{_lambda_.4} parent=11 // pred_fallthru
        _
      // Predicated region
      $region17: #{_lambda_.4} parent=11 // pred_check
        %p187 = pneg %p80
      $region18: #{_lambda_.4} parent=11 // pred_check_branch
        %189 = sbr.rel (%p187) target = $region20
      $region19: #{_lambda_.4} parent=11 // pred_region
        _
      $region20: #{_lambda_.4} parent=11 // pred_fallthru
        _
      // Predicated region
      $region21: #{_lambda_.4} parent=11 // pred_check
        %p190 = pneg %p101
      $region22: #{_lambda_.4} parent=11 // pred_check_branch
        %192 = sbr.rel (%p190) target = $region24
      $region23: #{_lambda_.4} parent=11 // pred_region
        _
      $region24: #{_lambda_.4} parent=11 // pred_fallthru
        _
      // Predicated region
      $region25: #{_lambda_.4} parent=11 // pred_check
        %p193 = pneg %p122
      $region26: #{_lambda_.4} parent=11 // pred_check_branch
        %195 = sbr.rel (%p193) target = $region28
      $region27: #{_lambda_.4} parent=11 // pred_region
        _
      $region28: #{_lambda_.4} parent=11 // pred_fallthru
        _
      // Predicated region
      $region29: #{_lambda_.4} parent=11 // pred_check
        %p196 = pneg %p143
      $region30: #{_lambda_.4} parent=11 // pred_check_branch
        %198 = sbr.rel (%p196) target = $region32
      $region31: #{_lambda_.4} parent=11 // pred_region
        _
      $region32: #{_lambda_.4} parent=11 // pred_fallthru
        _
    $region12: #{_lambda_.4} parent=5 // pred_fallthru
      _
    %p199 = scmp.lt.s32.totalorder %s12, 2
    // Predicated region
    $region33: #{_lambda_.4} parent=5 // pred_check
      %p200 = pneg %p199
    $region34: #{_lambda_.4} parent=5 // pred_check_branch
      %202 = sbr.rel (%p200) target = $region36
    $region35: #{_lambda_.4} parent=5 // pred_region
      // Predicated region
      $region37: #{_lambda_.4} parent=35 // pred_check
        %p203 = pneg %p32
      $region38: #{_lambda_.4} parent=35 // pred_check_branch
        %205 = sbr.rel (%p203) target = $region40
      $region39: #{_lambda_.4} parent=35 // pred_region
        %p206 = scmp.lt.s32.totalorder %s12, 1
        %s207 = scalar_select %p206, %s12, 1
        %s208 = smul.addr %s207, 2
        %s209 = smul.addr %s208, 2
        %s210 = scalar_lea.vmem %s0, %s209
      $region40: #{_lambda_.4} parent=35 // pred_fallthru
        _
    $region36: #{_lambda_.4} parent=5 // pred_fallthru
      _
    %p211 = scmp.le.s32.totalorder 1, %s12
    %p212 = scmp.lt.s32.totalorder %s12, 3
    %p213 = pnand %p211, %p212
    %p214 = pneg %p213
    // Predicated region
    $region41: #{_lambda_.4} parent=5 // pred_check
      _
    $region42: #{_lambda_.4} parent=5 // pred_check_branch
      %216 = sbr.rel (%p213) target = $region44
    $region43: #{_lambda_.4} parent=5 // pred_region
      %s217 = ssub.s32 %s12, 1
      %p218 = scmp.lt.s32.totalorder %s17, 1
      %s219 = scalar_select %p218, %s17, 1
      %s220 = smul.addr %s219, 2
      %s221 = smul.addr %s220, 2
      %s222 = scalar_lea.vmem %s0, %s221
      %p223 = pneg %p38
      %p224 = pneg %p35
      %p225 = pneg %p59
      %p226 = pneg %p56
      %p227 = pneg %p80
      %p228 = pneg %p77
      %p229 = pneg %p101
      %p230 = pneg %p98
      %p231 = pneg %p122
      %p232 = pneg %p119
      %p233 = pneg %p143
      %p234 = pneg %p140
      %p235 = pneg %p169
      %p236 = pneg %p166
      %p237 = scmp.lt.s32.totalorder %s17, 1
      %s238 = scalar_select %p237, %s17, 1
      %s239 = smul.addr %s238, 4
      %s240 = scalar_lea.vmem %s6, %s239
      %p241 = scmp.lt.s32.totalorder %s17, 1
      %s242 = scalar_select %p241, %s17, 1
      %s243 = smul.addr %s242, 2
      %s244 = smul.addr %s243, 2
      %s245 = scalar_lea.vmem %s0, %s244
      %p246 = scmp.lt.s32.totalorder %s17, 1
      %s247 = scalar_select %p246, %s17, 1
      %s248 = smul.addr %s247, 4
      %s249 = scalar_lea.vmem %s6, %s248
      %v251 = vld [vmem:[%s245] sm:$0xf]
      %v252 = vld [vmem:[%s1] sm:$0xf]
      %v253 = vld [vmem:[%s1 + $0x4] sm:$0xf]
      %v254 = vld [vmem:[%s1 + $0x8] sm:$0xf]
      %v255 = vld [vmem:[%s1 + $0xc] sm:$0xf]
      %v256 = vld [vmem:[%s1 + $0x10] sm:$0xf]
      %v257 = vld [vmem:[%s1 + $0x14] sm:$0xf]
      %v258 = vld [vmem:[%s1 + $0x18] sm:$0xf]
      %v259 = vld [vmem:[%s1 + $0x1c] sm:$0xf]
      %v260 = vld [vmem:[%s1 + $0x20] sm:$0xf]
      %v261 = vld [vmem:[%s1 + $0x24] sm:$0xf]
      %v262 = vld [vmem:[%s1 + $0x28] sm:$0xf]
      %v263 = vld [vmem:[%s1 + $0x2c] sm:$0xf]
      %v264 = vld [vmem:[%s1 + $0x30] sm:$0xf]
      %v265 = vld [vmem:[%s1 + $0x34] sm:$0xf]
      %v266 = vld [vmem:[%s1 + $0x38] sm:$0xf]
      %v267 = vld [vmem:[%s1 + $0x3c] sm:$0xf]
      %v268 = vld [vmem:[%s1 + $0x40] sm:$0xf]
      %v269 = vld [vmem:[%s1 + $0x44] sm:$0xf]
      %v270 = vld [vmem:[%s1 + $0x48] sm:$0xf]
      %v271 = vld [vmem:[%s1 + $0x4c] sm:$0xf]
      %v272 = vld [vmem:[%s1 + $0x50] sm:$0xf]
      %v273 = vld [vmem:[%s1 + $0x54] sm:$0xf]
      %v274 = vld [vmem:[%s1 + $0x58] sm:$0xf]
      %v275 = vld [vmem:[%s1 + $0x5c] sm:$0xf]
      %v278 = vunpack.c.l.s4 1983009808
      %v279 = vunpack.c.0.s8 %v278
      %v280 = vlaneseq
      %v281 = vshrl.u32 %v280, 7
      %v282 = vsub.s32 %v279, %v281
      %v283 = vrot.slane %v251, %v282
      %v284 = vcombine.high %v283, %v283
      %v310 = vunpack.c.l.b16 %v252
      %v311 = vunpack.c.l.b16 %v253
      %v312 = vunpack.c.l.b16 %v254
      %v313 = vunpack.c.l.b16 %v255
      %v314 = vunpack.c.l.b16 %v256
      %v315 = vunpack.c.l.b16 %v257
      %v316 = vunpack.c.l.b16 %v258
      %v317 = vunpack.c.l.b16 %v259
      %v318 = vunpack.c.l.b16 %v260
      %v319 = vunpack.c.l.b16 %v261
      %v320 = vunpack.c.l.b16 %v262
      %v321 = vunpack.c.l.b16 %v263
      %v322 = vunpack.c.l.b16 %v264
      %v323 = vunpack.c.l.b16 %v265
      %v324 = vunpack.c.l.b16 %v266
      %v325 = vunpack.c.l.b16 %v267
      %v326 = vunpack.c.l.b16 %v268
      %v327 = vunpack.c.l.b16 %v269
      %v328 = vunpack.c.l.b16 %v270
      %v329 = vunpack.c.l.b16 %v271
      %v330 = vunpack.c.l.b16 %v272
      %v331 = vunpack.c.l.b16 %v273
      %v332 = vunpack.c.l.b16 %v274
      %v333 = vunpack.c.l.b16 %v275
      %v334 = vpack.c.b16 %v311, %v310
      %v335 = vpack.c.b16 %v313, %v312
      %v336 = vpack.c.b16 %v315, %v314
      %v337 = vpack.c.b16 %v317, %v316
      %v338 = vpack.c.b16 %v319, %v318
      %v339 = vpack.c.b16 %v321, %v320
      %v340 = vpack.c.b16 %v323, %v322
      %v341 = vpack.c.b16 %v325, %v324
      %v342 = vpack.c.b16 %v327, %v326
      %v343 = vpack.c.b16 %v329, %v328
      %v344 = vpack.c.b16 %v331, %v330
      %v345 = vpack.c.b16 %v333, %v332
      %vm358 = vcmask 523264
      %v360 = vsel %vm358, %v284, 0
      %362 = vmatprep.subr.bf16.mxu0 0
      %363 = vmatpush1.bf16.msra.mxu0 %v334
      %364 = vmatprep.subr.bf16.mxu0 0
      %365 = vmatpush1.bf16.msra.mxu0 %v335
      %366 = vmatprep.subr.bf16.mxu0 0
      %367 = vmatpush1.bf16.msra.mxu0 %v336
      %368 = vmatprep.subr.bf16.mxu0 0
      %369 = vmatpush1.bf16.msra.mxu0 %v337
      %370 = vmatprep.subr.bf16.mxu0 0
      %371 = vmatpush1.bf16.msra.mxu0 %v338
      %372 = vmatprep.subr.bf16.mxu0 0
      %373 = vmatpush1.bf16.msra.mxu0 %v339
      %374 = vmatprep.subr.bf16.mxu0 0
      %375 = vmatpush1.bf16.msra.mxu0 %v340
      %376 = vmatprep.subr.bf16.mxu0 0
      %377 = vmatpush1.bf16.msra.mxu0 %v341
      %378 = vmatprep.subr.bf16.mxu0 0
      %379 = vmatpush1.bf16.msra.mxu0 %v342
      %380 = vmatprep.subr.bf16.mxu0 0
      %381 = vmatpush1.bf16.msra.mxu0 %v343
      %382 = vmatprep.subr.bf16.mxu0 0
      %383 = vmatpush1.bf16.msra.mxu0 %v344
      %384 = vmatprep.subr.bf16.mxu0 0
      %385 = vmatpush1.bf16.msra.mxu0 %v345
      %386 = vmatprep.subr.bf16.mxu0 0
      %387 = vmatpush1.bf16.msra.mxu0 0
      %388 = vmatprep.subr.bf16.mxu0 0
      %389 = vmatpush1.bf16.msra.mxu0 0
      %390 = vmatprep.subr.bf16.mxu0 0
      %391 = vmatpush1.bf16.msra.mxu0 0
      %392 = vmatprep.subr.bf16.mxu0 0
      %393 = vmatpush1.bf16.msra.mxu0 0
      %394 = vmatprep.mubr.bf16.mxu0 %v360
      %395 = vmatmul.mubr.bf16.gmra.mrb[0].mxu0 %v283
      %v396 = vpop.f32.mrb[0].mxu0
      %v397 = vadd.f32 0.0, %v396
      %v398 = vpop.f32.mrb[0].mxu0
      %v399 = vpop.f32.mrb[0].mxu0
      %v400 = vpop.f32.mrb[0].mxu0
      %401 = vdwg.mxu0
      %v402 = vld [vmem:[%s2] sm:$0x1]
      %v404 = vrot.slane %v397, 7
      %vm406 = vcmask 1040384
      %v407 = vsel %vm406, %v402, %v404
      %v408 = vld [vmem:[%s3] sm:$0x1f]
      %v409 = vadd.f32 %v407, %v408
      %v410 = vld [vmem:[%s4] sm:$0x1]
      %v411 = vld [vmem:[%s5] sm:$0x1]
      %vm412 = vcmask 258048
      %v413 = vsel %vm412, %v409, 0.0
      %414 = vadd.xlane.f32.xlu0 %v413
      %v415 = vpop.xlane.xlu0 %414
      %v416 = vrcp.pop 32.0
      %v417 = vmul.f32 %v415, %v416
      %v418 = vsub.f32 %v409, %v417
      %v419 = vmul.f32 %v418, %v418
      %v420 = vsel %vm412, %v419, 0.0
      %421 = vadd.xlane.f32.xlu0 %v420
      %v422 = vpop.xlane.xlu0 %421
      %v423 = vmul.f32 %v422, %v416
      %v424 = vadd.f32 %v423, 1e-05
      %v425 = vrsqrt.pop %v424
      %v426 = vmul.f32 %v418, %v425
      %v428 = vlaneseq
      %v429 = vshrl.u32 %v428, 7
      %v430 = vsub.s32 0, %v429
      %v431 = vrot.slane %v410, %v430
      %v433 = vmul.f32 %v426, %v431
      %v435 = vlaneseq
      %v436 = vshrl.u32 %v435, 7
      %v437 = vsub.s32 0, %v436
      %v438 = vrot.slane %v411, %v437
      %v440 = vadd.f32 %v433, %v438
      %v441 = vpack.c.bf16 %v440, %v440
      %vm442 = vcmask 256000
      %vm443 = vsmask.f32 2304
      %vm444 = vmand %vm442, %vm443
      %v445 = vld [vmem:[%s249] sm:$0x7]
      %v446 = vsel %vm444, %v441, %v445
      %447 = vst [vmem:[%s249] sm:$0x7] %v446
      %p448 = scmp.lt.s32.totalorder %s17, 1
      %s449 = scalar_select %p448, %s17, 1
      %s450 = smul.addr %s449, 4
      %s451 = scalar_lea.vmem %s6, %s450
      // Predicated region
      $region45: #{_lambda_.4} parent=43 // pred_check
        %p452 = pneg %p166
      $region46: #{_lambda_.4} parent=43 // pred_check_branch
        %454 = sbr.rel (%p452) target = $region48
      $region47: #{_lambda_.4} parent=43 // pred_region
        _
      $region48: #{_lambda_.4} parent=43 // pred_fallthru
        _
    $region44: #{_lambda_.4} parent=5 // pred_fallthru
      _
    %p455 = scmp.le.s32.totalorder 2, %s12
    // Predicated region
    $region49: #{_lambda_.4} parent=5 // pred_check
      %p456 = pneg %p455
    $region50: #{_lambda_.4} parent=5 // pred_check_branch
      %458 = sbr.rel (%p456) target = $region52
    $region51: #{_lambda_.4} parent=5 // pred_region
      %s459 = ssub.s32 %s12, 2
      // Predicated region
      $region53: #{_lambda_.4} parent=51 // pred_check
        %p460 = pneg %p172
      $region54: #{_lambda_.4} parent=51 // pred_check_branch
        %462 = sbr.rel (%p460) target = $region56
      $region55: #{_lambda_.4} parent=51 // pred_region
        %p463 = scmp.lt.s32.totalorder %s18, 1
        %s464 = scalar_select %p463, %s18, 1
        %s465 = smul.addr %s464, 4
        %s466 = scalar_lea.vmem %s6, %s465
      $region56: #{_lambda_.4} parent=51 // pred_fallthru
        _
    $region52: #{_lambda_.4} parent=5 // pred_fallthru
      _
  $region6: #{_lambda_.4} parent=0 // loop_footer
    %s16 = sadd.s32 1, %s12
  $region7: #{_lambda_.4} parent=0 // loop_footer_branch
    %11 = sbr.rel target = $region3
  $region8: #{_lambda_.4} parent=0 // loop_exit
    _

// kernel: _lambda_.5
$region0: #{_lambda_.5}
  #allocation0 [shape = 'u32[]', space=smem, size = 0x4, offset = 0x4, fixed_abs, tag = 'smem constant byte address 0x4 - core index']
  #allocation1 [shape = 'u32[144,128]{1,0:T(1,128)}', space=vmem, size = 0x12000, scoped, tag = 'internal scratch']
  #allocation2 [shape = 'f32[5,32]{1,0:T(8,128)}', space=vmem, size = 0x1000, scoped, tag = 'scratch operand']
  %s0 = inlined_call_operand.vmem [shape: bf16[2,5,32], index: 0, kind: input, shape index: {}]
  %s1 = inlined_call_operand.vmem [shape: f32[2,1,32], index: 1, kind: input, shape index: {}]
  %s2 = inlined_call_operand.vmem [shape: f32[2,1,32], index: 2, kind: input, shape index: {}]
  %s3 = inlined_call_operand.vmem [shape: bf16[2,12,32,8], index: 3, kind: input, shape index: {}]
  %s4 = inlined_call_operand.vmem [shape: f32[2,12,1,8], index: 4, kind: input, shape index: {}]
  %s5 = inlined_call_operand.vmem [shape: bf16[2,4,8,32], index: 5, kind: input, shape index: {}]
  %s6 = inlined_call_operand.vmem [shape: f32[2,1,32], index: 6, kind: input, shape index: {}]
  %s7 = inlined_call_operand.vmem [shape: f32[2,1,32], index: 7, kind: input, shape index: {}]
  %s8 = inlined_call_operand.vmem [shape: f32[2,1,32], index: 8, kind: input, shape index: {}]
  %s9 = inlined_call_operand.vmem [shape: bf16[2,32,128], index: 9, kind: input, shape index: {}]
  %s10 = inlined_call_operand.vmem [shape: f32[2,1,128], index: 10, kind: input, shape index: {}]
  %s11 = inlined_call_operand.vmem [shape: bf16[2,128,32], index: 11, kind: input, shape index: {}]
  %s12 = inlined_call_operand.vmem [shape: f32[2,1,32], index: 12, kind: input, shape index: {}]
  %s13 = inlined_call_operand.vmem [shape: bf16[2,5,32], index: 13, kind: output, shape index: {}]
  %s14 = sld [smem:[#allocation0]]
  $region93: #{_lambda_.5} parent=0
    _
  %s16 = ssub.s32 1, %s14
  %s17 = scalar_select 0, %s16, %s14
  loop: start=0, step=1, limit=6
  $region2: #{_lambda_.5} parent=0 // loop_pre_header
    _
  $region3: #{_lambda_.5} parent=0 // loop_header
    %s19 = sphi 0, %s23
    %p20 = scmp.ge.s32.totalorder %s19, 6
    %s26 = sphi 0, %s38
    %s27 = sphi 0, %s34
    %s28 = sphi 0, %s26
    %s29 = sphi 0, %s27
    %s30 = sphi 0, %s28
    %s31 = sphi 0, %s29
    %s41 = sphi 0, %s43
    %s44 = sphi 0, %s41
    %s45 = sphi 0, %s44
    %s61 = sphi 0, %s45
    %s67 = sphi 0, %s69
    %s70 = sphi 0, %s67
    %s71 = sphi 0, %s70
    %s87 = sphi 0, %s71
    %s93 = sphi 0, %s95
    %s96 = sphi 0, %s93
    %s97 = sphi 0, %s96
    %s113 = sphi 0, %s97
    %s119 = sphi 0, %s121
    %s122 = sphi 0, %s119
    %s123 = sphi 0, %s122
    %s139 = sphi 0, %s123
    %s145 = sphi 0, %s147
    %s148 = sphi 0, %s145
    %s149 = sphi 0, %s148
    %s165 = sphi 0, %s149
    %s171 = sphi 0, %s173
    %s174 = sphi 0, %s171
    %s175 = sphi 0, %s174
    %s191 = sphi 0, %s175
    %s197 = sphi 0, %s199
    %s200 = sphi 0, %s197
    %s201 = sphi 0, %s200
    %s217 = sphi 0, %s201
    %s223 = sphi 0, %s225
    %s226 = sphi 0, %s223
    %s227 = sphi 0, %s226
    %s243 = sphi 0, %s227
    %s249 = sphi 0, %s251
    %s252 = sphi 0, %s249
    %s253 = sphi 0, %s252
    %s269 = sphi 0, %s253
    %s275 = sphi 0, %s277
    %s278 = sphi 0, %s275
    %s279 = sphi 0, %s278
    %s295 = sphi 0, %s279
    %s301 = sphi 0, %s303
    %s304 = sphi 0, %s301
    %s305 = sphi 0, %s304
    %s321 = sphi 0, %s305
    %s327 = sphi 0, %s329
    %s330 = sphi 0, %s327
    %s331 = sphi 0, %s330
    %s347 = sphi 0, %s331
    %s353 = sphi 0, %s355
    %s356 = sphi 0, %s353
    %s357 = sphi 0, %s356
    %s373 = sphi 0, %s357
    %s379 = sphi 0, %s381
    %s382 = sphi 0, %s379
    %s383 = sphi 0, %s382
    %s399 = sphi 0, %s383
  $region4: #{_lambda_.5} parent=0 // loop_header_branch
    %22 = sbr.rel (%p20) target = $region8
  $region5: #{_lambda_.5} parent=0 // loop_body
    %s24 = ssub.s32 %s19, 1
    %s25 = ssub.s32 %s19, 2
    %s32 = sadd.s32 1, %s27
    %p33 = scmp.ge.s32.totalorder %s32, 2
    %s34 = scalar_select %p33, 0, %s32
    %s35 = sadd.s32 1, %s26
    %s36 = scalar_select %p33, %s35, %s26
    %p37 = scmp.ge.s32.totalorder %s36, 2
    %s38 = scalar_select %p37, 0, %s36
    %s39 = ssub.s32 %s26, %s38
    %p40 = scmp.eq.s32.totalorder %s39, 0
    %s42 = sadd.s32 %s41, 1
    %s43 = scalar_select %p40, %s41, %s42
    %p46 = pneg %p40
    %p47 = scmp.eq.s32.totalorder %s19, 3
    %p48 = por %p46, %p47
    %p49 = scmp.ne.s32.totalorder %s41, %s44
    %p50 = scmp.eq.s32.totalorder %s19, 0
    %p51 = por %p49, %p50
    %p52 = scmp.ne.s32.totalorder %s41, %s44
    %p53 = scmp.eq.s32.totalorder %s24, 3
    %p54 = por %p52, %p53
    %p55 = scmp.ne.s32.totalorder %s44, %s45
    %p56 = scmp.eq.s32.totalorder %s24, 0
    %p57 = por %p55, %p56
    %p58 = scmp.ne.s32.totalorder %s44, %s45
    %p59 = scmp.eq.s32.totalorder %s25, 3
    %p60 = por %p58, %p59
    %p62 = scmp.ne.s32.totalorder %s45, %s61
    %p63 = scmp.eq.s32.totalorder %s25, 0
    %p64 = por %p62, %p63
    %s65 = ssub.s32 %s27, %s34
    %p66 = scmp.eq.s32.totalorder %s65, 0
    %s68 = sadd.s32 %s67, 1
    %s69 = scalar_select %p66, %s67, %s68
    %p72 = pneg %p66
    %p73 = scmp.eq.s32.totalorder %s19, 3
    %p74 = por %p72, %p73
    %p75 = scmp.ne.s32.totalorder %s67, %s70
    %p76 = scmp.eq.s32.totalorder %s19, 0
    %p77 = por %p75, %p76
    %p78 = scmp.ne.s32.totalorder %s67, %s70
    %p79 = scmp.eq.s32.totalorder %s24, 3
    %p80 = por %p78, %p79
    %p81 = scmp.ne.s32.totalorder %s70, %s71
    %p82 = scmp.eq.s32.totalorder %s24, 0
    %p83 = por %p81, %p82
    %p84 = scmp.ne.s32.totalorder %s70, %s71
    %p85 = scmp.eq.s32.totalorder %s25, 3
    %p86 = por %p84, %p85
    %p88 = scmp.ne.s32.totalorder %s71, %s87
    %p89 = scmp.eq.s32.totalorder %s25, 0
    %p90 = por %p88, %p89
    %s91 = ssub.s32 %s27, %s34
    %p92 = scmp.eq.s32.totalorder %s91, 0
    %s94 = sadd.s32 %s93, 1
    %s95 = scalar_select %p92, %s93, %s94
    %p98 = pneg %p92
    %p99 = scmp.eq.s32.totalorder %s19, 3
    %p100 = por %p98, %p99
    %p101 = scmp.ne.s32.totalorder %s93, %s96
    %p102 = scmp.eq.s32.totalorder %s19, 0
    %p103 = por %p101, %p102
    %p104 = scmp.ne.s32.totalorder %s93, %s96
    %p105 = scmp.eq.s32.totalorder %s24, 3
    %p106 = por %p104, %p105
    %p107 = scmp.ne.s32.totalorder %s96, %s97
    %p108 = scmp.eq.s32.totalorder %s24, 0
    %p109 = por %p107, %p108
    %p110 = scmp.ne.s32.totalorder %s96, %s97
    %p111 = scmp.eq.s32.totalorder %s25, 3
    %p112 = por %p110, %p111
    %p114 = scmp.ne.s32.totalorder %s97, %s113
    %p115 = scmp.eq.s32.totalorder %s25, 0
    %p116 = por %p114, %p115
    %s117 = ssub.s32 %s27, %s34
    %p118 = scmp.eq.s32.totalorder %s117, 0
    %s120 = sadd.s32 %s119, 1
    %s121 = scalar_select %p118, %s119, %s120
    %p124 = pneg %p118
    %p125 = scmp.eq.s32.totalorder %s19, 3
    %p126 = por %p124, %p125
    %p127 = scmp.ne.s32.totalorder %s119, %s122
    %p128 = scmp.eq.s32.totalorder %s19, 0
    %p129 = por %p127, %p128
    %p130 = scmp.ne.s32.totalorder %s119, %s122
    %p131 = scmp.eq.s32.totalorder %s24, 3
    %p132 = por %p130, %p131
    %p133 = scmp.ne.s32.totalorder %s122, %s123
    %p134 = scmp.eq.s32.totalorder %s24, 0
    %p135 = por %p133, %p134
    %p136 = scmp.ne.s32.totalorder %s122, %s123
    %p137 = scmp.eq.s32.totalorder %s25, 3
    %p138 = por %p136, %p137
    %p140 = scmp.ne.s32.totalorder %s123, %s139
    %p141 = scmp.eq.s32.totalorder %s25, 0
    %p142 = por %p140, %p141
    %s143 = ssub.s32 %s27, %s34
    %p144 = scmp.eq.s32.totalorder %s143, 0
    %s146 = sadd.s32 %s145, 1
    %s147 = scalar_select %p144, %s145, %s146
    %p150 = pneg %p144
    %p151 = scmp.eq.s32.totalorder %s19, 3
    %p152 = por %p150, %p151
    %p153 = scmp.ne.s32.totalorder %s145, %s148
    %p154 = scmp.eq.s32.totalorder %s19, 0
    %p155 = por %p153, %p154
    %p156 = scmp.ne.s32.totalorder %s145, %s148
    %p157 = scmp.eq.s32.totalorder %s24, 3
    %p158 = por %p156, %p157
    %p159 = scmp.ne.s32.totalorder %s148, %s149
    %p160 = scmp.eq.s32.totalorder %s24, 0
    %p161 = por %p159, %p160
    %p162 = scmp.ne.s32.totalorder %s148, %s149
    %p163 = scmp.eq.s32.totalorder %s25, 3
    %p164 = por %p162, %p163
    %p166 = scmp.ne.s32.totalorder %s149, %s165
    %p167 = scmp.eq.s32.totalorder %s25, 0
    %p168 = por %p166, %p167
    %s169 = ssub.s32 %s27, %s34
    %p170 = scmp.eq.s32.totalorder %s169, 0
    %s172 = sadd.s32 %s171, 1
    %s173 = scalar_select %p170, %s171, %s172
    %p176 = pneg %p170
    %p177 = scmp.eq.s32.totalorder %s19, 3
    %p178 = por %p176, %p177
    %p179 = scmp.ne.s32.totalorder %s171, %s174
    %p180 = scmp.eq.s32.totalorder %s19, 0
    %p181 = por %p179, %p180
    %p182 = scmp.ne.s32.totalorder %s171, %s174
    %p183 = scmp.eq.s32.totalorder %s24, 3
    %p184 = por %p182, %p183
    %p185 = scmp.ne.s32.totalorder %s174, %s175
    %p186 = scmp.eq.s32.totalorder %s24, 0
    %p187 = por %p185, %p186
    %p188 = scmp.ne.s32.totalorder %s174, %s175
    %p189 = scmp.eq.s32.totalorder %s25, 3
    %p190 = por %p188, %p189
    %p192 = scmp.ne.s32.totalorder %s175, %s191
    %p193 = scmp.eq.s32.totalorder %s25, 0
    %p194 = por %p192, %p193
    %s195 = ssub.s32 %s27, %s34
    %p196 = scmp.eq.s32.totalorder %s195, 0
    %s198 = sadd.s32 %s197, 1
    %s199 = scalar_select %p196, %s197, %s198
    %p202 = pneg %p196
    %p203 = scmp.eq.s32.totalorder %s19, 3
    %p204 = por %p202, %p203
    %p205 = scmp.ne.s32.totalorder %s197, %s200
    %p206 = scmp.eq.s32.totalorder %s19, 0
    %p207 = por %p205, %p206
    %p208 = scmp.ne.s32.totalorder %s197, %s200
    %p209 = scmp.eq.s32.totalorder %s24, 3
    %p210 = por %p208, %p209
    %p211 = scmp.ne.s32.totalorder %s200, %s201
    %p212 = scmp.eq.s32.totalorder %s24, 0
    %p213 = por %p211, %p212
    %p214 = scmp.ne.s32.totalorder %s200, %s201
    %p215 = scmp.eq.s32.totalorder %s25, 3
    %p216 = por %p214, %p215
    %p218 = scmp.ne.s32.totalorder %s201, %s217
    %p219 = scmp.eq.s32.totalorder %s25, 0
    %p220 = por %p218, %p219
    %s221 = ssub.s32 %s27, %s34
    %p222 = scmp.eq.s32.totalorder %s221, 0
    %s224 = sadd.s32 %s223, 1
    %s225 = scalar_select %p222, %s223, %s224
    %p228 = pneg %p222
    %p229 = scmp.eq.s32.totalorder %s19, 3
    %p230 = por %p228, %p229
    %p231 = scmp.ne.s32.totalorder %s223, %s226
    %p232 = scmp.eq.s32.totalorder %s19, 0
    %p233 = por %p231, %p232
    %p234 = scmp.ne.s32.totalorder %s223, %s226
    %p235 = scmp.eq.s32.totalorder %s24, 3
    %p236 = por %p234, %p235
    %p237 = scmp.ne.s32.totalorder %s226, %s227
    %p238 = scmp.eq.s32.totalorder %s24, 0
    %p239 = por %p237, %p238
    %p240 = scmp.ne.s32.totalorder %s226, %s227
    %p241 = scmp.eq.s32.totalorder %s25, 3
    %p242 = por %p240, %p241
    %p244 = scmp.ne.s32.totalorder %s227, %s243
    %p245 = scmp.eq.s32.totalorder %s25, 0
    %p246 = por %p244, %p245
    %s247 = ssub.s32 %s27, %s34
    %p248 = scmp.eq.s32.totalorder %s247, 0
    %s250 = sadd.s32 %s249, 1
    %s251 = scalar_select %p248, %s249, %s250
    %p254 = pneg %p248
    %p255 = scmp.eq.s32.totalorder %s19, 3
    %p256 = por %p254, %p255
    %p257 = scmp.ne.s32.totalorder %s249, %s252
    %p258 = scmp.eq.s32.totalorder %s19, 0
    %p259 = por %p257, %p258
    %p260 = scmp.ne.s32.totalorder %s249, %s252
    %p261 = scmp.eq.s32.totalorder %s24, 3
    %p262 = por %p260, %p261
    %p263 = scmp.ne.s32.totalorder %s252, %s253
    %p264 = scmp.eq.s32.totalorder %s24, 0
    %p265 = por %p263, %p264
    %p266 = scmp.ne.s32.totalorder %s252, %s253
    %p267 = scmp.eq.s32.totalorder %s25, 3
    %p268 = por %p266, %p267
    %p270 = scmp.ne.s32.totalorder %s253, %s269
    %p271 = scmp.eq.s32.totalorder %s25, 0
    %p272 = por %p270, %p271
    %s273 = ssub.s32 %s27, %s34
    %p274 = scmp.eq.s32.totalorder %s273, 0
    %s276 = sadd.s32 %s275, 1
    %s277 = scalar_select %p274, %s275, %s276
    %p280 = pneg %p274
    %p281 = scmp.eq.s32.totalorder %s19, 3
    %p282 = por %p280, %p281
    %p283 = scmp.ne.s32.totalorder %s275, %s278
    %p284 = scmp.eq.s32.totalorder %s19, 0
    %p285 = por %p283, %p284
    %p286 = scmp.ne.s32.totalorder %s275, %s278
    %p287 = scmp.eq.s32.totalorder %s24, 3
    %p288 = por %p286, %p287
    %p289 = scmp.ne.s32.totalorder %s278, %s279
    %p290 = scmp.eq.s32.totalorder %s24, 0
    %p291 = por %p289, %p290
    %p292 = scmp.ne.s32.totalorder %s278, %s279
    %p293 = scmp.eq.s32.totalorder %s25, 3
    %p294 = por %p292, %p293
    %p296 = scmp.ne.s32.totalorder %s279, %s295
    %p297 = scmp.eq.s32.totalorder %s25, 0
    %p298 = por %p296, %p297
    %s299 = ssub.s32 %s27, %s34
    %p300 = scmp.eq.s32.totalorder %s299, 0
    %s302 = sadd.s32 %s301, 1
    %s303 = scalar_select %p300, %s301, %s302
    %p306 = pneg %p300
    %p307 = scmp.eq.s32.totalorder %s19, 3
    %p308 = por %p306, %p307
    %p309 = scmp.ne.s32.totalorder %s301, %s304
    %p310 = scmp.eq.s32.totalorder %s19, 0
    %p311 = por %p309, %p310
    %p312 = scmp.ne.s32.totalorder %s301, %s304
    %p313 = scmp.eq.s32.totalorder %s24, 3
    %p314 = por %p312, %p313
    %p315 = scmp.ne.s32.totalorder %s304, %s305
    %p316 = scmp.eq.s32.totalorder %s24, 0
    %p317 = por %p315, %p316
    %p318 = scmp.ne.s32.totalorder %s304, %s305
    %p319 = scmp.eq.s32.totalorder %s25, 3
    %p320 = por %p318, %p319
    %p322 = scmp.ne.s32.totalorder %s305, %s321
    %p323 = scmp.eq.s32.totalorder %s25, 0
    %p324 = por %p322, %p323
    %s325 = ssub.s32 %s27, %s34
    %p326 = scmp.eq.s32.totalorder %s325, 0
    %s328 = sadd.s32 %s327, 1
    %s329 = scalar_select %p326, %s327, %s328
    %p332 = pneg %p326
    %p333 = scmp.eq.s32.totalorder %s19, 3
    %p334 = por %p332, %p333
    %p335 = scmp.ne.s32.totalorder %s327, %s330
    %p336 = scmp.eq.s32.totalorder %s19, 0
    %p337 = por %p335, %p336
    %p338 = scmp.ne.s32.totalorder %s327, %s330
    %p339 = scmp.eq.s32.totalorder %s24, 3
    %p340 = por %p338, %p339
    %p341 = scmp.ne.s32.totalorder %s330, %s331
    %p342 = scmp.eq.s32.totalorder %s24, 0
    %p343 = por %p341, %p342
    %p344 = scmp.ne.s32.totalorder %s330, %s331
    %p345 = scmp.eq.s32.totalorder %s25, 3
    %p346 = por %p344, %p345
    %p348 = scmp.ne.s32.totalorder %s331, %s347
    %p349 = scmp.eq.s32.totalorder %s25, 0
    %p350 = por %p348, %p349
    %s351 = ssub.s32 %s27, %s34
    %p352 = scmp.eq.s32.totalorder %s351, 0
    %s354 = sadd.s32 %s353, 1
    %s355 = scalar_select %p352, %s353, %s354
    %p358 = pneg %p352
    %p359 = scmp.eq.s32.totalorder %s19, 3
    %p360 = por %p358, %p359
    %p361 = scmp.ne.s32.totalorder %s353, %s356
    %p362 = scmp.eq.s32.totalorder %s19, 0
    %p363 = por %p361, %p362
    %p364 = scmp.ne.s32.totalorder %s353, %s356
    %p365 = scmp.eq.s32.totalorder %s24, 3
    %p366 = por %p364, %p365
    %p367 = scmp.ne.s32.totalorder %s356, %s357
    %p368 = scmp.eq.s32.totalorder %s24, 0
    %p369 = por %p367, %p368
    %p370 = scmp.ne.s32.totalorder %s356, %s357
    %p371 = scmp.eq.s32.totalorder %s25, 3
    %p372 = por %p370, %p371
    %p374 = scmp.ne.s32.totalorder %s357, %s373
    %p375 = scmp.eq.s32.totalorder %s25, 0
    %p376 = por %p374, %p375
    %s377 = ssub.s32 %s26, %s38
    %p378 = scmp.eq.s32.totalorder %s377, 0
    %s380 = sadd.s32 %s379, 1
    %s381 = scalar_select %p378, %s379, %s380
    %p384 = pneg %p378
    %p385 = scmp.eq.s32.totalorder %s19, 3
    %p386 = por %p384, %p385
    %p387 = scmp.ne.s32.totalorder %s379, %s382
    %p388 = scmp.eq.s32.totalorder %s19, 0
    %p389 = por %p387, %p388
    %p390 = scmp.ne.s32.totalorder %s379, %s382
    %p391 = scmp.eq.s32.totalorder %s24, 3
    %p392 = por %p390, %p391
    %p393 = scmp.ne.s32.totalorder %s382, %s383
    %p394 = scmp.eq.s32.totalorder %s24, 0
    %p395 = por %p393, %p394
    %p396 = scmp.ne.s32.totalorder %s382, %s383
    %p397 = scmp.eq.s32.totalorder %s25, 3
    %p398 = por %p396, %p397
    %p400 = scmp.ne.s32.totalorder %s383, %s399
    %p401 = scmp.eq.s32.totalorder %s25, 0
    %p402 = por %p400, %p401
    %p403 = scmp.le.s32.totalorder 1, %s19
    %p404 = scmp.lt.s32.totalorder %s19, 5
    %p405 = pnand %p403, %p404
    %p406 = pneg %p405
    // Predicated region
    $region9: #{_lambda_.5} parent=5 // pred_check
      _
    $region10: #{_lambda_.5} parent=5 // pred_check_branch
      %408 = sbr.rel (%p405) target = $region12
    $region11: #{_lambda_.5} parent=5 // pred_region
      %s409 = ssub.s32 %s19, 1
    $region12: #{_lambda_.5} parent=5 // pred_fallthru
      _
    %p410 = scmp.lt.s32.totalorder %s19, 4
    // Predicated region
    $region13: #{_lambda_.5} parent=5 // pred_check
      %p411 = pneg %p410
    $region14: #{_lambda_.5} parent=5 // pred_check_branch
      %413 = sbr.rel (%p411) target = $region16
    $region15: #{_lambda_.5} parent=5 // pred_region
      // Predicated region
      $region17: #{_lambda_.5} parent=15 // pred_check
        %p414 = pneg %p51
      $region18: #{_lambda_.5} parent=15 // pred_check_branch
        %416 = sbr.rel (%p414) target = $region20
      $region19: #{_lambda_.5} parent=15 // pred_region
        %p417 = scmp.lt.s32.totalorder %s26, 1
        %s418 = scalar_select %p417, %s26, 1
        %s419 = smul.addr %s418, 4
        %s420 = scalar_lea.vmem %s0, %s419
      $region20: #{_lambda_.5} parent=15 // pred_fallthru
        _
      // Predicated region
      $region21: #{_lambda_.5} parent=15 // pred_check
        %p421 = pneg %p77
      $region22: #{_lambda_.5} parent=15 // pred_check_branch
        %423 = sbr.rel (%p421) target = $region24
      $region23: #{_lambda_.5} parent=15 // pred_region
        %p424 = scmp.lt.s32.totalorder %s27, 1
        %s425 = scalar_select %p424, %s27, 1
        %s426 = scalar_lea.vmem %s1, %s425
      $region24: #{_lambda_.5} parent=15 // pred_fallthru
        _
      // Predicated region
      $region25: #{_lambda_.5} parent=15 // pred_check
        %p427 = pneg %p103
      $region26: #{_lambda_.5} parent=15 // pred_check_branch
        %429 = sbr.rel (%p427) target = $region28
      $region27: #{_lambda_.5} parent=15 // pred_region
        %p430 = scmp.lt.s32.totalorder %s27, 1
        %s431 = scalar_select %p430, %s27, 1
        %s432 = scalar_lea.vmem %s2, %s431
      $region28: #{_lambda_.5} parent=15 // pred_fallthru
        _
      // Predicated region
      $region29: #{_lambda_.5} parent=15 // pred_check
        %p433 = pneg %p129
      $region30: #{_lambda_.5} parent=15 // pred_check_branch
        %435 = sbr.rel (%p433) target = $region32
      $region31: #{_lambda_.5} parent=15 // pred_region
        %p436 = scmp.lt.s32.totalorder %s27, 1
        %s437 = scalar_select %p436, %s27, 1
        %s438 = smul.addr %s437, 48
        %s439 = smul.addr %s438, 4
        %s440 = scalar_lea.vmem %s3, %s439
      $region32: #{_lambda_.5} parent=15 // pred_fallthru
        _
      // Predicated region
      $region33: #{_lambda_.5} parent=15 // pred_check
        %p441 = pneg %p155
      $region34: #{_lambda_.5} parent=15 // pred_check_branch
        %443 = sbr.rel (%p441) target = $region36
      $region35: #{_lambda_.5} parent=15 // pred_region
        %p444 = scmp.lt.s32.totalorder %s27, 1
        %s445 = scalar_select %p444, %s27, 1
        %s446 = smul.addr %s445, 12
        %s447 = scalar_lea.vmem %s4, %s446
      $region36: #{_lambda_.5} parent=15 // pred_fallthru
        _
      // Predicated region
      $region37: #{_lambda_.5} parent=15 // pred_check
        %p448 = pneg %p181
      $region38: #{_lambda_.5} parent=15 // pred_check_branch
        %450 = sbr.rel (%p448) target = $region40
      $region39: #{_lambda_.5} parent=15 // pred_region
        %p451 = scmp.lt.s32.totalorder %s27, 1
        %s452 = scalar_select %p451, %s27, 1
        %s453 = smul.addr %s452, 4
        %s454 = smul.addr %s453, 4
        %s455 = scalar_lea.vmem %s5, %s454
      $region40: #{_lambda_.5} parent=15 // pred_fallthru
        _
      // Predicated region
      $region41: #{_lambda_.5} parent=15 // pred_check
        %p456 = pneg %p207
      $region42: #{_lambda_.5} parent=15 // pred_check_branch
        %458 = sbr.rel (%p456) target = $region44
      $region43: #{_lambda_.5} parent=15 // pred_region
        %p459 = scmp.lt.s32.totalorder %s27, 1
        %s460 = scalar_select %p459, %s27, 1
        %s461 = scalar_lea.vmem %s6, %s460
      $region44: #{_lambda_.5} parent=15 // pred_fallthru
        _
      // Predicated region
      $region45: #{_lambda_.5} parent=15 // pred_check
        %p462 = pneg %p233
      $region46: #{_lambda_.5} parent=15 // pred_check_branch
        %464 = sbr.rel (%p462) target = $region48
      $region47: #{_lambda_.5} parent=15 // pred_region
        %p465 = scmp.lt.s32.totalorder %s27, 1
        %s466 = scalar_select %p465, %s27, 1
        %s467 = scalar_lea.vmem %s7, %s466
      $region48: #{_lambda_.5} parent=15 // pred_fallthru
        _
      // Predicated region
      $region49: #{_lambda_.5} parent=15 // pred_check
        %p468 = pneg %p259
      $region50: #{_lambda_.5} parent=15 // pred_check_branch
        %470 = sbr.rel (%p468) target = $region52
      $region51: #{_lambda_.5} parent=15 // pred_region
        %p471 = scmp.lt.s32.totalorder %s27, 1
        %s472 = scalar_select %p471, %s27, 1
        %s473 = scalar_lea.vmem %s8, %s472
      $region52: #{_lambda_.5} parent=15 // pred_fallthru
        _
      // Predicated region
      $region53: #{_lambda_.5} parent=15 // pred_check
        %p474 = pneg %p285
      $region54: #{_lambda_.5} parent=15 // pred_check_branch
        %476 = sbr.rel (%p474) target = $region56
      $region55: #{_lambda_.5} parent=15 // pred_region
        %p477 = scmp.lt.s32.totalorder %s27, 1
        %s478 = scalar_select %p477, %s27, 1
        %s479 = smul.addr %s478, 4
        %s480 = smul.addr %s479, 4
        %s481 = scalar_lea.vmem %s9, %s480
      $region56: #{_lambda_.5} parent=15 // pred_fallthru
        _
      // Predicated region
      $region57: #{_lambda_.5} parent=15 // pred_check
        %p482 = pneg %p311
      $region58: #{_lambda_.5} parent=15 // pred_check_branch
        %484 = sbr.rel (%p482) target = $region60
      $region59: #{_lambda_.5} parent=15 // pred_region
        %p485 = scmp.lt.s32.totalorder %s27, 1
        %s486 = scalar_select %p485, %s27, 1
        %s487 = scalar_lea.vmem %s10, %s486
      $region60: #{_lambda_.5} parent=15 // pred_fallthru
        _
      // Predicated region
      $region61: #{_lambda_.5} parent=15 // pred_check
        %p488 = pneg %p337
      $region62: #{_lambda_.5} parent=15 // pred_check_branch
        %490 = sbr.rel (%p488) target = $region64
      $region63: #{_lambda_.5} parent=15 // pred_region
        %p491 = scmp.lt.s32.totalorder %s27, 1
        %s492 = scalar_select %p491, %s27, 1
        %s493 = smul.addr %s492, 16
        %s494 = smul.addr %s493, 4
        %s495 = scalar_lea.vmem %s11, %s494
      $region64: #{_lambda_.5} parent=15 // pred_fallthru
        _
      // Predicated region
      $region65: #{_lambda_.5} parent=15 // pred_check
        %p496 = pneg %p363
      $region66: #{_lambda_.5} parent=15 // pred_check_branch
        %498 = sbr.rel (%p496) target = $region68
      $region67: #{_lambda_.5} parent=15 // pred_region
        %p499 = scmp.lt.s32.totalorder %s27, 1
        %s500 = scalar_select %p499, %s27, 1
        %s501 = scalar_lea.vmem %s12, %s500
      $region68: #{_lambda_.5} parent=15 // pred_fallthru
        _
    $region16: #{_lambda_.5} parent=5 // pred_fallthru
      _
    %p502 = scmp.le.s32.totalorder 1, %s19
    %p503 = scmp.lt.s32.totalorder %s19, 5
    %p504 = pnand %p502, %p503
    %p505 = pneg %p504
    // Predicated region
    $region69: #{_lambda_.5} parent=5 // pred_check
      _
    $region70: #{_lambda_.5} parent=5 // pred_check_branch
      %507 = sbr.rel (%p504) target = $region72
    $region71: #{_lambda_.5} parent=5 // pred_region
      %s508 = ssub.s32 %s19, 1
      %p509 = scmp.lt.s32.totalorder %s28, 1
      %s510 = scalar_select %p509, %s28, 1
      %s511 = smul.addr %s510, 4
      %s512 = scalar_lea.vmem %s0, %s511
      %p513 = pneg %p57
      %p514 = pneg %p54
      %p515 = scmp.lt.s32.totalorder %s29, 1
      %s516 = scalar_select %p515, %s29, 1
      %s517 = scalar_lea.vmem %s1, %s516
      %p518 = pneg %p83
      %p519 = pneg %p80
      %p520 = scmp.lt.s32.totalorder %s29, 1
      %s521 = scalar_select %p520, %s29, 1
      %s522 = scalar_lea.vmem %s2, %s521
      %p523 = pneg %p109
      %p524 = pneg %p106
      %p525 = scmp.lt.s32.totalorder %s29, 1
      %s526 = scalar_select %p525, %s29, 1
      %s527 = smul.addr %s526, 48
      %s528 = smul.addr %s527, 4
      %s529 = scalar_lea.vmem %s3, %s528
      %p530 = pneg %p135
      %p531 = pneg %p132
      %p532 = scmp.lt.s32.totalorder %s29, 1
      %s533 = scalar_select %p532, %s29, 1
      %s534 = smul.addr %s533, 12
      %s535 = scalar_lea.vmem %s4, %s534
      %p536 = pneg %p161
      %p537 = pneg %p158
      %p538 = scmp.lt.s32.totalorder %s29, 1
      %s539 = scalar_select %p538, %s29, 1
      %s540 = smul.addr %s539, 4
      %s541 = smul.addr %s540, 4
      %s542 = scalar_lea.vmem %s5, %s541
      %p543 = pneg %p187
      %p544 = pneg %p184
      %p545 = scmp.lt.s32.totalorder %s29, 1
      %s546 = scalar_select %p545, %s29, 1
      %s547 = scalar_lea.vmem %s6, %s546
      %p548 = pneg %p213
      %p549 = pneg %p210
      %p550 = scmp.lt.s32.totalorder %s29, 1
      %s551 = scalar_select %p550, %s29, 1
      %s552 = scalar_lea.vmem %s7, %s551
      %p553 = pneg %p239
      %p554 = pneg %p236
      %p555 = scmp.lt.s32.totalorder %s29, 1
      %s556 = scalar_select %p555, %s29, 1
      %s557 = scalar_lea.vmem %s8, %s556
      %p558 = pneg %p265
      %p559 = pneg %p262
      %p560 = scmp.lt.s32.totalorder %s29, 1
      %s561 = scalar_select %p560, %s29, 1
      %s562 = smul.addr %s561, 4
      %s563 = smul.addr %s562, 4
      %s564 = scalar_lea.vmem %s9, %s563
      %p565 = pneg %p291
      %p566 = pneg %p288
      %p567 = scmp.lt.s32.totalorder %s29, 1
      %s568 = scalar_select %p567, %s29, 1
      %s569 = scalar_lea.vmem %s10, %s568
      %p570 = pneg %p317
      %p571 = pneg %p314
      %p572 = scmp.lt.s32.totalorder %s29, 1
      %s573 = scalar_select %p572, %s29, 1
      %s574 = smul.addr %s573, 16
      %s575 = smul.addr %s574, 4
      %s576 = scalar_lea.vmem %s11, %s575
      %p577 = pneg %p343
      %p578 = pneg %p340
      %p579 = scmp.lt.s32.totalorder %s29, 1
      %s580 = scalar_select %p579, %s29, 1
      %s581 = scalar_lea.vmem %s12, %s580
      %p582 = pneg %p369
      %p583 = pneg %p366
      %p584 = pneg %p395
      %p585 = pneg %p392
      %p586 = scmp.lt.s32.totalorder %s28, 1
      %s587 = scalar_select %p586, %s28, 1
      %s588 = smul.addr %s587, 4
      %s589 = scalar_lea.vmem %s13, %s588
      %p590 = scmp.lt.s32.totalorder %s28, 1
      %s591 = scalar_select %p590, %s28, 1
      %s592 = smul.addr %s591, 4
      %s593 = scalar_lea.vmem %s0, %s592
      %p594 = scmp.lt.s32.totalorder %s29, 1
      %s595 = scalar_select %p594, %s29, 1
      %s596 = scalar_lea.vmem %s1, %s595
      %p597 = scmp.lt.s32.totalorder %s29, 1
      %s598 = scalar_select %p597, %s29, 1
      %s599 = scalar_lea.vmem %s2, %s598
      %p600 = scmp.lt.s32.totalorder %s29, 1
      %s601 = scalar_select %p600, %s29, 1
      %s602 = smul.addr %s601, 48
      %s603 = smul.addr %s602, 4
      %s604 = scalar_lea.vmem %s3, %s603
      %p605 = scmp.lt.s32.totalorder %s29, 1
      %s606 = scalar_select %p605, %s29, 1
      %s607 = smul.addr %s606, 12
      %s608 = scalar_lea.vmem %s4, %s607
      %p609 = scmp.lt.s32.totalorder %s29, 1
      %s610 = scalar_select %p609, %s29, 1
      %s611 = smul.addr %s610, 4
      %s612 = smul.addr %s611, 4
      %s613 = scalar_lea.vmem %s5, %s612
      %p614 = scmp.lt.s32.totalorder %s29, 1
      %s615 = scalar_select %p614, %s29, 1
      %s616 = scalar_lea.vmem %s6, %s615
      %p617 = scmp.lt.s32.totalorder %s29, 1
      %s618 = scalar_select %p617, %s29, 1
      %s619 = scalar_lea.vmem %s7, %s618
      %p620 = scmp.lt.s32.totalorder %s29, 1
      %s621 = scalar_select %p620, %s29, 1
      %s622 = scalar_lea.vmem %s8, %s621
      %p623 = scmp.lt.s32.totalorder %s29, 1
      %s624 = scalar_select %p623, %s29, 1
      %s625 = smul.addr %s624, 4
      %s626 = smul.addr %s625, 4
      %s627 = scalar_lea.vmem %s9, %s626
      %p628 = scmp.lt.s32.totalorder %s29, 1
      %s629 = scalar_select %p628, %s29, 1
      %s630 = scalar_lea.vmem %s10, %s629
      %p631 = scmp.lt.s32.totalorder %s29, 1
      %s632 = scalar_select %p631, %s29, 1
      %s633 = smul.addr %s632, 16
      %s634 = smul.addr %s633, 4
      %s635 = scalar_lea.vmem %s11, %s634
      %p636 = scmp.lt.s32.totalorder %s29, 1
      %s637 = scalar_select %p636, %s29, 1
      %s638 = scalar_lea.vmem %s12, %s637
      %p639 = scmp.lt.s32.totalorder %s28, 1
      %s640 = scalar_select %p639, %s28, 1
      %s641 = smul.addr %s640, 4
      %s642 = scalar_lea.vmem %s13, %s641
      %p644 = scmp.eq.s32.totalorder %s29, 0
      // Predicated region
      $region73: #{_lambda_.5} parent=71 // pred_check
        %p645 = pneg %p644
      $region74: #{_lambda_.5} parent=71 // pred_check_branch
        %647 = sbr.rel (%p645) target = $region76
      $region75: #{_lambda_.5} parent=71 // pred_region
        %v648 = vld [vmem:[%s593] sm:$0x7]
        %v649 = vunpack.c.l.bf16 %v648
        %vm650 = vcmask 258048
        %651 = vst.msk [vmem:[#allocation2] sm:$0x1f] %vm650, %v649
      $region76: #{_lambda_.5} parent=71 // pred_fallthru
        _
      %v652 = vld [vmem:[#allocation2] sm:$0x1f]
      %v653 = vld [vmem:[%s596] sm:$0x1]
      %v654 = vld [vmem:[%s599] sm:$0x1]
      %vm655 = vcmask 258048
      %v656 = vsel %vm655, %v652, 0.0
      %657 = vadd.xlane.f32.xlu0 %v656
      %v658 = vpop.xlane.xlu0 %657
      %v659 = vrcp.pop 32.0
      %v660 = vmul.f32 %v658, %v659
      %v661 = vsub.f32 %v652, %v660
      %v662 = vmul.f32 %v661, %v661
      %v663 = vsel %vm655, %v662, 0.0
      %664 = vadd.xlane.f32.xlu0 %v663
      %v665 = vpop.xlane.xlu0 %664
      %v666 = vmul.f32 %v665, %v659
      %v667 = vadd.f32 %v666, 1e-05
      %v668 = vrsqrt.pop %v667
      %v669 = vmul.f32 %v661, %v668
      %v671 = vlaneseq
      %v672 = vshrl.u32 %v671, 7
      %v673 = vsub.s32 0, %v672
      %v674 = vrot.slane %v653, %v673
      %v676 = vmul.f32 %v669, %v674
      %v678 = vlaneseq
      %v679 = vshrl.u32 %v678, 7
      %v680 = vsub.s32 0, %v679
      %v681 = vrot.slane %v654, %v680
      %v683 = vadd.f32 %v676, %v681
      %v684 = vpack.c.bf16 %v683, %v683
      %v685 = vld [vmem:[%s604] sm:$0xf]
      %v686 = vld [vmem:[%s604 + $0x4] sm:$0xf]
      %v687 = vld [vmem:[%s604 + $0x8] sm:$0xf]
      %v688 = vld [vmem:[%s604 + $0xc] sm:$0xf]
      %v689 = vld [vmem:[%s604 + $0x10] sm:$0xf]
      %v690 = vld [vmem:[%s604 + $0x14] sm:$0xf]
      %v691 = vld [vmem:[%s604 + $0x18] sm:$0xf]
      %v692 = vld [vmem:[%s604 + $0x1c] sm:$0xf]
      %v693 = vld [vmem:[%s604 + $0x20] sm:$0xf]
      %v694 = vld [vmem:[%s604 + $0x24] sm:$0xf]
      %v695 = vld [vmem:[%s604 + $0x28] sm:$0xf]
      %v696 = vld [vmem:[%s604 + $0x2c] sm:$0xf]
      %v697 = vld [vmem:[%s604 + $0x30] sm:$0xf]
      %v698 = vld [vmem:[%s604 + $0x34] sm:$0xf]
      %v699 = vld [vmem:[%s604 + $0x38] sm:$0xf]
      %v700 = vld [vmem:[%s604 + $0x3c] sm:$0xf]
      %v701 = vld [vmem:[%s604 + $0x40] sm:$0xf]
      %v702 = vld [vmem:[%s604 + $0x44] sm:$0xf]
      %v703 = vld [vmem:[%s604 + $0x48] sm:$0xf]
      %v704 = vld [vmem:[%s604 + $0x4c] sm:$0xf]
      %v705 = vld [vmem:[%s604 + $0x50] sm:$0xf]
      %v706 = vld [vmem:[%s604 + $0x54] sm:$0xf]
      %v707 = vld [vmem:[%s604 + $0x58] sm:$0xf]
      %v708 = vld [vmem:[%s604 + $0x5c] sm:$0xf]
      %v709 = vld [vmem:[%s604 + $0x60] sm:$0xf]
      %v710 = vld [vmem:[%s604 + $0x64] sm:$0xf]
      %v711 = vld [vmem:[%s604 + $0x68] sm:$0xf]
      %v712 = vld [vmem:[%s604 + $0x6c] sm:$0xf]
      %v713 = vld [vmem:[%s604 + $0x70] sm:$0xf]
      %v714 = vld [vmem:[%s604 + $0x74] sm:$0xf]
      %v715 = vld [vmem:[%s604 + $0x78] sm:$0xf]
      %v716 = vld [vmem:[%s604 + $0x7c] sm:$0xf]
      %v717 = vld [vmem:[%s604 + $0x80] sm:$0xf]
      %v718 = vld [vmem:[%s604 + $0x84] sm:$0xf]
      %v719 = vld [vmem:[%s604 + $0x88] sm:$0xf]
      %v720 = vld [vmem:[%s604 + $0x8c] sm:$0xf]
      %v721 = vld [vmem:[%s604 + $0x90] sm:$0xf]
      %v722 = vld [vmem:[%s604 + $0x94] sm:$0xf]
      %v723 = vld [vmem:[%s604 + $0x98] sm:$0xf]
      %v724 = vld [vmem:[%s604 + $0x9c] sm:$0xf]
      %v725 = vld [vmem:[%s604 + $0xa0] sm:$0xf]
      %v726 = vld [vmem:[%s604 + $0xa4] sm:$0xf]
      %v727 = vld [vmem:[%s604 + $0xa8] sm:$0xf]
      %v728 = vld [vmem:[%s604 + $0xac] sm:$0xf]
      %v729 = vld [vmem:[%s604 + $0xb0] sm:$0xf]
      %v730 = vld [vmem:[%s604 + $0xb4] sm:$0xf]
      %v731 = vld [vmem:[%s604 + $0xb8] sm:$0xf]
      %v732 = vld [vmem:[%s604 + $0xbc] sm:$0xf]
      %v733 = vld [vmem:[%s608] sm:$0x1]
      %v734 = vld [vmem:[%s608 + $0x1] sm:$0x1]
      %v735 = vld [vmem:[%s608 + $0x2] sm:$0x1]
      %v736 = vld [vmem:[%s608 + $0x3] sm:$0x1]
      %v737 = vld [vmem:[%s608 + $0x4] sm:$0x1]
      %v738 = vld [vmem:[%s608 + $0x5] sm:$0x1]
      %v739 = vld [vmem:[%s608 + $0x6] sm:$0x1]
      %v740 = vld [vmem:[%s608 + $0x7] sm:$0x1]
      %v741 = vld [vmem:[%s608 + $0x8] sm:$0x1]
      %v742 = vld [vmem:[%s608 + $0x9] sm:$0x1]
      %v743 = vld [vmem:[%s608 + $0xa] sm:$0x1]
      %v744 = vld [vmem:[%s608 + $0xb] sm:$0x1]
      %v757 = vlaneseq
      %v758 = vshrl.u32 %v757, 7
      %v759 = vsub.s32 0, %v758
      %v760 = vrot.slane %v733, %v759
      %v761 = vlaneseq
      %v762 = vshrl.u32 %v761, 7
      %v763 = vsub.s32 0, %v762
      %v764 = vrot.slane %v734, %v763
      %v765 = vlaneseq
      %v766 = vshrl.u32 %v765, 7
      %v767 = vsub.s32 0, %v766
      %v768 = vrot.slane %v735, %v767
      %v769 = vlaneseq
      %v770 = vshrl.u32 %v769, 7
      %v771 = vsub.s32 0, %v770
      %v772 = vrot.slane %v736, %v771
      %v773 = vlaneseq
      %v774 = vshrl.u32 %v773, 7
      %v775 = vsub.s32 0, %v774
      %v776 = vrot.slane %v737, %v775
      %v777 = vlaneseq
      %v778 = vshrl.u32 %v777, 7
      %v779 = vsub.s32 0, %v778
      %v780 = vrot.slane %v738, %v779
      %v781 = vlaneseq
      %v782 = vshrl.u32 %v781, 7
      %v783 = vsub.s32 0, %v782
      %v784 = vrot.slane %v739, %v783
      %v785 = vlaneseq
      %v786 = vshrl.u32 %v785, 7
      %v787 = vsub.s32 0, %v786
      %v788 = vrot.slane %v740, %v787
      %v789 = vlaneseq
      %v790 = vshrl.u32 %v789, 7
      %v791 = vsub.s32 0, %v790
      %v792 = vrot.slane %v741, %v791
      %v793 = vlaneseq
      %v794 = vshrl.u32 %v793, 7
      %v795 = vsub.s32 0, %v794
      %v796 = vrot.slane %v742, %v795
      %v797 = vlaneseq
      %v798 = vshrl.u32 %v797, 7
      %v799 = vsub.s32 0, %v798
      %v800 = vrot.slane %v743, %v799
      %v801 = vlaneseq
      %v802 = vshrl.u32 %v801, 7
      %v803 = vsub.s32 0, %v802
      %v804 = vrot.slane %v744, %v803
      %v821 = vunpack.c.l.b16 %v685
      %v822 = vunpack.c.l.b16 %v686
      %v823 = vunpack.c.l.b16 %v687
      %v824 = vunpack.c.l.b16 %v688
      %v825 = vpack.c.b16 %v822, %v821
      %v826 = vpack.c.b16 %v824, %v823
      %vm829 = vcmask 261120
      %v831 = vsel %vm829, %v684, 0
      %833 = vmatprep.subr.bf16.mxu0 0
      %834 = vmatpush1.bf16.msra.mxu0 %v825
      %835 = vmatprep.subr.bf16.mxu0 0
      %836 = vmatpush1.bf16.msra.mxu0 %v826
      %837 = vmatprep.subr.bf16.mxu0 0
      %838 = vmatpush1.bf16.msra.mxu0 0
      %839 = vmatprep.subr.bf16.mxu0 0
      %840 = vmatpush1.bf16.msra.mxu0 0
      %841 = vmatprep.subr.bf16.mxu0 0
      %842 = vmatpush1.bf16.msra.mxu0 0
      %843 = vmatprep.subr.bf16.mxu0 0
      %844 = vmatpush1.bf16.msra.mxu0 0
      %845 = vmatprep.subr.bf16.mxu0 0
      %846 = vmatpush1.bf16.msra.mxu0 0
      %847 = vmatprep.subr.bf16.mxu0 0
      %848 = vmatpush1.bf16.msra.mxu0 0
      %849 = vmatprep.subr.bf16.mxu0 0
      %850 = vmatpush1.bf16.msra.mxu0 0
      %851 = vmatprep.subr.bf16.mxu0 0
      %852 = vmatpush1.bf16.msra.mxu0 0
      %853 = vmatprep.subr.bf16.mxu0 0
      %854 = vmatpush1.bf16.msra.mxu0 0
      %855 = vmatprep.subr.bf16.mxu0 0
      %856 = vmatpush1.bf16.msra.mxu0 0
      %857 = vmatprep.subr.bf16.mxu0 0
      %858 = vmatpush1.bf16.msra.mxu0 0
      %859 = vmatprep.subr.bf16.mxu0 0
      %860 = vmatpush1.bf16.msra.mxu0 0
      %861 = vmatprep.subr.bf16.mxu0 0
      %862 = vmatpush1.bf16.msra.mxu0 0
      %863 = vmatprep.subr.bf16.mxu0 0
      %864 = vmatpush1.bf16.msra.mxu0 0
      %865 = vmatprep.mubr.bf16.mxu0 0
      %866 = vmatmul.mubr.bf16.gmra.mrb[0].mxu0 %v831
      %v867 = vpop.f32.mrb[0].mxu0
      %v868 = vadd.f32 %v760, %v867
      %v869 = vpop.f32.mrb[0].mxu0
      %v870 = vpop.f32.mrb[0].mxu0
      %v871 = vpop.f32.mrb[0].mxu0
      %872 = vdwg.mxu0
      %v877 = vunpack.c.l.b16 %v689
      %v878 = vunpack.c.l.b16 %v690
      %v879 = vunpack.c.l.b16 %v691
      %v880 = vunpack.c.l.b16 %v692
      %v881 = vpack.c.b16 %v878, %v877
      %v882 = vpack.c.b16 %v880, %v879
      %885 = vmatprep.subr.bf16.mxu0 0
      %886 = vmatpush1.bf16.msra.mxu0 %v881
      %887 = vmatprep.subr.bf16.mxu0 0
      %888 = vmatpush1.bf16.msra.mxu0 %v882
      %889 = vmatprep.subr.bf16.mxu0 0
      %890 = vmatpush1.bf16.msra.mxu0 0
      %891 = vmatprep.subr.bf16.mxu0 0
      %892 = vmatpush1.bf16.msra.mxu0 0
      %893 = vmatprep.subr.bf16.mxu0 0
      %894 = vmatpush1.bf16.msra.mxu0 0
      %895 = vmatprep.subr.bf16.mxu0 0
      %896 = vmatpush1.bf16.msra.mxu0 0
      %897 = vmatprep.subr.bf16.mxu0 0
      %898 = vmatpush1.bf16.msra.mxu0 0
      %899 = vmatprep.subr.bf16.mxu0 0
      %900 = vmatpush1.bf16.msra.mxu0 0
      %901 = vmatprep.subr.bf16.mxu0 0
      %902 = vmatpush1.bf16.msra.mxu0 0
      %903 = vmatprep.subr.bf16.mxu0 0
      %904 = vmatpush1.bf16.msra.mxu0 0
      %905 = vmatprep.subr.bf16.mxu0 0
      %906 = vmatpush1.bf16.msra.mxu0 0
      %907 = vmatprep.subr.bf16.mxu0 0
      %908 = vmatpush1.bf16.msra.mxu0 0
      %909 = vmatprep.subr.bf16.mxu0 0
      %910 = vmatpush1.bf16.msra.mxu0 0
      %911 = vmatprep.subr.bf16.mxu0 0
      %912 = vmatpush1.bf16.msra.mxu0 0
      %913 = vmatprep.subr.bf16.mxu0 0
      %914 = vmatpush1.bf16.msra.mxu0 0
      %915 = vmatprep.subr.bf16.mxu0 0
      %916 = vmatpush1.bf16.msra.mxu0 0
      %917 = vmatprep.mubr.bf16.mxu0 0
      %918 = vmatmul.mubr.bf16.gmra.mrb[0].mxu0 %v831
      %v919 = vpop.f32.mrb[0].mxu0
      %v920 = vadd.f32 %v764, %v919
      %v921 = vpop.f32.mrb[0].mxu0
      %v922 = vpop.f32.mrb[0].mxu0
      %v923 = vpop.f32.mrb[0].mxu0
      %924 = vdwg.mxu0
      %v929 = vunpack.c.l.b16 %v693
      %v930 = vunpack.c.l.b16 %v694
      %v931 = vunpack.c.l.b16 %v695
      %v932 = vunpack.c.l.b16 %v696
      %v933 = vpack.c.b16 %v930, %v929
      %v934 = vpack.c.b16 %v932, %v931
      %937 = vmatprep.subr.bf16.mxu0 0
      %938 = vmatpush1.bf16.msra.mxu0 %v933
      %939 = vmatprep.subr.bf16.mxu0 0
      %940 = vmatpush1.bf16.msra.mxu0 %v934
      %941 = vmatprep.subr.bf16.mxu0 0
      %942 = vmatpush1.bf16.msra.mxu0 0
      %943 = vmatprep.subr.bf16.mxu0 0
      %944 = vmatpush1.bf16.msra.mxu0 0
      %945 = vmatprep.subr.bf16.mxu0 0
      %946 = vmatpush1.bf16.msra.mxu0 0
      %947 = vmatprep.subr.bf16.mxu0 0
      %948 = vmatpush1.bf16.msra.mxu0 0
      %949 = vmatprep.subr.bf16.mxu0 0
      %950 = vmatpush1.bf16.msra.mxu0 0
      %951 = vmatprep.subr.bf16.mxu0 0
      %952 = vmatpush1.bf16.msra.mxu0 0
      %953 = vmatprep.subr.bf16.mxu0 0
      %954 = vmatpush1.bf16.msra.mxu0 0
      %955 = vmatprep.subr.bf16.mxu0 0
      %956 = vmatpush1.bf16.msra.mxu0 0
      %957 = vmatprep.subr.bf16.mxu0 0
      %958 = vmatpush1.bf16.msra.mxu0 0
      %959 = vmatprep.subr.bf16.mxu0 0
      %960 = vmatpush1.bf16.msra.mxu0 0
      %961 = vmatprep.subr.bf16.mxu0 0
      %962 = vmatpush1.bf16.msra.mxu0 0
      %963 = vmatprep.subr.bf16.mxu0 0
      %964 = vmatpush1.bf16.msra.mxu0 0
      %965 = vmatprep.subr.bf16.mxu0 0
      %966 = vmatpush1.bf16.msra.mxu0 0
      %967 = vmatprep.subr.bf16.mxu0 0
      %968 = vmatpush1.bf16.msra.mxu0 0
      %969 = vmatprep.mubr.bf16.mxu0 0
      %970 = vmatmul.mubr.bf16.gmra.mrb[0].mxu0 %v831
      %v971 = vpop.f32.mrb[0].mxu0
      %v972 = vadd.f32 %v768, %v971
      %v973 = vpop.f32.mrb[0].mxu0
      %v974 = vpop.f32.mrb[0].mxu0
      %v975 = vpop.f32.mrb[0].mxu0
      %976 = vdwg.mxu0
      %v981 = vunpack.c.l.b16 %v697
      %v982 = vunpack.c.l.b16 %v698
      %v983 = vunpack.c.l.b16 %v699
      %v984 = vunpack.c.l.b16 %v700
      %v985 = vpack.c.b16 %v982, %v981
      %v986 = vpack.c.b16 %v984, %v983
      %989 = vmatprep.subr.bf16.mxu0 0
      %990 = vmatpush1.bf16.msra.mxu0 %v985
      %991 = vmatprep.subr.bf16.mxu0 0
      %992 = vmatpush1.bf16.msra.mxu0 %v986
      %993 = vmatprep.subr.bf16.mxu0 0
      %994 = vmatpush1.bf16.msra.mxu0 0
      %995 = vmatprep.subr.bf16.mxu0 0
      %996 = vmatpush1.bf16.msra.mxu0 0
      %997 = vmatprep.subr.bf16.mxu0 0
      %998 = vmatpush1.bf16.msra.mxu0 0
      %999 = vmatprep.subr.bf16.mxu0 0
      %1000 = vmatpush1.bf16.msra.mxu0 0
      %1001 = vmatprep.subr.bf16.mxu0 0
      %1002 = vmatpush1.bf16.msra.mxu0 0
      %1003 = vmatprep.subr.bf16.mxu0 0
      %1004 = vmatpush1.bf16.msra.mxu0 0
      %1005 = vmatprep.subr.bf16.mxu0 0
      %1006 = vmatpush1.bf16.msra.mxu0 0
      %1007 = vmatprep.subr.bf16.mxu0 0
      %1008 = vmatpush1.bf16.msra.mxu0 0
      %1009 = vmatprep.subr.bf16.mxu0 0
      %1010 = vmatpush1.bf16.msra.mxu0 0
      %1011 = vmatprep.subr.bf16.mxu0 0
      %1012 = vmatpush1.bf16.msra.mxu0 0
      %1013 = vmatprep.subr.bf16.mxu0 0
      %1014 = vmatpush1.bf16.msra.mxu0 0
      %1015 = vmatprep.subr.bf16.mxu0 0
      %1016 = vmatpush1.bf16.msra.mxu0 0
      %1017 = vmatprep.subr.bf16.mxu0 0
      %1018 = vmatpush1.bf16.msra.mxu0 0
      %1019 = vmatprep.subr.bf16.mxu0 0
      %1020 = vmatpush1.bf16.msra.mxu0 0
      %1021 = vmatprep.mubr.bf16.mxu0 0
      %1022 = vmatmul.mubr.bf16.gmra.mrb[0].mxu0 %v831
      %v1023 = vpop.f32.mrb[0].mxu0
      %v1024 = vadd.f32 %v772, %v1023
      %v1025 = vpop.f32.mrb[0].mxu0
      %v1026 = vpop.f32.mrb[0].mxu0
      %v1027 = vpop.f32.mrb[0].mxu0
      %1028 = vdwg.mxu0
      %v1033 = vunpack.c.l.b16 %v701
      %v1034 = vunpack.c.l.b16 %v702
      %v1035 = vunpack.c.l.b16 %v703
      %v1036 = vunpack.c.l.b16 %v704
      %v1037 = vpack.c.b16 %v1034, %v1033
      %v1038 = vpack.c.b16 %v1036, %v1035
      %1041 = vmatprep.subr.bf16.mxu0 0
      %1042 = vmatpush1.bf16.msra.mxu0 %v1037
      %1043 = vmatprep.subr.bf16.mxu0 0
      %1044 = vmatpush1.bf16.msra.mxu0 %v1038
      %1045 = vmatprep.subr.bf16.mxu0 0
      %1046 = vmatpush1.bf16.msra.mxu0 0
      %1047 = vmatprep.subr.bf16.mxu0 0
      %1048 = vmatpush1.bf16.msra.mxu0 0
      %1049 = vmatprep.subr.bf16.mxu0 0
      %1050 = vmatpush1.bf16.msra.mxu0 0
      %1051 = vmatprep.subr.bf16.mxu0 0
      %1052 = vmatpush1.bf16.msra.mxu0 0
      %1053 = vmatprep.subr.bf16.mxu0 0
      %1054 = vmatpush1.bf16.msra.mxu0 0
      %1055 = vmatprep.subr.bf16.mxu0 0
      %1056 = vmatpush1.bf16.msra.mxu0 0
      %1057 = vmatprep.subr.bf16.mxu0 0
      %1058 = vmatpush1.bf16.msra.mxu0 0
      %1059 = vmatprep.subr.bf16.mxu0 0
      %1060 = vmatpush1.bf16.msra.mxu0 0
      %1061 = vmatprep.subr.bf16.mxu0 0
      %1062 = vmatpush1.bf16.msra.mxu0 0
      %1063 = vmatprep.subr.bf16.mxu0 0
      %1064 = vmatpush1.bf16.msra.mxu0 0
      %1065 = vmatprep.subr.bf16.mxu0 0
      %1066 = vmatpush1.bf16.msra.mxu0 0
      %1067 = vmatprep.subr.bf16.mxu0 0
      %1068 = vmatpush1.bf16.msra.mxu0 0
      %1069 = vmatprep.subr.bf16.mxu0 0
      %1070 = vmatpush1.bf16.msra.mxu0 0
      %1071 = vmatprep.subr.bf16.mxu0 0
      %1072 = vmatpush1.bf16.msra.mxu0 0
      %1073 = vmatprep.mubr.bf16.mxu0 0
      %1074 = vmatmul.mubr.bf16.gmra.mrb[0].mxu0 %v831
      %v1075 = vpop.f32.mrb[0].mxu0
      %v1076 = vadd.f32 %v776, %v1075
      %v1077 = vpop.f32.mrb[0].mxu0
      %v1078 = vpop.f32.mrb[0].mxu0
      %v1079 = vpop.f32.mrb[0].mxu0
      %1080 = vdwg.mxu0
      %v1085 = vunpack.c.l.b16 %v705
      %v1086 = vunpack.c.l.b16 %v706
      %v1087 = vunpack.c.l.b16 %v707
      %v1088 = vunpack.c.l.b16 %v708
      %v1089 = vpack.c.b16 %v1086, %v1085
      %v1090 = vpack.c.b16 %v1088, %v1087
      %1093 = vmatprep.subr.bf16.mxu0 0
      %1094 = vmatpush1.bf16.msra.mxu0 %v1089
      %1095 = vmatprep.subr.bf16.mxu0 0
      %1096 = vmatpush1.bf16.msra.mxu0 %v1090
      %1097 = vmatprep.subr.bf16.mxu0 0
      %1098 = vmatpush1.bf16.msra.mxu0 0
      %1099 = vmatprep.subr.bf16.mxu0 0
      %1100 = vmatpush1.bf16.msra.mxu0 0
      %1101 = vmatprep.subr.bf16.mxu0 0
      %1102 = vmatpush1.bf16.msra.mxu0 0
      %1103 = vmatprep.subr.bf16.mxu0 0
      %1104 = vmatpush1.bf16.msra.mxu0 0
      %1105 = vmatprep.subr.bf16.mxu0 0
      %1106 = vmatpush1.bf16.msra.mxu0 0
      %1107 = vmatprep.subr.bf16.mxu0 0
      %1108 = vmatpush1.bf16.msra.mxu0 0
      %1109 = vmatprep.subr.bf16.mxu0 0
      %1110 = vmatpush1.bf16.msra.mxu0 0
      %1111 = vmatprep.subr.bf16.mxu0 0
      %1112 = vmatpush1.bf16.msra.mxu0 0
      %1113 = vmatprep.subr.bf16.mxu0 0
      %1114 = vmatpush1.bf16.msra.mxu0 0
      %1115 = vmatprep.subr.bf16.mxu0 0
      %1116 = vmatpush1.bf16.msra.mxu0 0
      %1117 = vmatprep.subr.bf16.mxu0 0
      %1118 = vmatpush1.bf16.msra.mxu0 0
      %1119 = vmatprep.subr.bf16.mxu0 0
      %1120 = vmatpush1.bf16.msra.mxu0 0
      %1121 = vmatprep.subr.bf16.mxu0 0
      %1122 = vmatpush1.bf16.msra.mxu0 0
      %1123 = vmatprep.subr.bf16.mxu0 0
      %1124 = vmatpush1.bf16.msra.mxu0 0
      %1125 = vmatprep.mubr.bf16.mxu0 0
      %1126 = vmatmul.mubr.bf16.gmra.mrb[0].mxu0 %v831
      %v1127 = vpop.f32.mrb[0].mxu0
      %v1128 = vadd.f32 %v780, %v1127
      %v1129 = vpop.f32.mrb[0].mxu0
      %v1130 = vpop.f32.mrb[0].mxu0
      %v1131 = vpop.f32.mrb[0].mxu0
      %1132 = vdwg.mxu0
      %v1137 = vunpack.c.l.b16 %v709
      %v1138 = vunpack.c.l.b16 %v710
      %v1139 = vunpack.c.l.b16 %v711
      %v1140 = vunpack.c.l.b16 %v712
      %v1141 = vpack.c.b16 %v1138, %v1137
      %v1142 = vpack.c.b16 %v1140, %v1139
      %1145 = vmatprep.subr.bf16.mxu0 0
      %1146 = vmatpush1.bf16.msra.mxu0 %v1141
      %1147 = vmatprep.subr.bf16.mxu0 0
      %1148 = vmatpush1.bf16.msra.mxu0 %v1142
      %1149 = vmatprep.subr.bf16.mxu0 0
      %1150 = vmatpush1.bf16.msra.mxu0 0
      %1151 = vmatprep.subr.bf16.mxu0 0
      %1152 = vmatpush1.bf16.msra.mxu0 0
      %1153 = vmatprep.subr.bf16.mxu0 0
      %1154 = vmatpush1.bf16.msra.mxu0 0
      %1155 = vmatprep.subr.bf16.mxu0 0
      %1156 = vmatpush1.bf16.msra.mxu0 0
      %1157 = vmatprep.subr.bf16.mxu0 0
      %1158 = vmatpush1.bf16.msra.mxu0 0
      %1159 = vmatprep.subr.bf16.mxu0 0
      %1160 = vmatpush1.bf16.msra.mxu0 0
      %1161 = vmatprep.subr.bf16.mxu0 0
      %1162 = vmatpush1.bf16.msra.mxu0 0
      %1163 = vmatprep.subr.bf16.mxu0 0
      %1164 = vmatpush1.bf16.msra.mxu0 0
      %1165 = vmatprep.subr.bf16.mxu0 0
      %1166 = vmatpush1.bf16.msra.mxu0 0
      %1167 = vmatprep.subr.bf16.mxu0 0
      %1168 = vmatpush1.bf16.msra.mxu0 0
      %1169 = vmatprep.subr.bf16.mxu0 0
      %1170 = vmatpush1.bf16.msra.mxu0 0
      %1171 = vmatprep.subr.bf16.mxu0 0
      %1172 = vmatpush1.bf16.msra.mxu0 0
      %1173 = vmatprep.subr.bf16.mxu0 0
      %1174 = vmatpush1.bf16.msra.mxu0 0
      %1175 = vmatprep.subr.bf16.mxu0 0
      %1176 = vmatpush1.bf16.msra.mxu0 0
      %1177 = vmatprep.mubr.bf16.mxu0 0
      %1178 = vmatmul.mubr.bf16.gmra.mrb[0].mxu0 %v831
      %v1179 = vpop.f32.mrb[0].mxu0
      %v1180 = vadd.f32 %v784, %v1179
      %v1181 = vpop.f32.mrb[0].mxu0
      %v1182 = vpop.f32.mrb[0].mxu0
      %v1183 = vpop.f32.mrb[0].mxu0
      %1184 = vdwg.mxu0
      %v1189 = vunpack.c.l.b16 %v713
      %v1190 = vunpack.c.l.b16 %v714
      %v1191 = vunpack.c.l.b16 %v715
      %v1192 = vunpack.c.l.b16 %v716
      %v1193 = vpack.c.b16 %v1190, %v1189
      %v1194 = vpack.c.b16 %v1192, %v1191
      %1197 = vmatprep.subr.bf16.mxu0 0
      %1198 = vmatpush1.bf16.msra.mxu0 %v1193
      %1199 = vmatprep.subr.bf16.mxu0 0
      %1200 = vmatpush1.bf16.msra.mxu0 %v1194
      %1201 = vmatprep.subr.bf16.mxu0 0
      %1202 = vmatpush1.bf16.msra.mxu0 0
      %1203 = vmatprep.subr.bf16.mxu0 0
      %1204 = vmatpush1.bf16.msra.mxu0 0
      %1205 = vmatprep.subr.bf16.mxu0 0
      %1206 = vmatpush1.bf16.msra.mxu0 0
      %1207 = vmatprep.subr.bf16.mxu0 0
      %1208 = vmatpush1.bf16.msra.mxu0 0
      %1209 = vmatprep.subr.bf16.mxu0 0
      %1210 = vmatpush1.bf16.msra.mxu0 0
      %1211 = vmatprep.subr.bf16.mxu0 0
      %1212 = vmatpush1.bf16.msra.mxu0 0
      %1213 = vmatprep.subr.bf16.mxu0 0
      %1214 = vmatpush1.bf16.msra.mxu0 0
      %1215 = vmatprep.subr.bf16.mxu0 0
      %1216 = vmatpush1.bf16.msra.mxu0 0
      %1217 = vmatprep.subr.bf16.mxu0 0
      %1218 = vmatpush1.bf16.msra.mxu0 0
      %1219 = vmatprep.subr.bf16.mxu0 0
      %1220 = vmatpush1.bf16.msra.mxu0 0
      %1221 = vmatprep.subr.bf16.mxu0 0
      %1222 = vmatpush1.bf16.msra.mxu0 0
      %1223 = vmatprep.subr.bf16.mxu0 0
      %1224 = vmatpush1.bf16.msra.mxu0 0
      %1225 = vmatprep.subr.bf16.mxu0 0
      %1226 = vmatpush1.bf16.msra.mxu0 0
      %1227 = vmatprep.subr.bf16.mxu0 0
      %1228 = vmatpush1.bf16.msra.mxu0 0
      %1229 = vmatprep.mubr.bf16.mxu0 0
      %1230 = vmatmul.mubr.bf16.gmra.mrb[0].mxu0 %v831
      %v1231 = vpop.f32.mrb[0].mxu0
      %v1232 = vadd.f32 %v788, %v1231
      %v1233 = vpop.f32.mrb[0].mxu0
      %v1234 = vpop.f32.mrb[0].mxu0
      %v1235 = vpop.f32.mrb[0].mxu0
      %1236 = vdwg.mxu0
      %v1241 = vunpack.c.l.b16 %v717
      %v1242 = vunpack.c.l.b16 %v718
      %v1243 = vunpack.c.l.b16 %v719
      %v1244 = vunpack.c.l.b16 %v720
      %v1245 = vpack.c.b16 %v1242, %v1241
      %v1246 = vpack.c.b16 %v1244, %v1243
      %1249 = vmatprep.subr.bf16.mxu0 0
      %1250 = vmatpush1.bf16.msra.mxu0 %v1245
      %1251 = vmatprep.subr.bf16.mxu0 0
      %1252 = vmatpush1.bf16.msra.mxu0 %v1246
      %1253 = vmatprep.subr.bf16.mxu0 0
      %1254 = vmatpush1.bf16.msra.mxu0 0
      %1255 = vmatprep.subr.bf16.mxu0 0
      %1256 = vmatpush1.bf16.msra.mxu0 0
      %1257 = vmatprep.subr.bf16.mxu0 0
      %1258 = vmatpush1.bf16.msra.mxu0 0
      %1259 = vmatprep.subr.bf16.mxu0 0
      %1260 = vmatpush1.bf16.msra.mxu0 0
      %1261 = vmatprep.subr.bf16.mxu0 0
      %1262 = vmatpush1.bf16.msra.mxu0 0
      %1263 = vmatprep.subr.bf16.mxu0 0
      %1264 = vmatpush1.bf16.msra.mxu0 0
      %1265 = vmatprep.subr.bf16.mxu0 0
      %1266 = vmatpush1.bf16.msra.mxu0 0
      %1267 = vmatprep.subr.bf16.mxu0 0
      %1268 = vmatpush1.bf16.msra.mxu0 0
      %1269 = vmatprep.subr.bf16.mxu0 0
      %1270 = vmatpush1.bf16.msra.mxu0 0
      %1271 = vmatprep.subr.bf16.mxu0 0
      %1272 = vmatpush1.bf16.msra.mxu0 0
      %1273 = vmatprep.subr.bf16.mxu0 0
      %1274 = vmatpush1.bf16.msra.mxu0 0
      %1275 = vmatprep.subr.bf16.mxu0 0
      %1276 = vmatpush1.bf16.msra.mxu0 0
      %1277 = vmatprep.subr.bf16.mxu0 0
      %1278 = vmatpush1.bf16.msra.mxu0 0
      %1279 = vmatprep.subr.bf16.mxu0 0
      %1280 = vmatpush1.bf16.msra.mxu0 0
      %1281 = vmatprep.mubr.bf16.mxu0 0
      %1282 = vmatmul.mubr.bf16.gmra.mrb[0].mxu0 %v831
      %v1283 = vpop.f32.mrb[0].mxu0
      %v1284 = vadd.f32 %v792, %v1283
      %v1285 = vpop.f32.mrb[0].mxu0
      %v1286 = vpop.f32.mrb[0].mxu0
      %v1287 = vpop.f32.mrb[0].mxu0
      %1288 = vdwg.mxu0
      %v1293 = vunpack.c.l.b16 %v721
      %v1294 = vunpack.c.l.b16 %v722
      %v1295 = vunpack.c.l.b16 %v723
      %v1296 = vunpack.c.l.b16 %v724
      %v1297 = vpack.c.b16 %v1294, %v1293
      %v1298 = vpack.c.b16 %v1296, %v1295
      %1301 = vmatprep.subr.bf16.mxu0 0
      %1302 = vmatpush1.bf16.msra.mxu0 %v1297
      %1303 = vmatprep.subr.bf16.mxu0 0
      %1304 = vmatpush1.bf16.msra.mxu0 %v1298
      %1305 = vmatprep.subr.bf16.mxu0 0
      %1306 = vmatpush1.bf16.msra.mxu0 0
      %1307 = vmatprep.subr.bf16.mxu0 0
      %1308 = vmatpush1.bf16.msra.mxu0 0
      %1309 = vmatprep.subr.bf16.mxu0 0
      %1310 = vmatpush1.bf16.msra.mxu0 0
      %1311 = vmatprep.subr.bf16.mxu0 0
      %1312 = vmatpush1.bf16.msra.mxu0 0
      %1313 = vmatprep.subr.bf16.mxu0 0
      %1314 = vmatpush1.bf16.msra.mxu0 0
      %1315 = vmatprep.subr.bf16.mxu0 0
      %1316 = vmatpush1.bf16.msra.mxu0 0
      %1317 = vmatprep.subr.bf16.mxu0 0
      %1318 = vmatpush1.bf16.msra.mxu0 0
      %1319 = vmatprep.subr.bf16.mxu0 0
      %1320 = vmatpush1.bf16.msra.mxu0 0
      %1321 = vmatprep.subr.bf16.mxu0 0
      %1322 = vmatpush1.bf16.msra.mxu0 0
      %1323 = vmatprep.subr.bf16.mxu0 0
      %1324 = vmatpush1.bf16.msra.mxu0 0
      %1325 = vmatprep.subr.bf16.mxu0 0
      %1326 = vmatpush1.bf16.msra.mxu0 0
      %1327 = vmatprep.subr.bf16.mxu0 0
      %1328 = vmatpush1.bf16.msra.mxu0 0
      %1329 = vmatprep.subr.bf16.mxu0 0
      %1330 = vmatpush1.bf16.msra.mxu0 0
      %1331 = vmatprep.subr.bf16.mxu0 0
      %1332 = vmatpush1.bf16.msra.mxu0 0
      %1333 = vmatprep.mubr.bf16.mxu0 0
      %1334 = vmatmul.mubr.bf16.gmra.mrb[0].mxu0 %v831
      %v1335 = vpop.f32.mrb[0].mxu0
      %v1336 = vadd.f32 %v796, %v1335
      %v1337 = vpop.f32.mrb[0].mxu0
      %v1338 = vpop.f32.mrb[0].mxu0
      %v1339 = vpop.f32.mrb[0].mxu0
      %1340 = vdwg.mxu0
      %v1345 = vunpack.c.l.b16 %v725
      %v1346 = vunpack.c.l.b16 %v726
      %v1347 = vunpack.c.l.b16 %v727
      %v1348 = vunpack.c.l.b16 %v728
      %v1349 = vpack.c.b16 %v1346, %v1345
      %v1350 = vpack.c.b16 %v1348, %v1347
      %1353 = vmatprep.subr.bf16.mxu0 0
      %1354 = vmatpush1.bf16.msra.mxu0 %v1349
      %1355 = vmatprep.subr.bf16.mxu0 0
      %1356 = vmatpush1.bf16.msra.mxu0 %v1350
      %1357 = vmatprep.subr.bf16.mxu0 0
      %1358 = vmatpush1.bf16.msra.mxu0 0
      %1359 = vmatprep.subr.bf16.mxu0 0
      %1360 = vmatpush1.bf16.msra.mxu0 0
      %1361 = vmatprep.subr.bf16.mxu0 0
      %1362 = vmatpush1.bf16.msra.mxu0 0
      %1363 = vmatprep.subr.bf16.mxu0 0
      %1364 = vmatpush1.bf16.msra.mxu0 0
      %1365 = vmatprep.subr.bf16.mxu0 0
      %1366 = vmatpush1.bf16.msra.mxu0 0
      %1367 = vmatprep.subr.bf16.mxu0 0
      %1368 = vmatpush1.bf16.msra.mxu0 0
      %1369 = vmatprep.subr.bf16.mxu0 0
      %1370 = vmatpush1.bf16.msra.mxu0 0
      %1371 = vmatprep.subr.bf16.mxu0 0
      %1372 = vmatpush1.bf16.msra.mxu0 0
      %1373 = vmatprep.subr.bf16.mxu0 0
      %1374 = vmatpush1.bf16.msra.mxu0 0
      %1375 = vmatprep.subr.bf16.mxu0 0
      %1376 = vmatpush1.bf16.msra.mxu0 0
      %1377 = vmatprep.subr.bf16.mxu0 0
      %1378 = vmatpush1.bf16.msra.mxu0 0
      %1379 = vmatprep.subr.bf16.mxu0 0
      %1380 = vmatpush1.bf16.msra.mxu0 0
      %1381 = vmatprep.subr.bf16.mxu0 0
      %1382 = vmatpush1.bf16.msra.mxu0 0
      %1383 = vmatprep.subr.bf16.mxu0 0
      %1384 = vmatpush1.bf16.msra.mxu0 0
      %1385 = vmatprep.mubr.bf16.mxu0 0
      %1386 = vmatmul.mubr.bf16.gmra.mrb[0].mxu0 %v831
      %v1387 = vpop.f32.mrb[0].mxu0
      %v1388 = vadd.f32 %v800, %v1387
      %v1389 = vpop.f32.mrb[0].mxu0
      %v1390 = vpop.f32.mrb[0].mxu0
      %v1391 = vpop.f32.mrb[0].mxu0
      %1392 = vdwg.mxu0
      %v1397 = vunpack.c.l.b16 %v729
      %v1398 = vunpack.c.l.b16 %v730
      %v1399 = vunpack.c.l.b16 %v731
      %v1400 = vunpack.c.l.b16 %v732
      %v1401 = vpack.c.b16 %v1398, %v1397
      %v1402 = vpack.c.b16 %v1400, %v1399
      %1405 = vmatprep.subr.bf16.mxu0 0
      %1406 = vmatpush1.bf16.msra.mxu0 %v1401
      %1407 = vmatprep.subr.bf16.mxu0 0
      %1408 = vmatpush1.bf16.msra.mxu0 %v1402
      %1409 = vmatprep.subr.bf16.mxu0 0
      %1410 = vmatpush1.bf16.msra.mxu0 0
      %1411 = vmatprep.subr.bf16.mxu0 0
      %1412 = vmatpush1.bf16.msra.mxu0 0
      %1413 = vmatprep.subr.bf16.mxu0 0
      %1414 = vmatpush1.bf16.msra.mxu0 0
      %1415 = vmatprep.subr.bf16.mxu0 0
      %1416 = vmatpush1.bf16.msra.mxu0 0
      %1417 = vmatprep.subr.bf16.mxu0 0
      %1418 = vmatpush1.bf16.msra.mxu0 0
      %1419 = vmatprep.subr.bf16.mxu0 0
      %1420 = vmatpush1.bf16.msra.mxu0 0
      %1421 = vmatprep.subr.bf16.mxu0 0
      %1422 = vmatpush1.bf16.msra.mxu0 0
      %1423 = vmatprep.subr.bf16.mxu0 0
      %1424 = vmatpush1.bf16.msra.mxu0 0
      %1425 = vmatprep.subr.bf16.mxu0 0
      %1426 = vmatpush1.bf16.msra.mxu0 0
      %1427 = vmatprep.subr.bf16.mxu0 0
      %1428 = vmatpush1.bf16.msra.mxu0 0
      %1429 = vmatprep.subr.bf16.mxu0 0
      %1430 = vmatpush1.bf16.msra.mxu0 0
      %1431 = vmatprep.subr.bf16.mxu0 0
      %1432 = vmatpush1.bf16.msra.mxu0 0
      %1433 = vmatprep.subr.bf16.mxu0 0
      %1434 = vmatpush1.bf16.msra.mxu0 0
      %1435 = vmatprep.subr.bf16.mxu0 0
      %1436 = vmatpush1.bf16.msra.mxu0 0
      %1437 = vmatprep.mubr.bf16.mxu0 0
      %1438 = vmatmul.mubr.bf16.gmra.mrb[0].mxu0 %v831
      %v1439 = vpop.f32.mrb[0].mxu0
      %v1440 = vadd.f32 %v804, %v1439
      %v1441 = vpop.f32.mrb[0].mxu0
      %v1442 = vpop.f32.mrb[0].mxu0
      %v1443 = vpop.f32.mrb[0].mxu0
      %1444 = vdwg.mxu0
      %v1445 = vpack.c.bf16 %v868, %v868
      %v1446 = vpack.c.bf16 %v920, %v920
      %v1447 = vpack.c.bf16 %v972, %v972
      %v1448 = vpack.c.bf16 %v1024, %v1024
      %v1449 = vpack.c.bf16 %v1076, %v1076
      %v1450 = vpack.c.bf16 %v1128, %v1128
      %v1451 = vpack.c.bf16 %v1180, %v1180
      %v1452 = vpack.c.bf16 %v1232, %v1232
      %v1453 = vpack.c.bf16 %v1284, %v1284
      %v1454 = vpack.c.bf16 %v1336, %v1336
      %v1455 = vpack.c.bf16 %v1388, %v1388
      %v1456 = vpack.c.bf16 %v1440, %v1440
      %vm1457 = vcmask 64512
      %v1459 = vsel %vm1457, %v1445, 0
      %v1462 = vsel %vm1457, %v1449, 0
      %1464 = vmatprep.subr.bf16.mxu0 0
      %1465 = vmatpush1.bf16.xpose.msra.mxu0 %v1462
      %1466 = vmatprep.subr.bf16.mxu0 0
      %1467 = vmatpush1.bf16.xpose.msra.mxu0 0
      %1468 = vmatprep.subr.bf16.mxu0 0
      %1469 = vmatpush1.bf16.xpose.msra.mxu0 0
      %1470 = vmatprep.subr.bf16.mxu0 0
      %1471 = vmatpush1.bf16.xpose.msra.mxu0 0
      %1472 = vmatprep.subr.bf16.mxu0 0
      %1473 = vmatpush1.bf16.xpose.msra.mxu0 0
      %1474 = vmatprep.subr.bf16.mxu0 0
      %1475 = vmatpush1.bf16.xpose.msra.mxu0 0
      %1476 = vmatprep.subr.bf16.mxu0 0
      %1477 = vmatpush1.bf16.xpose.msra.mxu0 0
      %1478 = vmatprep.subr.bf16.mxu0 0
      %1479 = vmatpush1.bf16.xpose.msra.mxu0 0
      %1480 = vmatprep.subr.bf16.mxu0 0
      %1481 = vmatpush1.bf16.xpose.msra.mxu0 0
      %1482 = vmatprep.subr.bf16.mxu0 0
      %1483 = vmatpush1.bf16.xpose.msra.mxu0 0
      %1484 = vmatprep.subr.bf16.mxu0 0
      %1485 = vmatpush1.bf16.xpose.msra.mxu0 0
      %1486 = vmatprep.subr.bf16.mxu0 0
      %1487 = vmatpush1.bf16.xpose.msra.mxu0 0
      %1488 = vmatprep.subr.bf16.mxu0 0
      %1489 = vmatpush1.bf16.xpose.msra.mxu0 0
      %1490 = vmatprep.subr.bf16.mxu0 0
      %1491 = vmatpush1.bf16.xpose.msra.mxu0 0
      %1492 = vmatprep.subr.bf16.mxu0 0
      %1493 = vmatpush1.bf16.xpose.msra.mxu0 0
      %1494 = vmatprep.subr.bf16.mxu0 0
      %1495 = vmatpush1.bf16.xpose.msra.mxu0 0
      %1496 = vmatprep.mubr.bf16.mxu0 0
      %1497 = vmatmul.mubr.bf16.gmra.mrb[0].mxu0 %v1459
      %v1498 = vpop.f32.mrb[0].mxu0
      %v1499 = vadd.f32 0.0, %v1498
      %v1500 = vpop.f32.mrb[0].mxu0
      %v1501 = vpop.f32.mrb[0].mxu0
      %v1502 = vpop.f32.mrb[0].mxu0
      %1503 = vdwg.mxu0
      %v1505 = vsel %vm1457, %v1446, 0
      %v1508 = vsel %vm1457, %v1450, 0
      %1510 = vmatprep.subr.bf16.mxu0 0
      %1511 = vmatpush1.bf16.xpose.msra.mxu0 %v1508
      %1512 = vmatprep.subr.bf16.mxu0 0
      %1513 = vmatpush1.bf16.xpose.msra.mxu0 0
      %1514 = vmatprep.subr.bf16.mxu0 0
      %1515 = vmatpush1.bf16.xpose.msra.mxu0 0
      %1516 = vmatprep.subr.bf16.mxu0 0
      %1517 = vmatpush1.bf16.xpose.msra.mxu0 0
      %1518 = vmatprep.subr.bf16.mxu0 0
      %1519 = vmatpush1.bf16.xpose.msra.mxu0 0
      %1520 = vmatprep.subr.bf16.mxu0 0
      %1521 = vmatpush1.bf16.xpose.msra.mxu0 0
      %1522 = vmatprep.subr.bf16.mxu0 0
      %1523 = vmatpush1.bf16.xpose.msra.mxu0 0
      %1524 = vmatprep.subr.bf16.mxu0 0
      %1525 = vmatpush1.bf16.xpose.msra.mxu0 0
      %1526 = vmatprep.subr.bf16.mxu0 0
      %1527 = vmatpush1.bf16.xpose.msra.mxu0 0
      %1528 = vmatprep.subr.bf16.mxu0 0
      %1529 = vmatpush1.bf16.xpose.msra.mxu0 0
      %1530 = vmatprep.subr.bf16.mxu0 0
      %1531 = vmatpush1.bf16.xpose.msra.mxu0 0
      %1532 = vmatprep.subr.bf16.mxu0 0
      %1533 = vmatpush1.bf16.xpose.msra.mxu0 0
      %1534 = vmatprep.subr.bf16.mxu0 0
      %1535 = vmatpush1.bf16.xpose.msra.mxu0 0
      %1536 = vmatprep.subr.bf16.mxu0 0
      %1537 = vmatpush1.bf16.xpose.msra.mxu0 0
      %1538 = vmatprep.subr.bf16.mxu0 0
      %1539 = vmatpush1.bf16.xpose.msra.mxu0 0
      %1540 = vmatprep.subr.bf16.mxu0 0
      %1541 = vmatpush1.bf16.xpose.msra.mxu0 0
      %1542 = vmatprep.mubr.bf16.mxu0 0
      %1543 = vmatmul.mubr.bf16.gmra.mrb[0].mxu0 %v1505
      %v1544 = vpop.f32.mrb[0].mxu0
      %v1545 = vadd.f32 0.0, %v1544
      %v1546 = vpop.f32.mrb[0].mxu0
      %v1547 = vpop.f32.mrb[0].mxu0
      %v1548 = vpop.f32.mrb[0].mxu0
      %1549 = vdwg.mxu0
      %v1551 = vsel %vm1457, %v1447, 0
      %v1554 = vsel %vm1457, %v1451, 0
      %1556 = vmatprep.subr.bf16.mxu0 0
      %1557 = vmatpush1.bf16.xpose.msra.mxu0 %v1554
      %1558 = vmatprep.subr.bf16.mxu0 0
      %1559 = vmatpush1.bf16.xpose.msra.mxu0 0
      %1560 = vmatprep.subr.bf16.mxu0 0
      %1561 = vmatpush1.bf16.xpose.msra.mxu0 0
      %1562 = vmatprep.subr.bf16.mxu0 0
      %1563 = vmatpush1.bf16.xpose.msra.mxu0 0
      %1564 = vmatprep.subr.bf16.mxu0 0
      %1565 = vmatpush1.bf16.xpose.msra.mxu0 0
      %1566 = vmatprep.subr.bf16.mxu0 0
      %1567 = vmatpush1.bf16.xpose.msra.mxu0 0
      %1568 = vmatprep.subr.bf16.mxu0 0
      %1569 = vmatpush1.bf16.xpose.msra.mxu0 0
      %1570 = vmatprep.subr.bf16.mxu0 0
      %1571 = vmatpush1.bf16.xpose.msra.mxu0 0
      %1572 = vmatprep.subr.bf16.mxu0 0
      %1573 = vmatpush1.bf16.xpose.msra.mxu0 0
      %1574 = vmatprep.subr.bf16.mxu0 0
      %1575 = vmatpush1.bf16.xpose.msra.mxu0 0
      %1576 = vmatprep.subr.bf16.mxu0 0
      %1577 = vmatpush1.bf16.xpose.msra.mxu0 0
      %1578 = vmatprep.subr.bf16.mxu0 0
      %1579 = vmatpush1.bf16.xpose.msra.mxu0 0
      %1580 = vmatprep.subr.bf16.mxu0 0
      %1581 = vmatpush1.bf16.xpose.msra.mxu0 0
      %1582 = vmatprep.subr.bf16.mxu0 0
      %1583 = vmatpush1.bf16.xpose.msra.mxu0 0
      %1584 = vmatprep.subr.bf16.mxu0 0
      %1585 = vmatpush1.bf16.xpose.msra.mxu0 0
      %1586 = vmatprep.subr.bf16.mxu0 0
      %1587 = vmatpush1.bf16.xpose.msra.mxu0 0
      %1588 = vmatprep.mubr.bf16.mxu0 0
      %1589 = vmatmul.mubr.bf16.gmra.mrb[0].mxu0 %v1551
      %v1590 = vpop.f32.mrb[0].mxu0
      %v1591 = vadd.f32 0.0, %v1590
      %v1592 = vpop.f32.mrb[0].mxu0
      %v1593 = vpop.f32.mrb[0].mxu0
      %v1594 = vpop.f32.mrb[0].mxu0
      %1595 = vdwg.mxu0
      %v1597 = vsel %vm1457, %v1448, 0
      %v1600 = vsel %vm1457, %v1452, 0
      %1602 = vmatprep.subr.bf16.mxu0 0
      %1603 = vmatpush1.bf16.xpose.msra.mxu0 %v1600
      %1604 = vmatprep.subr.bf16.mxu0 0
      %1605 = vmatpush1.bf16.xpose.msra.mxu0 0
      %1606 = vmatprep.subr.bf16.mxu0 0
      %1607 = vmatpush1.bf16.xpose.msra.mxu0 0
      %1608 = vmatprep.subr.bf16.mxu0 0
      %1609 = vmatpush1.bf16.xpose.msra.mxu0 0
      %1610 = vmatprep.subr.bf16.mxu0 0
      %1611 = vmatpush1.bf16.xpose.msra.mxu0 0
      %1612 = vmatprep.subr.bf16.mxu0 0
      %1613 = vmatpush1.bf16.xpose.msra.mxu0 0
      %1614 = vmatprep.subr.bf16.mxu0 0
      %1615 = vmatpush1.bf16.xpose.msra.mxu0 0
      %1616 = vmatprep.subr.bf16.mxu0 0
      %1617 = vmatpush1.bf16.xpose.msra.mxu0 0
      %1618 = vmatprep.subr.bf16.mxu0 0
      %1619 = vmatpush1.bf16.xpose.msra.mxu0 0
      %1620 = vmatprep.subr.bf16.mxu0 0
      %1621 = vmatpush1.bf16.xpose.msra.mxu0 0
      %1622 = vmatprep.subr.bf16.mxu0 0
      %1623 = vmatpush1.bf16.xpose.msra.mxu0 0
      %1624 = vmatprep.subr.bf16.mxu0 0
      %1625 = vmatpush1.bf16.xpose.msra.mxu0 0
      %1626 = vmatprep.subr.bf16.mxu0 0
      %1627 = vmatpush1.bf16.xpose.msra.mxu0 0
      %1628 = vmatprep.subr.bf16.mxu0 0
      %1629 = vmatpush1.bf16.xpose.msra.mxu0 0
      %1630 = vmatprep.subr.bf16.mxu0 0
      %1631 = vmatpush1.bf16.xpose.msra.mxu0 0
      %1632 = vmatprep.subr.bf16.mxu0 0
      %1633 = vmatpush1.bf16.xpose.msra.mxu0 0
      %1634 = vmatprep.mubr.bf16.mxu0 0
      %1635 = vmatmul.mubr.bf16.gmra.mrb[0].mxu0 %v1597
      %v1636 = vpop.f32.mrb[0].mxu0
      %v1637 = vadd.f32 0.0, %v1636
      %v1638 = vpop.f32.mrb[0].mxu0
      %v1639 = vpop.f32.mrb[0].mxu0
      %v1640 = vpop.f32.mrb[0].mxu0
      %1641 = vdwg.mxu0
      %vm1642 = vcmask 36864
      %v1643 = vsel %vm1642, %v1499, -inf
      %1644 = vmax.xlane.f32.xlu0 %v1643
      %v1645 = vpop.xlane.xlu0 %1644
      %v1646 = vsel %vm1642, %v1545, -inf
      %1647 = vmax.xlane.f32.xlu0 %v1646
      %v1648 = vpop.xlane.xlu0 %1647
      %v1649 = vsel %vm1642, %v1591, -inf
      %1650 = vmax.xlane.f32.xlu0 %v1649
      %v1651 = vpop.xlane.xlu0 %1650
      %v1652 = vsel %vm1642, %v1637, -inf
      %1653 = vmax.xlane.f32.xlu0 %v1652
      %v1654 = vpop.xlane.xlu0 %1653
      %v1655 = vsub.f32 %v1499, %v1645
      %v1656 = vsub.f32 %v1545, %v1648
      %v1657 = vsub.f32 %v1591, %v1651
      %v1658 = vsub.f32 %v1637, %v1654
      %v1659 = vmul.f32 %v1655, 1.442695
      %v1660 = vpow.pop %v1659
      %v1661 = vmul.f32 %v1656, 1.442695
      %v1662 = vpow.pop %v1661
      %v1663 = vmul.f32 %v1657, 1.442695
      %v1664 = vpow.pop %v1663
      %v1665 = vmul.f32 %v1658, 1.442695
      %v1666 = vpow.pop %v1665
      %v1667 = vsel %vm1642, %v1660, 0.0
      %1668 = vadd.xlane.f32.xlu0 %v1667
      %v1669 = vpop.xlane.xlu0 %1668
      %v1670 = vsel %vm1642, %v1662, 0.0
      %1671 = vadd.xlane.f32.xlu0 %v1670
      %v1672 = vpop.xlane.xlu0 %1671
      %v1673 = vsel %vm1642, %v1664, 0.0
      %1674 = vadd.xlane.f32.xlu0 %v1673
      %v1675 = vpop.xlane.xlu0 %1674
      %v1676 = vsel %vm1642, %v1666, 0.0
      %1677 = vadd.xlane.f32.xlu0 %v1676
      %v1678 = vpop.xlane.xlu0 %1677
      %v1679 = vrcp.pop %v1669
      %v1680 = vrcp.pop %v1672
      %v1681 = vrcp.pop %v1675
      %v1682 = vrcp.pop %v1678
      %v1683 = vmul.f32 %v1660, %v1679
      %v1684 = vmul.f32 %v1662, %v1680
      %v1685 = vmul.f32 %v1664, %v1681
      %v1686 = vmul.f32 %v1666, %v1682
      %v1687 = vpack.c.bf16 %v1683, %v1683
      %v1688 = vpack.c.bf16 %v1684, %v1684
      %v1689 = vpack.c.bf16 %v1685, %v1685
      %v1690 = vpack.c.bf16 %v1686, %v1686
      %vm1691 = vcmask 39936
      %v1693 = vsel %vm1691, %v1687, 0
      %vm1695 = vcmask 1041408
      %vm1696 = vcmask 1042432
      %v1697 = vsel %vm1695, 4294967295, 65535
      %v1698 = vsel %vm1696, %v1697, 0
      %v1700 = vand.u32 %v1453, %v1698
      %1702 = vmatprep.subr.bf16.mxu0 0
      %1703 = vmatpush1.bf16.msra.mxu0 %v1700
      %1704 = vmatprep.subr.bf16.mxu0 0
      %1705 = vmatpush1.bf16.msra.mxu0 0
      %1706 = vmatprep.subr.bf16.mxu0 0
      %1707 = vmatpush1.bf16.msra.mxu0 0
      %1708 = vmatprep.subr.bf16.mxu0 0
      %1709 = vmatpush1.bf16.msra.mxu0 0
      %1710 = vmatprep.subr.bf16.mxu0 0
      %1711 = vmatpush1.bf16.msra.mxu0 0
      %1712 = vmatprep.subr.bf16.mxu0 0
      %1713 = vmatpush1.bf16.msra.mxu0 0
      %1714 = vmatprep.subr.bf16.mxu0 0
      %1715 = vmatpush1.bf16.msra.mxu0 0
      %1716 = vmatprep.subr.bf16.mxu0 0
      %1717 = vmatpush1.bf16.msra.mxu0 0
      %1718 = vmatprep.subr.bf16.mxu0 0
      %1719 = vmatpush1.bf16.msra.mxu0 0
      %1720 = vmatprep.subr.bf16.mxu0 0
      %1721 = vmatpush1.bf16.msra.mxu0 0
      %1722 = vmatprep.subr.bf16.mxu0 0
      %1723 = vmatpush1.bf16.msra.mxu0 0
      %1724 = vmatprep.subr.bf16.mxu0 0
      %1725 = vmatpush1.bf16.msra.mxu0 0
      %1726 = vmatprep.subr.bf16.mxu0 0
      %1727 = vmatpush1.bf16.msra.mxu0 0
      %1728 = vmatprep.subr.bf16.mxu0 0
      %1729 = vmatpush1.bf16.msra.mxu0 0
      %1730 = vmatprep.subr.bf16.mxu0 0
      %1731 = vmatpush1.bf16.msra.mxu0 0
      %1732 = vmatprep.subr.bf16.mxu0 0
      %1733 = vmatpush1.bf16.msra.mxu0 0
      %1734 = vmatprep.mubr.bf16.mxu0 0
      %1735 = vmatmul.mubr.bf16.gmra.mrb[0].mxu0 %v1693
      %v1736 = vpop.f32.mrb[0].mxu0
      %v1737 = vadd.f32 0.0, %v1736
      %v1738 = vpop.f32.mrb[0].mxu0
      %v1739 = vpop.f32.mrb[0].mxu0
      %v1740 = vpop.f32.mrb[0].mxu0
      %1741 = vdwg.mxu0
      %v1743 = vsel %vm1691, %v1688, 0
      %v1746 = vand.u32 %v1454, %v1698
      %1748 = vmatprep.subr.bf16.mxu0 0
      %1749 = vmatpush1.bf16.msra.mxu0 %v1746
      %1750 = vmatprep.subr.bf16.mxu0 0
      %1751 = vmatpush1.bf16.msra.mxu0 0
      %1752 = vmatprep.subr.bf16.mxu0 0
      %1753 = vmatpush1.bf16.msra.mxu0 0
      %1754 = vmatprep.subr.bf16.mxu0 0
      %1755 = vmatpush1.bf16.msra.mxu0 0
      %1756 = vmatprep.subr.bf16.mxu0 0
      %1757 = vmatpush1.bf16.msra.mxu0 0
      %1758 = vmatprep.subr.bf16.mxu0 0
      %1759 = vmatpush1.bf16.msra.mxu0 0
      %1760 = vmatprep.subr.bf16.mxu0 0
      %1761 = vmatpush1.bf16.msra.mxu0 0
      %1762 = vmatprep.subr.bf16.mxu0 0
      %1763 = vmatpush1.bf16.msra.mxu0 0
      %1764 = vmatprep.subr.bf16.mxu0 0
      %1765 = vmatpush1.bf16.msra.mxu0 0
      %1766 = vmatprep.subr.bf16.mxu0 0
      %1767 = vmatpush1.bf16.msra.mxu0 0
      %1768 = vmatprep.subr.bf16.mxu0 0
      %1769 = vmatpush1.bf16.msra.mxu0 0
      %1770 = vmatprep.subr.bf16.mxu0 0
      %1771 = vmatpush1.bf16.msra.mxu0 0
      %1772 = vmatprep.subr.bf16.mxu0 0
      %1773 = vmatpush1.bf16.msra.mxu0 0
      %1774 = vmatprep.subr.bf16.mxu0 0
      %1775 = vmatpush1.bf16.msra.mxu0 0
      %1776 = vmatprep.subr.bf16.mxu0 0
      %1777 = vmatpush1.bf16.msra.mxu0 0
      %1778 = vmatprep.subr.bf16.mxu0 0
      %1779 = vmatpush1.bf16.msra.mxu0 0
      %1780 = vmatprep.mubr.bf16.mxu0 0
      %1781 = vmatmul.mubr.bf16.gmra.mrb[0].mxu0 %v1743
      %v1782 = vpop.f32.mrb[0].mxu0
      %v1783 = vadd.f32 0.0, %v1782
      %v1784 = vpop.f32.mrb[0].mxu0
      %v1785 = vpop.f32.mrb[0].mxu0
      %v1786 = vpop.f32.mrb[0].mxu0
      %1787 = vdwg.mxu0
      %v1789 = vsel %vm1691, %v1689, 0
      %v1792 = vand.u32 %v1455, %v1698
      %1794 = vmatprep.subr.bf16.mxu0 0
      %1795 = vmatpush1.bf16.msra.mxu0 %v1792
      %1796 = vmatprep.subr.bf16.mxu0 0
      %1797 = vmatpush1.bf16.msra.mxu0 0
      %1798 = vmatprep.subr.bf16.mxu0 0
      %1799 = vmatpush1.bf16.msra.mxu0 0
      %1800 = vmatprep.subr.bf16.mxu0 0
      %1801 = vmatpush1.bf16.msra.mxu0 0
      %1802 = vmatprep.subr.bf16.mxu0 0
      %1803 = vmatpush1.bf16.msra.mxu0 0
      %1804 = vmatprep.subr.bf16.mxu0 0
      %1805 = vmatpush1.bf16.msra.mxu0 0
      %1806 = vmatprep.subr.bf16.mxu0 0
      %1807 = vmatpush1.bf16.msra.mxu0 0
      %1808 = vmatprep.subr.bf16.mxu0 0
      %1809 = vmatpush1.bf16.msra.mxu0 0
      %1810 = vmatprep.subr.bf16.mxu0 0
      %1811 = vmatpush1.bf16.msra.mxu0 0
      %1812 = vmatprep.subr.bf16.mxu0 0
      %1813 = vmatpush1.bf16.msra.mxu0 0
      %1814 = vmatprep.subr.bf16.mxu0 0
      %1815 = vmatpush1.bf16.msra.mxu0 0
      %1816 = vmatprep.subr.bf16.mxu0 0
      %1817 = vmatpush1.bf16.msra.mxu0 0
      %1818 = vmatprep.subr.bf16.mxu0 0
      %1819 = vmatpush1.bf16.msra.mxu0 0
      %1820 = vmatprep.subr.bf16.mxu0 0
      %1821 = vmatpush1.bf16.msra.mxu0 0
      %1822 = vmatprep.subr.bf16.mxu0 0
      %1823 = vmatpush1.bf16.msra.mxu0 0
      %1824 = vmatprep.subr.bf16.mxu0 0
      %1825 = vmatpush1.bf16.msra.mxu0 0
      %1826 = vmatprep.mubr.bf16.mxu0 0
      %1827 = vmatmul.mubr.bf16.gmra.mrb[0].mxu0 %v1789
      %v1828 = vpop.f32.mrb[0].mxu0
      %v1829 = vadd.f32 0.0, %v1828
      %v1830 = vpop.f32.mrb[0].mxu0
      %v1831 = vpop.f32.mrb[0].mxu0
      %v1832 = vpop.f32.mrb[0].mxu0
      %1833 = vdwg.mxu0
      %v1835 = vsel %vm1691, %v1690, 0
      %v1838 = vand.u32 %v1456, %v1698
      %1840 = vmatprep.subr.bf16.mxu0 0
      %1841 = vmatpush1.bf16.msra.mxu0 %v1838
      %1842 = vmatprep.subr.bf16.mxu0 0
      %1843 = vmatpush1.bf16.msra.mxu0 0
      %1844 = vmatprep.subr.bf16.mxu0 0
      %1845 = vmatpush1.bf16.msra.mxu0 0
      %1846 = vmatprep.subr.bf16.mxu0 0
      %1847 = vmatpush1.bf16.msra.mxu0 0
      %1848 = vmatprep.subr.bf16.mxu0 0
      %1849 = vmatpush1.bf16.msra.mxu0 0
      %1850 = vmatprep.subr.bf16.mxu0 0
      %1851 = vmatpush1.bf16.msra.mxu0 0
      %1852 = vmatprep.subr.bf16.mxu0 0
      %1853 = vmatpush1.bf16.msra.mxu0 0
      %1854 = vmatprep.subr.bf16.mxu0 0
      %1855 = vmatpush1.bf16.msra.mxu0 0
      %1856 = vmatprep.subr.bf16.mxu0 0
      %1857 = vmatpush1.bf16.msra.mxu0 0
      %1858 = vmatprep.subr.bf16.mxu0 0
      %1859 = vmatpush1.bf16.msra.mxu0 0
      %1860 = vmatprep.subr.bf16.mxu0 0
      %1861 = vmatpush1.bf16.msra.mxu0 0
      %1862 = vmatprep.subr.bf16.mxu0 0
      %1863 = vmatpush1.bf16.msra.mxu0 0
      %1864 = vmatprep.subr.bf16.mxu0 0
      %1865 = vmatpush1.bf16.msra.mxu0 0
      %1866 = vmatprep.subr.bf16.mxu0 0
      %1867 = vmatpush1.bf16.msra.mxu0 0
      %1868 = vmatprep.subr.bf16.mxu0 0
      %1869 = vmatpush1.bf16.msra.mxu0 0
      %1870 = vmatprep.subr.bf16.mxu0 0
      %1871 = vmatpush1.bf16.msra.mxu0 0
      %1872 = vmatprep.mubr.bf16.mxu0 0
      %1873 = vmatmul.mubr.bf16.gmra.mrb[0].mxu0 %v1835
      %v1874 = vpop.f32.mrb[0].mxu0
      %v1875 = vadd.f32 0.0, %v1874
      %v1876 = vpop.f32.mrb[0].mxu0
      %v1877 = vpop.f32.mrb[0].mxu0
      %v1878 = vpop.f32.mrb[0].mxu0
      %1879 = vdwg.mxu0
      %v1880 = vpack.c.bf16 %v1737, %v1737
      %v1881 = vpack.c.bf16 %v1783, %v1783
      %v1882 = vpack.c.bf16 %v1829, %v1829
      %v1883 = vpack.c.bf16 %v1875, %v1875
      %v1884 = vld [vmem:[%s613] sm:$0xf]
      %v1885 = vld [vmem:[%s613 + $0x4] sm:$0xf]
      %v1886 = vld [vmem:[%s613 + $0x8] sm:$0xf]
      %v1887 = vld [vmem:[%s613 + $0xc] sm:$0xf]
      %v1889 = vsel %vm1457, %v1880, 0
      %vm1891 = vcmask 1043456
      %v1893 = vsel %vm1891, %v1884, 0
      %1895 = vmatprep.subr.bf16.mxu0 0
      %1896 = vmatpush1.bf16.msra.mxu0 %v1893
      %1897 = vmatprep.subr.bf16.mxu0 0
      %1898 = vmatpush1.bf16.msra.mxu0 0
      %1899 = vmatprep.subr.bf16.mxu0 0
      %1900 = vmatpush1.bf16.msra.mxu0 0
      %1901 = vmatprep.subr.bf16.mxu0 0
      %1902 = vmatpush1.bf16.msra.mxu0 0
      %1903 = vmatprep.subr.bf16.mxu0 0
      %1904 = vmatpush1.bf16.msra.mxu0 0
      %1905 = vmatprep.subr.bf16.mxu0 0
      %1906 = vmatpush1.bf16.msra.mxu0 0
      %1907 = vmatprep.subr.bf16.mxu0 0
      %1908 = vmatpush1.bf16.msra.mxu0 0
      %1909 = vmatprep.subr.bf16.mxu0 0
      %1910 = vmatpush1.bf16.msra.mxu0 0
      %1911 = vmatprep.subr.bf16.mxu0 0
      %1912 = vmatpush1.bf16.msra.mxu0 0
      %1913 = vmatprep.subr.bf16.mxu0 0
      %1914 = vmatpush1.bf16.msra.mxu0 0
      %1915 = vmatprep.subr.bf16.mxu0 0
      %1916 = vmatpush1.bf16.msra.mxu0 0
      %1917 = vmatprep.subr.bf16.mxu0 0
      %1918 = vmatpush1.bf16.msra.mxu0 0
      %1919 = vmatprep.subr.bf16.mxu0 0
      %1920 = vmatpush1.bf16.msra.mxu0 0
      %1921 = vmatprep.subr.bf16.mxu0 0
      %1922 = vmatpush1.bf16.msra.mxu0 0
      %1923 = vmatprep.subr.bf16.mxu0 0
      %1924 = vmatpush1.bf16.msra.mxu0 0
      %1925 = vmatprep.subr.bf16.mxu0 0
      %1926 = vmatpush1.bf16.msra.mxu0 0
      %1927 = vmatprep.mubr.bf16.mxu0 0
      %1928 = vmatmul.mubr.bf16.gmra.mrb[0].mxu0 %v1889
      %v1929 = vpop.f32.mrb[0].mxu0
      %v1930 = vadd.f32 0.0, %v1929
      %v1931 = vpop.f32.mrb[0].mxu0
      %v1932 = vpop.f32.mrb[0].mxu0
      %v1933 = vpop.f32.mrb[0].mxu0
      %1934 = vdwg.mxu0
      %v1936 = vsel %vm1457, %v1881, 0
      %v1939 = vsel %vm1891, %v1885, 0
      %1941 = vmatprep.subr.bf16.mxu0 0
      %1942 = vmatpush1.bf16.msra.mxu0 %v1939
      %1943 = vmatprep.subr.bf16.mxu0 0
      %1944 = vmatpush1.bf16.msra.mxu0 0
      %1945 = vmatprep.subr.bf16.mxu0 0
      %1946 = vmatpush1.bf16.msra.mxu0 0
      %1947 = vmatprep.subr.bf16.mxu0 0
      %1948 = vmatpush1.bf16.msra.mxu0 0
      %1949 = vmatprep.subr.bf16.mxu0 0
      %1950 = vmatpush1.bf16.msra.mxu0 0
      %1951 = vmatprep.subr.bf16.mxu0 0
      %1952 = vmatpush1.bf16.msra.mxu0 0
      %1953 = vmatprep.subr.bf16.mxu0 0
      %1954 = vmatpush1.bf16.msra.mxu0 0
      %1955 = vmatprep.subr.bf16.mxu0 0
      %1956 = vmatpush1.bf16.msra.mxu0 0
      %1957 = vmatprep.subr.bf16.mxu0 0
      %1958 = vmatpush1.bf16.msra.mxu0 0
      %1959 = vmatprep.subr.bf16.mxu0 0
      %1960 = vmatpush1.bf16.msra.mxu0 0
      %1961 = vmatprep.subr.bf16.mxu0 0
      %1962 = vmatpush1.bf16.msra.mxu0 0
      %1963 = vmatprep.subr.bf16.mxu0 0
      %1964 = vmatpush1.bf16.msra.mxu0 0
      %1965 = vmatprep.subr.bf16.mxu0 0
      %1966 = vmatpush1.bf16.msra.mxu0 0
      %1967 = vmatprep.subr.bf16.mxu0 0
      %1968 = vmatpush1.bf16.msra.mxu0 0
      %1969 = vmatprep.subr.bf16.mxu0 0
      %1970 = vmatpush1.bf16.msra.mxu0 0
      %1971 = vmatprep.subr.bf16.mxu0 0
      %1972 = vmatpush1.bf16.msra.mxu0 0
      %1973 = vmatprep.mubr.bf16.mxu0 0
      %1974 = vmatmul.mubr.bf16.gmra.mrb[0].mxu0 %v1936
      %v1975 = vpop.f32.mrb[0].mxu0
      %v1976 = vadd.f32 0.0, %v1975
      %v1977 = vpop.f32.mrb[0].mxu0
      %v1978 = vpop.f32.mrb[0].mxu0
      %v1979 = vpop.f32.mrb[0].mxu0
      %1980 = vdwg.mxu0
      %v1982 = vsel %vm1457, %v1882, 0
      %v1985 = vsel %vm1891, %v1886, 0
      %1987 = vmatprep.subr.bf16.mxu0 0
      %1988 = vmatpush1.bf16.msra.mxu0 %v1985
      %1989 = vmatprep.subr.bf16.mxu0 0
      %1990 = vmatpush1.bf16.msra.mxu0 0
      %1991 = vmatprep.subr.bf16.mxu0 0
      %1992 = vmatpush1.bf16.msra.mxu0 0
      %1993 = vmatprep.subr.bf16.mxu0 0
      %1994 = vmatpush1.bf16.msra.mxu0 0
      %1995 = vmatprep.subr.bf16.mxu0 0
      %1996 = vmatpush1.bf16.msra.mxu0 0
      %1997 = vmatprep.subr.bf16.mxu0 0
      %1998 = vmatpush1.bf16.msra.mxu0 0
      %1999 = vmatprep.subr.bf16.mxu0 0
      %2000 = vmatpush1.bf16.msra.mxu0 0
      %2001 = vmatprep.subr.bf16.mxu0 0
      %2002 = vmatpush1.bf16.msra.mxu0 0
      %2003 = vmatprep.subr.bf16.mxu0 0
      %2004 = vmatpush1.bf16.msra.mxu0 0
      %2005 = vmatprep.subr.bf16.mxu0 0
      %2006 = vmatpush1.bf16.msra.mxu0 0
      %2007 = vmatprep.subr.bf16.mxu0 0
      %2008 = vmatpush1.bf16.msra.mxu0 0
      %2009 = vmatprep.subr.bf16.mxu0 0
      %2010 = vmatpush1.bf16.msra.mxu0 0
      %2011 = vmatprep.subr.bf16.mxu0 0
      %2012 = vmatpush1.bf16.msra.mxu0 0
      %2013 = vmatprep.subr.bf16.mxu0 0
      %2014 = vmatpush1.bf16.msra.mxu0 0
      %2015 = vmatprep.subr.bf16.mxu0 0
      %2016 = vmatpush1.bf16.msra.mxu0 0
      %2017 = vmatprep.subr.bf16.mxu0 0
      %2018 = vmatpush1.bf16.msra.mxu0 0
      %2019 = vmatprep.mubr.bf16.mxu0 0
      %2020 = vmatmul.mubr.bf16.gmra.mrb[0].mxu0 %v1982
      %v2021 = vpop.f32.mrb[0].mxu0
      %v2022 = vadd.f32 0.0, %v2021
      %v2023 = vpop.f32.mrb[0].mxu0
      %v2024 = vpop.f32.mrb[0].mxu0
      %v2025 = vpop.f32.mrb[0].mxu0
      %2026 = vdwg.mxu0
      %v2028 = vsel %vm1457, %v1883, 0
      %v2031 = vsel %vm1891, %v1887, 0
      %2033 = vmatprep.subr.bf16.mxu0 0
      %2034 = vmatpush1.bf16.msra.mxu0 %v2031
      %2035 = vmatprep.subr.bf16.mxu0 0
      %2036 = vmatpush1.bf16.msra.mxu0 0
      %2037 = vmatprep.subr.bf16.mxu0 0
      %2038 = vmatpush1.bf16.msra.mxu0 0
      %2039 = vmatprep.subr.bf16.mxu0 0
      %2040 = vmatpush1.bf16.msra.mxu0 0
      %2041 = vmatprep.subr.bf16.mxu0 0
      %2042 = vmatpush1.bf16.msra.mxu0 0
      %2043 = vmatprep.subr.bf16.mxu0 0
      %2044 = vmatpush1.bf16.msra.mxu0 0
      %2045 = vmatprep.subr.bf16.mxu0 0
      %2046 = vmatpush1.bf16.msra.mxu0 0
      %2047 = vmatprep.subr.bf16.mxu0 0
      %2048 = vmatpush1.bf16.msra.mxu0 0
      %2049 = vmatprep.subr.bf16.mxu0 0
      %2050 = vmatpush1.bf16.msra.mxu0 0
      %2051 = vmatprep.subr.bf16.mxu0 0
      %2052 = vmatpush1.bf16.msra.mxu0 0
      %2053 = vmatprep.subr.bf16.mxu0 0
      %2054 = vmatpush1.bf16.msra.mxu0 0
      %2055 = vmatprep.subr.bf16.mxu0 0
      %2056 = vmatpush1.bf16.msra.mxu0 0
      %2057 = vmatprep.subr.bf16.mxu0 0
      %2058 = vmatpush1.bf16.msra.mxu0 0
      %2059 = vmatprep.subr.bf16.mxu0 0
      %2060 = vmatpush1.bf16.msra.mxu0 0
      %2061 = vmatprep.subr.bf16.mxu0 0
      %2062 = vmatpush1.bf16.msra.mxu0 0
      %2063 = vmatprep.subr.bf16.mxu0 0
      %2064 = vmatpush1.bf16.msra.mxu0 0
      %2065 = vmatprep.mubr.bf16.mxu0 0
      %2066 = vmatmul.mubr.bf16.gmra.mrb[0].mxu0 %v2028
      %v2067 = vpop.f32.mrb[0].mxu0
      %v2068 = vadd.f32 0.0, %v2067
      %v2069 = vpop.f32.mrb[0].mxu0
      %v2070 = vpop.f32.mrb[0].mxu0
      %v2071 = vpop.f32.mrb[0].mxu0
      %2072 = vdwg.mxu0
      %v2073 = vsel %vm655, %v1930, 0.0
      %v2074 = vsel %vm655, %v1976, 0.0
      %v2075 = vadd.f32 %v2073, %v2074
      %v2076 = vsel %vm655, %v2022, 0.0
      %v2077 = vadd.f32 %v2075, %v2076
      %v2078 = vsel %vm655, %v2068, 0.0
      %v2079 = vadd.f32 %v2077, %v2078
      %v2080 = vadd.f32 %v652, %v2079
      %v2081 = vld [vmem:[%s616] sm:$0x1]
      %v2083 = vlaneseq
      %v2084 = vshrl.u32 %v2083, 7
      %v2085 = vsub.s32 0, %v2084
      %v2086 = vrot.slane %v2081, %v2085
      %v2088 = vadd.f32 %v2080, %v2086
      %v2089 = vld [vmem:[%s619] sm:$0x1]
      %v2090 = vld [vmem:[%s622] sm:$0x1]
      %v2091 = vsel %vm655, %v2088, 0.0
      %2092 = vadd.xlane.f32.xlu0 %v2091
      %v2093 = vpop.xlane.xlu0 %2092
      %v2094 = vmul.f32 %v2093, %v659
      %v2095 = vsub.f32 %v2088, %v2094
      %v2096 = vmul.f32 %v2095, %v2095
      %v2097 = vsel %vm655, %v2096, 0.0
      %2098 = vadd.xlane.f32.xlu0 %v2097
      %v2099 = vpop.xlane.xlu0 %2098
      %v2100 = vmul.f32 %v2099, %v659
      %v2101 = vadd.f32 %v2100, 1e-05
      %v2102 = vrsqrt.pop %v2101
      %v2103 = vmul.f32 %v2095, %v2102
      %v2105 = vlaneseq
      %v2106 = vshrl.u32 %v2105, 7
      %v2107 = vsub.s32 0, %v2106
      %v2108 = vrot.slane %v2089, %v2107
      %v2110 = vmul.f32 %v2103, %v2108
      %v2112 = vlaneseq
      %v2113 = vshrl.u32 %v2112, 7
      %v2114 = vsub.s32 0, %v2113
      %v2115 = vrot.slane %v2090, %v2114
      %v2117 = vadd.f32 %v2110, %v2115
      %v2118 = vld [vmem:[%s627] sm:$0xf]
      %v2119 = vld [vmem:[%s627 + $0x4] sm:$0xf]
      %v2120 = vld [vmem:[%s627 + $0x8] sm:$0xf]
      %v2121 = vld [vmem:[%s627 + $0xc] sm:$0xf]
      %v2122 = vpack.c.bf16 %v2117, %v2117
      %v2123 = vld [vmem:[%s630] sm:$0x1]
      %v2125 = vlaneseq
      %v2126 = vshrl.u32 %v2125, 7
      %v2127 = vsub.s32 0, %v2126
      %v2128 = vrot.slane %v2123, %v2127
      %v2134 = vunpack.c.l.b16 %v2118
      %v2135 = vunpack.c.l.b16 %v2119
      %v2136 = vunpack.c.l.b16 %v2120
      %v2137 = vunpack.c.l.b16 %v2121
      %v2138 = vpack.c.b16 %v2135, %v2134
      %v2139 = vpack.c.b16 %v2137, %v2136
      %v2143 = vsel %vm829, %v2122, 0
      %2145 = vmatprep.subr.bf16.mxu0 0
      %2146 = vmatpush1.bf16.msra.mxu0 %v2138
      %2147 = vmatprep.subr.bf16.mxu0 0
      %2148 = vmatpush1.bf16.msra.mxu0 %v2139
      %2149 = vmatprep.subr.bf16.mxu0 0
      %2150 = vmatpush1.bf16.msra.mxu0 0
      %2151 = vmatprep.subr.bf16.mxu0 0
      %2152 = vmatpush1.bf16.msra.mxu0 0
      %2153 = vmatprep.subr.bf16.mxu0 0
      %2154 = vmatpush1.bf16.msra.mxu0 0
      %2155 = vmatprep.subr.bf16.mxu0 0
      %2156 = vmatpush1.bf16.msra.mxu0 0
      %2157 = vmatprep.subr.bf16.mxu0 0
      %2158 = vmatpush1.bf16.msra.mxu0 0
      %2159 = vmatprep.subr.bf16.mxu0 0
      %2160 = vmatpush1.bf16.msra.mxu0 0
      %2161 = vmatprep.subr.bf16.mxu0 0
      %2162 = vmatpush1.bf16.msra.mxu0 0
      %2163 = vmatprep.subr.bf16.mxu0 0
      %2164 = vmatpush1.bf16.msra.mxu0 0
      %2165 = vmatprep.subr.bf16.mxu0 0
      %2166 = vmatpush1.bf16.msra.mxu0 0
      %2167 = vmatprep.subr.bf16.mxu0 0
      %2168 = vmatpush1.bf16.msra.mxu0 0
      %2169 = vmatprep.subr.bf16.mxu0 0
      %2170 = vmatpush1.bf16.msra.mxu0 0
      %2171 = vmatprep.subr.bf16.mxu0 0
      %2172 = vmatpush1.bf16.msra.mxu0 0
      %2173 = vmatprep.subr.bf16.mxu0 0
      %2174 = vmatpush1.bf16.msra.mxu0 0
      %2175 = vmatprep.subr.bf16.mxu0 0
      %2176 = vmatpush1.bf16.msra.mxu0 0
      %2177 = vmatprep.mubr.bf16.mxu0 0
      %2178 = vmatmul.mubr.bf16.gmra.mrb[0].mxu0 %v2143
      %v2179 = vpop.f32.mrb[0].mxu0
      %v2180 = vadd.f32 %v2128, %v2179
      %v2181 = vpop.f32.mrb[0].mxu0
      %v2182 = vpop.f32.mrb[0].mxu0
      %v2183 = vpop.f32.mrb[0].mxu0
      %2184 = vdwg.mxu0
      %v2185 = vmul.f32 %v2180, 1.702
      %v2186 = vxor.u32 %v2185, 2147483648
      %v2187 = vmul.f32 %v2186, 1.442695
      %v2188 = vpow.pop %v2187
      %v2189 = vadd.f32 %v2188, 1.0
      %v2190 = vrcp.pop %v2189
      %v2191 = vmul.f32 1.0, %v2190
      %v2192 = vmul.f32 %v2180, %v2191
      %v2193 = vld [vmem:[%s635] sm:$0xf]
      %v2194 = vld [vmem:[%s635 + $0x4] sm:$0xf]
      %v2195 = vld [vmem:[%s635 + $0x8] sm:$0xf]
      %v2196 = vld [vmem:[%s635 + $0xc] sm:$0xf]
      %v2197 = vld [vmem:[%s635 + $0x10] sm:$0xf]
      %v2198 = vld [vmem:[%s635 + $0x14] sm:$0xf]
      %v2199 = vld [vmem:[%s635 + $0x18] sm:$0xf]
      %v2200 = vld [vmem:[%s635 + $0x1c] sm:$0xf]
      %v2201 = vld [vmem:[%s635 + $0x20] sm:$0xf]
      %v2202 = vld [vmem:[%s635 + $0x24] sm:$0xf]
      %v2203 = vld [vmem:[%s635 + $0x28] sm:$0xf]
      %v2204 = vld [vmem:[%s635 + $0x2c] sm:$0xf]
      %v2205 = vld [vmem:[%s635 + $0x30] sm:$0xf]
      %v2206 = vld [vmem:[%s635 + $0x34] sm:$0xf]
      %v2207 = vld [vmem:[%s635 + $0x38] sm:$0xf]
      %v2208 = vld [vmem:[%s635 + $0x3c] sm:$0xf]
      %v2209 = vpack.c.bf16 %v2192, %v2192
      %v2226 = vunpack.c.l.b16 %v2193
      %v2227 = vunpack.c.l.b16 %v2194
      %v2228 = vunpack.c.l.b16 %v2195
      %v2229 = vunpack.c.l.b16 %v2196
      %v2230 = vunpack.c.l.b16 %v2197
      %v2231 = vunpack.c.l.b16 %v2198
      %v2232 = vunpack.c.l.b16 %v2199
      %v2233 = vunpack.c.l.b16 %v2200
      %v2234 = vunpack.c.l.b16 %v2201
      %v2235 = vunpack.c.l.b16 %v2202
      %v2236 = vunpack.c.l.b16 %v2203
      %v2237 = vunpack.c.l.b16 %v2204
      %v2238 = vunpack.c.l.b16 %v2205
      %v2239 = vunpack.c.l.b16 %v2206
      %v2240 = vunpack.c.l.b16 %v2207
      %v2241 = vunpack.c.l.b16 %v2208
      %v2242 = vpack.c.b16 %v2227, %v2226
      %v2243 = vpack.c.b16 %v2229, %v2228
      %v2244 = vpack.c.b16 %v2231, %v2230
      %v2245 = vpack.c.b16 %v2233, %v2232
      %v2246 = vpack.c.b16 %v2235, %v2234
      %v2247 = vpack.c.b16 %v2237, %v2236
      %v2248 = vpack.c.b16 %v2239, %v2238
      %v2249 = vpack.c.b16 %v2241, %v2240
      %2258 = vmatprep.subr.bf16.mxu0 0
      %2259 = vmatpush1.bf16.msra.mxu0 %v2242
      %2260 = vmatprep.subr.bf16.mxu0 0
      %2261 = vmatpush1.bf16.msra.mxu0 %v2243
      %2262 = vmatprep.subr.bf16.mxu0 0
      %2263 = vmatpush1.bf16.msra.mxu0 %v2244
      %2264 = vmatprep.subr.bf16.mxu0 0
      %2265 = vmatpush1.bf16.msra.mxu0 %v2245
      %2266 = vmatprep.subr.bf16.mxu0 0
      %2267 = vmatpush1.bf16.msra.mxu0 %v2246
      %2268 = vmatprep.subr.bf16.mxu0 0
      %2269 = vmatpush1.bf16.msra.mxu0 %v2247
      %2270 = vmatprep.subr.bf16.mxu0 0
      %2271 = vmatpush1.bf16.msra.mxu0 %v2248
      %2272 = vmatprep.subr.bf16.mxu0 0
      %2273 = vmatpush1.bf16.msra.mxu0 %v2249
      %2274 = vmatprep.subr.bf16.mxu0 0
      %2275 = vmatpush1.bf16.msra.mxu0 0
      %2276 = vmatprep.subr.bf16.mxu0 0
      %2277 = vmatpush1.bf16.msra.mxu0 0
      %2278 = vmatprep.subr.bf16.mxu0 0
      %2279 = vmatpush1.bf16.msra.mxu0 0
      %2280 = vmatprep.subr.bf16.mxu0 0
      %2281 = vmatpush1.bf16.msra.mxu0 0
      %2282 = vmatprep.subr.bf16.mxu0 0
      %2283 = vmatpush1.bf16.msra.mxu0 0
      %2284 = vmatprep.subr.bf16.mxu0 0
      %2285 = vmatpush1.bf16.msra.mxu0 0
      %2286 = vmatprep.subr.bf16.mxu0 0
      %2287 = vmatpush1.bf16.msra.mxu0 0
      %2288 = vmatprep.subr.bf16.mxu0 0
      %2289 = vmatpush1.bf16.msra.mxu0 0
      %2290 = vmatprep.mubr.bf16.mxu0 0
      %2291 = vmatmul.mubr.bf16.gmra.mrb[0].mxu0 %v2209
      %v2292 = vpop.f32.mrb[0].mxu0
      %v2293 = vadd.f32 0.0, %v2292
      %v2294 = vpop.f32.mrb[0].mxu0
      %v2295 = vpop.f32.mrb[0].mxu0
      %v2296 = vpop.f32.mrb[0].mxu0
      %2297 = vdwg.mxu0
      %v2298 = vadd.f32 %v2088, %v2293
      %v2299 = vld [vmem:[%s638] sm:$0x1]
      %v2301 = vlaneseq
      %v2302 = vshrl.u32 %v2301, 7
      %v2303 = vsub.s32 0, %v2302
      %v2304 = vrot.slane %v2299, %v2303
      %v2306 = vadd.f32 %v2298, %v2304
      %2307 = vst.msk [vmem:[#allocation2] sm:$0x1f] %vm655, %v2306
      %p2308 = scmp.eq.s32.totalorder %s29, 1
      // Predicated region
      $region77: #{_lambda_.5} parent=71 // pred_check
        %p2309 = pneg %p2308
      $region78: #{_lambda_.5} parent=71 // pred_check_branch
        %2311 = sbr.rel (%p2309) target = $region80
      $region79: #{_lambda_.5} parent=71 // pred_region
        %v2312 = vpack.c.bf16 %v2306, %v2306
        %vm2313 = vcmask 256000
        %vm2314 = vsmask.f32 2304
        %vm2315 = vmand %vm2313, %vm2314
        %v2316 = vld [vmem:[%s642] sm:$0x7]
        %v2317 = vsel %vm2315, %v2312, %v2316
        %2318 = vst [vmem:[%s642] sm:$0x7] %v2317
      $region80: #{_lambda_.5} parent=71 // pred_fallthru
        _
      %p2319 = scmp.lt.s32.totalorder %s28, 1
      %s2320 = scalar_select %p2319, %s28, 1
      %s2321 = smul.addr %s2320, 4
      %s2322 = scalar_lea.vmem %s13, %s2321
      // Predicated region
      $region81: #{_lambda_.5} parent=71 // pred_check
        %p2323 = pneg %p392
      $region82: #{_lambda_.5} parent=71 // pred_check_branch
        %2325 = sbr.rel (%p2323) target = $region84
      $region83: #{_lambda_.5} parent=71 // pred_region
        _
      $region84: #{_lambda_.5} parent=71 // pred_fallthru
        _
    $region72: #{_lambda_.5} parent=5 // pred_fallthru
      _
    %p2326 = scmp.le.s32.totalorder 2, %s19
    // Predicated region
    $region85: #{_lambda_.5} parent=5 // pred_check
      %p2327 = pneg %p2326
    $region86: #{_lambda_.5} parent=5 // pred_check_branch
      %2329 = sbr.rel (%p2327) target = $region88
    $region87: #{_lambda_.5} parent=5 // pred_region
      %s2330 = ssub.s32 %s19, 2
      // Predicated region
      $region89: #{_lambda_.5} parent=87 // pred_check
        %p2331 = pneg %p398
      $region90: #{_lambda_.5} parent=87 // pred_check_branch
        %2333 = sbr.rel (%p2331) target = $region92
      $region91: #{_lambda_.5} parent=87 // pred_region
        %p2334 = scmp.lt.s32.totalorder %s30, 1
        %s2335 = scalar_select %p2334, %s30, 1
        %s2336 = smul.addr %s2335, 4
        %s2337 = scalar_lea.vmem %s13, %s2336
      $region92: #{_lambda_.5} parent=87 // pred_fallthru
        _
    $region88: #{_lambda_.5} parent=5 // pred_fallthru
      _
  $region6: #{_lambda_.5} parent=0 // loop_footer
    %s23 = sadd.s32 1, %s19
  $region7: #{_lambda_.5} parent=0 // loop_footer_branch
    %18 = sbr.rel target = $region3
  $region8: #{_lambda_.5} parent=0 // loop_exit
    _

// kernel: _lambda_.7
$region0: #{_lambda_.7}
  #allocation0 [shape = 'u32[]', space=smem, size = 0x4, offset = 0x4, fixed_abs, tag = 'smem constant byte address 0x4 - core index']
  #allocation1 [shape = 'u32[144,128]{1,0:T(1,128)}', space=vmem, size = 0x12000, scoped, tag = 'internal scratch']
  #allocation2 [shape = 'f32[1,1]{1,0:T(1,128)S(1)}', space=vmem, size = 0x200, scoped, tag = 'scoped memory for _lambda_.7']
  %s0 = inlined_call_operand.vmem [shape: bf16[2,32], index: 0, kind: input, shape index: {}]
  %s1 = inlined_call_operand.vmem [shape: bf16[2,32], index: 1, kind: input, shape index: {}]
  %s2 = inlined_call_operand.vmem [shape: f32[1,32], index: 2, kind: input, shape index: {}]
  %s3 = inlined_call_operand.vmem [shape: f32[1,32], index: 3, kind: input, shape index: {}]
  %s4 = inlined_call_operand.vmem [shape: bf16[32,16], index: 4, kind: input, shape index: {}]
  %s5 = inlined_call_operand.vmem [shape: f32[1,32], index: 5, kind: input, shape index: {}]
  %s6 = inlined_call_operand.vmem [shape: f32[1,32], index: 6, kind: input, shape index: {}]
  %s7 = inlined_call_operand.vmem [shape: bf16[32,16], index: 7, kind: input, shape index: {}]
  %s8 = inlined_call_operand.<no memory space> [shape: f32[1,1], index: 8, kind: input, shape index: {}]
  %s9 = inlined_call_operand.vmem [shape: f32[2,2], index: 9, kind: output, shape index: {}]
  %s10 = sld [smem:[#allocation0]]
  $region46: #{_lambda_.7} parent=0
    _
  %s12 = ssub.s32 1, %s10
  %s13 = scalar_select 0, %s12, %s10
  %v14 = vstv %s8
  %15 = vst [vmem:[#allocation2] sm:$0x1] %v14
  // Predicated region
  $region2: #{_lambda_.7} parent=0 // pred_check
    _
  $region3: #{_lambda_.7} parent=0 // pred_check_branch
    %17 = sbr.rel (0) target = $region5
  $region4: #{_lambda_.7} parent=0 // pred_region
    _
  $region5: #{_lambda_.7} parent=0 // pred_fallthru
    _
  // Predicated region
  $region6: #{_lambda_.7} parent=0 // pred_check
    _
  $region7: #{_lambda_.7} parent=0 // pred_check_branch
    %19 = sbr.rel (0) target = $region9
  $region8: #{_lambda_.7} parent=0 // pred_region
    _
  $region9: #{_lambda_.7} parent=0 // pred_fallthru
    _
  // Predicated region
  $region10: #{_lambda_.7} parent=0 // pred_check
    _
  $region11: #{_lambda_.7} parent=0 // pred_check_branch
    %21 = sbr.rel (0) target = $region13
  $region12: #{_lambda_.7} parent=0 // pred_region
    _
  $region13: #{_lambda_.7} parent=0 // pred_fallthru
    _
  // Predicated region
  $region14: #{_lambda_.7} parent=0 // pred_check
    _
  $region15: #{_lambda_.7} parent=0 // pred_check_branch
    %23 = sbr.rel (0) target = $region17
  $region16: #{_lambda_.7} parent=0 // pred_region
    _
  $region17: #{_lambda_.7} parent=0 // pred_fallthru
    _
  // Predicated region
  $region18: #{_lambda_.7} parent=0 // pred_check
    _
  $region19: #{_lambda_.7} parent=0 // pred_check_branch
    %25 = sbr.rel (0) target = $region21
  $region20: #{_lambda_.7} parent=0 // pred_region
    _
  $region21: #{_lambda_.7} parent=0 // pred_fallthru
    _
  // Predicated region
  $region22: #{_lambda_.7} parent=0 // pred_check
    _
  $region23: #{_lambda_.7} parent=0 // pred_check_branch
    %27 = sbr.rel (0) target = $region25
  $region24: #{_lambda_.7} parent=0 // pred_region
    _
  $region25: #{_lambda_.7} parent=0 // pred_fallthru
    _
  // Predicated region
  $region26: #{_lambda_.7} parent=0 // pred_check
    _
  $region27: #{_lambda_.7} parent=0 // pred_check_branch
    %29 = sbr.rel (0) target = $region29
  $region28: #{_lambda_.7} parent=0 // pred_region
    _
  $region29: #{_lambda_.7} parent=0 // pred_fallthru
    _
  // Predicated region
  $region30: #{_lambda_.7} parent=0 // pred_check
    _
  $region31: #{_lambda_.7} parent=0 // pred_check_branch
    %31 = sbr.rel (0) target = $region33
  $region32: #{_lambda_.7} parent=0 // pred_region
    _
  $region33: #{_lambda_.7} parent=0 // pred_fallthru
    _
  // Predicated region
  $region34: #{_lambda_.7} parent=0 // pred_check
    _
  $region35: #{_lambda_.7} parent=0 // pred_check_branch
    %33 = sbr.rel (0) target = $region37
  $region36: #{_lambda_.7} parent=0 // pred_region
    _
  $region37: #{_lambda_.7} parent=0 // pred_fallthru
    _
  %v35 = vld [vmem:[%s0] sm:$0x1]
  %v36 = vunpack.c.l.bf16 %v35
  %v37 = vld [vmem:[%s2] sm:$0x1]
  %v38 = vld [vmem:[%s3] sm:$0x1]
  %vm39 = vcmask 254976
  %v40 = vsel %vm39, %v36, 0.0
  %41 = vadd.xlane.f32.xlu0 %v40
  %v42 = vpop.xlane.xlu0 %41
  %v43 = vrcp.pop 32.0
  %v44 = vmul.f32 %v42, %v43
  %v45 = vsub.f32 %v36, %v44
  %v46 = vmul.f32 %v45, %v45
  %v47 = vsel %vm39, %v46, 0.0
  %48 = vadd.xlane.f32.xlu0 %v47
  %v49 = vpop.xlane.xlu0 %48
  %v50 = vmul.f32 %v49, %v43
  %v51 = vadd.f32 %v50, 1e-05
  %v52 = vrsqrt.pop %v51
  %v53 = vmul.f32 %v45, %v52
  %v55 = vlaneseq
  %v56 = vshrl.u32 %v55, 7
  %v57 = vsub.s32 0, %v56
  %v58 = vrot.slane %v37, %v57
  %v60 = vmul.f32 %v53, %v58
  %v62 = vlaneseq
  %v63 = vshrl.u32 %v62, 7
  %v64 = vsub.s32 0, %v63
  %v65 = vrot.slane %v38, %v64
  %v67 = vadd.f32 %v60, %v65
  %v68 = vld [vmem:[%s4] sm:$0xf]
  %v69 = vld [vmem:[%s4 + $0x4] sm:$0xf]
  %v70 = vld [vmem:[%s4 + $0x8] sm:$0xf]
  %v71 = vld [vmem:[%s4 + $0xc] sm:$0xf]
  %v72 = vpack.c.bf16 %v67, %v67
  %v77 = vunpack.c.l.b16 %v68
  %v78 = vunpack.c.l.b16 %v69
  %v79 = vunpack.c.l.b16 %v70
  %v80 = vunpack.c.l.b16 %v71
  %v81 = vpack.c.b16 %v78, %v77
  %v82 = vpack.c.b16 %v80, %v79
  %vm85 = vcmask 261120
  %v87 = vsel %vm85, %v72, 0
  %89 = vmatprep.subr.bf16.mxu0 0
  %90 = vmatpush1.bf16.msra.mxu0 %v81
  %91 = vmatprep.subr.bf16.mxu0 0
  %92 = vmatpush1.bf16.msra.mxu0 %v82
  %93 = vmatprep.subr.bf16.mxu0 0
  %94 = vmatpush1.bf16.msra.mxu0 0
  %95 = vmatprep.subr.bf16.mxu0 0
  %96 = vmatpush1.bf16.msra.mxu0 0
  %97 = vmatprep.subr.bf16.mxu0 0
  %98 = vmatpush1.bf16.msra.mxu0 0
  %99 = vmatprep.subr.bf16.mxu0 0
  %100 = vmatpush1.bf16.msra.mxu0 0
  %101 = vmatprep.subr.bf16.mxu0 0
  %102 = vmatpush1.bf16.msra.mxu0 0
  %103 = vmatprep.subr.bf16.mxu0 0
  %104 = vmatpush1.bf16.msra.mxu0 0
  %105 = vmatprep.subr.bf16.mxu0 0
  %106 = vmatpush1.bf16.msra.mxu0 0
  %107 = vmatprep.subr.bf16.mxu0 0
  %108 = vmatpush1.bf16.msra.mxu0 0
  %109 = vmatprep.subr.bf16.mxu0 0
  %110 = vmatpush1.bf16.msra.mxu0 0
  %111 = vmatprep.subr.bf16.mxu0 0
  %112 = vmatpush1.bf16.msra.mxu0 0
  %113 = vmatprep.subr.bf16.mxu0 0
  %114 = vmatpush1.bf16.msra.mxu0 0
  %115 = vmatprep.subr.bf16.mxu0 0
  %116 = vmatpush1.bf16.msra.mxu0 0
  %117 = vmatprep.subr.bf16.mxu0 0
  %118 = vmatpush1.bf16.msra.mxu0 0
  %119 = vmatprep.subr.bf16.mxu0 0
  %120 = vmatpush1.bf16.msra.mxu0 0
  %121 = vmatprep.mubr.bf16.mxu0 0
  %122 = vmatmul.mubr.bf16.gmra.mrb[0].mxu0 %v87
  %v123 = vpop.f32.mrb[0].mxu0
  %v124 = vadd.f32 0.0, %v123
  %v125 = vpop.f32.mrb[0].mxu0
  %v126 = vpop.f32.mrb[0].mxu0
  %v127 = vpop.f32.mrb[0].mxu0
  %128 = vdwg.mxu0
  %v129 = vld [vmem:[%s1] sm:$0x1]
  %v130 = vunpack.c.l.bf16 %v129
  %v131 = vld [vmem:[%s5] sm:$0x1]
  %v132 = vld [vmem:[%s6] sm:$0x1]
  %v133 = vsel %vm39, %v130, 0.0
  %134 = vadd.xlane.f32.xlu0 %v133
  %v135 = vpop.xlane.xlu0 %134
  %v136 = vmul.f32 %v135, %v43
  %v137 = vsub.f32 %v130, %v136
  %v138 = vmul.f32 %v137, %v137
  %v139 = vsel %vm39, %v138, 0.0
  %140 = vadd.xlane.f32.xlu0 %v139
  %v141 = vpop.xlane.xlu0 %140
  %v142 = vmul.f32 %v141, %v43
  %v143 = vadd.f32 %v142, 1e-05
  %v144 = vrsqrt.pop %v143
  %v145 = vmul.f32 %v137, %v144
  %v147 = vlaneseq
  %v148 = vshrl.u32 %v147, 7
  %v149 = vsub.s32 0, %v148
  %v150 = vrot.slane %v131, %v149
  %v152 = vmul.f32 %v145, %v150
  %v154 = vlaneseq
  %v155 = vshrl.u32 %v154, 7
  %v156 = vsub.s32 0, %v155
  %v157 = vrot.slane %v132, %v156
  %v159 = vadd.f32 %v152, %v157
  %v160 = vld [vmem:[%s7] sm:$0xf]
  %v161 = vld [vmem:[%s7 + $0x4] sm:$0xf]
  %v162 = vld [vmem:[%s7 + $0x8] sm:$0xf]
  %v163 = vld [vmem:[%s7 + $0xc] sm:$0xf]
  %v164 = vpack.c.bf16 %v159, %v159
  %v169 = vunpack.c.l.b16 %v160
  %v170 = vunpack.c.l.b16 %v161
  %v171 = vunpack.c.l.b16 %v162
  %v172 = vunpack.c.l.b16 %v163
  %v173 = vpack.c.b16 %v170, %v169
  %v174 = vpack.c.b16 %v172, %v171
  %v178 = vsel %vm85, %v164, 0
  %180 = vmatprep.subr.bf16.mxu0 0
  %181 = vmatpush1.bf16.msra.mxu0 %v173
  %182 = vmatprep.subr.bf16.mxu0 0
  %183 = vmatpush1.bf16.msra.mxu0 %v174
  %184 = vmatprep.subr.bf16.mxu0 0
  %185 = vmatpush1.bf16.msra.mxu0 0
  %186 = vmatprep.subr.bf16.mxu0 0
  %187 = vmatpush1.bf16.msra.mxu0 0
  %188 = vmatprep.subr.bf16.mxu0 0
  %189 = vmatpush1.bf16.msra.mxu0 0
  %190 = vmatprep.subr.bf16.mxu0 0
  %191 = vmatpush1.bf16.msra.mxu0 0
  %192 = vmatprep.subr.bf16.mxu0 0
  %193 = vmatpush1.bf16.msra.mxu0 0
  %194 = vmatprep.subr.bf16.mxu0 0
  %195 = vmatpush1.bf16.msra.mxu0 0
  %196 = vmatprep.subr.bf16.mxu0 0
  %197 = vmatpush1.bf16.msra.mxu0 0
  %198 = vmatprep.subr.bf16.mxu0 0
  %199 = vmatpush1.bf16.msra.mxu0 0
  %200 = vmatprep.subr.bf16.mxu0 0
  %201 = vmatpush1.bf16.msra.mxu0 0
  %202 = vmatprep.subr.bf16.mxu0 0
  %203 = vmatpush1.bf16.msra.mxu0 0
  %204 = vmatprep.subr.bf16.mxu0 0
  %205 = vmatpush1.bf16.msra.mxu0 0
  %206 = vmatprep.subr.bf16.mxu0 0
  %207 = vmatpush1.bf16.msra.mxu0 0
  %208 = vmatprep.subr.bf16.mxu0 0
  %209 = vmatpush1.bf16.msra.mxu0 0
  %210 = vmatprep.subr.bf16.mxu0 0
  %211 = vmatpush1.bf16.msra.mxu0 0
  %212 = vmatprep.mubr.bf16.mxu0 0
  %213 = vmatmul.mubr.bf16.gmra.mrb[0].mxu0 %v178
  %v214 = vpop.f32.mrb[0].mxu0
  %v215 = vadd.f32 0.0, %v214
  %v216 = vpop.f32.mrb[0].mxu0
  %v217 = vpop.f32.mrb[0].mxu0
  %v218 = vpop.f32.mrb[0].mxu0
  %219 = vdwg.mxu0
  %v220 = vmul.f32 %v124, %v124
  %vm221 = vcmask 123904
  %v222 = vsel %vm221, %v220, 0.0
  %223 = vadd.xlane.f32.xlu0 %v222
  %v224 = vpop.xlane.xlu0 %223
  %v225 = vadd.f32 %v224, 1e-12
  %v226 = vrsqrt.pop %v225
  %v227 = vmul.f32 %v124, %v226
  %v228 = vmul.f32 %v215, %v215
  %v229 = vsel %vm221, %v228, 0.0
  %230 = vadd.xlane.f32.xlu0 %v229
  %v231 = vpop.xlane.xlu0 %230
  %v232 = vadd.f32 %v231, 1e-12
  %v233 = vrsqrt.pop %v232
  %v234 = vmul.f32 %v215, %v233
  %vm235 = vcmask 130048
  %v237 = vsel %vm235, %v227, 0
  %v240 = vsel %vm235, %v234, 0
  %242 = vmatprep.subr.mxu0 0.0
  %243 = vmatpush1.xpose.msra.mxu0 %v240
  %244 = vmatprep.subr.mxu0 0.0
  %245 = vmatpush1.xpose.msra.mxu0 0.0
  %246 = vmatprep.subr.mxu0 0.0
  %247 = vmatpush1.xpose.msra.mxu0 0.0
  %248 = vmatprep.subr.mxu0 0.0
  %249 = vmatpush1.xpose.msra.mxu0 0.0
  %250 = vmatprep.subr.mxu0 0.0
  %251 = vmatpush1.xpose.msra.mxu0 0.0
  %252 = vmatprep.subr.mxu0 0.0
  %253 = vmatpush1.xpose.msra.mxu0 0.0
  %254 = vmatprep.subr.mxu0 0.0
  %255 = vmatpush1.xpose.msra.mxu0 0.0
  %256 = vmatprep.subr.mxu0 0.0
  %257 = vmatpush1.xpose.msra.mxu0 0.0
  %258 = vmatprep.subr.mxu0 0.0
  %259 = vmatpush1.xpose.msra.mxu0 0.0
  %260 = vmatprep.subr.mxu0 0.0
  %261 = vmatpush1.xpose.msra.mxu0 0.0
  %262 = vmatprep.subr.mxu0 0.0
  %263 = vmatpush1.xpose.msra.mxu0 0.0
  %264 = vmatprep.subr.mxu0 0.0
  %265 = vmatpush1.xpose.msra.mxu0 0.0
  %266 = vmatprep.subr.mxu0 0.0
  %267 = vmatpush1.xpose.msra.mxu0 0.0
  %268 = vmatprep.subr.mxu0 0.0
  %269 = vmatpush1.xpose.msra.mxu0 0.0
  %270 = vmatprep.subr.mxu0 0.0
  %271 = vmatpush1.xpose.msra.mxu0 0.0
  %272 = vmatprep.subr.mxu0 0.0
  %273 = vmatpush1.xpose.msra.mxu0 0.0
  %274 = vmatprep.subr.mxu0 0.0
  %275 = vmatpush1.xpose.msra.mxu0 0.0
  %276 = vmatprep.subr.mxu0 0.0
  %277 = vmatpush1.xpose.msra.mxu0 0.0
  %278 = vmatprep.subr.mxu0 0.0
  %279 = vmatpush1.xpose.msra.mxu0 0.0
  %280 = vmatprep.subr.mxu0 0.0
  %281 = vmatpush1.xpose.msra.mxu0 0.0
  %282 = vmatprep.subr.mxu0 0.0
  %283 = vmatpush1.xpose.msra.mxu0 0.0
  %284 = vmatprep.subr.mxu0 0.0
  %285 = vmatpush1.xpose.msra.mxu0 0.0
  %286 = vmatprep.subr.mxu0 0.0
  %287 = vmatpush1.xpose.msra.mxu0 0.0
  %288 = vmatprep.subr.mxu0 0.0
  %289 = vmatpush1.xpose.msra.mxu0 0.0
  %290 = vmatprep.subr.mxu0 0.0
  %291 = vmatpush1.xpose.msra.mxu0 0.0
  %292 = vmatprep.subr.mxu0 0.0
  %293 = vmatpush1.xpose.msra.mxu0 0.0
  %294 = vmatprep.subr.mxu0 0.0
  %295 = vmatpush1.xpose.msra.mxu0 0.0
  %296 = vmatprep.subr.mxu0 0.0
  %297 = vmatpush1.xpose.msra.mxu0 0.0
  %298 = vmatprep.subr.mxu0 0.0
  %299 = vmatpush1.xpose.msra.mxu0 0.0
  %300 = vmatprep.subr.mxu0 0.0
  %301 = vmatpush1.xpose.msra.mxu0 0.0
  %302 = vmatprep.subr.mxu0 0.0
  %303 = vmatpush1.xpose.msra.mxu0 0.0
  %304 = vmatprep.subr.mxu0 0.0
  %305 = vmatpush1.xpose.msra.mxu0 0.0
  %306 = vmatprep.mubr.f32.mxu0 0.0
  %307 = vmatmul.mubr.f32.gmra.mrb[0].mxu0 %v237
  %v308 = vpop.f32.mrb[0].mxu0
  %v309 = vadd.f32 0.0, %v308
  %v310 = vpop.f32.mrb[0].mxu0
  %311 = vdwg.mxu0
  %v312 = vld [vmem:[#allocation2] sm:$0x1]
  %v313 = vmul.f32 %v312, 1.442695
  %v314 = vpow.pop %v313
  %v316 = vlaneseq
  %v317 = vshrl.u32 %v316, 7
  %v318 = vsub.s32 0, %v317
  %v319 = vrot.slane %v314, %v318
  %320 = vset.pattern.permute.xlu0 0
  %321 = vperm.xlu0 %320, %v319
  %v322 = vpop.permute.xlu0 %321
  %v324 = vmul.f32 %v322, %v309
  %vm325 = vcmask 9216
  %326 = vst.msk [vmem:[%s9] sm:$0x3] %vm325, %v324
  // Predicated region
  $region38: #{_lambda_.7} parent=0 // pred_check
    _
  $region39: #{_lambda_.7} parent=0 // pred_check_branch
    %328 = sbr.rel (0) target = $region41
  $region40: #{_lambda_.7} parent=0 // pred_region
    _
  $region41: #{_lambda_.7} parent=0 // pred_fallthru
    _
  // Predicated region
  $region42: #{_lambda_.7} parent=0 // pred_check
    _
  $region43: #{_lambda_.7} parent=0 // pred_check_branch
    %330 = sbr.rel (0) target = $region45
  $region44: #{_lambda_.7} parent=0 // pred_region
    _
  $region45: #{_lambda_.7} parent=0 // pred_fallthru
    _

// kernel: _lambda_.6
$region0: #{_lambda_.6}
  #allocation0 [shape = 'u32[]', space=smem, size = 0x4, offset = 0x4, fixed_abs, tag = 'smem constant byte address 0x4 - core index']
  #allocation1 [shape = 'u32[144,128]{1,0:T(1,128)}', space=vmem, size = 0x12000, scoped, tag = 'internal scratch']
  #allocation2 [shape = 'f32[8,32]{1,0:T(8,128)}', space=vmem, size = 0x1000, scoped, tag = 'scratch operand']
  %s0 = inlined_call_operand.vmem [shape: bf16[2,8,32], index: 0, kind: input, shape index: {}]
  %s1 = inlined_call_operand.vmem [shape: f32[2,1,32], index: 1, kind: input, shape index: {}]
  %s2 = inlined_call_operand.vmem [shape: f32[2,1,32], index: 2, kind: input, shape index: {}]
  %s3 = inlined_call_operand.vmem [shape: bf16[2,12,32,8], index: 3, kind: input, shape index: {}]
  %s4 = inlined_call_operand.vmem [shape: f32[2,12,1,8], index: 4, kind: input, shape index: {}]
  %s5 = inlined_call_operand.vmem [shape: bf16[2,4,8,32], index: 5, kind: input, shape index: {}]
  %s6 = inlined_call_operand.vmem [shape: f32[2,1,32], index: 6, kind: input, shape index: {}]
  %s7 = inlined_call_operand.vmem [shape: f32[2,1,32], index: 7, kind: input, shape index: {}]
  %s8 = inlined_call_operand.vmem [shape: f32[2,1,32], index: 8, kind: input, shape index: {}]
  %s9 = inlined_call_operand.vmem [shape: bf16[2,32,128], index: 9, kind: input, shape index: {}]
  %s10 = inlined_call_operand.vmem [shape: f32[2,1,128], index: 10, kind: input, shape index: {}]
  %s11 = inlined_call_operand.vmem [shape: bf16[2,128,32], index: 11, kind: input, shape index: {}]
  %s12 = inlined_call_operand.vmem [shape: f32[2,1,32], index: 12, kind: input, shape index: {}]
  %s13 = inlined_call_operand.vmem [shape: bf16[2,8,32], index: 13, kind: output, shape index: {}]
  %s14 = sld [smem:[#allocation0]]
  $region93: #{_lambda_.6} parent=0
    _
  %s16 = ssub.s32 1, %s14
  %s17 = scalar_select 0, %s16, %s14
  loop: start=0, step=1, limit=6
  $region2: #{_lambda_.6} parent=0 // loop_pre_header
    _
  $region3: #{_lambda_.6} parent=0 // loop_header
    %s19 = sphi 0, %s23
    %p20 = scmp.ge.s32.totalorder %s19, 6
    %s26 = sphi 0, %s38
    %s27 = sphi 0, %s34
    %s28 = sphi 0, %s26
    %s29 = sphi 0, %s27
    %s30 = sphi 0, %s28
    %s31 = sphi 0, %s29
    %s41 = sphi 0, %s43
    %s44 = sphi 0, %s41
    %s45 = sphi 0, %s44
    %s61 = sphi 0, %s45
    %s67 = sphi 0, %s69
    %s70 = sphi 0, %s67
    %s71 = sphi 0, %s70
    %s87 = sphi 0, %s71
    %s93 = sphi 0, %s95
    %s96 = sphi 0, %s93
    %s97 = sphi 0, %s96
    %s113 = sphi 0, %s97
    %s119 = sphi 0, %s121
    %s122 = sphi 0, %s119
    %s123 = sphi 0, %s122
    %s139 = sphi 0, %s123
    %s145 = sphi 0, %s147
    %s148 = sphi 0, %s145
    %s149 = sphi 0, %s148
    %s165 = sphi 0, %s149
    %s171 = sphi 0, %s173
    %s174 = sphi 0, %s171
    %s175 = sphi 0, %s174
    %s191 = sphi 0, %s175
    %s197 = sphi 0, %s199
    %s200 = sphi 0, %s197
    %s201 = sphi 0, %s200
    %s217 = sphi 0, %s201
    %s223 = sphi 0, %s225
    %s226 = sphi 0, %s223
    %s227 = sphi 0, %s226
    %s243 = sphi 0, %s227
    %s249 = sphi 0, %s251
    %s252 = sphi 0, %s249
    %s253 = sphi 0, %s252
    %s269 = sphi 0, %s253
    %s275 = sphi 0, %s277
    %s278 = sphi 0, %s275
    %s279 = sphi 0, %s278
    %s295 = sphi 0, %s279
    %s301 = sphi 0, %s303
    %s304 = sphi 0, %s301
    %s305 = sphi 0, %s304
    %s321 = sphi 0, %s305
    %s327 = sphi 0, %s329
    %s330 = sphi 0, %s327
    %s331 = sphi 0, %s330
    %s347 = sphi 0, %s331
    %s353 = sphi 0, %s355
    %s356 = sphi 0, %s353
    %s357 = sphi 0, %s356
    %s373 = sphi 0, %s357
    %s379 = sphi 0, %s381
    %s382 = sphi 0, %s379
    %s383 = sphi 0, %s382
    %s399 = sphi 0, %s383
  $region4: #{_lambda_.6} parent=0 // loop_header_branch
    %22 = sbr.rel (%p20) target = $region8
  $region5: #{_lambda_.6} parent=0 // loop_body
    %s24 = ssub.s32 %s19, 1
    %s25 = ssub.s32 %s19, 2
    %s32 = sadd.s32 1, %s27
    %p33 = scmp.ge.s32.totalorder %s32, 2
    %s34 = scalar_select %p33, 0, %s32
    %s35 = sadd.s32 1, %s26
    %s36 = scalar_select %p33, %s35, %s26
    %p37 = scmp.ge.s32.totalorder %s36, 2
    %s38 = scalar_select %p37, 0, %s36
    %s39 = ssub.s32 %s26, %s38
    %p40 = scmp.eq.s32.totalorder %s39, 0
    %s42 = sadd.s32 %s41, 1
    %s43 = scalar_select %p40, %s41, %s42
    %p46 = pneg %p40
    %p47 = scmp.eq.s32.totalorder %s19, 3
    %p48 = por %p46, %p47
    %p49 = scmp.ne.s32.totalorder %s41, %s44
    %p50 = scmp.eq.s32.totalorder %s19, 0
    %p51 = por %p49, %p50
    %p52 = scmp.ne.s32.totalorder %s41, %s44
    %p53 = scmp.eq.s32.totalorder %s24, 3
    %p54 = por %p52, %p53
    %p55 = scmp.ne.s32.totalorder %s44, %s45
    %p56 = scmp.eq.s32.totalorder %s24, 0
    %p57 = por %p55, %p56
    %p58 = scmp.ne.s32.totalorder %s44, %s45
    %p59 = scmp.eq.s32.totalorder %s25, 3
    %p60 = por %p58, %p59
    %p62 = scmp.ne.s32.totalorder %s45, %s61
    %p63 = scmp.eq.s32.totalorder %s25, 0
    %p64 = por %p62, %p63
    %s65 = ssub.s32 %s27, %s34
    %p66 = scmp.eq.s32.totalorder %s65, 0
    %s68 = sadd.s32 %s67, 1
    %s69 = scalar_select %p66, %s67, %s68
    %p72 = pneg %p66
    %p73 = scmp.eq.s32.totalorder %s19, 3
    %p74 = por %p72, %p73
    %p75 = scmp.ne.s32.totalorder %s67, %s70
    %p76 = scmp.eq.s32.totalorder %s19, 0
    %p77 = por %p75, %p76
    %p78 = scmp.ne.s32.totalorder %s67, %s70
    %p79 = scmp.eq.s32.totalorder %s24, 3
    %p80 = por %p78, %p79
    %p81 = scmp.ne.s32.totalorder %s70, %s71
    %p82 = scmp.eq.s32.totalorder %s24, 0
    %p83 = por %p81, %p82
    %p84 = scmp.ne.s32.totalorder %s70, %s71
    %p85 = scmp.eq.s32.totalorder %s25, 3
    %p86 = por %p84, %p85
    %p88 = scmp.ne.s32.totalorder %s71, %s87
    %p89 = scmp.eq.s32.totalorder %s25, 0
    %p90 = por %p88, %p89
    %s91 = ssub.s32 %s27, %s34
    %p92 = scmp.eq.s32.totalorder %s91, 0
    %s94 = sadd.s32 %s93, 1
    %s95 = scalar_select %p92, %s93, %s94
    %p98 = pneg %p92
    %p99 = scmp.eq.s32.totalorder %s19, 3
    %p100 = por %p98, %p99
    %p101 = scmp.ne.s32.totalorder %s93, %s96
    %p102 = scmp.eq.s32.totalorder %s19, 0
    %p103 = por %p101, %p102
    %p104 = scmp.ne.s32.totalorder %s93, %s96
    %p105 = scmp.eq.s32.totalorder %s24, 3
    %p106 = por %p104, %p105
    %p107 = scmp.ne.s32.totalorder %s96, %s97
    %p108 = scmp.eq.s32.totalorder %s24, 0
    %p109 = por %p107, %p108
    %p110 = scmp.ne.s32.totalorder %s96, %s97
    %p111 = scmp.eq.s32.totalorder %s25, 3
    %p112 = por %p110, %p111
    %p114 = scmp.ne.s32.totalorder %s97, %s113
    %p115 = scmp.eq.s32.totalorder %s25, 0
    %p116 = por %p114, %p115
    %s117 = ssub.s32 %s27, %s34
    %p118 = scmp.eq.s32.totalorder %s117, 0
    %s120 = sadd.s32 %s119, 1
    %s121 = scalar_select %p118, %s119, %s120
    %p124 = pneg %p118
    %p125 = scmp.eq.s32.totalorder %s19, 3
    %p126 = por %p124, %p125
    %p127 = scmp.ne.s32.totalorder %s119, %s122
    %p128 = scmp.eq.s32.totalorder %s19, 0
    %p129 = por %p127, %p128
    %p130 = scmp.ne.s32.totalorder %s119, %s122
    %p131 = scmp.eq.s32.totalorder %s24, 3
    %p132 = por %p130, %p131
    %p133 = scmp.ne.s32.totalorder %s122, %s123
    %p134 = scmp.eq.s32.totalorder %s24, 0
    %p135 = por %p133, %p134
    %p136 = scmp.ne.s32.totalorder %s122, %s123
    %p137 = scmp.eq.s32.totalorder %s25, 3
    %p138 = por %p136, %p137
    %p140 = scmp.ne.s32.totalorder %s123, %s139
    %p141 = scmp.eq.s32.totalorder %s25, 0
    %p142 = por %p140, %p141
    %s143 = ssub.s32 %s27, %s34
    %p144 = scmp.eq.s32.totalorder %s143, 0
    %s146 = sadd.s32 %s145, 1
    %s147 = scalar_select %p144, %s145, %s146
    %p150 = pneg %p144
    %p151 = scmp.eq.s32.totalorder %s19, 3
    %p152 = por %p150, %p151
    %p153 = scmp.ne.s32.totalorder %s145, %s148
    %p154 = scmp.eq.s32.totalorder %s19, 0
    %p155 = por %p153, %p154
    %p156 = scmp.ne.s32.totalorder %s145, %s148
    %p157 = scmp.eq.s32.totalorder %s24, 3
    %p158 = por %p156, %p157
    %p159 = scmp.ne.s32.totalorder %s148, %s149
    %p160 = scmp.eq.s32.totalorder %s24, 0
    %p161 = por %p159, %p160
    %p162 = scmp.ne.s32.totalorder %s148, %s149
    %p163 = scmp.eq.s32.totalorder %s25, 3
    %p164 = por %p162, %p163
    %p166 = scmp.ne.s32.totalorder %s149, %s165
    %p167 = scmp.eq.s32.totalorder %s25, 0
    %p168 = por %p166, %p167
    %s169 = ssub.s32 %s27, %s34
    %p170 = scmp.eq.s32.totalorder %s169, 0
    %s172 = sadd.s32 %s171, 1
    %s173 = scalar_select %p170, %s171, %s172
    %p176 = pneg %p170
    %p177 = scmp.eq.s32.totalorder %s19, 3
    %p178 = por %p176, %p177
    %p179 = scmp.ne.s32.totalorder %s171, %s174
    %p180 = scmp.eq.s32.totalorder %s19, 0
    %p181 = por %p179, %p180
    %p182 = scmp.ne.s32.totalorder %s171, %s174
    %p183 = scmp.eq.s32.totalorder %s24, 3
    %p184 = por %p182, %p183
    %p185 = scmp.ne.s32.totalorder %s174, %s175
    %p186 = scmp.eq.s32.totalorder %s24, 0
    %p187 = por %p185, %p186
    %p188 = scmp.ne.s32.totalorder %s174, %s175
    %p189 = scmp.eq.s32.totalorder %s25, 3
    %p190 = por %p188, %p189
    %p192 = scmp.ne.s32.totalorder %s175, %s191
    %p193 = scmp.eq.s32.totalorder %s25, 0
    %p194 = por %p192, %p193
    %s195 = ssub.s32 %s27, %s34
    %p196 = scmp.eq.s32.totalorder %s195, 0
    %s198 = sadd.s32 %s197, 1
    %s199 = scalar_select %p196, %s197, %s198
    %p202 = pneg %p196
    %p203 = scmp.eq.s32.totalorder %s19, 3
    %p204 = por %p202, %p203
    %p205 = scmp.ne.s32.totalorder %s197, %s200
    %p206 = scmp.eq.s32.totalorder %s19, 0
    %p207 = por %p205, %p206
    %p208 = scmp.ne.s32.totalorder %s197, %s200
    %p209 = scmp.eq.s32.totalorder %s24, 3
    %p210 = por %p208, %p209
    %p211 = scmp.ne.s32.totalorder %s200, %s201
    %p212 = scmp.eq.s32.totalorder %s24, 0
    %p213 = por %p211, %p212
    %p214 = scmp.ne.s32.totalorder %s200, %s201
    %p215 = scmp.eq.s32.totalorder %s25, 3
    %p216 = por %p214, %p215
    %p218 = scmp.ne.s32.totalorder %s201, %s217
    %p219 = scmp.eq.s32.totalorder %s25, 0
    %p220 = por %p218, %p219
    %s221 = ssub.s32 %s27, %s34
    %p222 = scmp.eq.s32.totalorder %s221, 0
    %s224 = sadd.s32 %s223, 1
    %s225 = scalar_select %p222, %s223, %s224
    %p228 = pneg %p222
    %p229 = scmp.eq.s32.totalorder %s19, 3
    %p230 = por %p228, %p229
    %p231 = scmp.ne.s32.totalorder %s223, %s226
    %p232 = scmp.eq.s32.totalorder %s19, 0
    %p233 = por %p231, %p232
    %p234 = scmp.ne.s32.totalorder %s223, %s226
    %p235 = scmp.eq.s32.totalorder %s24, 3
    %p236 = por %p234, %p235
    %p237 = scmp.ne.s32.totalorder %s226, %s227
    %p238 = scmp.eq.s32.totalorder %s24, 0
    %p239 = por %p237, %p238
    %p240 = scmp.ne.s32.totalorder %s226, %s227
    %p241 = scmp.eq.s32.totalorder %s25, 3
    %p242 = por %p240, %p241
    %p244 = scmp.ne.s32.totalorder %s227, %s243
    %p245 = scmp.eq.s32.totalorder %s25, 0
    %p246 = por %p244, %p245
    %s247 = ssub.s32 %s27, %s34
    %p248 = scmp.eq.s32.totalorder %s247, 0
    %s250 = sadd.s32 %s249, 1
    %s251 = scalar_select %p248, %s249, %s250
    %p254 = pneg %p248
    %p255 = scmp.eq.s32.totalorder %s19, 3
    %p256 = por %p254, %p255
    %p257 = scmp.ne.s32.totalorder %s249, %s252
    %p258 = scmp.eq.s32.totalorder %s19, 0
    %p259 = por %p257, %p258
    %p260 = scmp.ne.s32.totalorder %s249, %s252
    %p261 = scmp.eq.s32.totalorder %s24, 3
    %p262 = por %p260, %p261
    %p263 = scmp.ne.s32.totalorder %s252, %s253
    %p264 = scmp.eq.s32.totalorder %s24, 0
    %p265 = por %p263, %p264
    %p266 = scmp.ne.s32.totalorder %s252, %s253
    %p267 = scmp.eq.s32.totalorder %s25, 3
    %p268 = por %p266, %p267
    %p270 = scmp.ne.s32.totalorder %s253, %s269
    %p271 = scmp.eq.s32.totalorder %s25, 0
    %p272 = por %p270, %p271
    %s273 = ssub.s32 %s27, %s34
    %p274 = scmp.eq.s32.totalorder %s273, 0
    %s276 = sadd.s32 %s275, 1
    %s277 = scalar_select %p274, %s275, %s276
    %p280 = pneg %p274
    %p281 = scmp.eq.s32.totalorder %s19, 3
    %p282 = por %p280, %p281
    %p283 = scmp.ne.s32.totalorder %s275, %s278
    %p284 = scmp.eq.s32.totalorder %s19, 0
    %p285 = por %p283, %p284
    %p286 = scmp.ne.s32.totalorder %s275, %s278
    %p287 = scmp.eq.s32.totalorder %s24, 3
    %p288 = por %p286, %p287
    %p289 = scmp.ne.s32.totalorder %s278, %s279
    %p290 = scmp.eq.s32.totalorder %s24, 0
    %p291 = por %p289, %p290
    %p292 = scmp.ne.s32.totalorder %s278, %s279
    %p293 = scmp.eq.s32.totalorder %s25, 3
    %p294 = por %p292, %p293
    %p296 = scmp.ne.s32.totalorder %s279, %s295
    %p297 = scmp.eq.s32.totalorder %s25, 0
    %p298 = por %p296, %p297
    %s299 = ssub.s32 %s27, %s34
    %p300 = scmp.eq.s32.totalorder %s299, 0
    %s302 = sadd.s32 %s301, 1
    %s303 = scalar_select %p300, %s301, %s302
    %p306 = pneg %p300
    %p307 = scmp.eq.s32.totalorder %s19, 3
    %p308 = por %p306, %p307
    %p309 = scmp.ne.s32.totalorder %s301, %s304
    %p310 = scmp.eq.s32.totalorder %s19, 0
    %p311 = por %p309, %p310
    %p312 = scmp.ne.s32.totalorder %s301, %s304
    %p313 = scmp.eq.s32.totalorder %s24, 3
    %p314 = por %p312, %p313
    %p315 = scmp.ne.s32.totalorder %s304, %s305
    %p316 = scmp.eq.s32.totalorder %s24, 0
    %p317 = por %p315, %p316
    %p318 = scmp.ne.s32.totalorder %s304, %s305
    %p319 = scmp.eq.s32.totalorder %s25, 3
    %p320 = por %p318, %p319
    %p322 = scmp.ne.s32.totalorder %s305, %s321
    %p323 = scmp.eq.s32.totalorder %s25, 0
    %p324 = por %p322, %p323
    %s325 = ssub.s32 %s27, %s34
    %p326 = scmp.eq.s32.totalorder %s325, 0
    %s328 = sadd.s32 %s327, 1
    %s329 = scalar_select %p326, %s327, %s328
    %p332 = pneg %p326
    %p333 = scmp.eq.s32.totalorder %s19, 3
    %p334 = por %p332, %p333
    %p335 = scmp.ne.s32.totalorder %s327, %s330
    %p336 = scmp.eq.s32.totalorder %s19, 0
    %p337 = por %p335, %p336
    %p338 = scmp.ne.s32.totalorder %s327, %s330
    %p339 = scmp.eq.s32.totalorder %s24, 3
    %p340 = por %p338, %p339
    %p341 = scmp.ne.s32.totalorder %s330, %s331
    %p342 = scmp.eq.s32.totalorder %s24, 0
    %p343 = por %p341, %p342
    %p344 = scmp.ne.s32.totalorder %s330, %s331
    %p345 = scmp.eq.s32.totalorder %s25, 3
    %p346 = por %p344, %p345
    %p348 = scmp.ne.s32.totalorder %s331, %s347
    %p349 = scmp.eq.s32.totalorder %s25, 0
    %p350 = por %p348, %p349
    %s351 = ssub.s32 %s27, %s34
    %p352 = scmp.eq.s32.totalorder %s351, 0
    %s354 = sadd.s32 %s353, 1
    %s355 = scalar_select %p352, %s353, %s354
    %p358 = pneg %p352
    %p359 = scmp.eq.s32.totalorder %s19, 3
    %p360 = por %p358, %p359
    %p361 = scmp.ne.s32.totalorder %s353, %s356
    %p362 = scmp.eq.s32.totalorder %s19, 0
    %p363 = por %p361, %p362
    %p364 = scmp.ne.s32.totalorder %s353, %s356
    %p365 = scmp.eq.s32.totalorder %s24, 3
    %p366 = por %p364, %p365
    %p367 = scmp.ne.s32.totalorder %s356, %s357
    %p368 = scmp.eq.s32.totalorder %s24, 0
    %p369 = por %p367, %p368
    %p370 = scmp.ne.s32.totalorder %s356, %s357
    %p371 = scmp.eq.s32.totalorder %s25, 3
    %p372 = por %p370, %p371
    %p374 = scmp.ne.s32.totalorder %s357, %s373
    %p375 = scmp.eq.s32.totalorder %s25, 0
    %p376 = por %p374, %p375
    %s377 = ssub.s32 %s26, %s38
    %p378 = scmp.eq.s32.totalorder %s377, 0
    %s380 = sadd.s32 %s379, 1
    %s381 = scalar_select %p378, %s379, %s380
    %p384 = pneg %p378
    %p385 = scmp.eq.s32.totalorder %s19, 3
    %p386 = por %p384, %p385
    %p387 = scmp.ne.s32.totalorder %s379, %s382
    %p388 = scmp.eq.s32.totalorder %s19, 0
    %p389 = por %p387, %p388
    %p390 = scmp.ne.s32.totalorder %s379, %s382
    %p391 = scmp.eq.s32.totalorder %s24, 3
    %p392 = por %p390, %p391
    %p393 = scmp.ne.s32.totalorder %s382, %s383
    %p394 = scmp.eq.s32.totalorder %s24, 0
    %p395 = por %p393, %p394
    %p396 = scmp.ne.s32.totalorder %s382, %s383
    %p397 = scmp.eq.s32.totalorder %s25, 3
    %p398 = por %p396, %p397
    %p400 = scmp.ne.s32.totalorder %s383, %s399
    %p401 = scmp.eq.s32.totalorder %s25, 0
    %p402 = por %p400, %p401
    %p403 = scmp.le.s32.totalorder 1, %s19
    %p404 = scmp.lt.s32.totalorder %s19, 5
    %p405 = pnand %p403, %p404
    %p406 = pneg %p405
    // Predicated region
    $region9: #{_lambda_.6} parent=5 // pred_check
      _
    $region10: #{_lambda_.6} parent=5 // pred_check_branch
      %408 = sbr.rel (%p405) target = $region12
    $region11: #{_lambda_.6} parent=5 // pred_region
      %s409 = ssub.s32 %s19, 1
    $region12: #{_lambda_.6} parent=5 // pred_fallthru
      _
    %p410 = scmp.lt.s32.totalorder %s19, 4
    // Predicated region
    $region13: #{_lambda_.6} parent=5 // pred_check
      %p411 = pneg %p410
    $region14: #{_lambda_.6} parent=5 // pred_check_branch
      %413 = sbr.rel (%p411) target = $region16
    $region15: #{_lambda_.6} parent=5 // pred_region
      // Predicated region
      $region17: #{_lambda_.6} parent=15 // pred_check
        %p414 = pneg %p51
      $region18: #{_lambda_.6} parent=15 // pred_check_branch
        %416 = sbr.rel (%p414) target = $region20
      $region19: #{_lambda_.6} parent=15 // pred_region
        %p417 = scmp.lt.s32.totalorder %s26, 1
        %s418 = scalar_select %p417, %s26, 1
        %s419 = smul.addr %s418, 4
        %s420 = scalar_lea.vmem %s0, %s419
      $region20: #{_lambda_.6} parent=15 // pred_fallthru
        _
      // Predicated region
      $region21: #{_lambda_.6} parent=15 // pred_check
        %p421 = pneg %p77
      $region22: #{_lambda_.6} parent=15 // pred_check_branch
        %423 = sbr.rel (%p421) target = $region24
      $region23: #{_lambda_.6} parent=15 // pred_region
        %p424 = scmp.lt.s32.totalorder %s27, 1
        %s425 = scalar_select %p424, %s27, 1
        %s426 = scalar_lea.vmem %s1, %s425
      $region24: #{_lambda_.6} parent=15 // pred_fallthru
        _
      // Predicated region
      $region25: #{_lambda_.6} parent=15 // pred_check
        %p427 = pneg %p103
      $region26: #{_lambda_.6} parent=15 // pred_check_branch
        %429 = sbr.rel (%p427) target = $region28
      $region27: #{_lambda_.6} parent=15 // pred_region
        %p430 = scmp.lt.s32.totalorder %s27, 1
        %s431 = scalar_select %p430, %s27, 1
        %s432 = scalar_lea.vmem %s2, %s431
      $region28: #{_lambda_.6} parent=15 // pred_fallthru
        _
      // Predicated region
      $region29: #{_lambda_.6} parent=15 // pred_check
        %p433 = pneg %p129
      $region30: #{_lambda_.6} parent=15 // pred_check_branch
        %435 = sbr.rel (%p433) target = $region32
      $region31: #{_lambda_.6} parent=15 // pred_region
        %p436 = scmp.lt.s32.totalorder %s27, 1
        %s437 = scalar_select %p436, %s27, 1
        %s438 = smul.addr %s437, 48
        %s439 = smul.addr %s438, 4
        %s440 = scalar_lea.vmem %s3, %s439
      $region32: #{_lambda_.6} parent=15 // pred_fallthru
        _
      // Predicated region
      $region33: #{_lambda_.6} parent=15 // pred_check
        %p441 = pneg %p155
      $region34: #{_lambda_.6} parent=15 // pred_check_branch
        %443 = sbr.rel (%p441) target = $region36
      $region35: #{_lambda_.6} parent=15 // pred_region
        %p444 = scmp.lt.s32.totalorder %s27, 1
        %s445 = scalar_select %p444, %s27, 1
        %s446 = smul.addr %s445, 12
        %s447 = scalar_lea.vmem %s4, %s446
      $region36: #{_lambda_.6} parent=15 // pred_fallthru
        _
      // Predicated region
      $region37: #{_lambda_.6} parent=15 // pred_check
        %p448 = pneg %p181
      $region38: #{_lambda_.6} parent=15 // pred_check_branch
        %450 = sbr.rel (%p448) target = $region40
      $region39: #{_lambda_.6} parent=15 // pred_region
        %p451 = scmp.lt.s32.totalorder %s27, 1
        %s452 = scalar_select %p451, %s27, 1
        %s453 = smul.addr %s452, 4
        %s454 = smul.addr %s453, 4
        %s455 = scalar_lea.vmem %s5, %s454
      $region40: #{_lambda_.6} parent=15 // pred_fallthru
        _
      // Predicated region
      $region41: #{_lambda_.6} parent=15 // pred_check
        %p456 = pneg %p207
      $region42: #{_lambda_.6} parent=15 // pred_check_branch
        %458 = sbr.rel (%p456) target = $region44
      $region43: #{_lambda_.6} parent=15 // pred_region
        %p459 = scmp.lt.s32.totalorder %s27, 1
        %s460 = scalar_select %p459, %s27, 1
        %s461 = scalar_lea.vmem %s6, %s460
      $region44: #{_lambda_.6} parent=15 // pred_fallthru
        _
      // Predicated region
      $region45: #{_lambda_.6} parent=15 // pred_check
        %p462 = pneg %p233
      $region46: #{_lambda_.6} parent=15 // pred_check_branch
        %464 = sbr.rel (%p462) target = $region48
      $region47: #{_lambda_.6} parent=15 // pred_region
        %p465 = scmp.lt.s32.totalorder %s27, 1
        %s466 = scalar_select %p465, %s27, 1
        %s467 = scalar_lea.vmem %s7, %s466
      $region48: #{_lambda_.6} parent=15 // pred_fallthru
        _
      // Predicated region
      $region49: #{_lambda_.6} parent=15 // pred_check
        %p468 = pneg %p259
      $region50: #{_lambda_.6} parent=15 // pred_check_branch
        %470 = sbr.rel (%p468) target = $region52
      $region51: #{_lambda_.6} parent=15 // pred_region
        %p471 = scmp.lt.s32.totalorder %s27, 1
        %s472 = scalar_select %p471, %s27, 1
        %s473 = scalar_lea.vmem %s8, %s472
      $region52: #{_lambda_.6} parent=15 // pred_fallthru
        _
      // Predicated region
      $region53: #{_lambda_.6} parent=15 // pred_check
        %p474 = pneg %p285
      $region54: #{_lambda_.6} parent=15 // pred_check_branch
        %476 = sbr.rel (%p474) target = $region56
      $region55: #{_lambda_.6} parent=15 // pred_region
        %p477 = scmp.lt.s32.totalorder %s27, 1
        %s478 = scalar_select %p477, %s27, 1
        %s479 = smul.addr %s478, 4
        %s480 = smul.addr %s479, 4
        %s481 = scalar_lea.vmem %s9, %s480
      $region56: #{_lambda_.6} parent=15 // pred_fallthru
        _
      // Predicated region
      $region57: #{_lambda_.6} parent=15 // pred_check
        %p482 = pneg %p311
      $region58: #{_lambda_.6} parent=15 // pred_check_branch
        %484 = sbr.rel (%p482) target = $region60
      $region59: #{_lambda_.6} parent=15 // pred_region
        %p485 = scmp.lt.s32.totalorder %s27, 1
        %s486 = scalar_select %p485, %s27, 1
        %s487 = scalar_lea.vmem %s10, %s486
      $region60: #{_lambda_.6} parent=15 // pred_fallthru
        _
      // Predicated region
      $region61: #{_lambda_.6} parent=15 // pred_check
        %p488 = pneg %p337
      $region62: #{_lambda_.6} parent=15 // pred_check_branch
        %490 = sbr.rel (%p488) target = $region64
      $region63: #{_lambda_.6} parent=15 // pred_region
        %p491 = scmp.lt.s32.totalorder %s27, 1
        %s492 = scalar_select %p491, %s27, 1
        %s493 = smul.addr %s492, 16
        %s494 = smul.addr %s493, 4
        %s495 = scalar_lea.vmem %s11, %s494
      $region64: #{_lambda_.6} parent=15 // pred_fallthru
        _
      // Predicated region
      $region65: #{_lambda_.6} parent=15 // pred_check
        %p496 = pneg %p363
      $region66: #{_lambda_.6} parent=15 // pred_check_branch
        %498 = sbr.rel (%p496) target = $region68
      $region67: #{_lambda_.6} parent=15 // pred_region
        %p499 = scmp.lt.s32.totalorder %s27, 1
        %s500 = scalar_select %p499, %s27, 1
        %s501 = scalar_lea.vmem %s12, %s500
      $region68: #{_lambda_.6} parent=15 // pred_fallthru
        _
    $region16: #{_lambda_.6} parent=5 // pred_fallthru
      _
    %p502 = scmp.le.s32.totalorder 1, %s19
    %p503 = scmp.lt.s32.totalorder %s19, 5
    %p504 = pnand %p502, %p503
    %p505 = pneg %p504
    // Predicated region
    $region69: #{_lambda_.6} parent=5 // pred_check
      _
    $region70: #{_lambda_.6} parent=5 // pred_check_branch
      %507 = sbr.rel (%p504) target = $region72
    $region71: #{_lambda_.6} parent=5 // pred_region
      %s508 = ssub.s32 %s19, 1
      %p509 = scmp.lt.s32.totalorder %s28, 1
      %s510 = scalar_select %p509, %s28, 1
      %s511 = smul.addr %s510, 4
      %s512 = scalar_lea.vmem %s0, %s511
      %p513 = pneg %p57
      %p514 = pneg %p54
      %p515 = scmp.lt.s32.totalorder %s29, 1
      %s516 = scalar_select %p515, %s29, 1
      %s517 = scalar_lea.vmem %s1, %s516
      %p518 = pneg %p83
      %p519 = pneg %p80
      %p520 = scmp.lt.s32.totalorder %s29, 1
      %s521 = scalar_select %p520, %s29, 1
      %s522 = scalar_lea.vmem %s2, %s521
      %p523 = pneg %p109
      %p524 = pneg %p106
      %p525 = scmp.lt.s32.totalorder %s29, 1
      %s526 = scalar_select %p525, %s29, 1
      %s527 = smul.addr %s526, 48
      %s528 = smul.addr %s527, 4
      %s529 = scalar_lea.vmem %s3, %s528
      %p530 = pneg %p135
      %p531 = pneg %p132
      %p532 = scmp.lt.s32.totalorder %s29, 1
      %s533 = scalar_select %p532, %s29, 1
      %s534 = smul.addr %s533, 12
      %s535 = scalar_lea.vmem %s4, %s534
      %p536 = pneg %p161
      %p537 = pneg %p158
      %p538 = scmp.lt.s32.totalorder %s29, 1
      %s539 = scalar_select %p538, %s29, 1
      %s540 = smul.addr %s539, 4
      %s541 = smul.addr %s540, 4
      %s542 = scalar_lea.vmem %s5, %s541
      %p543 = pneg %p187
      %p544 = pneg %p184
      %p545 = scmp.lt.s32.totalorder %s29, 1
      %s546 = scalar_select %p545, %s29, 1
      %s547 = scalar_lea.vmem %s6, %s546
      %p548 = pneg %p213
      %p549 = pneg %p210
      %p550 = scmp.lt.s32.totalorder %s29, 1
      %s551 = scalar_select %p550, %s29, 1
      %s552 = scalar_lea.vmem %s7, %s551
      %p553 = pneg %p239
      %p554 = pneg %p236
      %p555 = scmp.lt.s32.totalorder %s29, 1
      %s556 = scalar_select %p555, %s29, 1
      %s557 = scalar_lea.vmem %s8, %s556
      %p558 = pneg %p265
      %p559 = pneg %p262
      %p560 = scmp.lt.s32.totalorder %s29, 1
      %s561 = scalar_select %p560, %s29, 1
      %s562 = smul.addr %s561, 4
      %s563 = smul.addr %s562, 4
      %s564 = scalar_lea.vmem %s9, %s563
      %p565 = pneg %p291
      %p566 = pneg %p288
      %p567 = scmp.lt.s32.totalorder %s29, 1
      %s568 = scalar_select %p567, %s29, 1
      %s569 = scalar_lea.vmem %s10, %s568
      %p570 = pneg %p317
      %p571 = pneg %p314
      %p572 = scmp.lt.s32.totalorder %s29, 1
      %s573 = scalar_select %p572, %s29, 1
      %s574 = smul.addr %s573, 16
      %s575 = smul.addr %s574, 4
      %s576 = scalar_lea.vmem %s11, %s575
      %p577 = pneg %p343
      %p578 = pneg %p340
      %p579 = scmp.lt.s32.totalorder %s29, 1
      %s580 = scalar_select %p579, %s29, 1
      %s581 = scalar_lea.vmem %s12, %s580
      %p582 = pneg %p369
      %p583 = pneg %p366
      %p584 = pneg %p395
      %p585 = pneg %p392
      %p586 = scmp.lt.s32.totalorder %s28, 1
      %s587 = scalar_select %p586, %s28, 1
      %s588 = smul.addr %s587, 4
      %s589 = scalar_lea.vmem %s13, %s588
      %p590 = scmp.lt.s32.totalorder %s28, 1
      %s591 = scalar_select %p590, %s28, 1
      %s592 = smul.addr %s591, 4
      %s593 = scalar_lea.vmem %s0, %s592
      %p594 = scmp.lt.s32.totalorder %s29, 1
      %s595 = scalar_select %p594, %s29, 1
      %s596 = scalar_lea.vmem %s1, %s595
      %p597 = scmp.lt.s32.totalorder %s29, 1
      %s598 = scalar_select %p597, %s29, 1
      %s599 = scalar_lea.vmem %s2, %s598
      %p600 = scmp.lt.s32.totalorder %s29, 1
      %s601 = scalar_select %p600, %s29, 1
      %s602 = smul.addr %s601, 48
      %s603 = smul.addr %s602, 4
      %s604 = scalar_lea.vmem %s3, %s603
      %p605 = scmp.lt.s32.totalorder %s29, 1
      %s606 = scalar_select %p605, %s29, 1
      %s607 = smul.addr %s606, 12
      %s608 = scalar_lea.vmem %s4, %s607
      %p609 = scmp.lt.s32.totalorder %s29, 1
      %s610 = scalar_select %p609, %s29, 1
      %s611 = smul.addr %s610, 4
      %s612 = smul.addr %s611, 4
      %s613 = scalar_lea.vmem %s5, %s612
      %p614 = scmp.lt.s32.totalorder %s29, 1
      %s615 = scalar_select %p614, %s29, 1
      %s616 = scalar_lea.vmem %s6, %s615
      %p617 = scmp.lt.s32.totalorder %s29, 1
      %s618 = scalar_select %p617, %s29, 1
      %s619 = scalar_lea.vmem %s7, %s618
      %p620 = scmp.lt.s32.totalorder %s29, 1
      %s621 = scalar_select %p620, %s29, 1
      %s622 = scalar_lea.vmem %s8, %s621
      %p623 = scmp.lt.s32.totalorder %s29, 1
      %s624 = scalar_select %p623, %s29, 1
      %s625 = smul.addr %s624, 4
      %s626 = smul.addr %s625, 4
      %s627 = scalar_lea.vmem %s9, %s626
      %p628 = scmp.lt.s32.totalorder %s29, 1
      %s629 = scalar_select %p628, %s29, 1
      %s630 = scalar_lea.vmem %s10, %s629
      %p631 = scmp.lt.s32.totalorder %s29, 1
      %s632 = scalar_select %p631, %s29, 1
      %s633 = smul.addr %s632, 16
      %s634 = smul.addr %s633, 4
      %s635 = scalar_lea.vmem %s11, %s634
      %p636 = scmp.lt.s32.totalorder %s29, 1
      %s637 = scalar_select %p636, %s29, 1
      %s638 = scalar_lea.vmem %s12, %s637
      %p639 = scmp.lt.s32.totalorder %s28, 1
      %s640 = scalar_select %p639, %s28, 1
      %s641 = smul.addr %s640, 4
      %s642 = scalar_lea.vmem %s13, %s641
      %p644 = scmp.eq.s32.totalorder %s29, 0
      // Predicated region
      $region73: #{_lambda_.6} parent=71 // pred_check
        %p645 = pneg %p644
      $region74: #{_lambda_.6} parent=71 // pred_check_branch
        %647 = sbr.rel (%p645) target = $region76
      $region75: #{_lambda_.6} parent=71 // pred_region
        %v648 = vld [vmem:[%s593] sm:$0xf]
        %v649 = vunpack.c.l.bf16 %v648
        %vm650 = vcmask 261120
        %651 = vst.msk [vmem:[#allocation2] sm:$0xff] %vm650, %v649
      $region76: #{_lambda_.6} parent=71 // pred_fallthru
        _
      %v652 = vld [vmem:[#allocation2] sm:$0xff]
      %v653 = vld [vmem:[%s596] sm:$0x1]
      %v654 = vld [vmem:[%s599] sm:$0x1]
      %vm655 = vcmask 261120
      %v656 = vsel %vm655, %v652, 0.0
      %657 = vadd.xlane.f32.xlu0 %v656
      %v658 = vpop.xlane.xlu0 %657
      %v659 = vrcp.pop 32.0
      %v660 = vmul.f32 %v658, %v659
      %v661 = vsub.f32 %v652, %v660
      %v662 = vmul.f32 %v661, %v661
      %v663 = vsel %vm655, %v662, 0.0
      %664 = vadd.xlane.f32.xlu0 %v663
      %v665 = vpop.xlane.xlu0 %664
      %v666 = vmul.f32 %v665, %v659
      %v667 = vadd.f32 %v666, 1e-05
      %v668 = vrsqrt.pop %v667
      %v669 = vmul.f32 %v661, %v668
      %v671 = vlaneseq
      %v672 = vshrl.u32 %v671, 7
      %v673 = vsub.s32 0, %v672
      %v674 = vrot.slane %v653, %v673
      %v676 = vmul.f32 %v669, %v674
      %v678 = vlaneseq
      %v679 = vshrl.u32 %v678, 7
      %v680 = vsub.s32 0, %v679
      %v681 = vrot.slane %v654, %v680
      %v683 = vadd.f32 %v676, %v681
      %v684 = vpack.c.bf16 %v683, %v683
      %v685 = vld [vmem:[%s604] sm:$0xf]
      %v686 = vld [vmem:[%s604 + $0x4] sm:$0xf]
      %v687 = vld [vmem:[%s604 + $0x8] sm:$0xf]
      %v688 = vld [vmem:[%s604 + $0xc] sm:$0xf]
      %v689 = vld [vmem:[%s604 + $0x10] sm:$0xf]
      %v690 = vld [vmem:[%s604 + $0x14] sm:$0xf]
      %v691 = vld [vmem:[%s604 + $0x18] sm:$0xf]
      %v692 = vld [vmem:[%s604 + $0x1c] sm:$0xf]
      %v693 = vld [vmem:[%s604 + $0x20] sm:$0xf]
      %v694 = vld [vmem:[%s604 + $0x24] sm:$0xf]
      %v695 = vld [vmem:[%s604 + $0x28] sm:$0xf]
      %v696 = vld [vmem:[%s604 + $0x2c] sm:$0xf]
      %v697 = vld [vmem:[%s604 + $0x30] sm:$0xf]
      %v698 = vld [vmem:[%s604 + $0x34] sm:$0xf]
      %v699 = vld [vmem:[%s604 + $0x38] sm:$0xf]
      %v700 = vld [vmem:[%s604 + $0x3c] sm:$0xf]
      %v701 = vld [vmem:[%s604 + $0x40] sm:$0xf]
      %v702 = vld [vmem:[%s604 + $0x44] sm:$0xf]
      %v703 = vld [vmem:[%s604 + $0x48] sm:$0xf]
      %v704 = vld [vmem:[%s604 + $0x4c] sm:$0xf]
      %v705 = vld [vmem:[%s604 + $0x50] sm:$0xf]
      %v706 = vld [vmem:[%s604 + $0x54] sm:$0xf]
      %v707 = vld [vmem:[%s604 + $0x58] sm:$0xf]
      %v708 = vld [vmem:[%s604 + $0x5c] sm:$0xf]
      %v709 = vld [vmem:[%s604 + $0x60] sm:$0xf]
      %v710 = vld [vmem:[%s604 + $0x64] sm:$0xf]
      %v711 = vld [vmem:[%s604 + $0x68] sm:$0xf]
      %v712 = vld [vmem:[%s604 + $0x6c] sm:$0xf]
      %v713 = vld [vmem:[%s604 + $0x70] sm:$0xf]
      %v714 = vld [vmem:[%s604 + $0x74] sm:$0xf]
      %v715 = vld [vmem:[%s604 + $0x78] sm:$0xf]
      %v716 = vld [vmem:[%s604 + $0x7c] sm:$0xf]
      %v717 = vld [vmem:[%s604 + $0x80] sm:$0xf]
      %v718 = vld [vmem:[%s604 + $0x84] sm:$0xf]
      %v719 = vld [vmem:[%s604 + $0x88] sm:$0xf]
      %v720 = vld [vmem:[%s604 + $0x8c] sm:$0xf]
      %v721 = vld [vmem:[%s604 + $0x90] sm:$0xf]
      %v722 = vld [vmem:[%s604 + $0x94] sm:$0xf]
      %v723 = vld [vmem:[%s604 + $0x98] sm:$0xf]
      %v724 = vld [vmem:[%s604 + $0x9c] sm:$0xf]
      %v725 = vld [vmem:[%s604 + $0xa0] sm:$0xf]
      %v726 = vld [vmem:[%s604 + $0xa4] sm:$0xf]
      %v727 = vld [vmem:[%s604 + $0xa8] sm:$0xf]
      %v728 = vld [vmem:[%s604 + $0xac] sm:$0xf]
      %v729 = vld [vmem:[%s604 + $0xb0] sm:$0xf]
      %v730 = vld [vmem:[%s604 + $0xb4] sm:$0xf]
      %v731 = vld [vmem:[%s604 + $0xb8] sm:$0xf]
      %v732 = vld [vmem:[%s604 + $0xbc] sm:$0xf]
      %v733 = vld [vmem:[%s608] sm:$0x1]
      %v734 = vld [vmem:[%s608 + $0x1] sm:$0x1]
      %v735 = vld [vmem:[%s608 + $0x2] sm:$0x1]
      %v736 = vld [vmem:[%s608 + $0x3] sm:$0x1]
      %v737 = vld [vmem:[%s608 + $0x4] sm:$0x1]
      %v738 = vld [vmem:[%s608 + $0x5] sm:$0x1]
      %v739 = vld [vmem:[%s608 + $0x6] sm:$0x1]
      %v740 = vld [vmem:[%s608 + $0x7] sm:$0x1]
      %v741 = vld [vmem:[%s608 + $0x8] sm:$0x1]
      %v742 = vld [vmem:[%s608 + $0x9] sm:$0x1]
      %v743 = vld [vmem:[%s608 + $0xa] sm:$0x1]
      %v744 = vld [vmem:[%s608 + $0xb] sm:$0x1]
      %v757 = vlaneseq
      %v758 = vshrl.u32 %v757, 7
      %v759 = vsub.s32 0, %v758
      %v760 = vrot.slane %v733, %v759
      %v761 = vlaneseq
      %v762 = vshrl.u32 %v761, 7
      %v763 = vsub.s32 0, %v762
      %v764 = vrot.slane %v734, %v763
      %v765 = vlaneseq
      %v766 = vshrl.u32 %v765, 7
      %v767 = vsub.s32 0, %v766
      %v768 = vrot.slane %v735, %v767
      %v769 = vlaneseq
      %v770 = vshrl.u32 %v769, 7
      %v771 = vsub.s32 0, %v770
      %v772 = vrot.slane %v736, %v771
      %v773 = vlaneseq
      %v774 = vshrl.u32 %v773, 7
      %v775 = vsub.s32 0, %v774
      %v776 = vrot.slane %v737, %v775
      %v777 = vlaneseq
      %v778 = vshrl.u32 %v777, 7
      %v779 = vsub.s32 0, %v778
      %v780 = vrot.slane %v738, %v779
      %v781 = vlaneseq
      %v782 = vshrl.u32 %v781, 7
      %v783 = vsub.s32 0, %v782
      %v784 = vrot.slane %v739, %v783
      %v785 = vlaneseq
      %v786 = vshrl.u32 %v785, 7
      %v787 = vsub.s32 0, %v786
      %v788 = vrot.slane %v740, %v787
      %v789 = vlaneseq
      %v790 = vshrl.u32 %v789, 7
      %v791 = vsub.s32 0, %v790
      %v792 = vrot.slane %v741, %v791
      %v793 = vlaneseq
      %v794 = vshrl.u32 %v793, 7
      %v795 = vsub.s32 0, %v794
      %v796 = vrot.slane %v742, %v795
      %v797 = vlaneseq
      %v798 = vshrl.u32 %v797, 7
      %v799 = vsub.s32 0, %v798
      %v800 = vrot.slane %v743, %v799
      %v801 = vlaneseq
      %v802 = vshrl.u32 %v801, 7
      %v803 = vsub.s32 0, %v802
      %v804 = vrot.slane %v744, %v803
      %v821 = vunpack.c.l.b16 %v685
      %v822 = vunpack.c.l.b16 %v686
      %v823 = vunpack.c.l.b16 %v687
      %v824 = vunpack.c.l.b16 %v688
      %v825 = vpack.c.b16 %v822, %v821
      %v826 = vpack.c.b16 %v824, %v823
      %v830 = vsel %vm655, %v684, 0
      %832 = vmatprep.subr.bf16.mxu0 0
      %833 = vmatpush1.bf16.msra.mxu0 %v825
      %834 = vmatprep.subr.bf16.mxu0 0
      %835 = vmatpush1.bf16.msra.mxu0 %v826
      %836 = vmatprep.subr.bf16.mxu0 0
      %837 = vmatpush1.bf16.msra.mxu0 0
      %838 = vmatprep.subr.bf16.mxu0 0
      %839 = vmatpush1.bf16.msra.mxu0 0
      %840 = vmatprep.subr.bf16.mxu0 0
      %841 = vmatpush1.bf16.msra.mxu0 0
      %842 = vmatprep.subr.bf16.mxu0 0
      %843 = vmatpush1.bf16.msra.mxu0 0
      %844 = vmatprep.subr.bf16.mxu0 0
      %845 = vmatpush1.bf16.msra.mxu0 0
      %846 = vmatprep.subr.bf16.mxu0 0
      %847 = vmatpush1.bf16.msra.mxu0 0
      %848 = vmatprep.subr.bf16.mxu0 0
      %849 = vmatpush1.bf16.msra.mxu0 0
      %850 = vmatprep.subr.bf16.mxu0 0
      %851 = vmatpush1.bf16.msra.mxu0 0
      %852 = vmatprep.subr.bf16.mxu0 0
      %853 = vmatpush1.bf16.msra.mxu0 0
      %854 = vmatprep.subr.bf16.mxu0 0
      %855 = vmatpush1.bf16.msra.mxu0 0
      %856 = vmatprep.subr.bf16.mxu0 0
      %857 = vmatpush1.bf16.msra.mxu0 0
      %858 = vmatprep.subr.bf16.mxu0 0
      %859 = vmatpush1.bf16.msra.mxu0 0
      %860 = vmatprep.subr.bf16.mxu0 0
      %861 = vmatpush1.bf16.msra.mxu0 0
      %862 = vmatprep.subr.bf16.mxu0 0
      %863 = vmatpush1.bf16.msra.mxu0 0
      %864 = vmatprep.mubr.bf16.mxu0 0
      %865 = vmatmul.mubr.bf16.gmra.mrb[0].mxu0 %v830
      %v866 = vpop.f32.mrb[0].mxu0
      %v867 = vadd.f32 %v760, %v866
      %v868 = vpop.f32.mrb[0].mxu0
      %v869 = vpop.f32.mrb[0].mxu0
      %v870 = vpop.f32.mrb[0].mxu0
      %871 = vdwg.mxu0
      %v876 = vunpack.c.l.b16 %v689
      %v877 = vunpack.c.l.b16 %v690
      %v878 = vunpack.c.l.b16 %v691
      %v879 = vunpack.c.l.b16 %v692
      %v880 = vpack.c.b16 %v877, %v876
      %v881 = vpack.c.b16 %v879, %v878
      %884 = vmatprep.subr.bf16.mxu0 0
      %885 = vmatpush1.bf16.msra.mxu0 %v880
      %886 = vmatprep.subr.bf16.mxu0 0
      %887 = vmatpush1.bf16.msra.mxu0 %v881
      %888 = vmatprep.subr.bf16.mxu0 0
      %889 = vmatpush1.bf16.msra.mxu0 0
      %890 = vmatprep.subr.bf16.mxu0 0
      %891 = vmatpush1.bf16.msra.mxu0 0
      %892 = vmatprep.subr.bf16.mxu0 0
      %893 = vmatpush1.bf16.msra.mxu0 0
      %894 = vmatprep.subr.bf16.mxu0 0
      %895 = vmatpush1.bf16.msra.mxu0 0
      %896 = vmatprep.subr.bf16.mxu0 0
      %897 = vmatpush1.bf16.msra.mxu0 0
      %898 = vmatprep.subr.bf16.mxu0 0
      %899 = vmatpush1.bf16.msra.mxu0 0
      %900 = vmatprep.subr.bf16.mxu0 0
      %901 = vmatpush1.bf16.msra.mxu0 0
      %902 = vmatprep.subr.bf16.mxu0 0
      %903 = vmatpush1.bf16.msra.mxu0 0
      %904 = vmatprep.subr.bf16.mxu0 0
      %905 = vmatpush1.bf16.msra.mxu0 0
      %906 = vmatprep.subr.bf16.mxu0 0
      %907 = vmatpush1.bf16.msra.mxu0 0
      %908 = vmatprep.subr.bf16.mxu0 0
      %909 = vmatpush1.bf16.msra.mxu0 0
      %910 = vmatprep.subr.bf16.mxu0 0
      %911 = vmatpush1.bf16.msra.mxu0 0
      %912 = vmatprep.subr.bf16.mxu0 0
      %913 = vmatpush1.bf16.msra.mxu0 0
      %914 = vmatprep.subr.bf16.mxu0 0
      %915 = vmatpush1.bf16.msra.mxu0 0
      %916 = vmatprep.mubr.bf16.mxu0 0
      %917 = vmatmul.mubr.bf16.gmra.mrb[0].mxu0 %v830
      %v918 = vpop.f32.mrb[0].mxu0
      %v919 = vadd.f32 %v764, %v918
      %v920 = vpop.f32.mrb[0].mxu0
      %v921 = vpop.f32.mrb[0].mxu0
      %v922 = vpop.f32.mrb[0].mxu0
      %923 = vdwg.mxu0
      %v928 = vunpack.c.l.b16 %v693
      %v929 = vunpack.c.l.b16 %v694
      %v930 = vunpack.c.l.b16 %v695
      %v931 = vunpack.c.l.b16 %v696
      %v932 = vpack.c.b16 %v929, %v928
      %v933 = vpack.c.b16 %v931, %v930
      %936 = vmatprep.subr.bf16.mxu0 0
      %937 = vmatpush1.bf16.msra.mxu0 %v932
      %938 = vmatprep.subr.bf16.mxu0 0
      %939 = vmatpush1.bf16.msra.mxu0 %v933
      %940 = vmatprep.subr.bf16.mxu0 0
      %941 = vmatpush1.bf16.msra.mxu0 0
      %942 = vmatprep.subr.bf16.mxu0 0
      %943 = vmatpush1.bf16.msra.mxu0 0
      %944 = vmatprep.subr.bf16.mxu0 0
      %945 = vmatpush1.bf16.msra.mxu0 0
      %946 = vmatprep.subr.bf16.mxu0 0
      %947 = vmatpush1.bf16.msra.mxu0 0
      %948 = vmatprep.subr.bf16.mxu0 0
      %949 = vmatpush1.bf16.msra.mxu0 0
      %950 = vmatprep.subr.bf16.mxu0 0
      %951 = vmatpush1.bf16.msra.mxu0 0
      %952 = vmatprep.subr.bf16.mxu0 0
      %953 = vmatpush1.bf16.msra.mxu0 0
      %954 = vmatprep.subr.bf16.mxu0 0
      %955 = vmatpush1.bf16.msra.mxu0 0
      %956 = vmatprep.subr.bf16.mxu0 0
      %957 = vmatpush1.bf16.msra.mxu0 0
      %958 = vmatprep.subr.bf16.mxu0 0
      %959 = vmatpush1.bf16.msra.mxu0 0
      %960 = vmatprep.subr.bf16.mxu0 0
      %961 = vmatpush1.bf16.msra.mxu0 0
      %962 = vmatprep.subr.bf16.mxu0 0
      %963 = vmatpush1.bf16.msra.mxu0 0
      %964 = vmatprep.subr.bf16.mxu0 0
      %965 = vmatpush1.bf16.msra.mxu0 0
      %966 = vmatprep.subr.bf16.mxu0 0
      %967 = vmatpush1.bf16.msra.mxu0 0
      %968 = vmatprep.mubr.bf16.mxu0 0
      %969 = vmatmul.mubr.bf16.gmra.mrb[0].mxu0 %v830
      %v970 = vpop.f32.mrb[0].mxu0
      %v971 = vadd.f32 %v768, %v970
      %v972 = vpop.f32.mrb[0].mxu0
      %v973 = vpop.f32.mrb[0].mxu0
      %v974 = vpop.f32.mrb[0].mxu0
      %975 = vdwg.mxu0
      %v980 = vunpack.c.l.b16 %v697
      %v981 = vunpack.c.l.b16 %v698
      %v982 = vunpack.c.l.b16 %v699
      %v983 = vunpack.c.l.b16 %v700
      %v984 = vpack.c.b16 %v981, %v980
      %v985 = vpack.c.b16 %v983, %v982
      %988 = vmatprep.subr.bf16.mxu0 0
      %989 = vmatpush1.bf16.msra.mxu0 %v984
      %990 = vmatprep.subr.bf16.mxu0 0
      %991 = vmatpush1.bf16.msra.mxu0 %v985
      %992 = vmatprep.subr.bf16.mxu0 0
      %993 = vmatpush1.bf16.msra.mxu0 0
      %994 = vmatprep.subr.bf16.mxu0 0
      %995 = vmatpush1.bf16.msra.mxu0 0
      %996 = vmatprep.subr.bf16.mxu0 0
      %997 = vmatpush1.bf16.msra.mxu0 0
      %998 = vmatprep.subr.bf16.mxu0 0
      %999 = vmatpush1.bf16.msra.mxu0 0
      %1000 = vmatprep.subr.bf16.mxu0 0
      %1001 = vmatpush1.bf16.msra.mxu0 0
      %1002 = vmatprep.subr.bf16.mxu0 0
      %1003 = vmatpush1.bf16.msra.mxu0 0
      %1004 = vmatprep.subr.bf16.mxu0 0
      %1005 = vmatpush1.bf16.msra.mxu0 0
      %1006 = vmatprep.subr.bf16.mxu0 0
      %1007 = vmatpush1.bf16.msra.mxu0 0
      %1008 = vmatprep.subr.bf16.mxu0 0
      %1009 = vmatpush1.bf16.msra.mxu0 0
      %1010 = vmatprep.subr.bf16.mxu0 0
      %1011 = vmatpush1.bf16.msra.mxu0 0
      %1012 = vmatprep.subr.bf16.mxu0 0
      %1013 = vmatpush1.bf16.msra.mxu0 0
      %1014 = vmatprep.subr.bf16.mxu0 0
      %1015 = vmatpush1.bf16.msra.mxu0 0
      %1016 = vmatprep.subr.bf16.mxu0 0
      %1017 = vmatpush1.bf16.msra.mxu0 0
      %1018 = vmatprep.subr.bf16.mxu0 0
      %1019 = vmatpush1.bf16.msra.mxu0 0
      %1020 = vmatprep.mubr.bf16.mxu0 0
      %1021 = vmatmul.mubr.bf16.gmra.mrb[0].mxu0 %v830
      %v1022 = vpop.f32.mrb[0].mxu0
      %v1023 = vadd.f32 %v772, %v1022
      %v1024 = vpop.f32.mrb[0].mxu0
      %v1025 = vpop.f32.mrb[0].mxu0
      %v1026 = vpop.f32.mrb[0].mxu0
      %1027 = vdwg.mxu0
      %v1032 = vunpack.c.l.b16 %v701
      %v1033 = vunpack.c.l.b16 %v702
      %v1034 = vunpack.c.l.b16 %v703
      %v1035 = vunpack.c.l.b16 %v704
      %v1036 = vpack.c.b16 %v1033, %v1032
      %v1037 = vpack.c.b16 %v1035, %v1034
      %1040 = vmatprep.subr.bf16.mxu0 0
      %1041 = vmatpush1.bf16.msra.mxu0 %v1036
      %1042 = vmatprep.subr.bf16.mxu0 0
      %1043 = vmatpush1.bf16.msra.mxu0 %v1037
      %1044 = vmatprep.subr.bf16.mxu0 0
      %1045 = vmatpush1.bf16.msra.mxu0 0
      %1046 = vmatprep.subr.bf16.mxu0 0
      %1047 = vmatpush1.bf16.msra.mxu0 0
      %1048 = vmatprep.subr.bf16.mxu0 0
      %1049 = vmatpush1.bf16.msra.mxu0 0
      %1050 = vmatprep.subr.bf16.mxu0 0
      %1051 = vmatpush1.bf16.msra.mxu0 0
      %1052 = vmatprep.subr.bf16.mxu0 0
      %1053 = vmatpush1.bf16.msra.mxu0 0
      %1054 = vmatprep.subr.bf16.mxu0 0
      %1055 = vmatpush1.bf16.msra.mxu0 0
      %1056 = vmatprep.subr.bf16.mxu0 0
      %1057 = vmatpush1.bf16.msra.mxu0 0
      %1058 = vmatprep.subr.bf16.mxu0 0
      %1059 = vmatpush1.bf16.msra.mxu0 0
      %1060 = vmatprep.subr.bf16.mxu0 0
      %1061 = vmatpush1.bf16.msra.mxu0 0
      %1062 = vmatprep.subr.bf16.mxu0 0
      %1063 = vmatpush1.bf16.msra.mxu0 0
      %1064 = vmatprep.subr.bf16.mxu0 0
      %1065 = vmatpush1.bf16.msra.mxu0 0
      %1066 = vmatprep.subr.bf16.mxu0 0
      %1067 = vmatpush1.bf16.msra.mxu0 0
      %1068 = vmatprep.subr.bf16.mxu0 0
      %1069 = vmatpush1.bf16.msra.mxu0 0
      %1070 = vmatprep.subr.bf16.mxu0 0
      %1071 = vmatpush1.bf16.msra.mxu0 0
      %1072 = vmatprep.mubr.bf16.mxu0 0
      %1073 = vmatmul.mubr.bf16.gmra.mrb[0].mxu0 %v830
      %v1074 = vpop.f32.mrb[0].mxu0
      %v1075 = vadd.f32 %v776, %v1074
      %v1076 = vpop.f32.mrb[0].mxu0
      %v1077 = vpop.f32.mrb[0].mxu0
      %v1078 = vpop.f32.mrb[0].mxu0
      %1079 = vdwg.mxu0
      %v1084 = vunpack.c.l.b16 %v705
      %v1085 = vunpack.c.l.b16 %v706
      %v1086 = vunpack.c.l.b16 %v707
      %v1087 = vunpack.c.l.b16 %v708
      %v1088 = vpack.c.b16 %v1085, %v1084
      %v1089 = vpack.c.b16 %v1087, %v1086
      %1092 = vmatprep.subr.bf16.mxu0 0
      %1093 = vmatpush1.bf16.msra.mxu0 %v1088
      %1094 = vmatprep.subr.bf16.mxu0 0
      %1095 = vmatpush1.bf16.msra.mxu0 %v1089
      %1096 = vmatprep.subr.bf16.mxu0 0
      %1097 = vmatpush1.bf16.msra.mxu0 0
      %1098 = vmatprep.subr.bf16.mxu0 0
      %1099 = vmatpush1.bf16.msra.mxu0 0
      %1100 = vmatprep.subr.bf16.mxu0 0
      %1101 = vmatpush1.bf16.msra.mxu0 0
      %1102 = vmatprep.subr.bf16.mxu0 0
      %1103 = vmatpush1.bf16.msra.mxu0 0
      %1104 = vmatprep.subr.bf16.mxu0 0
      %1105 = vmatpush1.bf16.msra.mxu0 0
      %1106 = vmatprep.subr.bf16.mxu0 0
      %1107 = vmatpush1.bf16.msra.mxu0 0
      %1108 = vmatprep.subr.bf16.mxu0 0
      %1109 = vmatpush1.bf16.msra.mxu0 0
      %1110 = vmatprep.subr.bf16.mxu0 0
      %1111 = vmatpush1.bf16.msra.mxu0 0
      %1112 = vmatprep.subr.bf16.mxu0 0
      %1113 = vmatpush1.bf16.msra.mxu0 0
      %1114 = vmatprep.subr.bf16.mxu0 0
      %1115 = vmatpush1.bf16.msra.mxu0 0
      %1116 = vmatprep.subr.bf16.mxu0 0
      %1117 = vmatpush1.bf16.msra.mxu0 0
      %1118 = vmatprep.subr.bf16.mxu0 0
      %1119 = vmatpush1.bf16.msra.mxu0 0
      %1120 = vmatprep.subr.bf16.mxu0 0
      %1121 = vmatpush1.bf16.msra.mxu0 0
      %1122 = vmatprep.subr.bf16.mxu0 0
      %1123 = vmatpush1.bf16.msra.mxu0 0
      %1124 = vmatprep.mubr.bf16.mxu0 0
      %1125 = vmatmul.mubr.bf16.gmra.mrb[0].mxu0 %v830
      %v1126 = vpop.f32.mrb[0].mxu0
      %v1127 = vadd.f32 %v780, %v1126
      %v1128 = vpop.f32.mrb[0].mxu0
      %v1129 = vpop.f32.mrb[0].mxu0
      %v1130 = vpop.f32.mrb[0].mxu0
      %1131 = vdwg.mxu0
      %v1136 = vunpack.c.l.b16 %v709
      %v1137 = vunpack.c.l.b16 %v710
      %v1138 = vunpack.c.l.b16 %v711
      %v1139 = vunpack.c.l.b16 %v712
      %v1140 = vpack.c.b16 %v1137, %v1136
      %v1141 = vpack.c.b16 %v1139, %v1138
      %1144 = vmatprep.subr.bf16.mxu0 0
      %1145 = vmatpush1.bf16.msra.mxu0 %v1140
      %1146 = vmatprep.subr.bf16.mxu0 0
      %1147 = vmatpush1.bf16.msra.mxu0 %v1141
      %1148 = vmatprep.subr.bf16.mxu0 0
      %1149 = vmatpush1.bf16.msra.mxu0 0
      %1150 = vmatprep.subr.bf16.mxu0 0
      %1151 = vmatpush1.bf16.msra.mxu0 0
      %1152 = vmatprep.subr.bf16.mxu0 0
      %1153 = vmatpush1.bf16.msra.mxu0 0
      %1154 = vmatprep.subr.bf16.mxu0 0
      %1155 = vmatpush1.bf16.msra.mxu0 0
      %1156 = vmatprep.subr.bf16.mxu0 0
      %1157 = vmatpush1.bf16.msra.mxu0 0
      %1158 = vmatprep.subr.bf16.mxu0 0
      %1159 = vmatpush1.bf16.msra.mxu0 0
      %1160 = vmatprep.subr.bf16.mxu0 0
      %1161 = vmatpush1.bf16.msra.mxu0 0
      %1162 = vmatprep.subr.bf16.mxu0 0
      %1163 = vmatpush1.bf16.msra.mxu0 0
      %1164 = vmatprep.subr.bf16.mxu0 0
      %1165 = vmatpush1.bf16.msra.mxu0 0
      %1166 = vmatprep.subr.bf16.mxu0 0
      %1167 = vmatpush1.bf16.msra.mxu0 0
      %1168 = vmatprep.subr.bf16.mxu0 0
      %1169 = vmatpush1.bf16.msra.mxu0 0
      %1170 = vmatprep.subr.bf16.mxu0 0
      %1171 = vmatpush1.bf16.msra.mxu0 0
      %1172 = vmatprep.subr.bf16.mxu0 0
      %1173 = vmatpush1.bf16.msra.mxu0 0
      %1174 = vmatprep.subr.bf16.mxu0 0
      %1175 = vmatpush1.bf16.msra.mxu0 0
      %1176 = vmatprep.mubr.bf16.mxu0 0
      %1177 = vmatmul.mubr.bf16.gmra.mrb[0].mxu0 %v830
      %v1178 = vpop.f32.mrb[0].mxu0
      %v1179 = vadd.f32 %v784, %v1178
      %v1180 = vpop.f32.mrb[0].mxu0
      %v1181 = vpop.f32.mrb[0].mxu0
      %v1182 = vpop.f32.mrb[0].mxu0
      %1183 = vdwg.mxu0
      %v1188 = vunpack.c.l.b16 %v713
      %v1189 = vunpack.c.l.b16 %v714
      %v1190 = vunpack.c.l.b16 %v715
      %v1191 = vunpack.c.l.b16 %v716
      %v1192 = vpack.c.b16 %v1189, %v1188
      %v1193 = vpack.c.b16 %v1191, %v1190
      %1196 = vmatprep.subr.bf16.mxu0 0
      %1197 = vmatpush1.bf16.msra.mxu0 %v1192
      %1198 = vmatprep.subr.bf16.mxu0 0
      %1199 = vmatpush1.bf16.msra.mxu0 %v1193
      %1200 = vmatprep.subr.bf16.mxu0 0
      %1201 = vmatpush1.bf16.msra.mxu0 0
      %1202 = vmatprep.subr.bf16.mxu0 0
      %1203 = vmatpush1.bf16.msra.mxu0 0
      %1204 = vmatprep.subr.bf16.mxu0 0
      %1205 = vmatpush1.bf16.msra.mxu0 0
      %1206 = vmatprep.subr.bf16.mxu0 0
      %1207 = vmatpush1.bf16.msra.mxu0 0
      %1208 = vmatprep.subr.bf16.mxu0 0
      %1209 = vmatpush1.bf16.msra.mxu0 0
      %1210 = vmatprep.subr.bf16.mxu0 0
      %1211 = vmatpush1.bf16.msra.mxu0 0
      %1212 = vmatprep.subr.bf16.mxu0 0
      %1213 = vmatpush1.bf16.msra.mxu0 0
      %1214 = vmatprep.subr.bf16.mxu0 0
      %1215 = vmatpush1.bf16.msra.mxu0 0
      %1216 = vmatprep.subr.bf16.mxu0 0
      %1217 = vmatpush1.bf16.msra.mxu0 0
      %1218 = vmatprep.subr.bf16.mxu0 0
      %1219 = vmatpush1.bf16.msra.mxu0 0
      %1220 = vmatprep.subr.bf16.mxu0 0
      %1221 = vmatpush1.bf16.msra.mxu0 0
      %1222 = vmatprep.subr.bf16.mxu0 0
      %1223 = vmatpush1.bf16.msra.mxu0 0
      %1224 = vmatprep.subr.bf16.mxu0 0
      %1225 = vmatpush1.bf16.msra.mxu0 0
      %1226 = vmatprep.subr.bf16.mxu0 0
      %1227 = vmatpush1.bf16.msra.mxu0 0
      %1228 = vmatprep.mubr.bf16.mxu0 0
      %1229 = vmatmul.mubr.bf16.gmra.mrb[0].mxu0 %v830
      %v1230 = vpop.f32.mrb[0].mxu0
      %v1231 = vadd.f32 %v788, %v1230
      %v1232 = vpop.f32.mrb[0].mxu0
      %v1233 = vpop.f32.mrb[0].mxu0
      %v1234 = vpop.f32.mrb[0].mxu0
      %1235 = vdwg.mxu0
      %v1240 = vunpack.c.l.b16 %v717
      %v1241 = vunpack.c.l.b16 %v718
      %v1242 = vunpack.c.l.b16 %v719
      %v1243 = vunpack.c.l.b16 %v720
      %v1244 = vpack.c.b16 %v1241, %v1240
      %v1245 = vpack.c.b16 %v1243, %v1242
      %1248 = vmatprep.subr.bf16.mxu0 0
      %1249 = vmatpush1.bf16.msra.mxu0 %v1244
      %1250 = vmatprep.subr.bf16.mxu0 0
      %1251 = vmatpush1.bf16.msra.mxu0 %v1245
      %1252 = vmatprep.subr.bf16.mxu0 0
      %1253 = vmatpush1.bf16.msra.mxu0 0
      %1254 = vmatprep.subr.bf16.mxu0 0
      %1255 = vmatpush1.bf16.msra.mxu0 0
      %1256 = vmatprep.subr.bf16.mxu0 0
      %1257 = vmatpush1.bf16.msra.mxu0 0
      %1258 = vmatprep.subr.bf16.mxu0 0
      %1259 = vmatpush1.bf16.msra.mxu0 0
      %1260 = vmatprep.subr.bf16.mxu0 0
      %1261 = vmatpush1.bf16.msra.mxu0 0
      %1262 = vmatprep.subr.bf16.mxu0 0
      %1263 = vmatpush1.bf16.msra.mxu0 0
      %1264 = vmatprep.subr.bf16.mxu0 0
      %1265 = vmatpush1.bf16.msra.mxu0 0
      %1266 = vmatprep.subr.bf16.mxu0 0
      %1267 = vmatpush1.bf16.msra.mxu0 0
      %1268 = vmatprep.subr.bf16.mxu0 0
      %1269 = vmatpush1.bf16.msra.mxu0 0
      %1270 = vmatprep.subr.bf16.mxu0 0
      %1271 = vmatpush1.bf16.msra.mxu0 0
      %1272 = vmatprep.subr.bf16.mxu0 0
      %1273 = vmatpush1.bf16.msra.mxu0 0
      %1274 = vmatprep.subr.bf16.mxu0 0
      %1275 = vmatpush1.bf16.msra.mxu0 0
      %1276 = vmatprep.subr.bf16.mxu0 0
      %1277 = vmatpush1.bf16.msra.mxu0 0
      %1278 = vmatprep.subr.bf16.mxu0 0
      %1279 = vmatpush1.bf16.msra.mxu0 0
      %1280 = vmatprep.mubr.bf16.mxu0 0
      %1281 = vmatmul.mubr.bf16.gmra.mrb[0].mxu0 %v830
      %v1282 = vpop.f32.mrb[0].mxu0
      %v1283 = vadd.f32 %v792, %v1282
      %v1284 = vpop.f32.mrb[0].mxu0
      %v1285 = vpop.f32.mrb[0].mxu0
      %v1286 = vpop.f32.mrb[0].mxu0
      %1287 = vdwg.mxu0
      %v1292 = vunpack.c.l.b16 %v721
      %v1293 = vunpack.c.l.b16 %v722
      %v1294 = vunpack.c.l.b16 %v723
      %v1295 = vunpack.c.l.b16 %v724
      %v1296 = vpack.c.b16 %v1293, %v1292
      %v1297 = vpack.c.b16 %v1295, %v1294
      %1300 = vmatprep.subr.bf16.mxu0 0
      %1301 = vmatpush1.bf16.msra.mxu0 %v1296
      %1302 = vmatprep.subr.bf16.mxu0 0
      %1303 = vmatpush1.bf16.msra.mxu0 %v1297
      %1304 = vmatprep.subr.bf16.mxu0 0
      %1305 = vmatpush1.bf16.msra.mxu0 0
      %1306 = vmatprep.subr.bf16.mxu0 0
      %1307 = vmatpush1.bf16.msra.mxu0 0
      %1308 = vmatprep.subr.bf16.mxu0 0
      %1309 = vmatpush1.bf16.msra.mxu0 0
      %1310 = vmatprep.subr.bf16.mxu0 0
      %1311 = vmatpush1.bf16.msra.mxu0 0
      %1312 = vmatprep.subr.bf16.mxu0 0
      %1313 = vmatpush1.bf16.msra.mxu0 0
      %1314 = vmatprep.subr.bf16.mxu0 0
      %1315 = vmatpush1.bf16.msra.mxu0 0
      %1316 = vmatprep.subr.bf16.mxu0 0
      %1317 = vmatpush1.bf16.msra.mxu0 0
      %1318 = vmatprep.subr.bf16.mxu0 0
      %1319 = vmatpush1.bf16.msra.mxu0 0
      %1320 = vmatprep.subr.bf16.mxu0 0
      %1321 = vmatpush1.bf16.msra.mxu0 0
      %1322 = vmatprep.subr.bf16.mxu0 0
      %1323 = vmatpush1.bf16.msra.mxu0 0
      %1324 = vmatprep.subr.bf16.mxu0 0
      %1325 = vmatpush1.bf16.msra.mxu0 0
      %1326 = vmatprep.subr.bf16.mxu0 0
      %1327 = vmatpush1.bf16.msra.mxu0 0
      %1328 = vmatprep.subr.bf16.mxu0 0
      %1329 = vmatpush1.bf16.msra.mxu0 0
      %1330 = vmatprep.subr.bf16.mxu0 0
      %1331 = vmatpush1.bf16.msra.mxu0 0
      %1332 = vmatprep.mubr.bf16.mxu0 0
      %1333 = vmatmul.mubr.bf16.gmra.mrb[0].mxu0 %v830
      %v1334 = vpop.f32.mrb[0].mxu0
      %v1335 = vadd.f32 %v796, %v1334
      %v1336 = vpop.f32.mrb[0].mxu0
      %v1337 = vpop.f32.mrb[0].mxu0
      %v1338 = vpop.f32.mrb[0].mxu0
      %1339 = vdwg.mxu0
      %v1344 = vunpack.c.l.b16 %v725
      %v1345 = vunpack.c.l.b16 %v726
      %v1346 = vunpack.c.l.b16 %v727
      %v1347 = vunpack.c.l.b16 %v728
      %v1348 = vpack.c.b16 %v1345, %v1344
      %v1349 = vpack.c.b16 %v1347, %v1346
      %1352 = vmatprep.subr.bf16.mxu0 0
      %1353 = vmatpush1.bf16.msra.mxu0 %v1348
      %1354 = vmatprep.subr.bf16.mxu0 0
      %1355 = vmatpush1.bf16.msra.mxu0 %v1349
      %1356 = vmatprep.subr.bf16.mxu0 0
      %1357 = vmatpush1.bf16.msra.mxu0 0
      %1358 = vmatprep.subr.bf16.mxu0 0
      %1359 = vmatpush1.bf16.msra.mxu0 0
      %1360 = vmatprep.subr.bf16.mxu0 0
      %1361 = vmatpush1.bf16.msra.mxu0 0
      %1362 = vmatprep.subr.bf16.mxu0 0
      %1363 = vmatpush1.bf16.msra.mxu0 0
      %1364 = vmatprep.subr.bf16.mxu0 0
      %1365 = vmatpush1.bf16.msra.mxu0 0
      %1366 = vmatprep.subr.bf16.mxu0 0
      %1367 = vmatpush1.bf16.msra.mxu0 0
      %1368 = vmatprep.subr.bf16.mxu0 0
      %1369 = vmatpush1.bf16.msra.mxu0 0
      %1370 = vmatprep.subr.bf16.mxu0 0
      %1371 = vmatpush1.bf16.msra.mxu0 0
      %1372 = vmatprep.subr.bf16.mxu0 0
      %1373 = vmatpush1.bf16.msra.mxu0 0
      %1374 = vmatprep.subr.bf16.mxu0 0
      %1375 = vmatpush1.bf16.msra.mxu0 0
      %1376 = vmatprep.subr.bf16.mxu0 0
      %1377 = vmatpush1.bf16.msra.mxu0 0
      %1378 = vmatprep.subr.bf16.mxu0 0
      %1379 = vmatpush1.bf16.msra.mxu0 0
      %1380 = vmatprep.subr.bf16.mxu0 0
      %1381 = vmatpush1.bf16.msra.mxu0 0
      %1382 = vmatprep.subr.bf16.mxu0 0
      %1383 = vmatpush1.bf16.msra.mxu0 0
      %1384 = vmatprep.mubr.bf16.mxu0 0
      %1385 = vmatmul.mubr.bf16.gmra.mrb[0].mxu0 %v830
      %v1386 = vpop.f32.mrb[0].mxu0
      %v1387 = vadd.f32 %v800, %v1386
      %v1388 = vpop.f32.mrb[0].mxu0
      %v1389 = vpop.f32.mrb[0].mxu0
      %v1390 = vpop.f32.mrb[0].mxu0
      %1391 = vdwg.mxu0
      %v1396 = vunpack.c.l.b16 %v729
      %v1397 = vunpack.c.l.b16 %v730
      %v1398 = vunpack.c.l.b16 %v731
      %v1399 = vunpack.c.l.b16 %v732
      %v1400 = vpack.c.b16 %v1397, %v1396
      %v1401 = vpack.c.b16 %v1399, %v1398
      %1404 = vmatprep.subr.bf16.mxu0 0
      %1405 = vmatpush1.bf16.msra.mxu0 %v1400
      %1406 = vmatprep.subr.bf16.mxu0 0
      %1407 = vmatpush1.bf16.msra.mxu0 %v1401
      %1408 = vmatprep.subr.bf16.mxu0 0
      %1409 = vmatpush1.bf16.msra.mxu0 0
      %1410 = vmatprep.subr.bf16.mxu0 0
      %1411 = vmatpush1.bf16.msra.mxu0 0
      %1412 = vmatprep.subr.bf16.mxu0 0
      %1413 = vmatpush1.bf16.msra.mxu0 0
      %1414 = vmatprep.subr.bf16.mxu0 0
      %1415 = vmatpush1.bf16.msra.mxu0 0
      %1416 = vmatprep.subr.bf16.mxu0 0
      %1417 = vmatpush1.bf16.msra.mxu0 0
      %1418 = vmatprep.subr.bf16.mxu0 0
      %1419 = vmatpush1.bf16.msra.mxu0 0
      %1420 = vmatprep.subr.bf16.mxu0 0
      %1421 = vmatpush1.bf16.msra.mxu0 0
      %1422 = vmatprep.subr.bf16.mxu0 0
      %1423 = vmatpush1.bf16.msra.mxu0 0
      %1424 = vmatprep.subr.bf16.mxu0 0
      %1425 = vmatpush1.bf16.msra.mxu0 0
      %1426 = vmatprep.subr.bf16.mxu0 0
      %1427 = vmatpush1.bf16.msra.mxu0 0
      %1428 = vmatprep.subr.bf16.mxu0 0
      %1429 = vmatpush1.bf16.msra.mxu0 0
      %1430 = vmatprep.subr.bf16.mxu0 0
      %1431 = vmatpush1.bf16.msra.mxu0 0
      %1432 = vmatprep.subr.bf16.mxu0 0
      %1433 = vmatpush1.bf16.msra.mxu0 0
      %1434 = vmatprep.subr.bf16.mxu0 0
      %1435 = vmatpush1.bf16.msra.mxu0 0
      %1436 = vmatprep.mubr.bf16.mxu0 0
      %1437 = vmatmul.mubr.bf16.gmra.mrb[0].mxu0 %v830
      %v1438 = vpop.f32.mrb[0].mxu0
      %v1439 = vadd.f32 %v804, %v1438
      %v1440 = vpop.f32.mrb[0].mxu0
      %v1441 = vpop.f32.mrb[0].mxu0
      %v1442 = vpop.f32.mrb[0].mxu0
      %1443 = vdwg.mxu0
      %v1444 = vpack.c.bf16 %v867, %v867
      %v1445 = vpack.c.bf16 %v919, %v919
      %v1446 = vpack.c.bf16 %v971, %v971
      %v1447 = vpack.c.bf16 %v1023, %v1023
      %v1448 = vpack.c.bf16 %v1075, %v1075
      %v1449 = vpack.c.bf16 %v1127, %v1127
      %v1450 = vpack.c.bf16 %v1179, %v1179
      %v1451 = vpack.c.bf16 %v1231, %v1231
      %v1452 = vpack.c.bf16 %v1283, %v1283
      %v1453 = vpack.c.bf16 %v1335, %v1335
      %v1454 = vpack.c.bf16 %v1387, %v1387
      %v1455 = vpack.c.bf16 %v1439, %v1439
      %v1456 = vlaneseq
      %v1457 = vshrl.u32 %v1456, 7
      %v1458 = vlaneseq
      %v1459 = vand.u32 %v1458, 127
      %vm1460 = vcmp.gt.s32.totalorder %v1459, %v1457
      %v1461 = vsel %vm1460, -1e+09, 0.0
      %vm1462 = vcmask 64512
      %v1464 = vsel %vm1462, %v1444, 0
      %v1467 = vsel %vm1462, %v1448, 0
      %1469 = vmatprep.subr.bf16.mxu0 0
      %1470 = vmatpush1.bf16.xpose.msra.mxu0 %v1467
      %1471 = vmatprep.subr.bf16.mxu0 0
      %1472 = vmatpush1.bf16.xpose.msra.mxu0 0
      %1473 = vmatprep.subr.bf16.mxu0 0
      %1474 = vmatpush1.bf16.xpose.msra.mxu0 0
      %1475 = vmatprep.subr.bf16.mxu0 0
      %1476 = vmatpush1.bf16.xpose.msra.mxu0 0
      %1477 = vmatprep.subr.bf16.mxu0 0
      %1478 = vmatpush1.bf16.xpose.msra.mxu0 0
      %1479 = vmatprep.subr.bf16.mxu0 0
      %1480 = vmatpush1.bf16.xpose.msra.mxu0 0
      %1481 = vmatprep.subr.bf16.mxu0 0
      %1482 = vmatpush1.bf16.xpose.msra.mxu0 0
      %1483 = vmatprep.subr.bf16.mxu0 0
      %1484 = vmatpush1.bf16.xpose.msra.mxu0 0
      %1485 = vmatprep.subr.bf16.mxu0 0
      %1486 = vmatpush1.bf16.xpose.msra.mxu0 0
      %1487 = vmatprep.subr.bf16.mxu0 0
      %1488 = vmatpush1.bf16.xpose.msra.mxu0 0
      %1489 = vmatprep.subr.bf16.mxu0 0
      %1490 = vmatpush1.bf16.xpose.msra.mxu0 0
      %1491 = vmatprep.subr.bf16.mxu0 0
      %1492 = vmatpush1.bf16.xpose.msra.mxu0 0
      %1493 = vmatprep.subr.bf16.mxu0 0
      %1494 = vmatpush1.bf16.xpose.msra.mxu0 0
      %1495 = vmatprep.subr.bf16.mxu0 0
      %1496 = vmatpush1.bf16.xpose.msra.mxu0 0
      %1497 = vmatprep.subr.bf16.mxu0 0
      %1498 = vmatpush1.bf16.xpose.msra.mxu0 0
      %1499 = vmatprep.subr.bf16.mxu0 0
      %1500 = vmatpush1.bf16.xpose.msra.mxu0 0
      %1501 = vmatprep.mubr.bf16.mxu0 0
      %1502 = vmatmul.mubr.bf16.gmra.mrb[0].mxu0 %v1464
      %v1503 = vpop.f32.mrb[0].mxu0
      %v1504 = vadd.f32 %v1461, %v1503
      %v1505 = vpop.f32.mrb[0].mxu0
      %v1506 = vpop.f32.mrb[0].mxu0
      %v1507 = vpop.f32.mrb[0].mxu0
      %1508 = vdwg.mxu0
      %v1510 = vsel %vm1462, %v1445, 0
      %v1513 = vsel %vm1462, %v1449, 0
      %1515 = vmatprep.subr.bf16.mxu0 0
      %1516 = vmatpush1.bf16.xpose.msra.mxu0 %v1513
      %1517 = vmatprep.subr.bf16.mxu0 0
      %1518 = vmatpush1.bf16.xpose.msra.mxu0 0
      %1519 = vmatprep.subr.bf16.mxu0 0
      %1520 = vmatpush1.bf16.xpose.msra.mxu0 0
      %1521 = vmatprep.subr.bf16.mxu0 0
      %1522 = vmatpush1.bf16.xpose.msra.mxu0 0
      %1523 = vmatprep.subr.bf16.mxu0 0
      %1524 = vmatpush1.bf16.xpose.msra.mxu0 0
      %1525 = vmatprep.subr.bf16.mxu0 0
      %1526 = vmatpush1.bf16.xpose.msra.mxu0 0
      %1527 = vmatprep.subr.bf16.mxu0 0
      %1528 = vmatpush1.bf16.xpose.msra.mxu0 0
      %1529 = vmatprep.subr.bf16.mxu0 0
      %1530 = vmatpush1.bf16.xpose.msra.mxu0 0
      %1531 = vmatprep.subr.bf16.mxu0 0
      %1532 = vmatpush1.bf16.xpose.msra.mxu0 0
      %1533 = vmatprep.subr.bf16.mxu0 0
      %1534 = vmatpush1.bf16.xpose.msra.mxu0 0
      %1535 = vmatprep.subr.bf16.mxu0 0
      %1536 = vmatpush1.bf16.xpose.msra.mxu0 0
      %1537 = vmatprep.subr.bf16.mxu0 0
      %1538 = vmatpush1.bf16.xpose.msra.mxu0 0
      %1539 = vmatprep.subr.bf16.mxu0 0
      %1540 = vmatpush1.bf16.xpose.msra.mxu0 0
      %1541 = vmatprep.subr.bf16.mxu0 0
      %1542 = vmatpush1.bf16.xpose.msra.mxu0 0
      %1543 = vmatprep.subr.bf16.mxu0 0
      %1544 = vmatpush1.bf16.xpose.msra.mxu0 0
      %1545 = vmatprep.subr.bf16.mxu0 0
      %1546 = vmatpush1.bf16.xpose.msra.mxu0 0
      %1547 = vmatprep.mubr.bf16.mxu0 0
      %1548 = vmatmul.mubr.bf16.gmra.mrb[0].mxu0 %v1510
      %v1549 = vpop.f32.mrb[0].mxu0
      %v1550 = vadd.f32 %v1461, %v1549
      %v1551 = vpop.f32.mrb[0].mxu0
      %v1552 = vpop.f32.mrb[0].mxu0
      %v1553 = vpop.f32.mrb[0].mxu0
      %1554 = vdwg.mxu0
      %v1556 = vsel %vm1462, %v1446, 0
      %v1559 = vsel %vm1462, %v1450, 0
      %1561 = vmatprep.subr.bf16.mxu0 0
      %1562 = vmatpush1.bf16.xpose.msra.mxu0 %v1559
      %1563 = vmatprep.subr.bf16.mxu0 0
      %1564 = vmatpush1.bf16.xpose.msra.mxu0 0
      %1565 = vmatprep.subr.bf16.mxu0 0
      %1566 = vmatpush1.bf16.xpose.msra.mxu0 0
      %1567 = vmatprep.subr.bf16.mxu0 0
      %1568 = vmatpush1.bf16.xpose.msra.mxu0 0
      %1569 = vmatprep.subr.bf16.mxu0 0
      %1570 = vmatpush1.bf16.xpose.msra.mxu0 0
      %1571 = vmatprep.subr.bf16.mxu0 0
      %1572 = vmatpush1.bf16.xpose.msra.mxu0 0
      %1573 = vmatprep.subr.bf16.mxu0 0
      %1574 = vmatpush1.bf16.xpose.msra.mxu0 0
      %1575 = vmatprep.subr.bf16.mxu0 0
      %1576 = vmatpush1.bf16.xpose.msra.mxu0 0
      %1577 = vmatprep.subr.bf16.mxu0 0
      %1578 = vmatpush1.bf16.xpose.msra.mxu0 0
      %1579 = vmatprep.subr.bf16.mxu0 0
      %1580 = vmatpush1.bf16.xpose.msra.mxu0 0
      %1581 = vmatprep.subr.bf16.mxu0 0
      %1582 = vmatpush1.bf16.xpose.msra.mxu0 0
      %1583 = vmatprep.subr.bf16.mxu0 0
      %1584 = vmatpush1.bf16.xpose.msra.mxu0 0
      %1585 = vmatprep.subr.bf16.mxu0 0
      %1586 = vmatpush1.bf16.xpose.msra.mxu0 0
      %1587 = vmatprep.subr.bf16.mxu0 0
      %1588 = vmatpush1.bf16.xpose.msra.mxu0 0
      %1589 = vmatprep.subr.bf16.mxu0 0
      %1590 = vmatpush1.bf16.xpose.msra.mxu0 0
      %1591 = vmatprep.subr.bf16.mxu0 0
      %1592 = vmatpush1.bf16.xpose.msra.mxu0 0
      %1593 = vmatprep.mubr.bf16.mxu0 0
      %1594 = vmatmul.mubr.bf16.gmra.mrb[0].mxu0 %v1556
      %v1595 = vpop.f32.mrb[0].mxu0
      %v1596 = vadd.f32 %v1461, %v1595
      %v1597 = vpop.f32.mrb[0].mxu0
      %v1598 = vpop.f32.mrb[0].mxu0
      %v1599 = vpop.f32.mrb[0].mxu0
      %1600 = vdwg.mxu0
      %v1602 = vsel %vm1462, %v1447, 0
      %v1605 = vsel %vm1462, %v1451, 0
      %1607 = vmatprep.subr.bf16.mxu0 0
      %1608 = vmatpush1.bf16.xpose.msra.mxu0 %v1605
      %1609 = vmatprep.subr.bf16.mxu0 0
      %1610 = vmatpush1.bf16.xpose.msra.mxu0 0
      %1611 = vmatprep.subr.bf16.mxu0 0
      %1612 = vmatpush1.bf16.xpose.msra.mxu0 0
      %1613 = vmatprep.subr.bf16.mxu0 0
      %1614 = vmatpush1.bf16.xpose.msra.mxu0 0
      %1615 = vmatprep.subr.bf16.mxu0 0
      %1616 = vmatpush1.bf16.xpose.msra.mxu0 0
      %1617 = vmatprep.subr.bf16.mxu0 0
      %1618 = vmatpush1.bf16.xpose.msra.mxu0 0
      %1619 = vmatprep.subr.bf16.mxu0 0
      %1620 = vmatpush1.bf16.xpose.msra.mxu0 0
      %1621 = vmatprep.subr.bf16.mxu0 0
      %1622 = vmatpush1.bf16.xpose.msra.mxu0 0
      %1623 = vmatprep.subr.bf16.mxu0 0
      %1624 = vmatpush1.bf16.xpose.msra.mxu0 0
      %1625 = vmatprep.subr.bf16.mxu0 0
      %1626 = vmatpush1.bf16.xpose.msra.mxu0 0
      %1627 = vmatprep.subr.bf16.mxu0 0
      %1628 = vmatpush1.bf16.xpose.msra.mxu0 0
      %1629 = vmatprep.subr.bf16.mxu0 0
      %1630 = vmatpush1.bf16.xpose.msra.mxu0 0
      %1631 = vmatprep.subr.bf16.mxu0 0
      %1632 = vmatpush1.bf16.xpose.msra.mxu0 0
      %1633 = vmatprep.subr.bf16.mxu0 0
      %1634 = vmatpush1.bf16.xpose.msra.mxu0 0
      %1635 = vmatprep.subr.bf16.mxu0 0
      %1636 = vmatpush1.bf16.xpose.msra.mxu0 0
      %1637 = vmatprep.subr.bf16.mxu0 0
      %1638 = vmatpush1.bf16.xpose.msra.mxu0 0
      %1639 = vmatprep.mubr.bf16.mxu0 0
      %1640 = vmatmul.mubr.bf16.gmra.mrb[0].mxu0 %v1602
      %v1641 = vpop.f32.mrb[0].mxu0
      %v1642 = vadd.f32 %v1461, %v1641
      %v1643 = vpop.f32.mrb[0].mxu0
      %v1644 = vpop.f32.mrb[0].mxu0
      %v1645 = vpop.f32.mrb[0].mxu0
      %1646 = vdwg.mxu0
      %v1647 = vsel %vm1462, %v1504, -inf
      %1648 = vmax.xlane.f32.xlu0 %v1647
      %v1649 = vpop.xlane.xlu0 %1648
      %v1650 = vsel %vm1462, %v1550, -inf
      %1651 = vmax.xlane.f32.xlu0 %v1650
      %v1652 = vpop.xlane.xlu0 %1651
      %v1653 = vsel %vm1462, %v1596, -inf
      %1654 = vmax.xlane.f32.xlu0 %v1653
      %v1655 = vpop.xlane.xlu0 %1654
      %v1656 = vsel %vm1462, %v1642, -inf
      %1657 = vmax.xlane.f32.xlu0 %v1656
      %v1658 = vpop.xlane.xlu0 %1657
      %v1659 = vsub.f32 %v1504, %v1649
      %v1660 = vsub.f32 %v1550, %v1652
      %v1661 = vsub.f32 %v1596, %v1655
      %v1662 = vsub.f32 %v1642, %v1658
      %v1663 = vmul.f32 %v1659, 1.442695
      %v1664 = vpow.pop %v1663
      %v1665 = vmul.f32 %v1660, 1.442695
      %v1666 = vpow.pop %v1665
      %v1667 = vmul.f32 %v1661, 1.442695
      %v1668 = vpow.pop %v1667
      %v1669 = vmul.f32 %v1662, 1.442695
      %v1670 = vpow.pop %v1669
      %v1671 = vsel %vm1462, %v1664, 0.0
      %1672 = vadd.xlane.f32.xlu0 %v1671
      %v1673 = vpop.xlane.xlu0 %1672
      %v1674 = vsel %vm1462, %v1666, 0.0
      %1675 = vadd.xlane.f32.xlu0 %v1674
      %v1676 = vpop.xlane.xlu0 %1675
      %v1677 = vsel %vm1462, %v1668, 0.0
      %1678 = vadd.xlane.f32.xlu0 %v1677
      %v1679 = vpop.xlane.xlu0 %1678
      %v1680 = vsel %vm1462, %v1670, 0.0
      %1681 = vadd.xlane.f32.xlu0 %v1680
      %v1682 = vpop.xlane.xlu0 %1681
      %v1683 = vrcp.pop %v1673
      %v1684 = vrcp.pop %v1676
      %v1685 = vrcp.pop %v1679
      %v1686 = vrcp.pop %v1682
      %v1687 = vmul.f32 %v1664, %v1683
      %v1688 = vmul.f32 %v1666, %v1684
      %v1689 = vmul.f32 %v1668, %v1685
      %v1690 = vmul.f32 %v1670, %v1686
      %v1691 = vpack.c.bf16 %v1687, %v1687
      %v1692 = vpack.c.bf16 %v1688, %v1688
      %v1693 = vpack.c.bf16 %v1689, %v1689
      %v1694 = vpack.c.bf16 %v1690, %v1690
      %v1696 = vsel %vm1462, %v1691, 0
      %vm1698 = vcmask 1043456
      %v1700 = vsel %vm1698, %v1452, 0
      %1702 = vmatprep.subr.bf16.mxu0 0
      %1703 = vmatpush1.bf16.msra.mxu0 %v1700
      %1704 = vmatprep.subr.bf16.mxu0 0
      %1705 = vmatpush1.bf16.msra.mxu0 0
      %1706 = vmatprep.subr.bf16.mxu0 0
      %1707 = vmatpush1.bf16.msra.mxu0 0
      %1708 = vmatprep.subr.bf16.mxu0 0
      %1709 = vmatpush1.bf16.msra.mxu0 0
      %1710 = vmatprep.subr.bf16.mxu0 0
      %1711 = vmatpush1.bf16.msra.mxu0 0
      %1712 = vmatprep.subr.bf16.mxu0 0
      %1713 = vmatpush1.bf16.msra.mxu0 0
      %1714 = vmatprep.subr.bf16.mxu0 0
      %1715 = vmatpush1.bf16.msra.mxu0 0
      %1716 = vmatprep.subr.bf16.mxu0 0
      %1717 = vmatpush1.bf16.msra.mxu0 0
      %1718 = vmatprep.subr.bf16.mxu0 0
      %1719 = vmatpush1.bf16.msra.mxu0 0
      %1720 = vmatprep.subr.bf16.mxu0 0
      %1721 = vmatpush1.bf16.msra.mxu0 0
      %1722 = vmatprep.subr.bf16.mxu0 0
      %1723 = vmatpush1.bf16.msra.mxu0 0
      %1724 = vmatprep.subr.bf16.mxu0 0
      %1725 = vmatpush1.bf16.msra.mxu0 0
      %1726 = vmatprep.subr.bf16.mxu0 0
      %1727 = vmatpush1.bf16.msra.mxu0 0
      %1728 = vmatprep.subr.bf16.mxu0 0
      %1729 = vmatpush1.bf16.msra.mxu0 0
      %1730 = vmatprep.subr.bf16.mxu0 0
      %1731 = vmatpush1.bf16.msra.mxu0 0
      %1732 = vmatprep.subr.bf16.mxu0 0
      %1733 = vmatpush1.bf16.msra.mxu0 0
      %1734 = vmatprep.mubr.bf16.mxu0 0
      %1735 = vmatmul.mubr.bf16.gmra.mrb[0].mxu0 %v1696
      %v1736 = vpop.f32.mrb[0].mxu0
      %v1737 = vadd.f32 0.0, %v1736
      %v1738 = vpop.f32.mrb[0].mxu0
      %v1739 = vpop.f32.mrb[0].mxu0
      %v1740 = vpop.f32.mrb[0].mxu0
      %1741 = vdwg.mxu0
      %v1743 = vsel %vm1462, %v1692, 0
      %v1746 = vsel %vm1698, %v1453, 0
      %1748 = vmatprep.subr.bf16.mxu0 0
      %1749 = vmatpush1.bf16.msra.mxu0 %v1746
      %1750 = vmatprep.subr.bf16.mxu0 0
      %1751 = vmatpush1.bf16.msra.mxu0 0
      %1752 = vmatprep.subr.bf16.mxu0 0
      %1753 = vmatpush1.bf16.msra.mxu0 0
      %1754 = vmatprep.subr.bf16.mxu0 0
      %1755 = vmatpush1.bf16.msra.mxu0 0
      %1756 = vmatprep.subr.bf16.mxu0 0
      %1757 = vmatpush1.bf16.msra.mxu0 0
      %1758 = vmatprep.subr.bf16.mxu0 0
      %1759 = vmatpush1.bf16.msra.mxu0 0
      %1760 = vmatprep.subr.bf16.mxu0 0
      %1761 = vmatpush1.bf16.msra.mxu0 0
      %1762 = vmatprep.subr.bf16.mxu0 0
      %1763 = vmatpush1.bf16.msra.mxu0 0
      %1764 = vmatprep.subr.bf16.mxu0 0
      %1765 = vmatpush1.bf16.msra.mxu0 0
      %1766 = vmatprep.subr.bf16.mxu0 0
      %1767 = vmatpush1.bf16.msra.mxu0 0
      %1768 = vmatprep.subr.bf16.mxu0 0
      %1769 = vmatpush1.bf16.msra.mxu0 0
      %1770 = vmatprep.subr.bf16.mxu0 0
      %1771 = vmatpush1.bf16.msra.mxu0 0
      %1772 = vmatprep.subr.bf16.mxu0 0
      %1773 = vmatpush1.bf16.msra.mxu0 0
      %1774 = vmatprep.subr.bf16.mxu0 0
      %1775 = vmatpush1.bf16.msra.mxu0 0
      %1776 = vmatprep.subr.bf16.mxu0 0
      %1777 = vmatpush1.bf16.msra.mxu0 0
      %1778 = vmatprep.subr.bf16.mxu0 0
      %1779 = vmatpush1.bf16.msra.mxu0 0
      %1780 = vmatprep.mubr.bf16.mxu0 0
      %1781 = vmatmul.mubr.bf16.gmra.mrb[0].mxu0 %v1743
      %v1782 = vpop.f32.mrb[0].mxu0
      %v1783 = vadd.f32 0.0, %v1782
      %v1784 = vpop.f32.mrb[0].mxu0
      %v1785 = vpop.f32.mrb[0].mxu0
      %v1786 = vpop.f32.mrb[0].mxu0
      %1787 = vdwg.mxu0
      %v1789 = vsel %vm1462, %v1693, 0
      %v1792 = vsel %vm1698, %v1454, 0
      %1794 = vmatprep.subr.bf16.mxu0 0
      %1795 = vmatpush1.bf16.msra.mxu0 %v1792
      %1796 = vmatprep.subr.bf16.mxu0 0
      %1797 = vmatpush1.bf16.msra.mxu0 0
      %1798 = vmatprep.subr.bf16.mxu0 0
      %1799 = vmatpush1.bf16.msra.mxu0 0
      %1800 = vmatprep.subr.bf16.mxu0 0
      %1801 = vmatpush1.bf16.msra.mxu0 0
      %1802 = vmatprep.subr.bf16.mxu0 0
      %1803 = vmatpush1.bf16.msra.mxu0 0
      %1804 = vmatprep.subr.bf16.mxu0 0
      %1805 = vmatpush1.bf16.msra.mxu0 0
      %1806 = vmatprep.subr.bf16.mxu0 0
      %1807 = vmatpush1.bf16.msra.mxu0 0
      %1808 = vmatprep.subr.bf16.mxu0 0
      %1809 = vmatpush1.bf16.msra.mxu0 0
      %1810 = vmatprep.subr.bf16.mxu0 0
      %1811 = vmatpush1.bf16.msra.mxu0 0
      %1812 = vmatprep.subr.bf16.mxu0 0
      %1813 = vmatpush1.bf16.msra.mxu0 0
      %1814 = vmatprep.subr.bf16.mxu0 0
      %1815 = vmatpush1.bf16.msra.mxu0 0
      %1816 = vmatprep.subr.bf16.mxu0 0
      %1817 = vmatpush1.bf16.msra.mxu0 0
      %1818 = vmatprep.subr.bf16.mxu0 0
      %1819 = vmatpush1.bf16.msra.mxu0 0
      %1820 = vmatprep.subr.bf16.mxu0 0
      %1821 = vmatpush1.bf16.msra.mxu0 0
      %1822 = vmatprep.subr.bf16.mxu0 0
      %1823 = vmatpush1.bf16.msra.mxu0 0
      %1824 = vmatprep.subr.bf16.mxu0 0
      %1825 = vmatpush1.bf16.msra.mxu0 0
      %1826 = vmatprep.mubr.bf16.mxu0 0
      %1827 = vmatmul.mubr.bf16.gmra.mrb[0].mxu0 %v1789
      %v1828 = vpop.f32.mrb[0].mxu0
      %v1829 = vadd.f32 0.0, %v1828
      %v1830 = vpop.f32.mrb[0].mxu0
      %v1831 = vpop.f32.mrb[0].mxu0
      %v1832 = vpop.f32.mrb[0].mxu0
      %1833 = vdwg.mxu0
      %v1835 = vsel %vm1462, %v1694, 0
      %v1838 = vsel %vm1698, %v1455, 0
      %1840 = vmatprep.subr.bf16.mxu0 0
      %1841 = vmatpush1.bf16.msra.mxu0 %v1838
      %1842 = vmatprep.subr.bf16.mxu0 0
      %1843 = vmatpush1.bf16.msra.mxu0 0
      %1844 = vmatprep.subr.bf16.mxu0 0
      %1845 = vmatpush1.bf16.msra.mxu0 0
      %1846 = vmatprep.subr.bf16.mxu0 0
      %1847 = vmatpush1.bf16.msra.mxu0 0
      %1848 = vmatprep.subr.bf16.mxu0 0
      %1849 = vmatpush1.bf16.msra.mxu0 0
      %1850 = vmatprep.subr.bf16.mxu0 0
      %1851 = vmatpush1.bf16.msra.mxu0 0
      %1852 = vmatprep.subr.bf16.mxu0 0
      %1853 = vmatpush1.bf16.msra.mxu0 0
      %1854 = vmatprep.subr.bf16.mxu0 0
      %1855 = vmatpush1.bf16.msra.mxu0 0
      %1856 = vmatprep.subr.bf16.mxu0 0
      %1857 = vmatpush1.bf16.msra.mxu0 0
      %1858 = vmatprep.subr.bf16.mxu0 0
      %1859 = vmatpush1.bf16.msra.mxu0 0
      %1860 = vmatprep.subr.bf16.mxu0 0
      %1861 = vmatpush1.bf16.msra.mxu0 0
      %1862 = vmatprep.subr.bf16.mxu0 0
      %1863 = vmatpush1.bf16.msra.mxu0 0
      %1864 = vmatprep.subr.bf16.mxu0 0
      %1865 = vmatpush1.bf16.msra.mxu0 0
      %1866 = vmatprep.subr.bf16.mxu0 0
      %1867 = vmatpush1.bf16.msra.mxu0 0
      %1868 = vmatprep.subr.bf16.mxu0 0
      %1869 = vmatpush1.bf16.msra.mxu0 0
      %1870 = vmatprep.subr.bf16.mxu0 0
      %1871 = vmatpush1.bf16.msra.mxu0 0
      %1872 = vmatprep.mubr.bf16.mxu0 0
      %1873 = vmatmul.mubr.bf16.gmra.mrb[0].mxu0 %v1835
      %v1874 = vpop.f32.mrb[0].mxu0
      %v1875 = vadd.f32 0.0, %v1874
      %v1876 = vpop.f32.mrb[0].mxu0
      %v1877 = vpop.f32.mrb[0].mxu0
      %v1878 = vpop.f32.mrb[0].mxu0
      %1879 = vdwg.mxu0
      %v1880 = vpack.c.bf16 %v1737, %v1737
      %v1881 = vpack.c.bf16 %v1783, %v1783
      %v1882 = vpack.c.bf16 %v1829, %v1829
      %v1883 = vpack.c.bf16 %v1875, %v1875
      %v1884 = vld [vmem:[%s613] sm:$0xf]
      %v1885 = vld [vmem:[%s613 + $0x4] sm:$0xf]
      %v1886 = vld [vmem:[%s613 + $0x8] sm:$0xf]
      %v1887 = vld [vmem:[%s613 + $0xc] sm:$0xf]
      %v1889 = vsel %vm1462, %v1880, 0
      %v1892 = vsel %vm1698, %v1884, 0
      %1894 = vmatprep.subr.bf16.mxu0 0
      %1895 = vmatpush1.bf16.msra.mxu0 %v1892
      %1896 = vmatprep.subr.bf16.mxu0 0
      %1897 = vmatpush1.bf16.msra.mxu0 0
      %1898 = vmatprep.subr.bf16.mxu0 0
      %1899 = vmatpush1.bf16.msra.mxu0 0
      %1900 = vmatprep.subr.bf16.mxu0 0
      %1901 = vmatpush1.bf16.msra.mxu0 0
      %1902 = vmatprep.subr.bf16.mxu0 0
      %1903 = vmatpush1.bf16.msra.mxu0 0
      %1904 = vmatprep.subr.bf16.mxu0 0
      %1905 = vmatpush1.bf16.msra.mxu0 0
      %1906 = vmatprep.subr.bf16.mxu0 0
      %1907 = vmatpush1.bf16.msra.mxu0 0
      %1908 = vmatprep.subr.bf16.mxu0 0
      %1909 = vmatpush1.bf16.msra.mxu0 0
      %1910 = vmatprep.subr.bf16.mxu0 0
      %1911 = vmatpush1.bf16.msra.mxu0 0
      %1912 = vmatprep.subr.bf16.mxu0 0
      %1913 = vmatpush1.bf16.msra.mxu0 0
      %1914 = vmatprep.subr.bf16.mxu0 0
      %1915 = vmatpush1.bf16.msra.mxu0 0
      %1916 = vmatprep.subr.bf16.mxu0 0
      %1917 = vmatpush1.bf16.msra.mxu0 0
      %1918 = vmatprep.subr.bf16.mxu0 0
      %1919 = vmatpush1.bf16.msra.mxu0 0
      %1920 = vmatprep.subr.bf16.mxu0 0
      %1921 = vmatpush1.bf16.msra.mxu0 0
      %1922 = vmatprep.subr.bf16.mxu0 0
      %1923 = vmatpush1.bf16.msra.mxu0 0
      %1924 = vmatprep.subr.bf16.mxu0 0
      %1925 = vmatpush1.bf16.msra.mxu0 0
      %1926 = vmatprep.mubr.bf16.mxu0 0
      %1927 = vmatmul.mubr.bf16.gmra.mrb[0].mxu0 %v1889
      %v1928 = vpop.f32.mrb[0].mxu0
      %v1929 = vadd.f32 0.0, %v1928
      %v1930 = vpop.f32.mrb[0].mxu0
      %v1931 = vpop.f32.mrb[0].mxu0
      %v1932 = vpop.f32.mrb[0].mxu0
      %1933 = vdwg.mxu0
      %v1935 = vsel %vm1462, %v1881, 0
      %v1938 = vsel %vm1698, %v1885, 0
      %1940 = vmatprep.subr.bf16.mxu0 0
      %1941 = vmatpush1.bf16.msra.mxu0 %v1938
      %1942 = vmatprep.subr.bf16.mxu0 0
      %1943 = vmatpush1.bf16.msra.mxu0 0
      %1944 = vmatprep.subr.bf16.mxu0 0
      %1945 = vmatpush1.bf16.msra.mxu0 0
      %1946 = vmatprep.subr.bf16.mxu0 0
      %1947 = vmatpush1.bf16.msra.mxu0 0
      %1948 = vmatprep.subr.bf16.mxu0 0
      %1949 = vmatpush1.bf16.msra.mxu0 0
      %1950 = vmatprep.subr.bf16.mxu0 0
      %1951 = vmatpush1.bf16.msra.mxu0 0
      %1952 = vmatprep.subr.bf16.mxu0 0
      %1953 = vmatpush1.bf16.msra.mxu0 0
      %1954 = vmatprep.subr.bf16.mxu0 0
      %1955 = vmatpush1.bf16.msra.mxu0 0
      %1956 = vmatprep.subr.bf16.mxu0 0
      %1957 = vmatpush1.bf16.msra.mxu0 0
      %1958 = vmatprep.subr.bf16.mxu0 0
      %1959 = vmatpush1.bf16.msra.mxu0 0
      %1960 = vmatprep.subr.bf16.mxu0 0
      %1961 = vmatpush1.bf16.msra.mxu0 0
      %1962 = vmatprep.subr.bf16.mxu0 0
      %1963 = vmatpush1.bf16.msra.mxu0 0
      %1964 = vmatprep.subr.bf16.mxu0 0
      %1965 = vmatpush1.bf16.msra.mxu0 0
      %1966 = vmatprep.subr.bf16.mxu0 0
      %1967 = vmatpush1.bf16.msra.mxu0 0
      %1968 = vmatprep.subr.bf16.mxu0 0
      %1969 = vmatpush1.bf16.msra.mxu0 0
      %1970 = vmatprep.subr.bf16.mxu0 0
      %1971 = vmatpush1.bf16.msra.mxu0 0
      %1972 = vmatprep.mubr.bf16.mxu0 0
      %1973 = vmatmul.mubr.bf16.gmra.mrb[0].mxu0 %v1935
      %v1974 = vpop.f32.mrb[0].mxu0
      %v1975 = vadd.f32 0.0, %v1974
      %v1976 = vpop.f32.mrb[0].mxu0
      %v1977 = vpop.f32.mrb[0].mxu0
      %v1978 = vpop.f32.mrb[0].mxu0
      %1979 = vdwg.mxu0
      %v1981 = vsel %vm1462, %v1882, 0
      %v1984 = vsel %vm1698, %v1886, 0
      %1986 = vmatprep.subr.bf16.mxu0 0
      %1987 = vmatpush1.bf16.msra.mxu0 %v1984
      %1988 = vmatprep.subr.bf16.mxu0 0
      %1989 = vmatpush1.bf16.msra.mxu0 0
      %1990 = vmatprep.subr.bf16.mxu0 0
      %1991 = vmatpush1.bf16.msra.mxu0 0
      %1992 = vmatprep.subr.bf16.mxu0 0
      %1993 = vmatpush1.bf16.msra.mxu0 0
      %1994 = vmatprep.subr.bf16.mxu0 0
      %1995 = vmatpush1.bf16.msra.mxu0 0
      %1996 = vmatprep.subr.bf16.mxu0 0
      %1997 = vmatpush1.bf16.msra.mxu0 0
      %1998 = vmatprep.subr.bf16.mxu0 0
      %1999 = vmatpush1.bf16.msra.mxu0 0
      %2000 = vmatprep.subr.bf16.mxu0 0
      %2001 = vmatpush1.bf16.msra.mxu0 0
      %2002 = vmatprep.subr.bf16.mxu0 0
      %2003 = vmatpush1.bf16.msra.mxu0 0
      %2004 = vmatprep.subr.bf16.mxu0 0
      %2005 = vmatpush1.bf16.msra.mxu0 0
      %2006 = vmatprep.subr.bf16.mxu0 0
      %2007 = vmatpush1.bf16.msra.mxu0 0
      %2008 = vmatprep.subr.bf16.mxu0 0
      %2009 = vmatpush1.bf16.msra.mxu0 0
      %2010 = vmatprep.subr.bf16.mxu0 0
      %2011 = vmatpush1.bf16.msra.mxu0 0
      %2012 = vmatprep.subr.bf16.mxu0 0
      %2013 = vmatpush1.bf16.msra.mxu0 0
      %2014 = vmatprep.subr.bf16.mxu0 0
      %2015 = vmatpush1.bf16.msra.mxu0 0
      %2016 = vmatprep.subr.bf16.mxu0 0
      %2017 = vmatpush1.bf16.msra.mxu0 0
      %2018 = vmatprep.mubr.bf16.mxu0 0
      %2019 = vmatmul.mubr.bf16.gmra.mrb[0].mxu0 %v1981
      %v2020 = vpop.f32.mrb[0].mxu0
      %v2021 = vadd.f32 0.0, %v2020
      %v2022 = vpop.f32.mrb[0].mxu0
      %v2023 = vpop.f32.mrb[0].mxu0
      %v2024 = vpop.f32.mrb[0].mxu0
      %2025 = vdwg.mxu0
      %v2027 = vsel %vm1462, %v1883, 0
      %v2030 = vsel %vm1698, %v1887, 0
      %2032 = vmatprep.subr.bf16.mxu0 0
      %2033 = vmatpush1.bf16.msra.mxu0 %v2030
      %2034 = vmatprep.subr.bf16.mxu0 0
      %2035 = vmatpush1.bf16.msra.mxu0 0
      %2036 = vmatprep.subr.bf16.mxu0 0
      %2037 = vmatpush1.bf16.msra.mxu0 0
      %2038 = vmatprep.subr.bf16.mxu0 0
      %2039 = vmatpush1.bf16.msra.mxu0 0
      %2040 = vmatprep.subr.bf16.mxu0 0
      %2041 = vmatpush1.bf16.msra.mxu0 0
      %2042 = vmatprep.subr.bf16.mxu0 0
      %2043 = vmatpush1.bf16.msra.mxu0 0
      %2044 = vmatprep.subr.bf16.mxu0 0
      %2045 = vmatpush1.bf16.msra.mxu0 0
      %2046 = vmatprep.subr.bf16.mxu0 0
      %2047 = vmatpush1.bf16.msra.mxu0 0
      %2048 = vmatprep.subr.bf16.mxu0 0
      %2049 = vmatpush1.bf16.msra.mxu0 0
      %2050 = vmatprep.subr.bf16.mxu0 0
      %2051 = vmatpush1.bf16.msra.mxu0 0
      %2052 = vmatprep.subr.bf16.mxu0 0
      %2053 = vmatpush1.bf16.msra.mxu0 0
      %2054 = vmatprep.subr.bf16.mxu0 0
      %2055 = vmatpush1.bf16.msra.mxu0 0
      %2056 = vmatprep.subr.bf16.mxu0 0
      %2057 = vmatpush1.bf16.msra.mxu0 0
      %2058 = vmatprep.subr.bf16.mxu0 0
      %2059 = vmatpush1.bf16.msra.mxu0 0
      %2060 = vmatprep.subr.bf16.mxu0 0
      %2061 = vmatpush1.bf16.msra.mxu0 0
      %2062 = vmatprep.subr.bf16.mxu0 0
      %2063 = vmatpush1.bf16.msra.mxu0 0
      %2064 = vmatprep.mubr.bf16.mxu0 0
      %2065 = vmatmul.mubr.bf16.gmra.mrb[0].mxu0 %v2027
      %v2066 = vpop.f32.mrb[0].mxu0
      %v2067 = vadd.f32 0.0, %v2066
      %v2068 = vpop.f32.mrb[0].mxu0
      %v2069 = vpop.f32.mrb[0].mxu0
      %v2070 = vpop.f32.mrb[0].mxu0
      %2071 = vdwg.mxu0
      %v2072 = vsel %vm655, %v1929, 0.0
      %v2073 = vsel %vm655, %v1975, 0.0
      %v2074 = vadd.f32 %v2072, %v2073
      %v2075 = vsel %vm655, %v2021, 0.0
      %v2076 = vadd.f32 %v2074, %v2075
      %v2077 = vsel %vm655, %v2067, 0.0
      %v2078 = vadd.f32 %v2076, %v2077
      %v2079 = vadd.f32 %v652, %v2078
      %v2080 = vld [vmem:[%s616] sm:$0x1]
      %v2082 = vlaneseq
      %v2083 = vshrl.u32 %v2082, 7
      %v2084 = vsub.s32 0, %v2083
      %v2085 = vrot.slane %v2080, %v2084
      %v2087 = vadd.f32 %v2079, %v2085
      %v2088 = vld [vmem:[%s619] sm:$0x1]
      %v2089 = vld [vmem:[%s622] sm:$0x1]
      %v2090 = vsel %vm655, %v2087, 0.0
      %2091 = vadd.xlane.f32.xlu0 %v2090
      %v2092 = vpop.xlane.xlu0 %2091
      %v2093 = vmul.f32 %v2092, %v659
      %v2094 = vsub.f32 %v2087, %v2093
      %v2095 = vmul.f32 %v2094, %v2094
      %v2096 = vsel %vm655, %v2095, 0.0
      %2097 = vadd.xlane.f32.xlu0 %v2096
      %v2098 = vpop.xlane.xlu0 %2097
      %v2099 = vmul.f32 %v2098, %v659
      %v2100 = vadd.f32 %v2099, 1e-05
      %v2101 = vrsqrt.pop %v2100
      %v2102 = vmul.f32 %v2094, %v2101
      %v2104 = vlaneseq
      %v2105 = vshrl.u32 %v2104, 7
      %v2106 = vsub.s32 0, %v2105
      %v2107 = vrot.slane %v2088, %v2106
      %v2109 = vmul.f32 %v2102, %v2107
      %v2111 = vlaneseq
      %v2112 = vshrl.u32 %v2111, 7
      %v2113 = vsub.s32 0, %v2112
      %v2114 = vrot.slane %v2089, %v2113
      %v2116 = vadd.f32 %v2109, %v2114
      %v2117 = vld [vmem:[%s627] sm:$0xf]
      %v2118 = vld [vmem:[%s627 + $0x4] sm:$0xf]
      %v2119 = vld [vmem:[%s627 + $0x8] sm:$0xf]
      %v2120 = vld [vmem:[%s627 + $0xc] sm:$0xf]
      %v2121 = vpack.c.bf16 %v2116, %v2116
      %v2122 = vld [vmem:[%s630] sm:$0x1]
      %v2124 = vlaneseq
      %v2125 = vshrl.u32 %v2124, 7
      %v2126 = vsub.s32 0, %v2125
      %v2127 = vrot.slane %v2122, %v2126
      %v2133 = vunpack.c.l.b16 %v2117
      %v2134 = vunpack.c.l.b16 %v2118
      %v2135 = vunpack.c.l.b16 %v2119
      %v2136 = vunpack.c.l.b16 %v2120
      %v2137 = vpack.c.b16 %v2134, %v2133
      %v2138 = vpack.c.b16 %v2136, %v2135
      %v2142 = vsel %vm655, %v2121, 0
      %2144 = vmatprep.subr.bf16.mxu0 0
      %2145 = vmatpush1.bf16.msra.mxu0 %v2137
      %2146 = vmatprep.subr.bf16.mxu0 0
      %2147 = vmatpush1.bf16.msra.mxu0 %v2138
      %2148 = vmatprep.subr.bf16.mxu0 0
      %2149 = vmatpush1.bf16.msra.mxu0 0
      %2150 = vmatprep.subr.bf16.mxu0 0
      %2151 = vmatpush1.bf16.msra.mxu0 0
      %2152 = vmatprep.subr.bf16.mxu0 0
      %2153 = vmatpush1.bf16.msra.mxu0 0
      %2154 = vmatprep.subr.bf16.mxu0 0
      %2155 = vmatpush1.bf16.msra.mxu0 0
      %2156 = vmatprep.subr.bf16.mxu0 0
      %2157 = vmatpush1.bf16.msra.mxu0 0
      %2158 = vmatprep.subr.bf16.mxu0 0
      %2159 = vmatpush1.bf16.msra.mxu0 0
      %2160 = vmatprep.subr.bf16.mxu0 0
      %2161 = vmatpush1.bf16.msra.mxu0 0
      %2162 = vmatprep.subr.bf16.mxu0 0
      %2163 = vmatpush1.bf16.msra.mxu0 0
      %2164 = vmatprep.subr.bf16.mxu0 0
      %2165 = vmatpush1.bf16.msra.mxu0 0
      %2166 = vmatprep.subr.bf16.mxu0 0
      %2167 = vmatpush1.bf16.msra.mxu0 0
      %2168 = vmatprep.subr.bf16.mxu0 0
      %2169 = vmatpush1.bf16.msra.mxu0 0
      %2170 = vmatprep.subr.bf16.mxu0 0
      %2171 = vmatpush1.bf16.msra.mxu0 0
      %2172 = vmatprep.subr.bf16.mxu0 0
      %2173 = vmatpush1.bf16.msra.mxu0 0
      %2174 = vmatprep.subr.bf16.mxu0 0
      %2175 = vmatpush1.bf16.msra.mxu0 0
      %2176 = vmatprep.mubr.bf16.mxu0 0
      %2177 = vmatmul.mubr.bf16.gmra.mrb[0].mxu0 %v2142
      %v2178 = vpop.f32.mrb[0].mxu0
      %v2179 = vadd.f32 %v2127, %v2178
      %v2180 = vpop.f32.mrb[0].mxu0
      %v2181 = vpop.f32.mrb[0].mxu0
      %v2182 = vpop.f32.mrb[0].mxu0
      %2183 = vdwg.mxu0
      %v2184 = vmul.f32 %v2179, 1.702
      %v2185 = vxor.u32 %v2184, 2147483648
      %v2186 = vmul.f32 %v2185, 1.442695
      %v2187 = vpow.pop %v2186
      %v2188 = vadd.f32 %v2187, 1.0
      %v2189 = vrcp.pop %v2188
      %v2190 = vmul.f32 1.0, %v2189
      %v2191 = vmul.f32 %v2179, %v2190
      %v2192 = vld [vmem:[%s635] sm:$0xf]
      %v2193 = vld [vmem:[%s635 + $0x4] sm:$0xf]
      %v2194 = vld [vmem:[%s635 + $0x8] sm:$0xf]
      %v2195 = vld [vmem:[%s635 + $0xc] sm:$0xf]
      %v2196 = vld [vmem:[%s635 + $0x10] sm:$0xf]
      %v2197 = vld [vmem:[%s635 + $0x14] sm:$0xf]
      %v2198 = vld [vmem:[%s635 + $0x18] sm:$0xf]
      %v2199 = vld [vmem:[%s635 + $0x1c] sm:$0xf]
      %v2200 = vld [vmem:[%s635 + $0x20] sm:$0xf]
      %v2201 = vld [vmem:[%s635 + $0x24] sm:$0xf]
      %v2202 = vld [vmem:[%s635 + $0x28] sm:$0xf]
      %v2203 = vld [vmem:[%s635 + $0x2c] sm:$0xf]
      %v2204 = vld [vmem:[%s635 + $0x30] sm:$0xf]
      %v2205 = vld [vmem:[%s635 + $0x34] sm:$0xf]
      %v2206 = vld [vmem:[%s635 + $0x38] sm:$0xf]
      %v2207 = vld [vmem:[%s635 + $0x3c] sm:$0xf]
      %v2208 = vpack.c.bf16 %v2191, %v2191
      %v2225 = vunpack.c.l.b16 %v2192
      %v2226 = vunpack.c.l.b16 %v2193
      %v2227 = vunpack.c.l.b16 %v2194
      %v2228 = vunpack.c.l.b16 %v2195
      %v2229 = vunpack.c.l.b16 %v2196
      %v2230 = vunpack.c.l.b16 %v2197
      %v2231 = vunpack.c.l.b16 %v2198
      %v2232 = vunpack.c.l.b16 %v2199
      %v2233 = vunpack.c.l.b16 %v2200
      %v2234 = vunpack.c.l.b16 %v2201
      %v2235 = vunpack.c.l.b16 %v2202
      %v2236 = vunpack.c.l.b16 %v2203
      %v2237 = vunpack.c.l.b16 %v2204
      %v2238 = vunpack.c.l.b16 %v2205
      %v2239 = vunpack.c.l.b16 %v2206
      %v2240 = vunpack.c.l.b16 %v2207
      %v2241 = vpack.c.b16 %v2226, %v2225
      %v2242 = vpack.c.b16 %v2228, %v2227
      %v2243 = vpack.c.b16 %v2230, %v2229
      %v2244 = vpack.c.b16 %v2232, %v2231
      %v2245 = vpack.c.b16 %v2234, %v2233
      %v2246 = vpack.c.b16 %v2236, %v2235
      %v2247 = vpack.c.b16 %v2238, %v2237
      %v2248 = vpack.c.b16 %v2240, %v2239
      %2257 = vmatprep.subr.bf16.mxu0 0
      %2258 = vmatpush1.bf16.msra.mxu0 %v2241
      %2259 = vmatprep.subr.bf16.mxu0 0
      %2260 = vmatpush1.bf16.msra.mxu0 %v2242
      %2261 = vmatprep.subr.bf16.mxu0 0
      %2262 = vmatpush1.bf16.msra.mxu0 %v2243
      %2263 = vmatprep.subr.bf16.mxu0 0
      %2264 = vmatpush1.bf16.msra.mxu0 %v2244
      %2265 = vmatprep.subr.bf16.mxu0 0
      %2266 = vmatpush1.bf16.msra.mxu0 %v2245
      %2267 = vmatprep.subr.bf16.mxu0 0
      %2268 = vmatpush1.bf16.msra.mxu0 %v2246
      %2269 = vmatprep.subr.bf16.mxu0 0
      %2270 = vmatpush1.bf16.msra.mxu0 %v2247
      %2271 = vmatprep.subr.bf16.mxu0 0
      %2272 = vmatpush1.bf16.msra.mxu0 %v2248
      %2273 = vmatprep.subr.bf16.mxu0 0
      %2274 = vmatpush1.bf16.msra.mxu0 0
      %2275 = vmatprep.subr.bf16.mxu0 0
      %2276 = vmatpush1.bf16.msra.mxu0 0
      %2277 = vmatprep.subr.bf16.mxu0 0
      %2278 = vmatpush1.bf16.msra.mxu0 0
      %2279 = vmatprep.subr.bf16.mxu0 0
      %2280 = vmatpush1.bf16.msra.mxu0 0
      %2281 = vmatprep.subr.bf16.mxu0 0
      %2282 = vmatpush1.bf16.msra.mxu0 0
      %2283 = vmatprep.subr.bf16.mxu0 0
      %2284 = vmatpush1.bf16.msra.mxu0 0
      %2285 = vmatprep.subr.bf16.mxu0 0
      %2286 = vmatpush1.bf16.msra.mxu0 0
      %2287 = vmatprep.subr.bf16.mxu0 0
      %2288 = vmatpush1.bf16.msra.mxu0 0
      %2289 = vmatprep.mubr.bf16.mxu0 0
      %2290 = vmatmul.mubr.bf16.gmra.mrb[0].mxu0 %v2208
      %v2291 = vpop.f32.mrb[0].mxu0
      %v2292 = vadd.f32 0.0, %v2291
      %v2293 = vpop.f32.mrb[0].mxu0
      %v2294 = vpop.f32.mrb[0].mxu0
      %v2295 = vpop.f32.mrb[0].mxu0
      %2296 = vdwg.mxu0
      %v2297 = vadd.f32 %v2087, %v2292
      %v2298 = vld [vmem:[%s638] sm:$0x1]
      %v2300 = vlaneseq
      %v2301 = vshrl.u32 %v2300, 7
      %v2302 = vsub.s32 0, %v2301
      %v2303 = vrot.slane %v2298, %v2302
      %v2305 = vadd.f32 %v2297, %v2303
      %2306 = vst.msk [vmem:[#allocation2] sm:$0xff] %vm655, %v2305
      %p2307 = scmp.eq.s32.totalorder %s29, 1
      // Predicated region
      $region77: #{_lambda_.6} parent=71 // pred_check
        %p2308 = pneg %p2307
      $region78: #{_lambda_.6} parent=71 // pred_check_branch
        %2310 = sbr.rel (%p2308) target = $region80
      $region79: #{_lambda_.6} parent=71 // pred_region
        %v2311 = vpack.c.bf16 %v2305, %v2305
        %vm2312 = vcmask 257024
        %2313 = vst.msk [vmem:[%s642] sm:$0xf] %vm2312, %v2311
      $region80: #{_lambda_.6} parent=71 // pred_fallthru
        _
      %p2314 = scmp.lt.s32.totalorder %s28, 1
      %s2315 = scalar_select %p2314, %s28, 1
      %s2316 = smul.addr %s2315, 4
      %s2317 = scalar_lea.vmem %s13, %s2316
      // Predicated region
      $region81: #{_lambda_.6} parent=71 // pred_check
        %p2318 = pneg %p392
      $region82: #{_lambda_.6} parent=71 // pred_check_branch
        %2320 = sbr.rel (%p2318) target = $region84
      $region83: #{_lambda_.6} parent=71 // pred_region
        _
      $region84: #{_lambda_.6} parent=71 // pred_fallthru
        _
    $region72: #{_lambda_.6} parent=5 // pred_fallthru
      _
    %p2321 = scmp.le.s32.totalorder 2, %s19
    // Predicated region
    $region85: #{_lambda_.6} parent=5 // pred_check
      %p2322 = pneg %p2321
    $region86: #{_lambda_.6} parent=5 // pred_check_branch
      %2324 = sbr.rel (%p2322) target = $region88
    $region87: #{_lambda_.6} parent=5 // pred_region
      %s2325 = ssub.s32 %s19, 2
      // Predicated region
      $region89: #{_lambda_.6} parent=87 // pred_check
        %p2326 = pneg %p398
      $region90: #{_lambda_.6} parent=87 // pred_check_branch
        %2328 = sbr.rel (%p2326) target = $region92
      $region91: #{_lambda_.6} parent=87 // pred_region
        %p2329 = scmp.lt.s32.totalorder %s30, 1
        %s2330 = scalar_select %p2329, %s30, 1
        %s2331 = smul.addr %s2330, 4
        %s2332 = scalar_lea.vmem %s13, %s2331
      $region92: #{_lambda_.6} parent=87 // pred_fallthru
        _
    $region88: #{_lambda_.6} parent=5 // pred_fallthru
      _
  $region6: #{_lambda_.6} parent=0 // loop_footer
    %s23 = sadd.s32 1, %s19
  $region7: #{_lambda_.6} parent=0 // loop_footer_branch
    %18 = sbr.rel target = $region3
  $region8: #{_lambda_.6} parent=0 // loop_exit
    _

</llo_original>
